<compile_context>
chip_gen: v5e
topology: v5e:2x2
jax: 0.10.0
libtpu: 0.0.40
codegen_flags: <defaults>
</compile_context>

<pallas_src>
import jax
import jax.numpy as jnp
from jax.experimental import pallas as pl
from jax.experimental.pallas import tpu as pltpu


# ----------------------------------------------------------------------------
# Helpers
# ----------------------------------------------------------------------------
def _round_up(n, m=128):
    return ((n + m - 1) // m) * m


def _pad_axis(a, axis, to):
    pad = to - a.shape[axis]
    if pad == 0:
        return a
    widths = [(0, 0)] * a.ndim
    widths[axis] = (0, pad)
    return jnp.pad(a, widths)


def _fold_bn(gamma, beta, mean, var, conv_bias=None, eps=1e-5):
    scale = gamma / jnp.sqrt(var + eps)                      # (C,)
    bias = beta - mean * scale
    if conv_bias is not None:
        bias = bias + conv_bias * scale
    return scale[None, :].astype(jnp.float32), bias[None, :].astype(jnp.float32)


def _phys_vmem_bytes():
    """Generation-aware physical VMEM size (falls back to 128 MiB = v5e/v6e)."""
    try:
        info = pltpu.get_tpu_info()
        for name in ("vmem_capacity_bytes", "vmem_bytes", "vmem_size_bytes"):
            v = getattr(info, name, None)
            if v:
                return int(v)
    except Exception:
        pass
    return 128 << 20


def _pick_row_tile(H, W, cin_p, cout_p, budget_bytes=12 << 20):
    """Largest row-tile height tH that divides H, keeps the flattened (tH*W) axis
    sublane-aligned, and fits the per-tile compute buffers in `budget_bytes`;
    prefer M = tH*W >= 256 so the 256-deep MXUs (v6e/v7x) are well fed."""
    max_cp = max(cin_p, cout_p)
    per_row = W * (3 * max_cp * 2      # dy-grouped bf16 LHS
                   + cout_p * 4        # f32 accumulator (in vregs / temps)
                   + 2 * cout_p * 2)   # double-buffered bf16 output tile
    divisors = [d for d in range(1, H + 1)
                if H % d == 0 and ((d * W) % 8 == 0 or d == H)]
    fitting = [d for d in divisors if d * per_row <= budget_bytes] or [min(divisors)]
    big_enough = [d for d in fitting if d * W >= 256]
    return max(big_enough) if big_enough else max(fitting)


# ----------------------------------------------------------------------------
# Fused (conv3x3 + BN + ReLU) x 2 + residual kernel
# ----------------------------------------------------------------------------
def _make_double_conv_kernel(H, W, tH, cin_p, cout_p, proj):
    """proj=True: residual = BN(1x1 conv(x)); proj=False: residual = x (cin_p == cout_p)."""
    R = H // tH

    def conv_band(src_ref, w_ref, k_p, row0):
        """3x3 conv for tH output rows starting at row0 (of the padded src), as 3
        dy-grouped matmuls with K = 3*k_p, accumulated in plain values (vregs)."""
        acc = None
        for dy in range(3):
            lhs = jnp.concatenate(
                [src_ref[pl.ds(row0 + dy, tH), dx:dx + W, :] for dx in range(3)],
                axis=-1).reshape(tH * W, 3 * k_p)                       # bf16 (tH*W, 3*k_p)
            part = jnp.dot(lhs, w_ref[dy * 3 * k_p:(dy + 1) * 3 * k_p, :],
                           preferred_element_type=jnp.float32)
            acc = part if acc is None else acc + part
        return acc                                                      # f32 (tH*W, cout_p)

    def kernel(*refs):
        if proj:
            (x_ref, w1_ref, s1_ref, b1_ref, w2_ref, s2_ref, b2_ref,
             wc_ref, sc_ref, bc_ref, o_ref, xp_ref, h_ref) = refs
        else:
            (x_ref, w1_ref, s1_ref, b1_ref, w2_ref, s2_ref, b2_ref,
             o_ref, xp_ref, h_ref) = refs

        r = pl.program_id(1)

        # ---- r == 0: fill the padded-input scratch and compute conv1+BN+ReLU for the
        # whole image into the resident padded scratch h_ref (bf16).
        # Correctness relies on: (a) grid iterating b outer / r inner, (b) the row axis
        # being "arbitrary" (sequential), and (c) x_ref's constant index_map along r so its
        # block stays resident. Do NOT change those without revisiting this gate.
        @pl.when(r == 0)
        def _():
            # Border-only zeroing (interiors are fully overwritten below).
            zrow_x = jnp.zeros((1, W + 2, cin_p), xp_ref.dtype)
            zcol_x = jnp.zeros((H, 1, cin_p), xp_ref.dtype)
            xp_ref[0:1, :, :] = zrow_x
            xp_ref[H + 1:H + 2, :, :] = zrow_x
            xp_ref[1:H + 1, 0:1, :] = zcol_x
            xp_ref[1:H + 1, W + 1:W + 2, :] = zcol_x
            xp_ref[1:H + 1, 1:W + 1, :] = x_ref[0]

            zrow_h = jnp.zeros((1, W + 2, cout_p), h_ref.dtype)
            zcol_h = jnp.zeros((H, 1, cout_p), h_ref.dtype)
            h_ref[0:1, :, :] = zrow_h
            h_ref[H + 1:H + 2, :, :] = zrow_h
            h_ref[1:H + 1, 0:1, :] = zcol_h
            h_ref[1:H + 1, W + 1:W + 2, :] = zcol_h

            # conv1 => BN => ReLU in row chunks (static, unrolled).
            for rr in range(R):
                row0 = rr * tH
                acc1 = conv_band(xp_ref, w1_ref, cin_p, row0)
                y1 = jnp.maximum(acc1 * s1_ref[...] + b1_ref[...], 0.0)
                h_ref[1 + row0:1 + row0 + tH, 1:W + 1, :] = (
                    y1.astype(h_ref.dtype).reshape(tH, W, cout_p))

        # ---- every r: conv2 => BN => ReLU + fused residual for this row tile.
        row0 = pl.multiple_of(r * tH, tH)
        acc2 = conv_band(h_ref, w2_ref, cout_p, row0)
        y = jnp.maximum(acc2 * s2_ref[...] + b2_ref[...], 0.0)

        # Residual comes from the resident padded input (no HBM traffic).
        x_tile = xp_ref[pl.ds(row0 + 1, tH), 1:W + 1, :].reshape(tH * W, cin_p)
        if proj:
            p = jnp.dot(x_tile, wc_ref[...], preferred_element_type=jnp.float32)
            y = y + (p * sc_ref[...] + bc_ref[...])
        else:
            y = y + x_tile.astype(jnp.float32)

        o_ref[0] = y.astype(o_ref.dtype)                                 # lane-dense store

    return kernel


def _fused_double_conv(x_nhwc, w1, s1, b1, w2, s2, b2,
                       wc=None, sc=None, bc=None, out_dtype=jnp.bfloat16):
    """x_nhwc:(B,H,W,Cin_p) bf16; w1:(9*Cin_p,Cout_p), w2:(9*Cout_p,Cout_p) bf16;
    scale/bias:(1,Cout_p) f32; wc:(Cin_p,Cout_p) bf16 or None.
    Returns (B, H*W, Cout_p) in out_dtype (padded lanes are exact zeros)."""
    B, H, W, cin_p = x_nhwc.shape
    cout_p = w1.shape[1]
    proj = wc is not None
    if not proj:
        assert cin_p == cout_p, "plain residual add requires matching padded channels"

    tH = _pick_row_tile(H, W, cin_p, cout_p)
    R = H // tH
    kernel = _make_double_conv_kernel(H, W, tH, cin_p, cout_p, proj)

    in_specs = [
        # Full image per batch element; constant block index along the row axis, so it is
        # DMA'd once per batch element and stays resident across the row tiles.
        pl.BlockSpec((1, H, W, cin_p), lambda b, r: (b, 0, 0, 0)),
        pl.BlockSpec((9 * cin_p, cout_p), lambda b, r: (0, 0)),
        pl.BlockSpec((1, cout_p), lambda b, r: (0, 0)),
        pl.BlockSpec((1, cout_p), lambda b, r: (0, 0)),
        pl.BlockSpec((9 * cout_p, cout_p), lambda b, r: (0, 0)),
        pl.BlockSpec((1, cout_p), lambda b, r: (0, 0)),
        pl.BlockSpec((1, cout_p), lambda b, r: (0, 0)),
    ]
    args = [x_nhwc, w1, s1, b1, w2, s2, b2]
    if proj:
        in_specs += [
            pl.BlockSpec((cin_p, cout_p), lambda b, r: (0, 0)),
            pl.BlockSpec((1, cout_p), lambda b, r: (0, 0)),
            pl.BlockSpec((1, cout_p), lambda b, r: (0, 0)),
        ]
        args += [wc, sc, bc]

    out_specs = pl.BlockSpec((1, tH * W, cout_p), lambda b, r: (b, r, 0))

    itm = 2  # bf16
    vmem_needed = (
        2 * H * W * cin_p * itm                                   # double-buffered input block
        + (H + 2) * (W + 2) * (cin_p + cout_p) * itm              # padded input + conv1 scratch
        + 2 * 9 * (cin_p + cout_p) * cout_p * itm                 # w1 + w2 (double-buffered)
        + 2 * tH * W * cout_p * jnp.dtype(out_dtype).itemsize     # double-buffered output tile
        + tH * W * (3 * max(cin_p, cout_p) * itm + cout_p * 4)    # LHS temps + f32 accumulator
        + (2 * cin_p * cout_p * itm if proj else 0)
    )
    phys = _phys_vmem_bytes()
    vmem_limit = int(min(max(2 * vmem_needed, 32 << 20), max(phys - (16 << 20), 32 << 20)))

    return pl.pallas_call(
        kernel,
        out_shape=jax.ShapeDtypeStruct((B, H * W, cout_p), out_dtype),
        grid_spec=pltpu.PrefetchScalarGridSpec(
            num_scalar_prefetch=0,
            grid=(B, R),
            in_specs=in_specs,
            out_specs=out_specs,
            scratch_shapes=[
                pltpu.VMEM((H + 2, W + 2, cin_p), x_nhwc.dtype),   # padded input (per batch)
                pltpu.VMEM((H + 2, W + 2, cout_p), x_nhwc.dtype),  # padded conv1 output
            ],
        ),
        compiler_params=pltpu.CompilerParams(
            # Row axis must stay "arbitrary": the r==0-gated scratch fill / conv1 pass is
            # reused by the later row tiles of the same batch element.
            dimension_semantics=("parallel", "arbitrary"),
            vmem_limit_bytes=vmem_limit,
        ),
    )(*args)


# ----------------------------------------------------------------------------
# Parameters (eval-mode BN)
# ----------------------------------------------------------------------------
def init_double_conv_params(key, in_ch, out_ch):
    ks = jax.random.split(key, 12)
    f32 = jnp.float32

    def nrm(k, shape, s=0.1):
        return (s * jax.random.normal(k, shape)).astype(f32)

    p = {}
    p["w1"] = nrm(ks[0], (3, 3, in_ch, out_ch))          # HWIO
    p["b1"] = nrm(ks[1], (out_ch,))
    p["bn1"] = (1.0 + nrm(ks[2], (out_ch,)), nrm(ks[3], (out_ch,)),
                nrm(ks[4], (out_ch,)), 1.0 + 0.1 * jnp.abs(nrm(ks[5], (out_ch,))))
    p["w2"] = nrm(ks[6], (3, 3, out_ch, out_ch))
    p["b2"] = nrm(ks[7], (out_ch,))
    p["bn2"] = (1.0 + nrm(ks[8], (out_ch,)), nrm(ks[9], (out_ch,)),
                nrm(ks[10], (out_ch,)), 1.0 + 0.1 * jnp.abs(nrm(ks[11], (out_ch,))))
    ks2 = jax.random.split(jax.random.fold_in(key, 77), 5)
    p["wc"] = nrm(ks2[0], (in_ch, out_ch))               # 1x1 conv, no bias
    p["bnc"] = (1.0 + nrm(ks2[1], (out_ch,)), nrm(ks2[2], (out_ch,)),
                nrm(ks2[3], (out_ch,)), 1.0 + 0.1 * jnp.abs(nrm(ks2[4], (out_ch,))))
    return p


# ----------------------------------------------------------------------------
# Forward wrapper (NCHW in / NCHW out, matching the PyTorch module)
# ----------------------------------------------------------------------------
@jax.jit
def double_conv_forward(x_nchw, params):
    x = jnp.transpose(x_nchw, (0, 2, 3, 1)).astype(jnp.float32)   # NCHW -> NHWC
    B, H, W, in_ch = x.shape
    out_ch = params["b1"].shape[0]
    cin_p, cout_p = _round_up(in_ch), _round_up(out_ch)

    # Fold eval-mode BN (and conv bias) into per-channel scale/bias; pad to 128 lanes.
    s1, b1 = _fold_bn(*params["bn1"], conv_bias=params["b1"])
    s2, b2 = _fold_bn(*params["bn2"], conv_bias=params["b2"])
    s1, b1 = _pad_axis(s1, 1, cout_p), _pad_axis(b1, 1, cout_p)
    s2, b2 = _pad_axis(s2, 1, cout_p), _pad_axis(b2, 1, cout_p)

    # Channel-padded bf16 weights, flattened tap-major to (9*Cin_p, Cout_p): within each dy
    # group the rows are [dx=0 | dx=1 | dx=2] x Cin_p, matching the in-kernel dy-grouped LHS.
    w1 = _pad_axis(_pad_axis(params["w1"], 2, cin_p), 3, cout_p)
    w1 = w1.reshape(9 * cin_p, cout_p).astype(jnp.bfloat16)
    w2 = _pad_axis(_pad_axis(params["w2"], 2, cout_p), 3, cout_p)
    w2 = w2.reshape(9 * cout_p, cout_p).astype(jnp.bfloat16)

    # Channel-padded bf16 activations (zero lanes stay exactly zero end-to-end).
    xp = _pad_axis(x, 3, cin_p).astype(jnp.bfloat16)              # (B, H, W, Cin_p)

    if in_ch != out_ch:
        sc, bc = _fold_bn(*params["bnc"])
        sc, bc = _pad_axis(sc, 1, cout_p), _pad_axis(bc, 1, cout_p)
        wc = _pad_axis(_pad_axis(params["wc"], 0, cin_p), 1, cout_p).astype(jnp.bfloat16)
        y = _fused_double_conv(xp, w1, s1, b1, w2, s2, b2, wc, sc, bc)
    else:
        y = _fused_double_conv(xp, w1, s1, b1, w2, s2, b2)

    y = y.reshape(B, H, W, cout_p)[:, :, :, :out_ch].astype(jnp.float32)   # drop padded lanes
    return jnp.transpose(y, (0, 3, 1, 2))                                  # NHWC -> NCHW


# ----------------------------------------------------------------------------
# Pure-JAX reference (same bf16-matmul / f32-accumulate semantics)
# ----------------------------------------------------------------------------
def _reference(x_nchw, params):
    x = jnp.transpose(x_nchw, (0, 2, 3, 1)).astype(jnp.float32)
    in_ch = x.shape[-1]
    out_ch = params["b1"].shape[0]

    def conv3(inp_bf16, w):
        return jax.lax.conv_general_dilated(
            inp_bf16, w.astype(jnp.bfloat16), window_strides=(1, 1), padding="SAME",
            dimension_numbers=("NHWC", "HWIO", "NHWC"),
            preferred_element_type=jnp.float32)

    s1, b1 = _fold_bn(*params["bn1"], conv_bias=params["b1"])
    s2, b2 = _fold_bn(*params["bn2"], conv_bias=params["b2"])
    x_bf = x.astype(jnp.bfloat16)
    h = jnp.maximum(conv3(x_bf, params["w1"]) * s1 + b1, 0.0)
    h = jnp.maximum(conv3(h.astype(jnp.bfloat16), params["w2"]) * s2 + b2, 0.0)
    if in_ch != out_ch:
        sc, bc = _fold_bn(*params["bnc"])
        r = jnp.einsum("bhwc,cd->bhwd", x_bf, params["wc"].astype(jnp.bfloat16),
                       preferred_element_type=jnp.float32) * sc + bc
    else:
        r = x_bf.astype(jnp.float32)
    return jnp.transpose(h + r, (0, 3, 1, 2))


if __name__ == "__main__":
    key = jax.random.PRNGKey(0)
    k_x, k_p, k_x2, k_p2 = jax.random.split(key, 4)

    # Case 1: in_ch != out_ch  (residual goes through the fused 1x1 conv + BN projection)
    B, IN_CH, OUT_CH, H, W = 2, 4, 8, 16, 16
    x = jax.random.normal(k_x, (B, IN_CH, H, W), dtype=jnp.float32)
    params = init_double_conv_params(k_p, IN_CH, OUT_CH)
    out = jax.block_until_ready(double_conv_forward(x, params))
    ref = _reference(x, params)
    assert out.shape == (B, OUT_CH, H, W)
    assert jnp.allclose(out, ref, atol=3e-2, rtol=3e-2), float(jnp.max(jnp.abs(out - ref)))

    # Case 2: in_ch == out_ch  (plain residual add, fused into the same kernel)
    x2 = jax.random.normal(k_x2, (B, 8, 8, 8), dtype=jnp.float32)
    params2 = init_double_conv_params(k_p2, 8, 8)
    out2 = jax.block_until_ready(double_conv_forward(x2, params2))
    ref2 = _reference(x2, params2)
    assert out2.shape == (B, 8, 8, 8)
    assert jnp.allclose(out2, ref2, atol=3e-2, rtol=3e-2), float(jnp.max(jnp.abs(out2 - ref2)))

    print("KERNEL_OK")
</pallas_src>

<mosaic_0001>
module attributes {stable_mosaic.version = 11 : i64} {
  func.func @kernel(%arg0: i32, %arg1: i32, %arg2: memref<1x16x16x128xbf16, #tpu.memory_space<vmem>>, %arg3: memref<1152x128xbf16, #tpu.memory_space<vmem>>, %arg4: memref<1x128xf32, #tpu.memory_space<vmem>>, %arg5: memref<1x128xf32, #tpu.memory_space<vmem>>, %arg6: memref<1152x128xbf16, #tpu.memory_space<vmem>>, %arg7: memref<1x128xf32, #tpu.memory_space<vmem>>, %arg8: memref<1x128xf32, #tpu.memory_space<vmem>>, %arg9: memref<128x128xbf16, #tpu.memory_space<vmem>>, %arg10: memref<1x128xf32, #tpu.memory_space<vmem>>, %arg11: memref<1x128xf32, #tpu.memory_space<vmem>>, %arg12: memref<1x256x128xbf16, #tpu.memory_space<vmem>>, %arg13: memref<18x18x128xbf16, #tpu.memory_space<vmem>>, %arg14: memref<18x18x128xbf16, #tpu.memory_space<vmem>>) attributes {dimension_semantics = [#tpu.dimension_semantics<parallel>, #tpu.dimension_semantics<arbitrary>], iteration_bounds = array<i64: 2, 1>, scalar_prefetch = 0 : i64, scratch_operands = 2 : i64, tpu.core_type = #tpu.core_type<tc>, window_params = [{transform_indices = @transform_0, window_bounds = array<i64: 1, 16, 16, 128>}, {pipeline_mode = #tpu.pipeline_mode<synchronous>, transform_indices = @transform_1, window_bounds = array<i64: 1152, 128>}, {pipeline_mode = #tpu.pipeline_mode<synchronous>, transform_indices = @transform_2, window_bounds = array<i64: 1, 128>}, {pipeline_mode = #tpu.pipeline_mode<synchronous>, transform_indices = @transform_3, window_bounds = array<i64: 1, 128>}, {pipeline_mode = #tpu.pipeline_mode<synchronous>, transform_indices = @transform_4, window_bounds = array<i64: 1152, 128>}, {pipeline_mode = #tpu.pipeline_mode<synchronous>, transform_indices = @transform_5, window_bounds = array<i64: 1, 128>}, {pipeline_mode = #tpu.pipeline_mode<synchronous>, transform_indices = @transform_6, window_bounds = array<i64: 1, 128>}, {pipeline_mode = #tpu.pipeline_mode<synchronous>, transform_indices = @transform_7, window_bounds = array<i64: 128, 128>}, {pipeline_mode = #tpu.pipeline_mode<synchronous>, transform_indices = @transform_8, window_bounds = array<i64: 1, 128>}, {pipeline_mode = #tpu.pipeline_mode<synchronous>, transform_indices = @transform_9, window_bounds = array<i64: 1, 128>}, {transform_indices = @transform_10, window_bounds = array<i64: 1, 256, 128>}]} {
    %c0_i32 = arith.constant 0 : i32
    %0 = arith.cmpi eq, %arg1, %c0_i32 : i32
    %1 = arith.extui %0 : i1 to i32
    %c0_i32_0 = arith.constant 0 : i32
    %2 = arith.cmpi ne, %1, %c0_i32_0 : i32
    scf.if %2 {
      %cst_47 = arith.constant 0.000000e+00 : bf16
      %71 = vector.broadcast %cst_47 : bf16 to vector<1x18x128xbf16>
      %cst_48 = arith.constant 0.000000e+00 : bf16
      %72 = vector.broadcast %cst_48 : bf16 to vector<16x1x128xbf16>
      %c0_49 = arith.constant 0 : index
      %c0_50 = arith.constant 0 : index
      %c0_51 = arith.constant 0 : index
      %73 = vector.load %arg13[%c0_49, %c0_50, %c0_51] : memref<18x18x128xbf16, #tpu.memory_space<vmem>>, vector<1x18x128xbf16>
      tpu.vector_store %arg13[%c0_49, %c0_50, %c0_51], %71 {strides = array<i32>} : memref<18x18x128xbf16, #tpu.memory_space<vmem>>, vector<1x18x128xbf16>,
      %c17 = arith.constant 17 : index
      %c0_52 = arith.constant 0 : index
      %c0_53 = arith.constant 0 : index
      %74 = vector.load %arg13[%c17, %c0_52, %c0_53] : memref<18x18x128xbf16, #tpu.memory_space<vmem>>, vector<1x18x128xbf16>
      tpu.vector_store %arg13[%c17, %c0_52, %c0_53], %71 {strides = array<i32>} : memref<18x18x128xbf16, #tpu.memory_space<vmem>>, vector<1x18x128xbf16>,
      %c1_54 = arith.constant 1 : index
      %c0_55 = arith.constant 0 : index
      %c0_56 = arith.constant 0 : index
      %75 = vector.load %arg13[%c1_54, %c0_55, %c0_56] : memref<18x18x128xbf16, #tpu.memory_space<vmem>>, vector<16x1x128xbf16>
      tpu.vector_store %arg13[%c1_54, %c0_55, %c0_56], %72 {strides = array<i32>} : memref<18x18x128xbf16, #tpu.memory_space<vmem>>, vector<16x1x128xbf16>,
      %c1_57 = arith.constant 1 : index
      %c17_58 = arith.constant 17 : index
      %c0_59 = arith.constant 0 : index
      %76 = vector.load %arg13[%c1_57, %c17_58, %c0_59] : memref<18x18x128xbf16, #tpu.memory_space<vmem>>, vector<16x1x128xbf16>
      tpu.vector_store %arg13[%c1_57, %c17_58, %c0_59], %72 {strides = array<i32>} : memref<18x18x128xbf16, #tpu.memory_space<vmem>>, vector<16x1x128xbf16>,
      %c0_60 = arith.constant 0 : index
      %c0_61 = arith.constant 0 : index
      %c0_62 = arith.constant 0 : index
      %c0_63 = arith.constant 0 : index
      %77 = vector.load %arg2[%c0_60, %c0_61, %c0_62, %c0_63] : memref<1x16x16x128xbf16, #tpu.memory_space<vmem>>, vector<1x16x16x128xbf16>
      %78 = vector.shape_cast %77 : vector<1x16x16x128xbf16> to vector<16x16x128xbf16>
      %c1_64 = arith.constant 1 : index
      %c1_65 = arith.constant 1 : index
      %c0_66 = arith.constant 0 : index
      %79 = vector.load %arg13[%c1_64, %c1_65, %c0_66] : memref<18x18x128xbf16, #tpu.memory_space<vmem>>, vector<16x16x128xbf16>
      tpu.vector_store %arg13[%c1_64, %c1_65, %c0_66], %78 {strides = array<i32>} : memref<18x18x128xbf16, #tpu.memory_space<vmem>>, vector<16x16x128xbf16>,
      %cst_67 = arith.constant 0.000000e+00 : bf16
      %80 = vector.broadcast %cst_67 : bf16 to vector<1x18x128xbf16>
      %cst_68 = arith.constant 0.000000e+00 : bf16
      %81 = vector.broadcast %cst_68 : bf16 to vector<16x1x128xbf16>
      %c0_69 = arith.constant 0 : index
      %c0_70 = arith.constant 0 : index
      %c0_71 = arith.constant 0 : index
      %82 = vector.load %arg14[%c0_69, %c0_70, %c0_71] : memref<18x18x128xbf16, #tpu.memory_space<vmem>>, vector<1x18x128xbf16>
      tpu.vector_store %arg14[%c0_69, %c0_70, %c0_71], %80 {strides = array<i32>} : memref<18x18x128xbf16, #tpu.memory_space<vmem>>, vector<1x18x128xbf16>,
      %c17_72 = arith.constant 17 : index
      %c0_73 = arith.constant 0 : index
      %c0_74 = arith.constant 0 : index
      %83 = vector.load %arg14[%c17_72, %c0_73, %c0_74] : memref<18x18x128xbf16, #tpu.memory_space<vmem>>, vector<1x18x128xbf16>
      tpu.vector_store %arg14[%c17_72, %c0_73, %c0_74], %80 {strides = array<i32>} : memref<18x18x128xbf16, #tpu.memory_space<vmem>>, vector<1x18x128xbf16>,
      %c1_75 = arith.constant 1 : index
      %c0_76 = arith.constant 0 : index
      %c0_77 = arith.constant 0 : index
      %84 = vector.load %arg14[%c1_75, %c0_76, %c0_77] : memref<18x18x128xbf16, #tpu.memory_space<vmem>>, vector<16x1x128xbf16>
      tpu.vector_store %arg14[%c1_75, %c0_76, %c0_77], %81 {strides = array<i32>} : memref<18x18x128xbf16, #tpu.memory_space<vmem>>, vector<16x1x128xbf16>,
      %c1_78 = arith.constant 1 : index
      %c17_79 = arith.constant 17 : index
      %c0_80 = arith.constant 0 : index
      %85 = vector.load %arg14[%c1_78, %c17_79, %c0_80] : memref<18x18x128xbf16, #tpu.memory_space<vmem>>, vector<16x1x128xbf16>
      tpu.vector_store %arg14[%c1_78, %c17_79, %c0_80], %81 {strides = array<i32>} : memref<18x18x128xbf16, #tpu.memory_space<vmem>>, vector<16x1x128xbf16>,
      %c0_81 = arith.constant 0 : index
      %c0_82 = arith.constant 0 : index
      %c0_83 = arith.constant 0 : index
      %86 = vector.load %arg13[%c0_81, %c0_82, %c0_83] : memref<18x18x128xbf16, #tpu.memory_space<vmem>>, vector<16x16x128xbf16>
      %c0_84 = arith.constant 0 : index
      %c1_85 = arith.constant 1 : index
      %c0_86 = arith.constant 0 : index
      %87 = vector.load %arg13[%c0_84, %c1_85, %c0_86] : memref<18x18x128xbf16, #tpu.memory_space<vmem>>, vector<16x16x128xbf16>
      %c0_87 = arith.constant 0 : index
      %c2_88 = arith.constant 2 : index
      %c0_89 = arith.constant 0 : index
      %88 = vector.load %arg13[%c0_87, %c2_88, %c0_89] : memref<18x18x128xbf16, #tpu.memory_space<vmem>>, vector<16x16x128xbf16>
      %89 = tpu.concatenate %86, %87, %88 in 2 : vector<16x16x128xbf16>, vector<16x16x128xbf16>, vector<16x16x128xbf16> -> vector<16x16x384xbf16>
      %90 = vector.shape_cast %89 : vector<16x16x384xbf16> to vector<256x384xbf16>
      %c0_90 = arith.constant 0 : index
      %c0_91 = arith.constant 0 : index
      %91 = vector.load %arg3[%c0_90, %c0_91] : memref<1152x128xbf16, #tpu.memory_space<vmem>>, vector<384x128xbf16>
      %cst_92 = arith.constant dense<0.000000e+00> : vector<256x128xf32>
      %92 = tpu.matmul %90, %91, %cst_92 {dimension_numbers = #tpu.dot_dimension_numbers<[1], [0], [0], [1], [0, 0, 1, 1], [], []>} : vector<256x384xbf16>, vector<384x128xbf16>, vector<256x128xf32> -> vector<256x128xf32>
      %c1_93 = arith.constant 1 : index
      %c0_94 = arith.constant 0 : index
      %c0_95 = arith.constant 0 : index
      %93 = vector.load %arg13[%c1_93, %c0_94, %c0_95] : memref<18x18x128xbf16, #tpu.memory_space<vmem>>, vector<16x16x128xbf16>
      %c1_96 = arith.constant 1 : index
      %c1_97 = arith.constant 1 : index
      %c0_98 = arith.constant 0 : index
      %94 = vector.load %arg13[%c1_96, %c1_97, %c0_98] : memref<18x18x128xbf16, #tpu.memory_space<vmem>>, vector<16x16x128xbf16>
      %c1_99 = arith.constant 1 : index
      %c2_100 = arith.constant 2 : index
      %c0_101 = arith.constant 0 : index
      %95 = vector.load %arg13[%c1_99, %c2_100, %c0_101] : memref<18x18x128xbf16, #tpu.memory_space<vmem>>, vector<16x16x128xbf16>
      %96 = tpu.concatenate %93, %94, %95 in 2 : vector<16x16x128xbf16>, vector<16x16x128xbf16>, vector<16x16x128xbf16> -> vector<16x16x384xbf16>
      %97 = vector.shape_cast %96 : vector<16x16x384xbf16> to vector<256x384xbf16>
      %c384_102 = arith.constant 384 : index
      %c0_103 = arith.constant 0 : index
      %98 = vector.load %arg3[%c384_102, %c0_103] : memref<1152x128xbf16, #tpu.memory_space<vmem>>, vector<384x128xbf16>
      %cst_104 = arith.constant dense<0.000000e+00> : vector<256x128xf32>
      %99 = tpu.matmul %97, %98, %cst_104 {dimension_numbers = #tpu.dot_dimension_numbers<[1], [0], [0], [1], [0, 0, 1, 1], [], []>} : vector<256x384xbf16>, vector<384x128xbf16>, vector<256x128xf32> -> vector<256x128xf32>
      %100 = arith.addf %92, %99 : vector<256x128xf32>
      %c2_105 = arith.constant 2 : index
      %c0_106 = arith.constant 0 : index
      %c0_107 = arith.constant 0 : index
      %101 = vector.load %arg13[%c2_105, %c0_106, %c0_107] : memref<18x18x128xbf16, #tpu.memory_space<vmem>>, vector<16x16x128xbf16>
      %c2_108 = arith.constant 2 : index
      %c1_109 = arith.constant 1 : index
      %c0_110 = arith.constant 0 : index
      %102 = vector.load %arg13[%c2_108, %c1_109, %c0_110] : memref<18x18x128xbf16, #tpu.memory_space<vmem>>, vector<16x16x128xbf16>
      %c2_111 = arith.constant 2 : index
      %c2_112 = arith.constant 2 : index
      %c0_113 = arith.constant 0 : index
      %103 = vector.load %arg13[%c2_111, %c2_112, %c0_113] : memref<18x18x128xbf16, #tpu.memory_space<vmem>>, vector<16x16x128xbf16>
      %104 = tpu.concatenate %101, %102, %103 in 2 : vector<16x16x128xbf16>, vector<16x16x128xbf16>, vector<16x16x128xbf16> -> vector<16x16x384xbf16>
      %105 = vector.shape_cast %104 : vector<16x16x384xbf16> to vector<256x384xbf16>
      %c768_114 = arith.constant 768 : index
      %c0_115 = arith.constant 0 : index
      %106 = vector.load %arg3[%c768_114, %c0_115] : memref<1152x128xbf16, #tpu.memory_space<vmem>>, vector<384x128xbf16>
      %cst_116 = arith.constant dense<0.000000e+00> : vector<256x128xf32>
      %107 = tpu.matmul %105, %106, %cst_116 {dimension_numbers = #tpu.dot_dimension_numbers<[1], [0], [0], [1], [0, 0, 1, 1], [], []>} : vector<256x384xbf16>, vector<384x128xbf16>, vector<256x128xf32> -> vector<256x128xf32>
      %108 = arith.addf %100, %107 : vector<256x128xf32>
      %c0_117 = arith.constant 0 : index
      %c0_118 = arith.constant 0 : index
      %109 = vector.load %arg4[%c0_117, %c0_118] : memref<1x128xf32, #tpu.memory_space<vmem>>, vector<1x128xf32>
      %110 = vector.broadcast %109 : vector<1x128xf32> to vector<256x128xf32>
      %111 = arith.mulf %108, %110 : vector<256x128xf32>
      %c0_119 = arith.constant 0 : index
      %c0_120 = arith.constant 0 : index
      %112 = vector.load %arg5[%c0_119, %c0_120] : memref<1x128xf32, #tpu.memory_space<vmem>>, vector<1x128xf32>
      %113 = vector.broadcast %112 : vector<1x128xf32> to vector<256x128xf32>
      %114 = arith.addf %111, %113 : vector<256x128xf32>
      %cst_121 = arith.constant 0.000000e+00 : f32
      %115 = vector.broadcast %cst_121 : f32 to vector<256x128xf32>
      %116 = arith.maximumf %114, %115 : vector<256x128xf32>
      %117 = arith.truncf %116 : vector<256x128xf32> to vector<256x128xbf16>
      %118 = vector.shape_cast %117 : vector<256x128xbf16> to vector<16x16x128xbf16>
      %c1_122 = arith.constant 1 : index
      %c1_123 = arith.constant 1 : index
      %c0_124 = arith.constant 0 : index
      %119 = vector.load %arg14[%c1_122, %c1_123, %c0_124] : memref<18x18x128xbf16, #tpu.memory_space<vmem>>, vector<16x16x128xbf16>
      tpu.vector_store %arg14[%c1_122, %c1_123, %c0_124], %118 {strides = array<i32>} : memref<18x18x128xbf16, #tpu.memory_space<vmem>>, vector<16x16x128xbf16>,
    } else {
    }
    %c16_i32 = arith.constant 16 : i32
    %3 = arith.muli %arg1, %c16_i32 : i32
    %4 = tpu.assume_multiple %3, 16 : i32
    %c0_i32_1 = arith.constant 0 : i32
    %5 = arith.addi %4, %c0_i32_1 : i32
    %6 = arith.index_cast %5 : i32 to index
    %c0 = arith.constant 0 : index
    %c0_2 = arith.constant 0 : index
    %7 = vector.load %arg14[%6, %c0, %c0_2] : memref<18x18x128xbf16, #tpu.memory_space<vmem>>, vector<16x16x128xbf16>
    %c0_i32_3 = arith.constant 0 : i32
    %8 = arith.addi %4, %c0_i32_3 : i32
    %9 = arith.index_cast %8 : i32 to index
    %c1 = arith.constant 1 : index
    %c0_4 = arith.constant 0 : index
    %10 = vector.load %arg14[%9, %c1, %c0_4] : memref<18x18x128xbf16, #tpu.memory_space<vmem>>, vector<16x16x128xbf16>
    %c0_i32_5 = arith.constant 0 : i32
    %11 = arith.addi %4, %c0_i32_5 : i32
    %12 = arith.index_cast %11 : i32 to index
    %c2 = arith.constant 2 : index
    %c0_6 = arith.constant 0 : index
    %13 = vector.load %arg14[%12, %c2, %c0_6] : memref<18x18x128xbf16, #tpu.memory_space<vmem>>, vector<16x16x128xbf16>
    %14 = tpu.concatenate %7, %10, %13 in 2 : vector<16x16x128xbf16>, vector<16x16x128xbf16>, vector<16x16x128xbf16> -> vector<16x16x384xbf16>
    %15 = vector.shape_cast %14 : vector<16x16x384xbf16> to vector<256x384xbf16>
    %c0_7 = arith.constant 0 : index
    %c0_8 = arith.constant 0 : index
    %16 = vector.load %arg6[%c0_7, %c0_8] : memref<1152x128xbf16, #tpu.memory_space<vmem>>, vector<384x128xbf16>
    %cst = arith.constant dense<0.000000e+00> : vector<256x128xf32>
    %17 = tpu.matmul %15, %16, %cst {dimension_numbers = #tpu.dot_dimension_numbers<[1], [0], [0], [1], [0, 0, 1, 1], [], []>} : vector<256x384xbf16>, vector<384x128xbf16>, vector<256x128xf32> -> vector<256x128xf32>
    %c1_i32 = arith.constant 1 : i32
    %18 = arith.addi %4, %c1_i32 : i32
    %19 = arith.index_cast %18 : i32 to index
    %c0_9 = arith.constant 0 : index
    %c0_10 = arith.constant 0 : index
    %20 = vector.load %arg14[%19, %c0_9, %c0_10] : memref<18x18x128xbf16, #tpu.memory_space<vmem>>, vector<16x16x128xbf16>
    %c1_i32_11 = arith.constant 1 : i32
    %21 = arith.addi %4, %c1_i32_11 : i32
    %22 = arith.index_cast %21 : i32 to index
    %c1_12 = arith.constant 1 : index
    %c0_13 = arith.constant 0 : index
    %23 = vector.load %arg14[%22, %c1_12, %c0_13] : memref<18x18x128xbf16, #tpu.memory_space<vmem>>, vector<16x16x128xbf16>
    %c1_i32_14 = arith.constant 1 : i32
    %24 = arith.addi %4, %c1_i32_14 : i32
    %25 = arith.index_cast %24 : i32 to index
    %c2_15 = arith.constant 2 : index
    %c0_16 = arith.constant 0 : index
    %26 = vector.load %arg14[%25, %c2_15, %c0_16] : memref<18x18x128xbf16, #tpu.memory_space<vmem>>, vector<16x16x128xbf16>
    %27 = tpu.concatenate %20, %23, %26 in 2 : vector<16x16x128xbf16>, vector<16x16x128xbf16>, vector<16x16x128xbf16> -> vector<16x16x384xbf16>
    %28 = vector.shape_cast %27 : vector<16x16x384xbf16> to vector<256x384xbf16>
    %c384 = arith.constant 384 : index
    %c0_17 = arith.constant 0 : index
    %29 = vector.load %arg6[%c384, %c0_17] : memref<1152x128xbf16, #tpu.memory_space<vmem>>, vector<384x128xbf16>
    %cst_18 = arith.constant dense<0.000000e+00> : vector<256x128xf32>
    %30 = tpu.matmul %28, %29, %cst_18 {dimension_numbers = #tpu.dot_dimension_numbers<[1], [0], [0], [1], [0, 0, 1, 1], [], []>} : vector<256x384xbf16>, vector<384x128xbf16>, vector<256x128xf32> -> vector<256x128xf32>
    %31 = arith.addf %17, %30 : vector<256x128xf32>
    %c2_i32 = arith.constant 2 : i32
    %32 = arith.addi %4, %c2_i32 : i32
    %33 = arith.index_cast %32 : i32 to index
    %c0_19 = arith.constant 0 : index
    %c0_20 = arith.constant 0 : index
    %34 = vector.load %arg14[%33, %c0_19, %c0_20] : memref<18x18x128xbf16, #tpu.memory_space<vmem>>, vector<16x16x128xbf16>
    %c2_i32_21 = arith.constant 2 : i32
    %35 = arith.addi %4, %c2_i32_21 : i32
    %36 = arith.index_cast %35 : i32 to index
    %c1_22 = arith.constant 1 : index
    %c0_23 = arith.constant 0 : index
    %37 = vector.load %arg14[%36, %c1_22, %c0_23] : memref<18x18x128xbf16, #tpu.memory_space<vmem>>, vector<16x16x128xbf16>
    %c2_i32_24 = arith.constant 2 : i32
    %38 = arith.addi %4, %c2_i32_24 : i32
    %39 = arith.index_cast %38 : i32 to index
    %c2_25 = arith.constant 2 : index
    %c0_26 = arith.constant 0 : index
    %40 = vector.load %arg14[%39, %c2_25, %c0_26] : memref<18x18x128xbf16, #tpu.memory_space<vmem>>, vector<16x16x128xbf16>
    %41 = tpu.concatenate %34, %37, %40 in 2 : vector<16x16x128xbf16>, vector<16x16x128xbf16>, vector<16x16x128xbf16> -> vector<16x16x384xbf16>
    %42 = vector.shape_cast %41 : vector<16x16x384xbf16> to vector<256x384xbf16>
    %c768 = arith.constant 768 : index
    %c0_27 = arith.constant 0 : index
    %43 = vector.load %arg6[%c768, %c0_27] : memref<1152x128xbf16, #tpu.memory_space<vmem>>, vector<384x128xbf16>
    %cst_28 = arith.constant dense<0.000000e+00> : vector<256x128xf32>
    %44 = tpu.matmul %42, %43, %cst_28 {dimension_numbers = #tpu.dot_dimension_numbers<[1], [0], [0], [1], [0, 0, 1, 1], [], []>} : vector<256x384xbf16>, vector<384x128xbf16>, vector<256x128xf32> -> vector<256x128xf32>
    %45 = arith.addf %31, %44 : vector<256x128xf32>
    %c0_29 = arith.constant 0 : index
    %c0_30 = arith.constant 0 : index
    %46 = vector.load %arg7[%c0_29, %c0_30] : memref<1x128xf32, #tpu.memory_space<vmem>>, vector<1x128xf32>
    %47 = vector.broadcast %46 : vector<1x128xf32> to vector<256x128xf32>
    %48 = arith.mulf %45, %47 : vector<256x128xf32>
    %c0_31 = arith.constant 0 : index
    %c0_32 = arith.constant 0 : index
    %49 = vector.load %arg8[%c0_31, %c0_32] : memref<1x128xf32, #tpu.memory_space<vmem>>, vector<1x128xf32>
    %50 = vector.broadcast %49 : vector<1x128xf32> to vector<256x128xf32>
    %51 = arith.addf %48, %50 : vector<256x128xf32>
    %cst_33 = arith.constant 0.000000e+00 : f32
    %52 = vector.broadcast %cst_33 : f32 to vector<256x128xf32>
    %53 = arith.maximumf %51, %52 : vector<256x128xf32>
    %c1_i32_34 = arith.constant 1 : i32
    %54 = arith.addi %4, %c1_i32_34 : i32
    %55 = arith.index_cast %54 : i32 to index
    %c1_35 = arith.constant 1 : index
    %c0_36 = arith.constant 0 : index
    %56 = vector.load %arg13[%55, %c1_35, %c0_36] : memref<18x18x128xbf16, #tpu.memory_space<vmem>>, vector<16x16x128xbf16>
    %57 = vector.shape_cast %56 : vector<16x16x128xbf16> to vector<256x128xbf16>
    %c0_37 = arith.constant 0 : index
    %c0_38 = arith.constant 0 : index
    %58 = vector.load %arg9[%c0_37, %c0_38] : memref<128x128xbf16, #tpu.memory_space<vmem>>, vector<128x128xbf16>
    %cst_39 = arith.constant dense<0.000000e+00> : vector<256x128xf32>
    %59 = tpu.matmul %57, %58, %cst_39 {dimension_numbers = #tpu.dot_dimension_numbers<[1], [0], [0], [1], [0, 0, 1, 1], [], []>} : vector<256x128xbf16>, vector<128x128xbf16>, vector<256x128xf32> -> vector<256x128xf32>
    %c0_40 = arith.constant 0 : index
    %c0_41 = arith.constant 0 : index
    %60 = vector.load %arg10[%c0_40, %c0_41] : memref<1x128xf32, #tpu.memory_space<vmem>>, vector<1x128xf32>
    %61 = vector.broadcast %60 : vector<1x128xf32> to vector<256x128xf32>
    %62 = arith.mulf %59, %61 : vector<256x128xf32>
    %c0_42 = arith.constant 0 : index
    %c0_43 = arith.constant 0 : index
    %63 = vector.load %arg11[%c0_42, %c0_43] : memref<1x128xf32, #tpu.memory_space<vmem>>, vector<1x128xf32>
    %64 = vector.broadcast %63 : vector<1x128xf32> to vector<256x128xf32>
    %65 = arith.addf %62, %64 : vector<256x128xf32>
    %66 = arith.addf %53, %65 : vector<256x128xf32>
    %67 = arith.truncf %66 : vector<256x128xf32> to vector<256x128xbf16>
    %c0_44 = arith.constant 0 : index
    %c0_45 = arith.constant 0 : index
    %c0_46 = arith.constant 0 : index
    %68 = vector.load %arg12[%c0_44, %c0_45, %c0_46] : memref<1x256x128xbf16, #tpu.memory_space<vmem>>, vector<1x256x128xbf16>
    %69 = vector.shape_cast %68 : vector<1x256x128xbf16> to vector<256x128xbf16>
    %70 = vector.shape_cast %67 : vector<256x128xbf16> to vector<1x256x128xbf16>
    tpu.vector_store %arg12[%c0_44, %c0_45, %c0_46], %70 {strides = array<i32>} : memref<1x256x128xbf16, #tpu.memory_space<vmem>>, vector<1x256x128xbf16>,
    return
  }
  func.func @transform_0(%arg0: i32, %arg1: i32) -> (i32, i32, i32, i32) {
    %c0_i32 = arith.constant 0 : i32
    %c0_i32_0 = arith.constant 0 : i32
    %c0_i32_1 = arith.constant 0 : i32
    %c0_i32_2 = arith.constant 0 : i32
    return %arg0, %c0_i32, %c0_i32_0, %c0_i32_1 : i32, i32, i32, i32
  }
  func.func @transform_1(%arg0: i32, %arg1: i32) -> (i32, i32) {
    %c0_i32 = arith.constant 0 : i32
    %c0_i32_0 = arith.constant 0 : i32
    %c0_i32_1 = arith.constant 0 : i32
    return %c0_i32, %c0_i32_0 : i32, i32
  }
  func.func @transform_2(%arg0: i32, %arg1: i32) -> (i32, i32) {
    %c0_i32 = arith.constant 0 : i32
    %c0_i32_0 = arith.constant 0 : i32
    %c0_i32_1 = arith.constant 0 : i32
    return %c0_i32, %c0_i32_0 : i32, i32
  }
  func.func @transform_3(%arg0: i32, %arg1: i32) -> (i32, i32) {
    %c0_i32 = arith.constant 0 : i32
    %c0_i32_0 = arith.constant 0 : i32
    %c0_i32_1 = arith.constant 0 : i32
    return %c0_i32, %c0_i32_0 : i32, i32
  }
  func.func @transform_4(%arg0: i32, %arg1: i32) -> (i32, i32) {
    %c0_i32 = arith.constant 0 : i32
    %c0_i32_0 = arith.constant 0 : i32
    %c0_i32_1 = arith.constant 0 : i32
    return %c0_i32, %c0_i32_0 : i32, i32
  }
  func.func @transform_5(%arg0: i32, %arg1: i32) -> (i32, i32) {
    %c0_i32 = arith.constant 0 : i32
    %c0_i32_0 = arith.constant 0 : i32
    %c0_i32_1 = arith.constant 0 : i32
    return %c0_i32, %c0_i32_0 : i32, i32
  }
  func.func @transform_6(%arg0: i32, %arg1: i32) -> (i32, i32) {
    %c0_i32 = arith.constant 0 : i32
    %c0_i32_0 = arith.constant 0 : i32
    %c0_i32_1 = arith.constant 0 : i32
    return %c0_i32, %c0_i32_0 : i32, i32
  }
  func.func @transform_7(%arg0: i32, %arg1: i32) -> (i32, i32) {
    %c0_i32 = arith.constant 0 : i32
    %c0_i32_0 = arith.constant 0 : i32
    %c0_i32_1 = arith.constant 0 : i32
    return %c0_i32, %c0_i32_0 : i32, i32
  }
  func.func @transform_8(%arg0: i32, %arg1: i32) -> (i32, i32) {
    %c0_i32 = arith.constant 0 : i32
    %c0_i32_0 = arith.constant 0 : i32
    %c0_i32_1 = arith.constant 0 : i32
    return %c0_i32, %c0_i32_0 : i32, i32
  }
  func.func @transform_9(%arg0: i32, %arg1: i32) -> (i32, i32) {
    %c0_i32 = arith.constant 0 : i32
    %c0_i32_0 = arith.constant 0 : i32
    %c0_i32_1 = arith.constant 0 : i32
    return %c0_i32, %c0_i32_0 : i32, i32
  }
  func.func @transform_10(%arg0: i32, %arg1: i32) -> (i32, i32, i32) {
    %c0_i32 = arith.constant 0 : i32
    %c0_i32_0 = arith.constant 0 : i32
    return %arg0, %arg1, %c0_i32 : i32, i32, i32
  }
}

</mosaic_0001>

<llo_original>
// kernel: double_conv_forward.1
$region0: #{double_conv_forward.1}
  #allocation0 [shape = 'u32[]', space=smem, size = 0x4, offset = 0x4, fixed_abs, tag = 'smem constant byte address 0x4 - core index']
  #allocation1 [shape = 'u32[72,128]{1,0:T(1,128)}', space=vmem, size = 0x9000, scoped, tag = 'internal scratch']
  #allocation2 [shape = 'bf16[18,18,128]{2,1,0:T(8,128)(2,1)}', space=vmem, size = 0x1b000, scoped, tag = 'scratch operand']
  #allocation3 [shape = 'bf16[18,18,128]{2,1,0:T(8,128)(2,1)}', space=vmem, size = 0x1b000, scoped, tag = 'scratch operand']
  %s0 = inlined_call_operand.vmem [shape: bf16[2,16,16,128], index: 0, kind: input, shape index: {}]
  %s1 = inlined_call_operand.vmem [shape: bf16[1152,128], index: 1, kind: input, shape index: {}]
  %s2 = inlined_call_operand.vmem [shape: f32[1,128], index: 2, kind: input, shape index: {}]
  %s3 = inlined_call_operand.vmem [shape: f32[1,128], index: 3, kind: input, shape index: {}]
  %s4 = inlined_call_operand.vmem [shape: bf16[1152,128], index: 4, kind: input, shape index: {}]
  %s5 = inlined_call_operand.vmem [shape: f32[1,128], index: 5, kind: input, shape index: {}]
  %s6 = inlined_call_operand.vmem [shape: f32[1,128], index: 6, kind: input, shape index: {}]
  %s7 = inlined_call_operand.vmem [shape: bf16[128,128], index: 7, kind: input, shape index: {}]
  %s8 = inlined_call_operand.vmem [shape: f32[1,128], index: 8, kind: input, shape index: {}]
  %s9 = inlined_call_operand.vmem [shape: f32[1,128], index: 9, kind: input, shape index: {}]
  %s10 = inlined_call_operand.vmem [shape: bf16[2,256,128], index: 10, kind: output, shape index: {}]
  %s11 = sld [smem:[#allocation0]]
  $region77: #{double_conv_forward.1} parent=0
    _
  %s13 = ssub.s32 1, %s11
  %s14 = scalar_select 0, %s13, %s11
  loop: start=0, step=1, limit=4
  $region2: #{double_conv_forward.1} parent=0 // loop_pre_header
    _
  $region3: #{double_conv_forward.1} parent=0 // loop_header
    %s16 = sphi 0, %s20
    %p17 = scmp.ge.s32.totalorder %s16, 4
    %s23 = sphi 0, %s35
    %s24 = sphi 0, %s31
    %s25 = sphi 0, %s23
    %s26 = sphi 0, %s24
    %s27 = sphi 0, %s25
    %s28 = sphi 0, %s26
    %s38 = sphi 0, %s40
    %s41 = sphi 0, %s38
    %s42 = sphi 0, %s41
    %s58 = sphi 0, %s42
    %s62 = sphi 0, %s62
    %s64 = sphi 0, %s62
    %s65 = sphi 0, %s64
    %s79 = sphi 0, %s65
    %s83 = sphi 0, %s83
    %s85 = sphi 0, %s83
    %s86 = sphi 0, %s85
    %s100 = sphi 0, %s86
    %s104 = sphi 0, %s104
    %s106 = sphi 0, %s104
    %s107 = sphi 0, %s106
    %s121 = sphi 0, %s107
    %s125 = sphi 0, %s125
    %s127 = sphi 0, %s125
    %s128 = sphi 0, %s127
    %s142 = sphi 0, %s128
    %s146 = sphi 0, %s146
    %s148 = sphi 0, %s146
    %s149 = sphi 0, %s148
    %s163 = sphi 0, %s149
    %s167 = sphi 0, %s167
    %s169 = sphi 0, %s167
    %s170 = sphi 0, %s169
    %s184 = sphi 0, %s170
    %s188 = sphi 0, %s188
    %s190 = sphi 0, %s188
    %s191 = sphi 0, %s190
    %s205 = sphi 0, %s191
    %s209 = sphi 0, %s209
    %s211 = sphi 0, %s209
    %s212 = sphi 0, %s211
    %s226 = sphi 0, %s212
    %s230 = sphi 0, %s230
    %s232 = sphi 0, %s230
    %s233 = sphi 0, %s232
    %s247 = sphi 0, %s233
    %s255 = sphi 0, %s257
    %s258 = sphi 0, %s255
    %s259 = sphi 0, %s258
    %s275 = sphi 0, %s259
  $region4: #{double_conv_forward.1} parent=0 // loop_header_branch
    %19 = sbr.rel (%p17) target = $region8
  $region5: #{double_conv_forward.1} parent=0 // loop_body
    %s21 = ssub.s32 %s16, 1
    %s22 = ssub.s32 %s16, 2
    %s29 = sadd.s32 1, %s24
    %p30 = scmp.ge.s32.totalorder %s29, 1
    %s31 = scalar_select %p30, 0, %s29
    %s32 = sadd.s32 1, %s23
    %s33 = scalar_select %p30, %s32, %s23
    %p34 = scmp.ge.s32.totalorder %s33, 2
    %s35 = scalar_select %p34, 0, %s33
    %s36 = ssub.s32 %s23, %s35
    %p37 = scmp.eq.s32.totalorder %s36, 0
    %s39 = sadd.s32 %s38, 1
    %s40 = scalar_select %p37, %s38, %s39
    %p43 = pneg %p37
    %p44 = scmp.eq.s32.totalorder %s16, 1
    %p45 = por %p43, %p44
    %p46 = scmp.ne.s32.totalorder %s38, %s41
    %p47 = scmp.eq.s32.totalorder %s16, 0
    %p48 = por %p46, %p47
    %p49 = scmp.ne.s32.totalorder %s38, %s41
    %p50 = scmp.eq.s32.totalorder %s21, 1
    %p51 = por %p49, %p50
    %p52 = scmp.ne.s32.totalorder %s41, %s42
    %p53 = scmp.eq.s32.totalorder %s21, 0
    %p54 = por %p52, %p53
    %p55 = scmp.ne.s32.totalorder %s41, %s42
    %p56 = scmp.eq.s32.totalorder %s22, 1
    %p57 = por %p55, %p56
    %p59 = scmp.ne.s32.totalorder %s42, %s58
    %p60 = scmp.eq.s32.totalorder %s22, 0
    %p61 = por %p59, %p60
    %s63 = sadd.s32 %s62, 1
    %p66 = scmp.eq.s32.totalorder %s16, 1
    %p67 = scmp.ne.s32.totalorder %s62, %s64
    %p68 = scmp.eq.s32.totalorder %s16, 0
    %p69 = por %p67, %p68
    %p70 = scmp.ne.s32.totalorder %s62, %s64
    %p71 = scmp.eq.s32.totalorder %s21, 1
    %p72 = por %p70, %p71
    %p73 = scmp.ne.s32.totalorder %s64, %s65
    %p74 = scmp.eq.s32.totalorder %s21, 0
    %p75 = por %p73, %p74
    %p76 = scmp.ne.s32.totalorder %s64, %s65
    %p77 = scmp.eq.s32.totalorder %s22, 1
    %p78 = por %p76, %p77
    %p80 = scmp.ne.s32.totalorder %s65, %s79
    %p81 = scmp.eq.s32.totalorder %s22, 0
    %p82 = por %p80, %p81
    %s84 = sadd.s32 %s83, 1
    %p87 = scmp.eq.s32.totalorder %s16, 1
    %p88 = scmp.ne.s32.totalorder %s83, %s85
    %p89 = scmp.eq.s32.totalorder %s16, 0
    %p90 = por %p88, %p89
    %p91 = scmp.ne.s32.totalorder %s83, %s85
    %p92 = scmp.eq.s32.totalorder %s21, 1
    %p93 = por %p91, %p92
    %p94 = scmp.ne.s32.totalorder %s85, %s86
    %p95 = scmp.eq.s32.totalorder %s21, 0
    %p96 = por %p94, %p95
    %p97 = scmp.ne.s32.totalorder %s85, %s86
    %p98 = scmp.eq.s32.totalorder %s22, 1
    %p99 = por %p97, %p98
    %p101 = scmp.ne.s32.totalorder %s86, %s100
    %p102 = scmp.eq.s32.totalorder %s22, 0
    %p103 = por %p101, %p102
    %s105 = sadd.s32 %s104, 1
    %p108 = scmp.eq.s32.totalorder %s16, 1
    %p109 = scmp.ne.s32.totalorder %s104, %s106
    %p110 = scmp.eq.s32.totalorder %s16, 0
    %p111 = por %p109, %p110
    %p112 = scmp.ne.s32.totalorder %s104, %s106
    %p113 = scmp.eq.s32.totalorder %s21, 1
    %p114 = por %p112, %p113
    %p115 = scmp.ne.s32.totalorder %s106, %s107
    %p116 = scmp.eq.s32.totalorder %s21, 0
    %p117 = por %p115, %p116
    %p118 = scmp.ne.s32.totalorder %s106, %s107
    %p119 = scmp.eq.s32.totalorder %s22, 1
    %p120 = por %p118, %p119
    %p122 = scmp.ne.s32.totalorder %s107, %s121
    %p123 = scmp.eq.s32.totalorder %s22, 0
    %p124 = por %p122, %p123
    %s126 = sadd.s32 %s125, 1
    %p129 = scmp.eq.s32.totalorder %s16, 1
    %p130 = scmp.ne.s32.totalorder %s125, %s127
    %p131 = scmp.eq.s32.totalorder %s16, 0
    %p132 = por %p130, %p131
    %p133 = scmp.ne.s32.totalorder %s125, %s127
    %p134 = scmp.eq.s32.totalorder %s21, 1
    %p135 = por %p133, %p134
    %p136 = scmp.ne.s32.totalorder %s127, %s128
    %p137 = scmp.eq.s32.totalorder %s21, 0
    %p138 = por %p136, %p137
    %p139 = scmp.ne.s32.totalorder %s127, %s128
    %p140 = scmp.eq.s32.totalorder %s22, 1
    %p141 = por %p139, %p140
    %p143 = scmp.ne.s32.totalorder %s128, %s142
    %p144 = scmp.eq.s32.totalorder %s22, 0
    %p145 = por %p143, %p144
    %s147 = sadd.s32 %s146, 1
    %p150 = scmp.eq.s32.totalorder %s16, 1
    %p151 = scmp.ne.s32.totalorder %s146, %s148
    %p152 = scmp.eq.s32.totalorder %s16, 0
    %p153 = por %p151, %p152
    %p154 = scmp.ne.s32.totalorder %s146, %s148
    %p155 = scmp.eq.s32.totalorder %s21, 1
    %p156 = por %p154, %p155
    %p157 = scmp.ne.s32.totalorder %s148, %s149
    %p158 = scmp.eq.s32.totalorder %s21, 0
    %p159 = por %p157, %p158
    %p160 = scmp.ne.s32.totalorder %s148, %s149
    %p161 = scmp.eq.s32.totalorder %s22, 1
    %p162 = por %p160, %p161
    %p164 = scmp.ne.s32.totalorder %s149, %s163
    %p165 = scmp.eq.s32.totalorder %s22, 0
    %p166 = por %p164, %p165
    %s168 = sadd.s32 %s167, 1
    %p171 = scmp.eq.s32.totalorder %s16, 1
    %p172 = scmp.ne.s32.totalorder %s167, %s169
    %p173 = scmp.eq.s32.totalorder %s16, 0
    %p174 = por %p172, %p173
    %p175 = scmp.ne.s32.totalorder %s167, %s169
    %p176 = scmp.eq.s32.totalorder %s21, 1
    %p177 = por %p175, %p176
    %p178 = scmp.ne.s32.totalorder %s169, %s170
    %p179 = scmp.eq.s32.totalorder %s21, 0
    %p180 = por %p178, %p179
    %p181 = scmp.ne.s32.totalorder %s169, %s170
    %p182 = scmp.eq.s32.totalorder %s22, 1
    %p183 = por %p181, %p182
    %p185 = scmp.ne.s32.totalorder %s170, %s184
    %p186 = scmp.eq.s32.totalorder %s22, 0
    %p187 = por %p185, %p186
    %s189 = sadd.s32 %s188, 1
    %p192 = scmp.eq.s32.totalorder %s16, 1
    %p193 = scmp.ne.s32.totalorder %s188, %s190
    %p194 = scmp.eq.s32.totalorder %s16, 0
    %p195 = por %p193, %p194
    %p196 = scmp.ne.s32.totalorder %s188, %s190
    %p197 = scmp.eq.s32.totalorder %s21, 1
    %p198 = por %p196, %p197
    %p199 = scmp.ne.s32.totalorder %s190, %s191
    %p200 = scmp.eq.s32.totalorder %s21, 0
    %p201 = por %p199, %p200
    %p202 = scmp.ne.s32.totalorder %s190, %s191
    %p203 = scmp.eq.s32.totalorder %s22, 1
    %p204 = por %p202, %p203
    %p206 = scmp.ne.s32.totalorder %s191, %s205
    %p207 = scmp.eq.s32.totalorder %s22, 0
    %p208 = por %p206, %p207
    %s210 = sadd.s32 %s209, 1
    %p213 = scmp.eq.s32.totalorder %s16, 1
    %p214 = scmp.ne.s32.totalorder %s209, %s211
    %p215 = scmp.eq.s32.totalorder %s16, 0
    %p216 = por %p214, %p215
    %p217 = scmp.ne.s32.totalorder %s209, %s211
    %p218 = scmp.eq.s32.totalorder %s21, 1
    %p219 = por %p217, %p218
    %p220 = scmp.ne.s32.totalorder %s211, %s212
    %p221 = scmp.eq.s32.totalorder %s21, 0
    %p222 = por %p220, %p221
    %p223 = scmp.ne.s32.totalorder %s211, %s212
    %p224 = scmp.eq.s32.totalorder %s22, 1
    %p225 = por %p223, %p224
    %p227 = scmp.ne.s32.totalorder %s212, %s226
    %p228 = scmp.eq.s32.totalorder %s22, 0
    %p229 = por %p227, %p228
    %s231 = sadd.s32 %s230, 1
    %p234 = scmp.eq.s32.totalorder %s16, 1
    %p235 = scmp.ne.s32.totalorder %s230, %s232
    %p236 = scmp.eq.s32.totalorder %s16, 0
    %p237 = por %p235, %p236
    %p238 = scmp.ne.s32.totalorder %s230, %s232
    %p239 = scmp.eq.s32.totalorder %s21, 1
    %p240 = por %p238, %p239
    %p241 = scmp.ne.s32.totalorder %s232, %s233
    %p242 = scmp.eq.s32.totalorder %s21, 0
    %p243 = por %p241, %p242
    %p244 = scmp.ne.s32.totalorder %s232, %s233
    %p245 = scmp.eq.s32.totalorder %s22, 1
    %p246 = por %p244, %p245
    %p248 = scmp.ne.s32.totalorder %s233, %s247
    %p249 = scmp.eq.s32.totalorder %s22, 0
    %p250 = por %p248, %p249
    %s251 = ssub.s32 %s23, %s35
    %s252 = ssub.s32 %s24, %s31
    %s253 = sor.u32 %s251, %s252
    %p254 = scmp.eq.s32.totalorder %s253, 0
    %s256 = sadd.s32 %s255, 1
    %s257 = scalar_select %p254, %s255, %s256
    %p260 = pneg %p254
    %p261 = scmp.eq.s32.totalorder %s16, 1
    %p262 = por %p260, %p261
    %p263 = scmp.ne.s32.totalorder %s255, %s258
    %p264 = scmp.eq.s32.totalorder %s16, 0
    %p265 = por %p263, %p264
    %p266 = scmp.ne.s32.totalorder %s255, %s258
    %p267 = scmp.eq.s32.totalorder %s21, 1
    %p268 = por %p266, %p267
    %p269 = scmp.ne.s32.totalorder %s258, %s259
    %p270 = scmp.eq.s32.totalorder %s21, 0
    %p271 = por %p269, %p270
    %p272 = scmp.ne.s32.totalorder %s258, %s259
    %p273 = scmp.eq.s32.totalorder %s22, 1
    %p274 = por %p272, %p273
    %p276 = scmp.ne.s32.totalorder %s259, %s275
    %p277 = scmp.eq.s32.totalorder %s22, 0
    %p278 = por %p276, %p277
    %p279 = scmp.le.s32.totalorder 1, %s16
    %p280 = scmp.lt.s32.totalorder %s16, 3
    %p281 = pnand %p279, %p280
    %p282 = pneg %p281
    // Predicated region
    $region9: #{double_conv_forward.1} parent=5 // pred_check
      _
    $region10: #{double_conv_forward.1} parent=5 // pred_check_branch
      %284 = sbr.rel (%p281) target = $region12
    $region11: #{double_conv_forward.1} parent=5 // pred_region
      %s285 = ssub.s32 %s16, 1
      // Predicated region
      $region13: #{double_conv_forward.1} parent=11 // pred_check
        %p286 = pneg %p75
      $region14: #{double_conv_forward.1} parent=11 // pred_check_branch
        %288 = sbr.rel (%p286) target = $region16
      $region15: #{double_conv_forward.1} parent=11 // pred_region
        _
      $region16: #{double_conv_forward.1} parent=11 // pred_fallthru
        _
      // Predicated region
      $region17: #{double_conv_forward.1} parent=11 // pred_check
        %p289 = pneg %p96
      $region18: #{double_conv_forward.1} parent=11 // pred_check_branch
        %291 = sbr.rel (%p289) target = $region20
      $region19: #{double_conv_forward.1} parent=11 // pred_region
        _
      $region20: #{double_conv_forward.1} parent=11 // pred_fallthru
        _
      // Predicated region
      $region21: #{double_conv_forward.1} parent=11 // pred_check
        %p292 = pneg %p117
      $region22: #{double_conv_forward.1} parent=11 // pred_check_branch
        %294 = sbr.rel (%p292) target = $region24
      $region23: #{double_conv_forward.1} parent=11 // pred_region
        _
      $region24: #{double_conv_forward.1} parent=11 // pred_fallthru
        _
      // Predicated region
      $region25: #{double_conv_forward.1} parent=11 // pred_check
        %p295 = pneg %p138
      $region26: #{double_conv_forward.1} parent=11 // pred_check_branch
        %297 = sbr.rel (%p295) target = $region28
      $region27: #{double_conv_forward.1} parent=11 // pred_region
        _
      $region28: #{double_conv_forward.1} parent=11 // pred_fallthru
        _
      // Predicated region
      $region29: #{double_conv_forward.1} parent=11 // pred_check
        %p298 = pneg %p159
      $region30: #{double_conv_forward.1} parent=11 // pred_check_branch
        %300 = sbr.rel (%p298) target = $region32
      $region31: #{double_conv_forward.1} parent=11 // pred_region
        _
      $region32: #{double_conv_forward.1} parent=11 // pred_fallthru
        _
      // Predicated region
      $region33: #{double_conv_forward.1} parent=11 // pred_check
        %p301 = pneg %p180
      $region34: #{double_conv_forward.1} parent=11 // pred_check_branch
        %303 = sbr.rel (%p301) target = $region36
      $region35: #{double_conv_forward.1} parent=11 // pred_region
        _
      $region36: #{double_conv_forward.1} parent=11 // pred_fallthru
        _
      // Predicated region
      $region37: #{double_conv_forward.1} parent=11 // pred_check
        %p304 = pneg %p201
      $region38: #{double_conv_forward.1} parent=11 // pred_check_branch
        %306 = sbr.rel (%p304) target = $region40
      $region39: #{double_conv_forward.1} parent=11 // pred_region
        _
      $region40: #{double_conv_forward.1} parent=11 // pred_fallthru
        _
      // Predicated region
      $region41: #{double_conv_forward.1} parent=11 // pred_check
        %p307 = pneg %p222
      $region42: #{double_conv_forward.1} parent=11 // pred_check_branch
        %309 = sbr.rel (%p307) target = $region44
      $region43: #{double_conv_forward.1} parent=11 // pred_region
        _
      $region44: #{double_conv_forward.1} parent=11 // pred_fallthru
        _
      // Predicated region
      $region45: #{double_conv_forward.1} parent=11 // pred_check
        %p310 = pneg %p243
      $region46: #{double_conv_forward.1} parent=11 // pred_check_branch
        %312 = sbr.rel (%p310) target = $region48
      $region47: #{double_conv_forward.1} parent=11 // pred_region
        _
      $region48: #{double_conv_forward.1} parent=11 // pred_fallthru
        _
    $region12: #{double_conv_forward.1} parent=5 // pred_fallthru
      _
    %p313 = scmp.lt.s32.totalorder %s16, 2
    // Predicated region
    $region49: #{double_conv_forward.1} parent=5 // pred_check
      %p314 = pneg %p313
    $region50: #{double_conv_forward.1} parent=5 // pred_check_branch
      %316 = sbr.rel (%p314) target = $region52
    $region51: #{double_conv_forward.1} parent=5 // pred_region
      // Predicated region
      $region53: #{double_conv_forward.1} parent=51 // pred_check
        %p317 = pneg %p48
      $region54: #{double_conv_forward.1} parent=51 // pred_check_branch
        %319 = sbr.rel (%p317) target = $region56
      $region55: #{double_conv_forward.1} parent=51 // pred_region
        %p320 = scmp.lt.s32.totalorder %s23, 1
        %s321 = scalar_select %p320, %s23, 1
        %s322 = smul.addr %s321, 32
        %s323 = smul.addr %s322, 4
        %s324 = scalar_lea.vmem %s0, %s323
      $region56: #{double_conv_forward.1} parent=51 // pred_fallthru
        _
    $region52: #{double_conv_forward.1} parent=5 // pred_fallthru
      _
    %p325 = scmp.le.s32.totalorder 1, %s16
    %p326 = scmp.lt.s32.totalorder %s16, 3
    %p327 = pnand %p325, %p326
    %p328 = pneg %p327
    // Predicated region
    $region57: #{double_conv_forward.1} parent=5 // pred_check
      _
    $region58: #{double_conv_forward.1} parent=5 // pred_check_branch
      %330 = sbr.rel (%p327) target = $region60
    $region59: #{double_conv_forward.1} parent=5 // pred_region
      %s331 = ssub.s32 %s16, 1
      %p332 = scmp.lt.s32.totalorder %s25, 1
      %s333 = scalar_select %p332, %s25, 1
      %s334 = smul.addr %s333, 32
      %s335 = smul.addr %s334, 4
      %s336 = scalar_lea.vmem %s0, %s335
      %p337 = pneg %p54
      %p338 = pneg %p51
      %p339 = pneg %p75
      %p340 = pneg %p72
      %p341 = pneg %p96
      %p342 = pneg %p93
      %p343 = pneg %p117
      %p344 = pneg %p114
      %p345 = pneg %p138
      %p346 = pneg %p135
      %p347 = pneg %p159
      %p348 = pneg %p156
      %p349 = pneg %p180
      %p350 = pneg %p177
      %p351 = pneg %p201
      %p352 = pneg %p198
      %p353 = pneg %p222
      %p354 = pneg %p219
      %p355 = pneg %p243
      %p356 = pneg %p240
      %p357 = pneg %p271
      %p358 = pneg %p268
      %s359 = smul.u32 32, %s26
      %p360 = scmp.lt.s32.totalorder %s25, 1
      %s361 = scalar_select %p360, %s25, 1
      %p362 = scmp.lt.s32.totalorder %s359, 31
      %s363 = scalar_select %p362, %s359, 31
      %s364 = smul.addr %s361, 32
      %s365 = sadd.s32 %s363, %s364
      %s366 = smul.addr %s365, 4
      %s367 = scalar_lea.vmem %s10, %s366
      %p368 = scmp.lt.s32.totalorder %s25, 1
      %s369 = scalar_select %p368, %s25, 1
      %s370 = smul.addr %s369, 32
      %s371 = smul.addr %s370, 4
      %s372 = scalar_lea.vmem %s0, %s371
      %s373 = smul.u32 32, %s26
      %p374 = scmp.lt.s32.totalorder %s25, 1
      %s375 = scalar_select %p374, %s25, 1
      %p376 = scmp.lt.s32.totalorder %s373, 31
      %s377 = scalar_select %p376, %s373, 31
      %s378 = smul.addr %s375, 32
      %s379 = sadd.s32 %s377, %s378
      %s380 = smul.addr %s379, 4
      %s381 = scalar_lea.vmem %s10, %s380
      %s382 = smul.u32 32, %s26
      %p384 = scmp.eq.s32.totalorder %s26, 0
      // Predicated region
      $region61: #{double_conv_forward.1} parent=59 // pred_check
        %p385 = pneg %p384
      $region62: #{double_conv_forward.1} parent=59 // pred_check_branch
        %387 = sbr.rel (%p385) target = $region64
      $region63: #{double_conv_forward.1} parent=59 // pred_region
        %388 = vst [vmem:[#allocation2] sm:$0xf] 0
        %389 = vst [vmem:[#allocation2 + $0x4] sm:$0xf] 0
        %390 = vst [vmem:[#allocation2 + $0x8] sm:$0x1] 0
        %s391 = scalar_lea.vmem [#allocation2], 204
        %392 = vst [vmem:[%s391] sm:$0xf] 0
        %393 = vst [vmem:[%s391 + $0x4] sm:$0xf] 0
        %394 = vst [vmem:[%s391 + $0x8] sm:$0x1] 0
        %s395 = scalar_lea.vmem [#allocation2], 12
        %vm396 = vcmask 1040384
        %vm397 = vsmask.f32 256
        %vm398 = vmand %vm396, %vm397
        %v399 = vld [vmem:[%s395] sm:$0x1]
        %v400 = vsel %vm398, 0, %v399
        %401 = vst [vmem:[%s395] sm:$0x1] %v400
        %v402 = vld [vmem:[%s395 + $0xc] sm:$0x1]
        %v403 = vsel %vm398, 0, %v402
        %404 = vst [vmem:[%s395 + $0xc] sm:$0x1] %v403
        %v405 = vld [vmem:[%s395 + $0x18] sm:$0x1]
        %v406 = vsel %vm398, 0, %v405
        %407 = vst [vmem:[%s395 + $0x18] sm:$0x1] %v406
        %v408 = vld [vmem:[%s395 + $0x24] sm:$0x1]
        %v409 = vsel %vm398, 0, %v408
        %410 = vst [vmem:[%s395 + $0x24] sm:$0x1] %v409
        %v411 = vld [vmem:[%s395 + $0x30] sm:$0x1]
        %v412 = vsel %vm398, 0, %v411
        %413 = vst [vmem:[%s395 + $0x30] sm:$0x1] %v412
        %v414 = vld [vmem:[%s395 + $0x3c] sm:$0x1]
        %v415 = vsel %vm398, 0, %v414
        %416 = vst [vmem:[%s395 + $0x3c] sm:$0x1] %v415
        %v417 = vld [vmem:[%s395 + $0x48] sm:$0x1]
        %v418 = vsel %vm398, 0, %v417
        %419 = vst [vmem:[%s395 + $0x48] sm:$0x1] %v418
        %v420 = vld [vmem:[%s395 + $0x54] sm:$0x1]
        %v421 = vsel %vm398, 0, %v420
        %422 = vst [vmem:[%s395 + $0x54] sm:$0x1] %v421
        %v423 = vld [vmem:[%s395 + $0x60] sm:$0x1]
        %v424 = vsel %vm398, 0, %v423
        %425 = vst [vmem:[%s395 + $0x60] sm:$0x1] %v424
        %v426 = vld [vmem:[%s395 + $0x6c] sm:$0x1]
        %v427 = vsel %vm398, 0, %v426
        %428 = vst [vmem:[%s395 + $0x6c] sm:$0x1] %v427
        %v429 = vld [vmem:[%s395 + $0x78] sm:$0x1]
        %v430 = vsel %vm398, 0, %v429
        %431 = vst [vmem:[%s395 + $0x78] sm:$0x1] %v430
        %v432 = vld [vmem:[%s395 + $0x84] sm:$0x1]
        %v433 = vsel %vm398, 0, %v432
        %434 = vst [vmem:[%s395 + $0x84] sm:$0x1] %v433
        %v435 = vld [vmem:[%s395 + $0x90] sm:$0x1]
        %v436 = vsel %vm398, 0, %v435
        %437 = vst [vmem:[%s395 + $0x90] sm:$0x1] %v436
        %v438 = vld [vmem:[%s395 + $0x9c] sm:$0x1]
        %v439 = vsel %vm398, 0, %v438
        %440 = vst [vmem:[%s395 + $0x9c] sm:$0x1] %v439
        %v441 = vld [vmem:[%s395 + $0xa8] sm:$0x1]
        %v442 = vsel %vm398, 0, %v441
        %443 = vst [vmem:[%s395 + $0xa8] sm:$0x1] %v442
        %v444 = vld [vmem:[%s395 + $0xb4] sm:$0x1]
        %v445 = vsel %vm398, 0, %v444
        %446 = vst [vmem:[%s395 + $0xb4] sm:$0x1] %v445
        %vm447 = vsmask.f32 7938
        %vm448 = vmand %vm396, %vm447
        %v449 = vld [vmem:[%s395 + $0x8] sm:$0x1]
        %v450 = vsel %vm448, 0, %v449
        %451 = vst [vmem:[%s395 + $0x8] sm:$0x1] %v450
        %v452 = vld [vmem:[%s395 + $0x14] sm:$0x1]
        %v453 = vsel %vm448, 0, %v452
        %454 = vst [vmem:[%s395 + $0x14] sm:$0x1] %v453
        %v455 = vld [vmem:[%s395 + $0x20] sm:$0x1]
        %v456 = vsel %vm448, 0, %v455
        %457 = vst [vmem:[%s395 + $0x20] sm:$0x1] %v456
        %v458 = vld [vmem:[%s395 + $0x2c] sm:$0x1]
        %v459 = vsel %vm448, 0, %v458
        %460 = vst [vmem:[%s395 + $0x2c] sm:$0x1] %v459
        %v461 = vld [vmem:[%s395 + $0x38] sm:$0x1]
        %v462 = vsel %vm448, 0, %v461
        %463 = vst [vmem:[%s395 + $0x38] sm:$0x1] %v462
        %v464 = vld [vmem:[%s395 + $0x44] sm:$0x1]
        %v465 = vsel %vm448, 0, %v464
        %466 = vst [vmem:[%s395 + $0x44] sm:$0x1] %v465
        %v467 = vld [vmem:[%s395 + $0x50] sm:$0x1]
        %v468 = vsel %vm448, 0, %v467
        %469 = vst [vmem:[%s395 + $0x50] sm:$0x1] %v468
        %v470 = vld [vmem:[%s395 + $0x5c] sm:$0x1]
        %v471 = vsel %vm448, 0, %v470
        %472 = vst [vmem:[%s395 + $0x5c] sm:$0x1] %v471
        %v473 = vld [vmem:[%s395 + $0x68] sm:$0x1]
        %v474 = vsel %vm448, 0, %v473
        %475 = vst [vmem:[%s395 + $0x68] sm:$0x1] %v474
        %v476 = vld [vmem:[%s395 + $0x74] sm:$0x1]
        %v477 = vsel %vm448, 0, %v476
        %478 = vst [vmem:[%s395 + $0x74] sm:$0x1] %v477
        %v479 = vld [vmem:[%s395 + $0x80] sm:$0x1]
        %v480 = vsel %vm448, 0, %v479
        %481 = vst [vmem:[%s395 + $0x80] sm:$0x1] %v480
        %v482 = vld [vmem:[%s395 + $0x8c] sm:$0x1]
        %v483 = vsel %vm448, 0, %v482
        %484 = vst [vmem:[%s395 + $0x8c] sm:$0x1] %v483
        %v485 = vld [vmem:[%s395 + $0x98] sm:$0x1]
        %v486 = vsel %vm448, 0, %v485
        %487 = vst [vmem:[%s395 + $0x98] sm:$0x1] %v486
        %v488 = vld [vmem:[%s395 + $0xa4] sm:$0x1]
        %v489 = vsel %vm448, 0, %v488
        %490 = vst [vmem:[%s395 + $0xa4] sm:$0x1] %v489
        %v491 = vld [vmem:[%s395 + $0xb0] sm:$0x1]
        %v492 = vsel %vm448, 0, %v491
        %493 = vst [vmem:[%s395 + $0xb0] sm:$0x1] %v492
        %v494 = vld [vmem:[%s395 + $0xbc] sm:$0x1]
        %v495 = vsel %vm448, 0, %v494
        %496 = vst [vmem:[%s395 + $0xbc] sm:$0x1] %v495
        %v497 = vld [vmem:[%s372] sm:$0xf]
        %v498 = vld [vmem:[%s372 + $0x4] sm:$0xf]
        %v499 = vld [vmem:[%s372 + $0x8] sm:$0xf]
        %v500 = vld [vmem:[%s372 + $0xc] sm:$0xf]
        %v501 = vld [vmem:[%s372 + $0x10] sm:$0xf]
        %v502 = vld [vmem:[%s372 + $0x14] sm:$0xf]
        %v503 = vld [vmem:[%s372 + $0x18] sm:$0xf]
        %v504 = vld [vmem:[%s372 + $0x1c] sm:$0xf]
        %v505 = vld [vmem:[%s372 + $0x20] sm:$0xf]
        %v506 = vld [vmem:[%s372 + $0x24] sm:$0xf]
        %v507 = vld [vmem:[%s372 + $0x28] sm:$0xf]
        %v508 = vld [vmem:[%s372 + $0x2c] sm:$0xf]
        %v509 = vld [vmem:[%s372 + $0x30] sm:$0xf]
        %v510 = vld [vmem:[%s372 + $0x34] sm:$0xf]
        %v511 = vld [vmem:[%s372 + $0x38] sm:$0xf]
        %v512 = vld [vmem:[%s372 + $0x3c] sm:$0xf]
        %v513 = vld [vmem:[%s372 + $0x40] sm:$0xf]
        %v514 = vld [vmem:[%s372 + $0x44] sm:$0xf]
        %v515 = vld [vmem:[%s372 + $0x48] sm:$0xf]
        %v516 = vld [vmem:[%s372 + $0x4c] sm:$0xf]
        %v517 = vld [vmem:[%s372 + $0x50] sm:$0xf]
        %v518 = vld [vmem:[%s372 + $0x54] sm:$0xf]
        %v519 = vld [vmem:[%s372 + $0x58] sm:$0xf]
        %v520 = vld [vmem:[%s372 + $0x5c] sm:$0xf]
        %v521 = vld [vmem:[%s372 + $0x60] sm:$0xf]
        %v522 = vld [vmem:[%s372 + $0x64] sm:$0xf]
        %v523 = vld [vmem:[%s372 + $0x68] sm:$0xf]
        %v524 = vld [vmem:[%s372 + $0x6c] sm:$0xf]
        %v525 = vld [vmem:[%s372 + $0x70] sm:$0xf]
        %v526 = vld [vmem:[%s372 + $0x74] sm:$0xf]
        %v527 = vld [vmem:[%s372 + $0x78] sm:$0xf]
        %v528 = vld [vmem:[%s372 + $0x7c] sm:$0xf]
        %vm529 = vsmask.f32 4368
        %vm530 = vmor %vm397, %vm529
        %v532 = vshrl.u32 %v497, 16
        %v534 = vrot.slane %v532, 7
        %v535 = vshll.u32 %v497, 16
        %v537 = vor.u32 %v534, %v535
        %v538 = vrot.slane %v534, 4
        %v540 = vshrl.u32 %v498, 16
        %v542 = vrot.slane %v540, 7
        %v543 = vshll.u32 %v498, 16
        %v545 = vor.u32 %v542, %v543
        %v546 = vsel %vm530, %v538, %v545
        %v547 = vrot.slane %v542, 4
        %v549 = vshrl.u32 %v499, 16
        %v551 = vrot.slane %v549, 7
        %v552 = vshll.u32 %v499, 16
        %v554 = vor.u32 %v551, %v552
        %v555 = vrot.slane %v551, 4
        %v557 = vshrl.u32 %v500, 16
        %v559 = vrot.slane %v557, 7
        %v560 = vshll.u32 %v500, 16
        %v562 = vor.u32 %v559, %v560
        %v563 = vsel %vm530, %v555, %v562
        %v564 = vrot.slane %v559, 4
        %v566 = vshrl.u32 %v501, 16
        %v568 = vrot.slane %v566, 7
        %v569 = vshll.u32 %v501, 16
        %v571 = vor.u32 %v568, %v569
        %v572 = vrot.slane %v568, 4
        %v574 = vshrl.u32 %v502, 16
        %v576 = vrot.slane %v574, 7
        %v577 = vshll.u32 %v502, 16
        %v579 = vor.u32 %v576, %v577
        %v580 = vsel %vm530, %v572, %v579
        %v581 = vrot.slane %v576, 4
        %v583 = vshrl.u32 %v503, 16
        %v585 = vrot.slane %v583, 7
        %v586 = vshll.u32 %v503, 16
        %v588 = vor.u32 %v585, %v586
        %v589 = vrot.slane %v585, 4
        %v591 = vshrl.u32 %v504, 16
        %v593 = vrot.slane %v591, 7
        %v594 = vshll.u32 %v504, 16
        %v596 = vor.u32 %v593, %v594
        %v597 = vsel %vm530, %v589, %v596
        %v598 = vrot.slane %v593, 4
        %v600 = vshrl.u32 %v505, 16
        %v602 = vrot.slane %v600, 7
        %v603 = vshll.u32 %v505, 16
        %v605 = vor.u32 %v602, %v603
        %v606 = vrot.slane %v602, 4
        %v608 = vshrl.u32 %v506, 16
        %v610 = vrot.slane %v608, 7
        %v611 = vshll.u32 %v506, 16
        %v613 = vor.u32 %v610, %v611
        %v614 = vsel %vm530, %v606, %v613
        %v615 = vrot.slane %v610, 4
        %v617 = vshrl.u32 %v507, 16
        %v619 = vrot.slane %v617, 7
        %v620 = vshll.u32 %v507, 16
        %v622 = vor.u32 %v619, %v620
        %v623 = vrot.slane %v619, 4
        %v625 = vshrl.u32 %v508, 16
        %v627 = vrot.slane %v625, 7
        %v628 = vshll.u32 %v508, 16
        %v630 = vor.u32 %v627, %v628
        %v631 = vsel %vm530, %v623, %v630
        %v632 = vrot.slane %v627, 4
        %v634 = vshrl.u32 %v509, 16
        %v636 = vrot.slane %v634, 7
        %v637 = vshll.u32 %v509, 16
        %v639 = vor.u32 %v636, %v637
        %v640 = vrot.slane %v636, 4
        %v642 = vshrl.u32 %v510, 16
        %v644 = vrot.slane %v642, 7
        %v645 = vshll.u32 %v510, 16
        %v647 = vor.u32 %v644, %v645
        %v648 = vsel %vm530, %v640, %v647
        %v649 = vrot.slane %v644, 4
        %v651 = vshrl.u32 %v511, 16
        %v653 = vrot.slane %v651, 7
        %v654 = vshll.u32 %v511, 16
        %v656 = vor.u32 %v653, %v654
        %v657 = vrot.slane %v653, 4
        %v659 = vshrl.u32 %v512, 16
        %v661 = vrot.slane %v659, 7
        %v662 = vshll.u32 %v512, 16
        %v664 = vor.u32 %v661, %v662
        %v665 = vsel %vm530, %v657, %v664
        %v666 = vrot.slane %v661, 4
        %v668 = vshrl.u32 %v513, 16
        %v670 = vrot.slane %v668, 7
        %v671 = vshll.u32 %v513, 16
        %v673 = vor.u32 %v670, %v671
        %v674 = vrot.slane %v670, 4
        %v676 = vshrl.u32 %v514, 16
        %v678 = vrot.slane %v676, 7
        %v679 = vshll.u32 %v514, 16
        %v681 = vor.u32 %v678, %v679
        %v682 = vsel %vm530, %v674, %v681
        %v683 = vrot.slane %v678, 4
        %v685 = vshrl.u32 %v515, 16
        %v687 = vrot.slane %v685, 7
        %v688 = vshll.u32 %v515, 16
        %v690 = vor.u32 %v687, %v688
        %v691 = vrot.slane %v687, 4
        %v693 = vshrl.u32 %v516, 16
        %v695 = vrot.slane %v693, 7
        %v696 = vshll.u32 %v516, 16
        %v698 = vor.u32 %v695, %v696
        %v699 = vsel %vm530, %v691, %v698
        %v700 = vrot.slane %v695, 4
        %v702 = vshrl.u32 %v517, 16
        %v704 = vrot.slane %v702, 7
        %v705 = vshll.u32 %v517, 16
        %v707 = vor.u32 %v704, %v705
        %v708 = vrot.slane %v704, 4
        %v710 = vshrl.u32 %v518, 16
        %v712 = vrot.slane %v710, 7
        %v713 = vshll.u32 %v518, 16
        %v715 = vor.u32 %v712, %v713
        %v716 = vsel %vm530, %v708, %v715
        %v717 = vrot.slane %v712, 4
        %v719 = vshrl.u32 %v519, 16
        %v721 = vrot.slane %v719, 7
        %v722 = vshll.u32 %v519, 16
        %v724 = vor.u32 %v721, %v722
        %v725 = vrot.slane %v721, 4
        %v727 = vshrl.u32 %v520, 16
        %v729 = vrot.slane %v727, 7
        %v730 = vshll.u32 %v520, 16
        %v732 = vor.u32 %v729, %v730
        %v733 = vsel %vm530, %v725, %v732
        %v734 = vrot.slane %v729, 4
        %v736 = vshrl.u32 %v521, 16
        %v738 = vrot.slane %v736, 7
        %v739 = vshll.u32 %v521, 16
        %v741 = vor.u32 %v738, %v739
        %v742 = vrot.slane %v738, 4
        %v744 = vshrl.u32 %v522, 16
        %v746 = vrot.slane %v744, 7
        %v747 = vshll.u32 %v522, 16
        %v749 = vor.u32 %v746, %v747
        %v750 = vsel %vm530, %v742, %v749
        %v751 = vrot.slane %v746, 4
        %v753 = vshrl.u32 %v523, 16
        %v755 = vrot.slane %v753, 7
        %v756 = vshll.u32 %v523, 16
        %v758 = vor.u32 %v755, %v756
        %v759 = vrot.slane %v755, 4
        %v761 = vshrl.u32 %v524, 16
        %v763 = vrot.slane %v761, 7
        %v764 = vshll.u32 %v524, 16
        %v766 = vor.u32 %v763, %v764
        %v767 = vsel %vm530, %v759, %v766
        %v768 = vrot.slane %v763, 4
        %v770 = vshrl.u32 %v525, 16
        %v772 = vrot.slane %v770, 7
        %v773 = vshll.u32 %v525, 16
        %v775 = vor.u32 %v772, %v773
        %v776 = vrot.slane %v772, 4
        %v778 = vshrl.u32 %v526, 16
        %v780 = vrot.slane %v778, 7
        %v781 = vshll.u32 %v526, 16
        %v783 = vor.u32 %v780, %v781
        %v784 = vsel %vm530, %v776, %v783
        %v785 = vrot.slane %v780, 4
        %v787 = vshrl.u32 %v527, 16
        %v789 = vrot.slane %v787, 7
        %v790 = vshll.u32 %v527, 16
        %v792 = vor.u32 %v789, %v790
        %v793 = vrot.slane %v789, 4
        %v795 = vshrl.u32 %v528, 16
        %v797 = vrot.slane %v795, 7
        %v798 = vshll.u32 %v528, 16
        %v800 = vor.u32 %v797, %v798
        %v801 = vsel %vm530, %v793, %v800
        %v802 = vrot.slane %v797, 4
        %vm851 = vcmask 1043456
        %vm852 = vmand %vm851, %vm447
        %v853 = vld [vmem:[%s395] sm:$0xf]
        %v854 = vsel %vm852, %v537, %v853
        %855 = vst [vmem:[%s395] sm:$0xf] %v854
        %856 = vst [vmem:[%s395 + $0x4] sm:$0xf] %v546
        %v857 = vld [vmem:[%s395 + $0x8] sm:$0x1]
        %v858 = vsel %vm398, %v547, %v857
        %859 = vst [vmem:[%s395 + $0x8] sm:$0x1] %v858
        %v860 = vld [vmem:[%s395 + $0xc] sm:$0xf]
        %v861 = vsel %vm852, %v554, %v860
        %862 = vst [vmem:[%s395 + $0xc] sm:$0xf] %v861
        %863 = vst [vmem:[%s395 + $0x10] sm:$0xf] %v563
        %v864 = vld [vmem:[%s395 + $0x14] sm:$0x1]
        %v865 = vsel %vm398, %v564, %v864
        %866 = vst [vmem:[%s395 + $0x14] sm:$0x1] %v865
        %v867 = vld [vmem:[%s395 + $0x18] sm:$0xf]
        %v868 = vsel %vm852, %v571, %v867
        %869 = vst [vmem:[%s395 + $0x18] sm:$0xf] %v868
        %870 = vst [vmem:[%s395 + $0x1c] sm:$0xf] %v580
        %v871 = vld [vmem:[%s395 + $0x20] sm:$0x1]
        %v872 = vsel %vm398, %v581, %v871
        %873 = vst [vmem:[%s395 + $0x20] sm:$0x1] %v872
        %v874 = vld [vmem:[%s395 + $0x24] sm:$0xf]
        %v875 = vsel %vm852, %v588, %v874
        %876 = vst [vmem:[%s395 + $0x24] sm:$0xf] %v875
        %877 = vst [vmem:[%s395 + $0x28] sm:$0xf] %v597
        %v878 = vld [vmem:[%s395 + $0x2c] sm:$0x1]
        %v879 = vsel %vm398, %v598, %v878
        %880 = vst [vmem:[%s395 + $0x2c] sm:$0x1] %v879
        %v881 = vld [vmem:[%s395 + $0x30] sm:$0xf]
        %v882 = vsel %vm852, %v605, %v881
        %883 = vst [vmem:[%s395 + $0x30] sm:$0xf] %v882
        %884 = vst [vmem:[%s395 + $0x34] sm:$0xf] %v614
        %v885 = vld [vmem:[%s395 + $0x38] sm:$0x1]
        %v886 = vsel %vm398, %v615, %v885
        %887 = vst [vmem:[%s395 + $0x38] sm:$0x1] %v886
        %v888 = vld [vmem:[%s395 + $0x3c] sm:$0xf]
        %v889 = vsel %vm852, %v622, %v888
        %890 = vst [vmem:[%s395 + $0x3c] sm:$0xf] %v889
        %891 = vst [vmem:[%s395 + $0x40] sm:$0xf] %v631
        %v892 = vld [vmem:[%s395 + $0x44] sm:$0x1]
        %v893 = vsel %vm398, %v632, %v892
        %894 = vst [vmem:[%s395 + $0x44] sm:$0x1] %v893
        %v895 = vld [vmem:[%s395 + $0x48] sm:$0xf]
        %v896 = vsel %vm852, %v639, %v895
        %897 = vst [vmem:[%s395 + $0x48] sm:$0xf] %v896
        %898 = vst [vmem:[%s395 + $0x4c] sm:$0xf] %v648
        %v899 = vld [vmem:[%s395 + $0x50] sm:$0x1]
        %v900 = vsel %vm398, %v649, %v899
        %901 = vst [vmem:[%s395 + $0x50] sm:$0x1] %v900
        %v902 = vld [vmem:[%s395 + $0x54] sm:$0xf]
        %v903 = vsel %vm852, %v656, %v902
        %904 = vst [vmem:[%s395 + $0x54] sm:$0xf] %v903
        %905 = vst [vmem:[%s395 + $0x58] sm:$0xf] %v665
        %v906 = vld [vmem:[%s395 + $0x5c] sm:$0x1]
        %v907 = vsel %vm398, %v666, %v906
        %908 = vst [vmem:[%s395 + $0x5c] sm:$0x1] %v907
        %v909 = vld [vmem:[%s395 + $0x60] sm:$0xf]
        %v910 = vsel %vm852, %v673, %v909
        %911 = vst [vmem:[%s395 + $0x60] sm:$0xf] %v910
        %912 = vst [vmem:[%s395 + $0x64] sm:$0xf] %v682
        %v913 = vld [vmem:[%s395 + $0x68] sm:$0x1]
        %v914 = vsel %vm398, %v683, %v913
        %915 = vst [vmem:[%s395 + $0x68] sm:$0x1] %v914
        %v916 = vld [vmem:[%s395 + $0x6c] sm:$0xf]
        %v917 = vsel %vm852, %v690, %v916
        %918 = vst [vmem:[%s395 + $0x6c] sm:$0xf] %v917
        %919 = vst [vmem:[%s395 + $0x70] sm:$0xf] %v699
        %v920 = vld [vmem:[%s395 + $0x74] sm:$0x1]
        %v921 = vsel %vm398, %v700, %v920
        %922 = vst [vmem:[%s395 + $0x74] sm:$0x1] %v921
        %v923 = vld [vmem:[%s395 + $0x78] sm:$0xf]
        %v924 = vsel %vm852, %v707, %v923
        %925 = vst [vmem:[%s395 + $0x78] sm:$0xf] %v924
        %926 = vst [vmem:[%s395 + $0x7c] sm:$0xf] %v716
        %v927 = vld [vmem:[%s395 + $0x80] sm:$0x1]
        %v928 = vsel %vm398, %v717, %v927
        %929 = vst [vmem:[%s395 + $0x80] sm:$0x1] %v928
        %v930 = vld [vmem:[%s395 + $0x84] sm:$0xf]
        %v931 = vsel %vm852, %v724, %v930
        %932 = vst [vmem:[%s395 + $0x84] sm:$0xf] %v931
        %933 = vst [vmem:[%s395 + $0x88] sm:$0xf] %v733
        %v934 = vld [vmem:[%s395 + $0x8c] sm:$0x1]
        %v935 = vsel %vm398, %v734, %v934
        %936 = vst [vmem:[%s395 + $0x8c] sm:$0x1] %v935
        %v937 = vld [vmem:[%s395 + $0x90] sm:$0xf]
        %v938 = vsel %vm852, %v741, %v937
        %939 = vst [vmem:[%s395 + $0x90] sm:$0xf] %v938
        %940 = vst [vmem:[%s395 + $0x94] sm:$0xf] %v750
        %v941 = vld [vmem:[%s395 + $0x98] sm:$0x1]
        %v942 = vsel %vm398, %v751, %v941
        %943 = vst [vmem:[%s395 + $0x98] sm:$0x1] %v942
        %v944 = vld [vmem:[%s395 + $0x9c] sm:$0xf]
        %v945 = vsel %vm852, %v758, %v944
        %946 = vst [vmem:[%s395 + $0x9c] sm:$0xf] %v945
        %947 = vst [vmem:[%s395 + $0xa0] sm:$0xf] %v767
        %v948 = vld [vmem:[%s395 + $0xa4] sm:$0x1]
        %v949 = vsel %vm398, %v768, %v948
        %950 = vst [vmem:[%s395 + $0xa4] sm:$0x1] %v949
        %v951 = vld [vmem:[%s395 + $0xa8] sm:$0xf]
        %v952 = vsel %vm852, %v775, %v951
        %953 = vst [vmem:[%s395 + $0xa8] sm:$0xf] %v952
        %954 = vst [vmem:[%s395 + $0xac] sm:$0xf] %v784
        %v955 = vld [vmem:[%s395 + $0xb0] sm:$0x1]
        %v956 = vsel %vm398, %v785, %v955
        %957 = vst [vmem:[%s395 + $0xb0] sm:$0x1] %v956
        %v958 = vld [vmem:[%s395 + $0xb4] sm:$0xf]
        %v959 = vsel %vm852, %v792, %v958
        %960 = vst [vmem:[%s395 + $0xb4] sm:$0xf] %v959
        %961 = vst [vmem:[%s395 + $0xb8] sm:$0xf] %v801
        %v962 = vld [vmem:[%s395 + $0xbc] sm:$0x1]
        %v963 = vsel %vm398, %v802, %v962
        %964 = vst [vmem:[%s395 + $0xbc] sm:$0x1] %v963
        %965 = vst [vmem:[#allocation3] sm:$0xf] 0
        %966 = vst [vmem:[#allocation3 + $0x4] sm:$0xf] 0
        %967 = vst [vmem:[#allocation3 + $0x8] sm:$0x1] 0
        %s968 = scalar_lea.vmem [#allocation3], 204
        %969 = vst [vmem:[%s968] sm:$0xf] 0
        %970 = vst [vmem:[%s968 + $0x4] sm:$0xf] 0
        %971 = vst [vmem:[%s968 + $0x8] sm:$0x1] 0
        %s972 = scalar_lea.vmem [#allocation3], 12
        %v973 = vld [vmem:[%s972] sm:$0x1]
        %v974 = vsel %vm398, 0, %v973
        %975 = vst [vmem:[%s972] sm:$0x1] %v974
        %v976 = vld [vmem:[%s972 + $0xc] sm:$0x1]
        %v977 = vsel %vm398, 0, %v976
        %978 = vst [vmem:[%s972 + $0xc] sm:$0x1] %v977
        %v979 = vld [vmem:[%s972 + $0x18] sm:$0x1]
        %v980 = vsel %vm398, 0, %v979
        %981 = vst [vmem:[%s972 + $0x18] sm:$0x1] %v980
        %v982 = vld [vmem:[%s972 + $0x24] sm:$0x1]
        %v983 = vsel %vm398, 0, %v982
        %984 = vst [vmem:[%s972 + $0x24] sm:$0x1] %v983
        %v985 = vld [vmem:[%s972 + $0x30] sm:$0x1]
        %v986 = vsel %vm398, 0, %v985
        %987 = vst [vmem:[%s972 + $0x30] sm:$0x1] %v986
        %v988 = vld [vmem:[%s972 + $0x3c] sm:$0x1]
        %v989 = vsel %vm398, 0, %v988
        %990 = vst [vmem:[%s972 + $0x3c] sm:$0x1] %v989
        %v991 = vld [vmem:[%s972 + $0x48] sm:$0x1]
        %v992 = vsel %vm398, 0, %v991
        %993 = vst [vmem:[%s972 + $0x48] sm:$0x1] %v992
        %v994 = vld [vmem:[%s972 + $0x54] sm:$0x1]
        %v995 = vsel %vm398, 0, %v994
        %996 = vst [vmem:[%s972 + $0x54] sm:$0x1] %v995
        %v997 = vld [vmem:[%s972 + $0x60] sm:$0x1]
        %v998 = vsel %vm398, 0, %v997
        %999 = vst [vmem:[%s972 + $0x60] sm:$0x1] %v998
        %v1000 = vld [vmem:[%s972 + $0x6c] sm:$0x1]
        %v1001 = vsel %vm398, 0, %v1000
        %1002 = vst [vmem:[%s972 + $0x6c] sm:$0x1] %v1001
        %v1003 = vld [vmem:[%s972 + $0x78] sm:$0x1]
        %v1004 = vsel %vm398, 0, %v1003
        %1005 = vst [vmem:[%s972 + $0x78] sm:$0x1] %v1004
        %v1006 = vld [vmem:[%s972 + $0x84] sm:$0x1]
        %v1007 = vsel %vm398, 0, %v1006
        %1008 = vst [vmem:[%s972 + $0x84] sm:$0x1] %v1007
        %v1009 = vld [vmem:[%s972 + $0x90] sm:$0x1]
        %v1010 = vsel %vm398, 0, %v1009
        %1011 = vst [vmem:[%s972 + $0x90] sm:$0x1] %v1010
        %v1012 = vld [vmem:[%s972 + $0x9c] sm:$0x1]
        %v1013 = vsel %vm398, 0, %v1012
        %1014 = vst [vmem:[%s972 + $0x9c] sm:$0x1] %v1013
        %v1015 = vld [vmem:[%s972 + $0xa8] sm:$0x1]
        %v1016 = vsel %vm398, 0, %v1015
        %1017 = vst [vmem:[%s972 + $0xa8] sm:$0x1] %v1016
        %v1018 = vld [vmem:[%s972 + $0xb4] sm:$0x1]
        %v1019 = vsel %vm398, 0, %v1018
        %1020 = vst [vmem:[%s972 + $0xb4] sm:$0x1] %v1019
        %v1021 = vld [vmem:[%s972 + $0x8] sm:$0x1]
        %v1022 = vsel %vm448, 0, %v1021
        %1023 = vst [vmem:[%s972 + $0x8] sm:$0x1] %v1022
        %v1024 = vld [vmem:[%s972 + $0x14] sm:$0x1]
        %v1025 = vsel %vm448, 0, %v1024
        %1026 = vst [vmem:[%s972 + $0x14] sm:$0x1] %v1025
        %v1027 = vld [vmem:[%s972 + $0x20] sm:$0x1]
        %v1028 = vsel %vm448, 0, %v1027
        %1029 = vst [vmem:[%s972 + $0x20] sm:$0x1] %v1028
        %v1030 = vld [vmem:[%s972 + $0x2c] sm:$0x1]
        %v1031 = vsel %vm448, 0, %v1030
        %1032 = vst [vmem:[%s972 + $0x2c] sm:$0x1] %v1031
        %v1033 = vld [vmem:[%s972 + $0x38] sm:$0x1]
        %v1034 = vsel %vm448, 0, %v1033
        %1035 = vst [vmem:[%s972 + $0x38] sm:$0x1] %v1034
        %v1036 = vld [vmem:[%s972 + $0x44] sm:$0x1]
        %v1037 = vsel %vm448, 0, %v1036
        %1038 = vst [vmem:[%s972 + $0x44] sm:$0x1] %v1037
        %v1039 = vld [vmem:[%s972 + $0x50] sm:$0x1]
        %v1040 = vsel %vm448, 0, %v1039
        %1041 = vst [vmem:[%s972 + $0x50] sm:$0x1] %v1040
        %v1042 = vld [vmem:[%s972 + $0x5c] sm:$0x1]
        %v1043 = vsel %vm448, 0, %v1042
        %1044 = vst [vmem:[%s972 + $0x5c] sm:$0x1] %v1043
        %v1045 = vld [vmem:[%s972 + $0x68] sm:$0x1]
        %v1046 = vsel %vm448, 0, %v1045
        %1047 = vst [vmem:[%s972 + $0x68] sm:$0x1] %v1046
        %v1048 = vld [vmem:[%s972 + $0x74] sm:$0x1]
        %v1049 = vsel %vm448, 0, %v1048
        %1050 = vst [vmem:[%s972 + $0x74] sm:$0x1] %v1049
        %v1051 = vld [vmem:[%s972 + $0x80] sm:$0x1]
        %v1052 = vsel %vm448, 0, %v1051
        %1053 = vst [vmem:[%s972 + $0x80] sm:$0x1] %v1052
        %v1054 = vld [vmem:[%s972 + $0x8c] sm:$0x1]
        %v1055 = vsel %vm448, 0, %v1054
        %1056 = vst [vmem:[%s972 + $0x8c] sm:$0x1] %v1055
        %v1057 = vld [vmem:[%s972 + $0x98] sm:$0x1]
        %v1058 = vsel %vm448, 0, %v1057
        %1059 = vst [vmem:[%s972 + $0x98] sm:$0x1] %v1058
        %v1060 = vld [vmem:[%s972 + $0xa4] sm:$0x1]
        %v1061 = vsel %vm448, 0, %v1060
        %1062 = vst [vmem:[%s972 + $0xa4] sm:$0x1] %v1061
        %v1063 = vld [vmem:[%s972 + $0xb0] sm:$0x1]
        %v1064 = vsel %vm448, 0, %v1063
        %1065 = vst [vmem:[%s972 + $0xb0] sm:$0x1] %v1064
        %v1066 = vld [vmem:[%s972 + $0xbc] sm:$0x1]
        %v1067 = vsel %vm448, 0, %v1066
        %1068 = vst [vmem:[%s972 + $0xbc] sm:$0x1] %v1067
        %v1069 = vld [vmem:[#allocation2] sm:$0xf]
        %v1070 = vld [vmem:[#allocation2 + $0x4] sm:$0xf]
        %v1071 = vld [vmem:[#allocation2 + $0xc] sm:$0xf]
        %v1072 = vld [vmem:[#allocation2 + $0x10] sm:$0xf]
        %v1073 = vld [vmem:[#allocation2 + $0x18] sm:$0xf]
        %v1074 = vld [vmem:[#allocation2 + $0x1c] sm:$0xf]
        %v1075 = vld [vmem:[#allocation2 + $0x24] sm:$0xf]
        %v1076 = vld [vmem:[#allocation2 + $0x28] sm:$0xf]
        %v1077 = vld [vmem:[#allocation2 + $0x30] sm:$0xf]
        %v1078 = vld [vmem:[#allocation2 + $0x34] sm:$0xf]
        %v1079 = vld [vmem:[#allocation2 + $0x3c] sm:$0xf]
        %v1080 = vld [vmem:[#allocation2 + $0x40] sm:$0xf]
        %v1081 = vld [vmem:[#allocation2 + $0x48] sm:$0xf]
        %v1082 = vld [vmem:[#allocation2 + $0x4c] sm:$0xf]
        %v1083 = vld [vmem:[#allocation2 + $0x54] sm:$0xf]
        %v1084 = vld [vmem:[#allocation2 + $0x58] sm:$0xf]
        %v1085 = vld [vmem:[#allocation2 + $0x60] sm:$0xf]
        %v1086 = vld [vmem:[#allocation2 + $0x64] sm:$0xf]
        %v1087 = vld [vmem:[#allocation2 + $0x6c] sm:$0xf]
        %v1088 = vld [vmem:[#allocation2 + $0x70] sm:$0xf]
        %v1089 = vld [vmem:[#allocation2 + $0x78] sm:$0xf]
        %v1090 = vld [vmem:[#allocation2 + $0x7c] sm:$0xf]
        %v1091 = vld [vmem:[#allocation2 + $0x84] sm:$0xf]
        %v1092 = vld [vmem:[#allocation2 + $0x88] sm:$0xf]
        %v1093 = vld [vmem:[#allocation2 + $0x90] sm:$0xf]
        %v1094 = vld [vmem:[#allocation2 + $0x94] sm:$0xf]
        %v1095 = vld [vmem:[#allocation2 + $0x9c] sm:$0xf]
        %v1096 = vld [vmem:[#allocation2 + $0xa0] sm:$0xf]
        %v1097 = vld [vmem:[#allocation2 + $0xa8] sm:$0xf]
        %v1098 = vld [vmem:[#allocation2 + $0xac] sm:$0xf]
        %v1099 = vld [vmem:[#allocation2 + $0xb4] sm:$0xf]
        %v1100 = vld [vmem:[#allocation2 + $0xb8] sm:$0xf]
        %v1101 = vld [vmem:[#allocation2 + $0x8] sm:$0x1]
        %v1102 = vld [vmem:[#allocation2 + $0x14] sm:$0x1]
        %v1103 = vld [vmem:[#allocation2 + $0x20] sm:$0x1]
        %v1104 = vld [vmem:[#allocation2 + $0x2c] sm:$0x1]
        %v1105 = vld [vmem:[#allocation2 + $0x38] sm:$0x1]
        %v1106 = vld [vmem:[#allocation2 + $0x44] sm:$0x1]
        %v1107 = vld [vmem:[#allocation2 + $0x50] sm:$0x1]
        %v1108 = vld [vmem:[#allocation2 + $0x5c] sm:$0x1]
        %v1109 = vld [vmem:[#allocation2 + $0x68] sm:$0x1]
        %v1110 = vld [vmem:[#allocation2 + $0x74] sm:$0x1]
        %v1111 = vld [vmem:[#allocation2 + $0x80] sm:$0x1]
        %v1112 = vld [vmem:[#allocation2 + $0x8c] sm:$0x1]
        %v1113 = vld [vmem:[#allocation2 + $0x98] sm:$0x1]
        %v1114 = vld [vmem:[#allocation2 + $0xa4] sm:$0x1]
        %v1115 = vld [vmem:[#allocation2 + $0xb0] sm:$0x1]
        %v1116 = vld [vmem:[#allocation2 + $0xbc] sm:$0x1]
        %v1117 = vld [vmem:[#allocation2] sm:$0xe]
        %v1118 = vld [vmem:[#allocation2 + $0xc] sm:$0xe]
        %v1119 = vld [vmem:[#allocation2 + $0x18] sm:$0xe]
        %v1120 = vld [vmem:[#allocation2 + $0x24] sm:$0xe]
        %v1121 = vld [vmem:[#allocation2 + $0x30] sm:$0xe]
        %v1122 = vld [vmem:[#allocation2 + $0x3c] sm:$0xe]
        %v1123 = vld [vmem:[#allocation2 + $0x48] sm:$0xe]
        %v1124 = vld [vmem:[#allocation2 + $0x54] sm:$0xe]
        %v1125 = vld [vmem:[#allocation2 + $0x60] sm:$0xe]
        %v1126 = vld [vmem:[#allocation2 + $0x6c] sm:$0xe]
        %v1127 = vld [vmem:[#allocation2 + $0x78] sm:$0xe]
        %v1128 = vld [vmem:[#allocation2 + $0x84] sm:$0xe]
        %v1129 = vld [vmem:[#allocation2 + $0x90] sm:$0xe]
        %v1130 = vld [vmem:[#allocation2 + $0x9c] sm:$0xe]
        %v1131 = vld [vmem:[#allocation2 + $0xa8] sm:$0xe]
        %v1132 = vld [vmem:[#allocation2 + $0xb4] sm:$0xe]
        %v1165 = vunpack.c.l.b16 %v1069
        %v1166 = vunpack.c.l.b16 %v1070
        %v1167 = vunpack.c.l.b16 %v1071
        %v1168 = vunpack.c.l.b16 %v1072
        %v1169 = vunpack.c.l.b16 %v1073
        %v1170 = vunpack.c.l.b16 %v1074
        %v1171 = vunpack.c.l.b16 %v1075
        %v1172 = vunpack.c.l.b16 %v1076
        %v1173 = vunpack.c.l.b16 %v1077
        %v1174 = vunpack.c.l.b16 %v1078
        %v1175 = vunpack.c.l.b16 %v1079
        %v1176 = vunpack.c.l.b16 %v1080
        %v1177 = vunpack.c.l.b16 %v1081
        %v1178 = vunpack.c.l.b16 %v1082
        %v1179 = vunpack.c.l.b16 %v1083
        %v1180 = vunpack.c.l.b16 %v1084
        %v1181 = vunpack.c.l.b16 %v1085
        %v1182 = vunpack.c.l.b16 %v1086
        %v1183 = vunpack.c.l.b16 %v1087
        %v1184 = vunpack.c.l.b16 %v1088
        %v1185 = vunpack.c.l.b16 %v1089
        %v1186 = vunpack.c.l.b16 %v1090
        %v1187 = vunpack.c.l.b16 %v1091
        %v1188 = vunpack.c.l.b16 %v1092
        %v1189 = vunpack.c.l.b16 %v1093
        %v1190 = vunpack.c.l.b16 %v1094
        %v1191 = vunpack.c.l.b16 %v1095
        %v1192 = vunpack.c.l.b16 %v1096
        %v1193 = vunpack.c.l.b16 %v1097
        %v1194 = vunpack.c.l.b16 %v1098
        %v1195 = vunpack.c.l.b16 %v1099
        %v1196 = vunpack.c.l.b16 %v1100
        %v1197 = vpack.c.b16 %v1166, %v1165
        %v1198 = vpack.c.b16 %v1168, %v1167
        %v1199 = vpack.c.b16 %v1170, %v1169
        %v1200 = vpack.c.b16 %v1172, %v1171
        %v1201 = vpack.c.b16 %v1174, %v1173
        %v1202 = vpack.c.b16 %v1176, %v1175
        %v1203 = vpack.c.b16 %v1178, %v1177
        %v1204 = vpack.c.b16 %v1180, %v1179
        %v1205 = vpack.c.b16 %v1182, %v1181
        %v1206 = vpack.c.b16 %v1184, %v1183
        %v1207 = vpack.c.b16 %v1186, %v1185
        %v1208 = vpack.c.b16 %v1188, %v1187
        %v1209 = vpack.c.b16 %v1190, %v1189
        %v1210 = vpack.c.b16 %v1192, %v1191
        %v1211 = vpack.c.b16 %v1194, %v1193
        %v1212 = vpack.c.b16 %v1196, %v1195
        %v1245 = vunpack.c.l.b16 %v1101
        %v1246 = vunpack.c.l.b16 %v1102
        %v1247 = vunpack.c.l.b16 %v1103
        %v1248 = vunpack.c.l.b16 %v1104
        %v1249 = vunpack.c.l.b16 %v1105
        %v1250 = vunpack.c.l.b16 %v1106
        %v1251 = vunpack.c.l.b16 %v1107
        %v1252 = vunpack.c.l.b16 %v1108
        %v1253 = vunpack.c.l.b16 %v1109
        %v1254 = vunpack.c.l.b16 %v1110
        %v1255 = vunpack.c.l.b16 %v1111
        %v1256 = vunpack.c.l.b16 %v1112
        %v1257 = vunpack.c.l.b16 %v1113
        %v1258 = vunpack.c.l.b16 %v1114
        %v1259 = vunpack.c.l.b16 %v1115
        %v1260 = vunpack.c.l.b16 %v1116
        %v1261 = vpack.c.b16 %v1245, %v1245
        %v1262 = vpack.c.b16 %v1246, %v1246
        %v1263 = vpack.c.b16 %v1247, %v1247
        %v1264 = vpack.c.b16 %v1248, %v1248
        %v1265 = vpack.c.b16 %v1249, %v1249
        %v1266 = vpack.c.b16 %v1250, %v1250
        %v1267 = vpack.c.b16 %v1251, %v1251
        %v1268 = vpack.c.b16 %v1252, %v1252
        %v1269 = vpack.c.b16 %v1253, %v1253
        %v1270 = vpack.c.b16 %v1254, %v1254
        %v1271 = vpack.c.b16 %v1255, %v1255
        %v1272 = vpack.c.b16 %v1256, %v1256
        %v1273 = vpack.c.b16 %v1257, %v1257
        %v1274 = vpack.c.b16 %v1258, %v1258
        %v1275 = vpack.c.b16 %v1259, %v1259
        %v1276 = vpack.c.b16 %v1260, %v1260
        %vm1277 = vsmask.f32 7424
        %v1279 = vshrl.u32 %v1197, 16
        %v1281 = vshll.u32 %v1197, 16
        %v1283 = vrot.slane %v1281, 1
        %v1284 = vor.u32 %v1279, %v1283
        %v1286 = vshll.u32 %v1261, 16
        %v1288 = vrot.slane %v1286, 1
        %v1289 = vsel %vm1277, %v1284, %v1288
        %v1291 = vshrl.u32 %v1198, 16
        %v1293 = vshll.u32 %v1198, 16
        %v1295 = vrot.slane %v1293, 1
        %v1296 = vor.u32 %v1291, %v1295
        %v1298 = vshll.u32 %v1262, 16
        %v1300 = vrot.slane %v1298, 1
        %v1301 = vsel %vm1277, %v1296, %v1300
        %v1303 = vshrl.u32 %v1199, 16
        %v1305 = vshll.u32 %v1199, 16
        %v1307 = vrot.slane %v1305, 1
        %v1308 = vor.u32 %v1303, %v1307
        %v1310 = vshll.u32 %v1263, 16
        %v1312 = vrot.slane %v1310, 1
        %v1313 = vsel %vm1277, %v1308, %v1312
        %v1315 = vshrl.u32 %v1200, 16
        %v1317 = vshll.u32 %v1200, 16
        %v1319 = vrot.slane %v1317, 1
        %v1320 = vor.u32 %v1315, %v1319
        %v1322 = vshll.u32 %v1264, 16
        %v1324 = vrot.slane %v1322, 1
        %v1325 = vsel %vm1277, %v1320, %v1324
        %v1327 = vshrl.u32 %v1201, 16
        %v1329 = vshll.u32 %v1201, 16
        %v1331 = vrot.slane %v1329, 1
        %v1332 = vor.u32 %v1327, %v1331
        %v1334 = vshll.u32 %v1265, 16
        %v1336 = vrot.slane %v1334, 1
        %v1337 = vsel %vm1277, %v1332, %v1336
        %v1339 = vshrl.u32 %v1202, 16
        %v1341 = vshll.u32 %v1202, 16
        %v1343 = vrot.slane %v1341, 1
        %v1344 = vor.u32 %v1339, %v1343
        %v1346 = vshll.u32 %v1266, 16
        %v1348 = vrot.slane %v1346, 1
        %v1349 = vsel %vm1277, %v1344, %v1348
        %v1351 = vshrl.u32 %v1203, 16
        %v1353 = vshll.u32 %v1203, 16
        %v1355 = vrot.slane %v1353, 1
        %v1356 = vor.u32 %v1351, %v1355
        %v1358 = vshll.u32 %v1267, 16
        %v1360 = vrot.slane %v1358, 1
        %v1361 = vsel %vm1277, %v1356, %v1360
        %v1363 = vshrl.u32 %v1204, 16
        %v1365 = vshll.u32 %v1204, 16
        %v1367 = vrot.slane %v1365, 1
        %v1368 = vor.u32 %v1363, %v1367
        %v1370 = vshll.u32 %v1268, 16
        %v1372 = vrot.slane %v1370, 1
        %v1373 = vsel %vm1277, %v1368, %v1372
        %v1375 = vshrl.u32 %v1205, 16
        %v1377 = vshll.u32 %v1205, 16
        %v1379 = vrot.slane %v1377, 1
        %v1380 = vor.u32 %v1375, %v1379
        %v1382 = vshll.u32 %v1269, 16
        %v1384 = vrot.slane %v1382, 1
        %v1385 = vsel %vm1277, %v1380, %v1384
        %v1387 = vshrl.u32 %v1206, 16
        %v1389 = vshll.u32 %v1206, 16
        %v1391 = vrot.slane %v1389, 1
        %v1392 = vor.u32 %v1387, %v1391
        %v1394 = vshll.u32 %v1270, 16
        %v1396 = vrot.slane %v1394, 1
        %v1397 = vsel %vm1277, %v1392, %v1396
        %v1399 = vshrl.u32 %v1207, 16
        %v1401 = vshll.u32 %v1207, 16
        %v1403 = vrot.slane %v1401, 1
        %v1404 = vor.u32 %v1399, %v1403
        %v1406 = vshll.u32 %v1271, 16
        %v1408 = vrot.slane %v1406, 1
        %v1409 = vsel %vm1277, %v1404, %v1408
        %v1411 = vshrl.u32 %v1208, 16
        %v1413 = vshll.u32 %v1208, 16
        %v1415 = vrot.slane %v1413, 1
        %v1416 = vor.u32 %v1411, %v1415
        %v1418 = vshll.u32 %v1272, 16
        %v1420 = vrot.slane %v1418, 1
        %v1421 = vsel %vm1277, %v1416, %v1420
        %v1423 = vshrl.u32 %v1209, 16
        %v1425 = vshll.u32 %v1209, 16
        %v1427 = vrot.slane %v1425, 1
        %v1428 = vor.u32 %v1423, %v1427
        %v1430 = vshll.u32 %v1273, 16
        %v1432 = vrot.slane %v1430, 1
        %v1433 = vsel %vm1277, %v1428, %v1432
        %v1435 = vshrl.u32 %v1210, 16
        %v1437 = vshll.u32 %v1210, 16
        %v1439 = vrot.slane %v1437, 1
        %v1440 = vor.u32 %v1435, %v1439
        %v1442 = vshll.u32 %v1274, 16
        %v1444 = vrot.slane %v1442, 1
        %v1445 = vsel %vm1277, %v1440, %v1444
        %v1447 = vshrl.u32 %v1211, 16
        %v1449 = vshll.u32 %v1211, 16
        %v1451 = vrot.slane %v1449, 1
        %v1452 = vor.u32 %v1447, %v1451
        %v1454 = vshll.u32 %v1275, 16
        %v1456 = vrot.slane %v1454, 1
        %v1457 = vsel %vm1277, %v1452, %v1456
        %v1459 = vshrl.u32 %v1212, 16
        %v1461 = vshll.u32 %v1212, 16
        %v1463 = vrot.slane %v1461, 1
        %v1464 = vor.u32 %v1459, %v1463
        %v1466 = vshll.u32 %v1276, 16
        %v1468 = vrot.slane %v1466, 1
        %v1469 = vsel %vm1277, %v1464, %v1468
        %v1502 = vunpack.c.l.b16 %v1117
        %v1503 = vunpack.c.l.b16 %v1118
        %v1504 = vunpack.c.l.b16 %v1119
        %v1505 = vunpack.c.l.b16 %v1120
        %v1506 = vunpack.c.l.b16 %v1121
        %v1507 = vunpack.c.l.b16 %v1122
        %v1508 = vunpack.c.l.b16 %v1123
        %v1509 = vunpack.c.l.b16 %v1124
        %v1510 = vunpack.c.l.b16 %v1125
        %v1511 = vunpack.c.l.b16 %v1126
        %v1512 = vunpack.c.l.b16 %v1127
        %v1513 = vunpack.c.l.b16 %v1128
        %v1514 = vunpack.c.l.b16 %v1129
        %v1515 = vunpack.c.l.b16 %v1130
        %v1516 = vunpack.c.l.b16 %v1131
        %v1517 = vunpack.c.l.b16 %v1132
        %v1518 = vpack.c.b16 %v1166, %v1502
        %v1519 = vpack.c.b16 %v1168, %v1503
        %v1520 = vpack.c.b16 %v1170, %v1504
        %v1521 = vpack.c.b16 %v1172, %v1505
        %v1522 = vpack.c.b16 %v1174, %v1506
        %v1523 = vpack.c.b16 %v1176, %v1507
        %v1524 = vpack.c.b16 %v1178, %v1508
        %v1525 = vpack.c.b16 %v1180, %v1509
        %v1526 = vpack.c.b16 %v1182, %v1510
        %v1527 = vpack.c.b16 %v1184, %v1511
        %v1528 = vpack.c.b16 %v1186, %v1512
        %v1529 = vpack.c.b16 %v1188, %v1513
        %v1530 = vpack.c.b16 %v1190, %v1514
        %v1531 = vpack.c.b16 %v1192, %v1515
        %v1532 = vpack.c.b16 %v1194, %v1516
        %v1533 = vpack.c.b16 %v1196, %v1517
        %vm1534 = vcmask 1046528
        %v1535 = vrot.slane %v1518, 1
        %v1536 = vrot.slane %v1261, 1
        %v1537 = vsel %vm1534, %v1535, %v1536
        %v1538 = vrot.slane %v1519, 1
        %v1539 = vrot.slane %v1262, 1
        %v1540 = vsel %vm1534, %v1538, %v1539
        %v1541 = vrot.slane %v1520, 1
        %v1542 = vrot.slane %v1263, 1
        %v1543 = vsel %vm1534, %v1541, %v1542
        %v1544 = vrot.slane %v1521, 1
        %v1545 = vrot.slane %v1264, 1
        %v1546 = vsel %vm1534, %v1544, %v1545
        %v1547 = vrot.slane %v1522, 1
        %v1548 = vrot.slane %v1265, 1
        %v1549 = vsel %vm1534, %v1547, %v1548
        %v1550 = vrot.slane %v1523, 1
        %v1551 = vrot.slane %v1266, 1
        %v1552 = vsel %vm1534, %v1550, %v1551
        %v1553 = vrot.slane %v1524, 1
        %v1554 = vrot.slane %v1267, 1
        %v1555 = vsel %vm1534, %v1553, %v1554
        %v1556 = vrot.slane %v1525, 1
        %v1557 = vrot.slane %v1268, 1
        %v1558 = vsel %vm1534, %v1556, %v1557
        %v1559 = vrot.slane %v1526, 1
        %v1560 = vrot.slane %v1269, 1
        %v1561 = vsel %vm1534, %v1559, %v1560
        %v1562 = vrot.slane %v1527, 1
        %v1563 = vrot.slane %v1270, 1
        %v1564 = vsel %vm1534, %v1562, %v1563
        %v1565 = vrot.slane %v1528, 1
        %v1566 = vrot.slane %v1271, 1
        %v1567 = vsel %vm1534, %v1565, %v1566
        %v1568 = vrot.slane %v1529, 1
        %v1569 = vrot.slane %v1272, 1
        %v1570 = vsel %vm1534, %v1568, %v1569
        %v1571 = vrot.slane %v1530, 1
        %v1572 = vrot.slane %v1273, 1
        %v1573 = vsel %vm1534, %v1571, %v1572
        %v1574 = vrot.slane %v1531, 1
        %v1575 = vrot.slane %v1274, 1
        %v1576 = vsel %vm1534, %v1574, %v1575
        %v1577 = vrot.slane %v1532, 1
        %v1578 = vrot.slane %v1275, 1
        %v1579 = vsel %vm1534, %v1577, %v1578
        %v1580 = vrot.slane %v1533, 1
        %v1581 = vrot.slane %v1276, 1
        %v1582 = vsel %vm1534, %v1580, %v1581
        %v1599 = vld [vmem:[%s1] sm:$0xf]
        %v1600 = vld [vmem:[%s1 + $0x4] sm:$0xf]
        %v1601 = vld [vmem:[%s1 + $0x8] sm:$0xf]
        %v1602 = vld [vmem:[%s1 + $0xc] sm:$0xf]
        %v1603 = vld [vmem:[%s1 + $0x10] sm:$0xf]
        %v1604 = vld [vmem:[%s1 + $0x14] sm:$0xf]
        %v1605 = vld [vmem:[%s1 + $0x18] sm:$0xf]
        %v1606 = vld [vmem:[%s1 + $0x1c] sm:$0xf]
        %v1607 = vld [vmem:[%s1 + $0x20] sm:$0xf]
        %v1608 = vld [vmem:[%s1 + $0x24] sm:$0xf]
        %v1609 = vld [vmem:[%s1 + $0x28] sm:$0xf]
        %v1610 = vld [vmem:[%s1 + $0x2c] sm:$0xf]
        %v1611 = vld [vmem:[%s1 + $0x30] sm:$0xf]
        %v1612 = vld [vmem:[%s1 + $0x34] sm:$0xf]
        %v1613 = vld [vmem:[%s1 + $0x38] sm:$0xf]
        %v1614 = vld [vmem:[%s1 + $0x3c] sm:$0xf]
        %v1615 = vld [vmem:[%s1 + $0x40] sm:$0xf]
        %v1616 = vld [vmem:[%s1 + $0x44] sm:$0xf]
        %v1617 = vld [vmem:[%s1 + $0x48] sm:$0xf]
        %v1618 = vld [vmem:[%s1 + $0x4c] sm:$0xf]
        %v1619 = vld [vmem:[%s1 + $0x50] sm:$0xf]
        %v1620 = vld [vmem:[%s1 + $0x54] sm:$0xf]
        %v1621 = vld [vmem:[%s1 + $0x58] sm:$0xf]
        %v1622 = vld [vmem:[%s1 + $0x5c] sm:$0xf]
        %v1623 = vld [vmem:[%s1 + $0x60] sm:$0xf]
        %v1624 = vld [vmem:[%s1 + $0x64] sm:$0xf]
        %v1625 = vld [vmem:[%s1 + $0x68] sm:$0xf]
        %v1626 = vld [vmem:[%s1 + $0x6c] sm:$0xf]
        %v1627 = vld [vmem:[%s1 + $0x70] sm:$0xf]
        %v1628 = vld [vmem:[%s1 + $0x74] sm:$0xf]
        %v1629 = vld [vmem:[%s1 + $0x78] sm:$0xf]
        %v1630 = vld [vmem:[%s1 + $0x7c] sm:$0xf]
        %v1631 = vld [vmem:[%s1 + $0x80] sm:$0xf]
        %v1632 = vld [vmem:[%s1 + $0x84] sm:$0xf]
        %v1633 = vld [vmem:[%s1 + $0x88] sm:$0xf]
        %v1634 = vld [vmem:[%s1 + $0x8c] sm:$0xf]
        %v1635 = vld [vmem:[%s1 + $0x90] sm:$0xf]
        %v1636 = vld [vmem:[%s1 + $0x94] sm:$0xf]
        %v1637 = vld [vmem:[%s1 + $0x98] sm:$0xf]
        %v1638 = vld [vmem:[%s1 + $0x9c] sm:$0xf]
        %v1639 = vld [vmem:[%s1 + $0xa0] sm:$0xf]
        %v1640 = vld [vmem:[%s1 + $0xa4] sm:$0xf]
        %v1641 = vld [vmem:[%s1 + $0xa8] sm:$0xf]
        %v1642 = vld [vmem:[%s1 + $0xac] sm:$0xf]
        %v1643 = vld [vmem:[%s1 + $0xb0] sm:$0xf]
        %v1644 = vld [vmem:[%s1 + $0xb4] sm:$0xf]
        %v1645 = vld [vmem:[%s1 + $0xb8] sm:$0xf]
        %v1646 = vld [vmem:[%s1 + $0xbc] sm:$0xf]
        %v1647 = vld [vmem:[%s395] sm:$0xf]
        %v1648 = vld [vmem:[%s395 + $0x4] sm:$0xf]
        %v1649 = vld [vmem:[%s395 + $0xc] sm:$0xf]
        %v1650 = vld [vmem:[%s395 + $0x10] sm:$0xf]
        %v1651 = vld [vmem:[%s395 + $0x18] sm:$0xf]
        %v1652 = vld [vmem:[%s395 + $0x1c] sm:$0xf]
        %v1653 = vld [vmem:[%s395 + $0x24] sm:$0xf]
        %v1654 = vld [vmem:[%s395 + $0x28] sm:$0xf]
        %v1655 = vld [vmem:[%s395 + $0x30] sm:$0xf]
        %v1656 = vld [vmem:[%s395 + $0x34] sm:$0xf]
        %v1657 = vld [vmem:[%s395 + $0x3c] sm:$0xf]
        %v1658 = vld [vmem:[%s395 + $0x40] sm:$0xf]
        %v1659 = vld [vmem:[%s395 + $0x48] sm:$0xf]
        %v1660 = vld [vmem:[%s395 + $0x4c] sm:$0xf]
        %v1661 = vld [vmem:[%s395 + $0x54] sm:$0xf]
        %v1662 = vld [vmem:[%s395 + $0x58] sm:$0xf]
        %v1663 = vld [vmem:[%s395 + $0x60] sm:$0xf]
        %v1664 = vld [vmem:[%s395 + $0x64] sm:$0xf]
        %v1665 = vld [vmem:[%s395 + $0x6c] sm:$0xf]
        %v1666 = vld [vmem:[%s395 + $0x70] sm:$0xf]
        %v1667 = vld [vmem:[%s395 + $0x78] sm:$0xf]
        %v1668 = vld [vmem:[%s395 + $0x7c] sm:$0xf]
        %v1669 = vld [vmem:[%s395 + $0x84] sm:$0xf]
        %v1670 = vld [vmem:[%s395 + $0x88] sm:$0xf]
        %v1671 = vld [vmem:[%s395 + $0x90] sm:$0xf]
        %v1672 = vld [vmem:[%s395 + $0x94] sm:$0xf]
        %v1673 = vld [vmem:[%s395 + $0x9c] sm:$0xf]
        %v1674 = vld [vmem:[%s395 + $0xa0] sm:$0xf]
        %v1675 = vld [vmem:[%s395 + $0xa8] sm:$0xf]
        %v1676 = vld [vmem:[%s395 + $0xac] sm:$0xf]
        %v1677 = vld [vmem:[%s395 + $0xb4] sm:$0xf]
        %v1678 = vld [vmem:[%s395 + $0xb8] sm:$0xf]
        %v1679 = vld [vmem:[%s395 + $0x8] sm:$0x1]
        %v1680 = vld [vmem:[%s395 + $0x14] sm:$0x1]
        %v1681 = vld [vmem:[%s395 + $0x20] sm:$0x1]
        %v1682 = vld [vmem:[%s395 + $0x2c] sm:$0x1]
        %v1683 = vld [vmem:[%s395 + $0x38] sm:$0x1]
        %v1684 = vld [vmem:[%s395 + $0x44] sm:$0x1]
        %v1685 = vld [vmem:[%s395 + $0x50] sm:$0x1]
        %v1686 = vld [vmem:[%s395 + $0x5c] sm:$0x1]
        %v1687 = vld [vmem:[%s395 + $0x68] sm:$0x1]
        %v1688 = vld [vmem:[%s395 + $0x74] sm:$0x1]
        %v1689 = vld [vmem:[%s395 + $0x80] sm:$0x1]
        %v1690 = vld [vmem:[%s395 + $0x8c] sm:$0x1]
        %v1691 = vld [vmem:[%s395 + $0x98] sm:$0x1]
        %v1692 = vld [vmem:[%s395 + $0xa4] sm:$0x1]
        %v1693 = vld [vmem:[%s395 + $0xb0] sm:$0x1]
        %v1694 = vld [vmem:[%s395 + $0xbc] sm:$0x1]
        %v1695 = vld [vmem:[%s395] sm:$0xe]
        %v1696 = vld [vmem:[%s395 + $0xc] sm:$0xe]
        %v1697 = vld [vmem:[%s395 + $0x18] sm:$0xe]
        %v1698 = vld [vmem:[%s395 + $0x24] sm:$0xe]
        %v1699 = vld [vmem:[%s395 + $0x30] sm:$0xe]
        %v1700 = vld [vmem:[%s395 + $0x3c] sm:$0xe]
        %v1701 = vld [vmem:[%s395 + $0x48] sm:$0xe]
        %v1702 = vld [vmem:[%s395 + $0x54] sm:$0xe]
        %v1703 = vld [vmem:[%s395 + $0x60] sm:$0xe]
        %v1704 = vld [vmem:[%s395 + $0x6c] sm:$0xe]
        %v1705 = vld [vmem:[%s395 + $0x78] sm:$0xe]
        %v1706 = vld [vmem:[%s395 + $0x84] sm:$0xe]
        %v1707 = vld [vmem:[%s395 + $0x90] sm:$0xe]
        %v1708 = vld [vmem:[%s395 + $0x9c] sm:$0xe]
        %v1709 = vld [vmem:[%s395 + $0xa8] sm:$0xe]
        %v1710 = vld [vmem:[%s395 + $0xb4] sm:$0xe]
        %v1743 = vunpack.c.l.b16 %v1647
        %v1744 = vunpack.c.l.b16 %v1648
        %v1745 = vunpack.c.l.b16 %v1649
        %v1746 = vunpack.c.l.b16 %v1650
        %v1747 = vunpack.c.l.b16 %v1651
        %v1748 = vunpack.c.l.b16 %v1652
        %v1749 = vunpack.c.l.b16 %v1653
        %v1750 = vunpack.c.l.b16 %v1654
        %v1751 = vunpack.c.l.b16 %v1655
        %v1752 = vunpack.c.l.b16 %v1656
        %v1753 = vunpack.c.l.b16 %v1657
        %v1754 = vunpack.c.l.b16 %v1658
        %v1755 = vunpack.c.l.b16 %v1659
        %v1756 = vunpack.c.l.b16 %v1660
        %v1757 = vunpack.c.l.b16 %v1661
        %v1758 = vunpack.c.l.b16 %v1662
        %v1759 = vunpack.c.l.b16 %v1663
        %v1760 = vunpack.c.l.b16 %v1664
        %v1761 = vunpack.c.l.b16 %v1665
        %v1762 = vunpack.c.l.b16 %v1666
        %v1763 = vunpack.c.l.b16 %v1667
        %v1764 = vunpack.c.l.b16 %v1668
        %v1765 = vunpack.c.l.b16 %v1669
        %v1766 = vunpack.c.l.b16 %v1670
        %v1767 = vunpack.c.l.b16 %v1671
        %v1768 = vunpack.c.l.b16 %v1672
        %v1769 = vunpack.c.l.b16 %v1673
        %v1770 = vunpack.c.l.b16 %v1674
        %v1771 = vunpack.c.l.b16 %v1675
        %v1772 = vunpack.c.l.b16 %v1676
        %v1773 = vunpack.c.l.b16 %v1677
        %v1774 = vunpack.c.l.b16 %v1678
        %v1775 = vpack.c.b16 %v1744, %v1743
        %v1776 = vpack.c.b16 %v1746, %v1745
        %v1777 = vpack.c.b16 %v1748, %v1747
        %v1778 = vpack.c.b16 %v1750, %v1749
        %v1779 = vpack.c.b16 %v1752, %v1751
        %v1780 = vpack.c.b16 %v1754, %v1753
        %v1781 = vpack.c.b16 %v1756, %v1755
        %v1782 = vpack.c.b16 %v1758, %v1757
        %v1783 = vpack.c.b16 %v1760, %v1759
        %v1784 = vpack.c.b16 %v1762, %v1761
        %v1785 = vpack.c.b16 %v1764, %v1763
        %v1786 = vpack.c.b16 %v1766, %v1765
        %v1787 = vpack.c.b16 %v1768, %v1767
        %v1788 = vpack.c.b16 %v1770, %v1769
        %v1789 = vpack.c.b16 %v1772, %v1771
        %v1790 = vpack.c.b16 %v1774, %v1773
        %v1823 = vunpack.c.l.b16 %v1679
        %v1824 = vunpack.c.l.b16 %v1680
        %v1825 = vunpack.c.l.b16 %v1681
        %v1826 = vunpack.c.l.b16 %v1682
        %v1827 = vunpack.c.l.b16 %v1683
        %v1828 = vunpack.c.l.b16 %v1684
        %v1829 = vunpack.c.l.b16 %v1685
        %v1830 = vunpack.c.l.b16 %v1686
        %v1831 = vunpack.c.l.b16 %v1687
        %v1832 = vunpack.c.l.b16 %v1688
        %v1833 = vunpack.c.l.b16 %v1689
        %v1834 = vunpack.c.l.b16 %v1690
        %v1835 = vunpack.c.l.b16 %v1691
        %v1836 = vunpack.c.l.b16 %v1692
        %v1837 = vunpack.c.l.b16 %v1693
        %v1838 = vunpack.c.l.b16 %v1694
        %v1839 = vpack.c.b16 %v1823, %v1823
        %v1840 = vpack.c.b16 %v1824, %v1824
        %v1841 = vpack.c.b16 %v1825, %v1825
        %v1842 = vpack.c.b16 %v1826, %v1826
        %v1843 = vpack.c.b16 %v1827, %v1827
        %v1844 = vpack.c.b16 %v1828, %v1828
        %v1845 = vpack.c.b16 %v1829, %v1829
        %v1846 = vpack.c.b16 %v1830, %v1830
        %v1847 = vpack.c.b16 %v1831, %v1831
        %v1848 = vpack.c.b16 %v1832, %v1832
        %v1849 = vpack.c.b16 %v1833, %v1833
        %v1850 = vpack.c.b16 %v1834, %v1834
        %v1851 = vpack.c.b16 %v1835, %v1835
        %v1852 = vpack.c.b16 %v1836, %v1836
        %v1853 = vpack.c.b16 %v1837, %v1837
        %v1854 = vpack.c.b16 %v1838, %v1838
        %v1856 = vshrl.u32 %v1775, 16
        %v1858 = vshll.u32 %v1775, 16
        %v1860 = vrot.slane %v1858, 1
        %v1861 = vor.u32 %v1856, %v1860
        %v1863 = vshll.u32 %v1839, 16
        %v1865 = vrot.slane %v1863, 1
        %v1866 = vsel %vm1277, %v1861, %v1865
        %v1868 = vshrl.u32 %v1776, 16
        %v1870 = vshll.u32 %v1776, 16
        %v1872 = vrot.slane %v1870, 1
        %v1873 = vor.u32 %v1868, %v1872
        %v1875 = vshll.u32 %v1840, 16
        %v1877 = vrot.slane %v1875, 1
        %v1878 = vsel %vm1277, %v1873, %v1877
        %v1880 = vshrl.u32 %v1777, 16
        %v1882 = vshll.u32 %v1777, 16
        %v1884 = vrot.slane %v1882, 1
        %v1885 = vor.u32 %v1880, %v1884
        %v1887 = vshll.u32 %v1841, 16
        %v1889 = vrot.slane %v1887, 1
        %v1890 = vsel %vm1277, %v1885, %v1889
        %v1892 = vshrl.u32 %v1778, 16
        %v1894 = vshll.u32 %v1778, 16
        %v1896 = vrot.slane %v1894, 1
        %v1897 = vor.u32 %v1892, %v1896
        %v1899 = vshll.u32 %v1842, 16
        %v1901 = vrot.slane %v1899, 1
        %v1902 = vsel %vm1277, %v1897, %v1901
        %v1904 = vshrl.u32 %v1779, 16
        %v1906 = vshll.u32 %v1779, 16
        %v1908 = vrot.slane %v1906, 1
        %v1909 = vor.u32 %v1904, %v1908
        %v1911 = vshll.u32 %v1843, 16
        %v1913 = vrot.slane %v1911, 1
        %v1914 = vsel %vm1277, %v1909, %v1913
        %v1916 = vshrl.u32 %v1780, 16
        %v1918 = vshll.u32 %v1780, 16
        %v1920 = vrot.slane %v1918, 1
        %v1921 = vor.u32 %v1916, %v1920
        %v1923 = vshll.u32 %v1844, 16
        %v1925 = vrot.slane %v1923, 1
        %v1926 = vsel %vm1277, %v1921, %v1925
        %v1928 = vshrl.u32 %v1781, 16
        %v1930 = vshll.u32 %v1781, 16
        %v1932 = vrot.slane %v1930, 1
        %v1933 = vor.u32 %v1928, %v1932
        %v1935 = vshll.u32 %v1845, 16
        %v1937 = vrot.slane %v1935, 1
        %v1938 = vsel %vm1277, %v1933, %v1937
        %v1940 = vshrl.u32 %v1782, 16
        %v1942 = vshll.u32 %v1782, 16
        %v1944 = vrot.slane %v1942, 1
        %v1945 = vor.u32 %v1940, %v1944
        %v1947 = vshll.u32 %v1846, 16
        %v1949 = vrot.slane %v1947, 1
        %v1950 = vsel %vm1277, %v1945, %v1949
        %v1952 = vshrl.u32 %v1783, 16
        %v1954 = vshll.u32 %v1783, 16
        %v1956 = vrot.slane %v1954, 1
        %v1957 = vor.u32 %v1952, %v1956
        %v1959 = vshll.u32 %v1847, 16
        %v1961 = vrot.slane %v1959, 1
        %v1962 = vsel %vm1277, %v1957, %v1961
        %v1964 = vshrl.u32 %v1784, 16
        %v1966 = vshll.u32 %v1784, 16
        %v1968 = vrot.slane %v1966, 1
        %v1969 = vor.u32 %v1964, %v1968
        %v1971 = vshll.u32 %v1848, 16
        %v1973 = vrot.slane %v1971, 1
        %v1974 = vsel %vm1277, %v1969, %v1973
        %v1976 = vshrl.u32 %v1785, 16
        %v1978 = vshll.u32 %v1785, 16
        %v1980 = vrot.slane %v1978, 1
        %v1981 = vor.u32 %v1976, %v1980
        %v1983 = vshll.u32 %v1849, 16
        %v1985 = vrot.slane %v1983, 1
        %v1986 = vsel %vm1277, %v1981, %v1985
        %v1988 = vshrl.u32 %v1786, 16
        %v1990 = vshll.u32 %v1786, 16
        %v1992 = vrot.slane %v1990, 1
        %v1993 = vor.u32 %v1988, %v1992
        %v1995 = vshll.u32 %v1850, 16
        %v1997 = vrot.slane %v1995, 1
        %v1998 = vsel %vm1277, %v1993, %v1997
        %v2000 = vshrl.u32 %v1787, 16
        %v2002 = vshll.u32 %v1787, 16
        %v2004 = vrot.slane %v2002, 1
        %v2005 = vor.u32 %v2000, %v2004
        %v2007 = vshll.u32 %v1851, 16
        %v2009 = vrot.slane %v2007, 1
        %v2010 = vsel %vm1277, %v2005, %v2009
        %v2012 = vshrl.u32 %v1788, 16
        %v2014 = vshll.u32 %v1788, 16
        %v2016 = vrot.slane %v2014, 1
        %v2017 = vor.u32 %v2012, %v2016
        %v2019 = vshll.u32 %v1852, 16
        %v2021 = vrot.slane %v2019, 1
        %v2022 = vsel %vm1277, %v2017, %v2021
        %v2024 = vshrl.u32 %v1789, 16
        %v2026 = vshll.u32 %v1789, 16
        %v2028 = vrot.slane %v2026, 1
        %v2029 = vor.u32 %v2024, %v2028
        %v2031 = vshll.u32 %v1853, 16
        %v2033 = vrot.slane %v2031, 1
        %v2034 = vsel %vm1277, %v2029, %v2033
        %v2036 = vshrl.u32 %v1790, 16
        %v2038 = vshll.u32 %v1790, 16
        %v2040 = vrot.slane %v2038, 1
        %v2041 = vor.u32 %v2036, %v2040
        %v2043 = vshll.u32 %v1854, 16
        %v2045 = vrot.slane %v2043, 1
        %v2046 = vsel %vm1277, %v2041, %v2045
        %v2079 = vunpack.c.l.b16 %v1695
        %v2080 = vunpack.c.l.b16 %v1696
        %v2081 = vunpack.c.l.b16 %v1697
        %v2082 = vunpack.c.l.b16 %v1698
        %v2083 = vunpack.c.l.b16 %v1699
        %v2084 = vunpack.c.l.b16 %v1700
        %v2085 = vunpack.c.l.b16 %v1701
        %v2086 = vunpack.c.l.b16 %v1702
        %v2087 = vunpack.c.l.b16 %v1703
        %v2088 = vunpack.c.l.b16 %v1704
        %v2089 = vunpack.c.l.b16 %v1705
        %v2090 = vunpack.c.l.b16 %v1706
        %v2091 = vunpack.c.l.b16 %v1707
        %v2092 = vunpack.c.l.b16 %v1708
        %v2093 = vunpack.c.l.b16 %v1709
        %v2094 = vunpack.c.l.b16 %v1710
        %v2095 = vpack.c.b16 %v1744, %v2079
        %v2096 = vpack.c.b16 %v1746, %v2080
        %v2097 = vpack.c.b16 %v1748, %v2081
        %v2098 = vpack.c.b16 %v1750, %v2082
        %v2099 = vpack.c.b16 %v1752, %v2083
        %v2100 = vpack.c.b16 %v1754, %v2084
        %v2101 = vpack.c.b16 %v1756, %v2085
        %v2102 = vpack.c.b16 %v1758, %v2086
        %v2103 = vpack.c.b16 %v1760, %v2087
        %v2104 = vpack.c.b16 %v1762, %v2088
        %v2105 = vpack.c.b16 %v1764, %v2089
        %v2106 = vpack.c.b16 %v1766, %v2090
        %v2107 = vpack.c.b16 %v1768, %v2091
        %v2108 = vpack.c.b16 %v1770, %v2092
        %v2109 = vpack.c.b16 %v1772, %v2093
        %v2110 = vpack.c.b16 %v1774, %v2094
        %v2111 = vrot.slane %v2095, 1
        %v2112 = vrot.slane %v1839, 1
        %v2113 = vsel %vm1534, %v2111, %v2112
        %v2114 = vrot.slane %v2096, 1
        %v2115 = vrot.slane %v1840, 1
        %v2116 = vsel %vm1534, %v2114, %v2115
        %v2117 = vrot.slane %v2097, 1
        %v2118 = vrot.slane %v1841, 1
        %v2119 = vsel %vm1534, %v2117, %v2118
        %v2120 = vrot.slane %v2098, 1
        %v2121 = vrot.slane %v1842, 1
        %v2122 = vsel %vm1534, %v2120, %v2121
        %v2123 = vrot.slane %v2099, 1
        %v2124 = vrot.slane %v1843, 1
        %v2125 = vsel %vm1534, %v2123, %v2124
        %v2126 = vrot.slane %v2100, 1
        %v2127 = vrot.slane %v1844, 1
        %v2128 = vsel %vm1534, %v2126, %v2127
        %v2129 = vrot.slane %v2101, 1
        %v2130 = vrot.slane %v1845, 1
        %v2131 = vsel %vm1534, %v2129, %v2130
        %v2132 = vrot.slane %v2102, 1
        %v2133 = vrot.slane %v1846, 1
        %v2134 = vsel %vm1534, %v2132, %v2133
        %v2135 = vrot.slane %v2103, 1
        %v2136 = vrot.slane %v1847, 1
        %v2137 = vsel %vm1534, %v2135, %v2136
        %v2138 = vrot.slane %v2104, 1
        %v2139 = vrot.slane %v1848, 1
        %v2140 = vsel %vm1534, %v2138, %v2139
        %v2141 = vrot.slane %v2105, 1
        %v2142 = vrot.slane %v1849, 1
        %v2143 = vsel %vm1534, %v2141, %v2142
        %v2144 = vrot.slane %v2106, 1
        %v2145 = vrot.slane %v1850, 1
        %v2146 = vsel %vm1534, %v2144, %v2145
        %v2147 = vrot.slane %v2107, 1
        %v2148 = vrot.slane %v1851, 1
        %v2149 = vsel %vm1534, %v2147, %v2148
        %v2150 = vrot.slane %v2108, 1
        %v2151 = vrot.slane %v1852, 1
        %v2152 = vsel %vm1534, %v2150, %v2151
        %v2153 = vrot.slane %v2109, 1
        %v2154 = vrot.slane %v1853, 1
        %v2155 = vsel %vm1534, %v2153, %v2154
        %v2156 = vrot.slane %v2110, 1
        %v2157 = vrot.slane %v1854, 1
        %v2158 = vsel %vm1534, %v2156, %v2157
        %v2175 = vld [vmem:[%s1 + $0xc0] sm:$0xf]
        %v2176 = vld [vmem:[%s1 + $0xc4] sm:$0xf]
        %v2177 = vld [vmem:[%s1 + $0xc8] sm:$0xf]
        %v2178 = vld [vmem:[%s1 + $0xcc] sm:$0xf]
        %v2179 = vld [vmem:[%s1 + $0xd0] sm:$0xf]
        %v2180 = vld [vmem:[%s1 + $0xd4] sm:$0xf]
        %v2181 = vld [vmem:[%s1 + $0xd8] sm:$0xf]
        %v2182 = vld [vmem:[%s1 + $0xdc] sm:$0xf]
        %v2183 = vld [vmem:[%s1 + $0xe0] sm:$0xf]
        %v2184 = vld [vmem:[%s1 + $0xe4] sm:$0xf]
        %v2185 = vld [vmem:[%s1 + $0xe8] sm:$0xf]
        %v2186 = vld [vmem:[%s1 + $0xec] sm:$0xf]
        %v2187 = vld [vmem:[%s1 + $0xf0] sm:$0xf]
        %v2188 = vld [vmem:[%s1 + $0xf4] sm:$0xf]
        %v2189 = vld [vmem:[%s1 + $0xf8] sm:$0xf]
        %v2190 = vld [vmem:[%s1 + $0xfc] sm:$0xf]
        %v2191 = vld [vmem:[%s1 + $0x100] sm:$0xf]
        %v2192 = vld [vmem:[%s1 + $0x104] sm:$0xf]
        %v2193 = vld [vmem:[%s1 + $0x108] sm:$0xf]
        %v2194 = vld [vmem:[%s1 + $0x10c] sm:$0xf]
        %v2195 = vld [vmem:[%s1 + $0x110] sm:$0xf]
        %v2196 = vld [vmem:[%s1 + $0x114] sm:$0xf]
        %v2197 = vld [vmem:[%s1 + $0x118] sm:$0xf]
        %v2198 = vld [vmem:[%s1 + $0x11c] sm:$0xf]
        %v2199 = vld [vmem:[%s1 + $0x120] sm:$0xf]
        %v2200 = vld [vmem:[%s1 + $0x124] sm:$0xf]
        %v2201 = vld [vmem:[%s1 + $0x128] sm:$0xf]
        %v2202 = vld [vmem:[%s1 + $0x12c] sm:$0xf]
        %v2203 = vld [vmem:[%s1 + $0x130] sm:$0xf]
        %v2204 = vld [vmem:[%s1 + $0x134] sm:$0xf]
        %v2205 = vld [vmem:[%s1 + $0x138] sm:$0xf]
        %v2206 = vld [vmem:[%s1 + $0x13c] sm:$0xf]
        %v2207 = vld [vmem:[%s1 + $0x140] sm:$0xf]
        %v2208 = vld [vmem:[%s1 + $0x144] sm:$0xf]
        %v2209 = vld [vmem:[%s1 + $0x148] sm:$0xf]
        %v2210 = vld [vmem:[%s1 + $0x14c] sm:$0xf]
        %v2211 = vld [vmem:[%s1 + $0x150] sm:$0xf]
        %v2212 = vld [vmem:[%s1 + $0x154] sm:$0xf]
        %v2213 = vld [vmem:[%s1 + $0x158] sm:$0xf]
        %v2214 = vld [vmem:[%s1 + $0x15c] sm:$0xf]
        %v2215 = vld [vmem:[%s1 + $0x160] sm:$0xf]
        %v2216 = vld [vmem:[%s1 + $0x164] sm:$0xf]
        %v2217 = vld [vmem:[%s1 + $0x168] sm:$0xf]
        %v2218 = vld [vmem:[%s1 + $0x16c] sm:$0xf]
        %v2219 = vld [vmem:[%s1 + $0x170] sm:$0xf]
        %v2220 = vld [vmem:[%s1 + $0x174] sm:$0xf]
        %v2221 = vld [vmem:[%s1 + $0x178] sm:$0xf]
        %v2222 = vld [vmem:[%s1 + $0x17c] sm:$0xf]
        %v2271 = vunpack.c.l.b16 %v2175
        %v2272 = vunpack.c.l.b16 %v2176
        %v2273 = vunpack.c.l.b16 %v2177
        %v2274 = vunpack.c.l.b16 %v2178
        %v2275 = vunpack.c.l.b16 %v2179
        %v2276 = vunpack.c.l.b16 %v2180
        %v2277 = vunpack.c.l.b16 %v2181
        %v2278 = vunpack.c.l.b16 %v2182
        %v2279 = vunpack.c.l.b16 %v2183
        %v2280 = vunpack.c.l.b16 %v2184
        %v2281 = vunpack.c.l.b16 %v2185
        %v2282 = vunpack.c.l.b16 %v2186
        %v2283 = vunpack.c.l.b16 %v2187
        %v2284 = vunpack.c.l.b16 %v2188
        %v2285 = vunpack.c.l.b16 %v2189
        %v2286 = vunpack.c.l.b16 %v2190
        %v2287 = vunpack.c.l.b16 %v2191
        %v2288 = vunpack.c.l.b16 %v2192
        %v2289 = vunpack.c.l.b16 %v2193
        %v2290 = vunpack.c.l.b16 %v2194
        %v2291 = vunpack.c.l.b16 %v2195
        %v2292 = vunpack.c.l.b16 %v2196
        %v2293 = vunpack.c.l.b16 %v2197
        %v2294 = vunpack.c.l.b16 %v2198
        %v2295 = vunpack.c.l.b16 %v2199
        %v2296 = vunpack.c.l.b16 %v2200
        %v2297 = vunpack.c.l.b16 %v2201
        %v2298 = vunpack.c.l.b16 %v2202
        %v2299 = vunpack.c.l.b16 %v2203
        %v2300 = vunpack.c.l.b16 %v2204
        %v2301 = vunpack.c.l.b16 %v2205
        %v2302 = vunpack.c.l.b16 %v2206
        %v2303 = vunpack.c.l.b16 %v2207
        %v2304 = vunpack.c.l.b16 %v2208
        %v2305 = vunpack.c.l.b16 %v2209
        %v2306 = vunpack.c.l.b16 %v2210
        %v2307 = vunpack.c.l.b16 %v2211
        %v2308 = vunpack.c.l.b16 %v2212
        %v2309 = vunpack.c.l.b16 %v2213
        %v2310 = vunpack.c.l.b16 %v2214
        %v2311 = vunpack.c.l.b16 %v2215
        %v2312 = vunpack.c.l.b16 %v2216
        %v2313 = vunpack.c.l.b16 %v2217
        %v2314 = vunpack.c.l.b16 %v2218
        %v2315 = vunpack.c.l.b16 %v2219
        %v2316 = vunpack.c.l.b16 %v2220
        %v2317 = vunpack.c.l.b16 %v2221
        %v2318 = vunpack.c.l.b16 %v2222
        %v2319 = vpack.c.b16 %v2272, %v2271
        %v2320 = vpack.c.b16 %v2274, %v2273
        %v2321 = vpack.c.b16 %v2276, %v2275
        %v2322 = vpack.c.b16 %v2278, %v2277
        %v2323 = vpack.c.b16 %v2280, %v2279
        %v2324 = vpack.c.b16 %v2282, %v2281
        %v2325 = vpack.c.b16 %v2284, %v2283
        %v2326 = vpack.c.b16 %v2286, %v2285
        %v2327 = vpack.c.b16 %v2288, %v2287
        %v2328 = vpack.c.b16 %v2290, %v2289
        %v2329 = vpack.c.b16 %v2292, %v2291
        %v2330 = vpack.c.b16 %v2294, %v2293
        %v2331 = vpack.c.b16 %v2296, %v2295
        %v2332 = vpack.c.b16 %v2298, %v2297
        %v2333 = vpack.c.b16 %v2300, %v2299
        %v2334 = vpack.c.b16 %v2302, %v2301
        %v2335 = vpack.c.b16 %v2304, %v2303
        %v2336 = vpack.c.b16 %v2306, %v2305
        %v2337 = vpack.c.b16 %v2308, %v2307
        %v2338 = vpack.c.b16 %v2310, %v2309
        %v2339 = vpack.c.b16 %v2312, %v2311
        %v2340 = vpack.c.b16 %v2314, %v2313
        %v2341 = vpack.c.b16 %v2316, %v2315
        %v2342 = vpack.c.b16 %v2318, %v2317
        %2367 = vmatpush.bf16.msra.mxu0 %v2326
        %2368 = vmatpush.bf16.msra.mxu0 %v2325
        %2369 = vmatpush.bf16.msra.mxu0 %v2324
        %2370 = vmatpush.bf16.msra.mxu0 %v2323
        %2371 = vmatpush.bf16.msra.mxu0 %v2322
        %2372 = vmatpush.bf16.msra.mxu0 %v2321
        %2373 = vmatpush.bf16.msra.mxu0 %v2320
        %2374 = vmatpush.bf16.msra.mxu0 %v2319
        %2375 = vmatmul.bf16.gmra.mxu0 %v1775
        %v2376 = vpop.f32.mrf.mxu0
        %v2377 = vadd.f32 0.0, %v2376
        %v2378 = vpop.f32.mrf.mxu0
        %v2379 = vadd.f32 0.0, %v2378
        %2380 = vmatmul.bf16.gmra.mxu0 %v1776
        %v2381 = vpop.f32.mrf.mxu0
        %v2382 = vadd.f32 0.0, %v2381
        %v2383 = vpop.f32.mrf.mxu0
        %v2384 = vadd.f32 0.0, %v2383
        %2385 = vmatmul.bf16.gmra.mxu0 %v1777
        %v2386 = vpop.f32.mrf.mxu0
        %v2387 = vadd.f32 0.0, %v2386
        %v2388 = vpop.f32.mrf.mxu0
        %v2389 = vadd.f32 0.0, %v2388
        %2390 = vmatmul.bf16.gmra.mxu0 %v1778
        %v2391 = vpop.f32.mrf.mxu0
        %v2392 = vadd.f32 0.0, %v2391
        %v2393 = vpop.f32.mrf.mxu0
        %v2394 = vadd.f32 0.0, %v2393
        %2395 = vmatmul.bf16.gmra.mxu0 %v1779
        %v2396 = vpop.f32.mrf.mxu0
        %v2397 = vadd.f32 0.0, %v2396
        %v2398 = vpop.f32.mrf.mxu0
        %v2399 = vadd.f32 0.0, %v2398
        %2400 = vmatmul.bf16.gmra.mxu0 %v1780
        %v2401 = vpop.f32.mrf.mxu0
        %v2402 = vadd.f32 0.0, %v2401
        %v2403 = vpop.f32.mrf.mxu0
        %v2404 = vadd.f32 0.0, %v2403
        %2405 = vmatmul.bf16.gmra.mxu0 %v1781
        %v2406 = vpop.f32.mrf.mxu0
        %v2407 = vadd.f32 0.0, %v2406
        %v2408 = vpop.f32.mrf.mxu0
        %v2409 = vadd.f32 0.0, %v2408
        %2410 = vmatmul.bf16.gmra.mxu0 %v1782
        %v2411 = vpop.f32.mrf.mxu0
        %v2412 = vadd.f32 0.0, %v2411
        %v2413 = vpop.f32.mrf.mxu0
        %v2414 = vadd.f32 0.0, %v2413
        %2415 = vmatmul.bf16.gmra.mxu0 %v1783
        %v2416 = vpop.f32.mrf.mxu0
        %v2417 = vadd.f32 0.0, %v2416
        %v2418 = vpop.f32.mrf.mxu0
        %v2419 = vadd.f32 0.0, %v2418
        %2420 = vmatmul.bf16.gmra.mxu0 %v1784
        %v2421 = vpop.f32.mrf.mxu0
        %v2422 = vadd.f32 0.0, %v2421
        %v2423 = vpop.f32.mrf.mxu0
        %v2424 = vadd.f32 0.0, %v2423
        %2425 = vmatmul.bf16.gmra.mxu0 %v1785
        %v2426 = vpop.f32.mrf.mxu0
        %v2427 = vadd.f32 0.0, %v2426
        %v2428 = vpop.f32.mrf.mxu0
        %v2429 = vadd.f32 0.0, %v2428
        %2430 = vmatmul.bf16.gmra.mxu0 %v1786
        %v2431 = vpop.f32.mrf.mxu0
        %v2432 = vadd.f32 0.0, %v2431
        %v2433 = vpop.f32.mrf.mxu0
        %v2434 = vadd.f32 0.0, %v2433
        %2435 = vmatmul.bf16.gmra.mxu0 %v1787
        %v2436 = vpop.f32.mrf.mxu0
        %v2437 = vadd.f32 0.0, %v2436
        %v2438 = vpop.f32.mrf.mxu0
        %v2439 = vadd.f32 0.0, %v2438
        %2440 = vmatmul.bf16.gmra.mxu0 %v1788
        %v2441 = vpop.f32.mrf.mxu0
        %v2442 = vadd.f32 0.0, %v2441
        %v2443 = vpop.f32.mrf.mxu0
        %v2444 = vadd.f32 0.0, %v2443
        %2445 = vmatmul.bf16.gmra.mxu0 %v1789
        %v2446 = vpop.f32.mrf.mxu0
        %v2447 = vadd.f32 0.0, %v2446
        %v2448 = vpop.f32.mrf.mxu0
        %v2449 = vadd.f32 0.0, %v2448
        %2450 = vmatmul.bf16.gmra.mxu0 %v1790
        %v2451 = vpop.f32.mrf.mxu0
        %v2452 = vadd.f32 0.0, %v2451
        %v2453 = vpop.f32.mrf.mxu0
        %v2454 = vadd.f32 0.0, %v2453
        %2455 = vdwg.mxu0
        %2456 = vmatpush.bf16.msra.mxu0 %v2334
        %2457 = vmatpush.bf16.msra.mxu0 %v2333
        %2458 = vmatpush.bf16.msra.mxu0 %v2332
        %2459 = vmatpush.bf16.msra.mxu0 %v2331
        %2460 = vmatpush.bf16.msra.mxu0 %v2330
        %2461 = vmatpush.bf16.msra.mxu0 %v2329
        %2462 = vmatpush.bf16.msra.mxu0 %v2328
        %2463 = vmatpush.bf16.msra.mxu0 %v2327
        %2464 = vmatmul.bf16.gmra.mxu0 %v1866
        %v2465 = vpop.f32.mrf.mxu0
        %v2466 = vadd.f32 %v2377, %v2465
        %v2467 = vpop.f32.mrf.mxu0
        %v2468 = vadd.f32 %v2379, %v2467
        %2469 = vmatmul.bf16.gmra.mxu0 %v1878
        %v2470 = vpop.f32.mrf.mxu0
        %v2471 = vadd.f32 %v2382, %v2470
        %v2472 = vpop.f32.mrf.mxu0
        %v2473 = vadd.f32 %v2384, %v2472
        %2474 = vmatmul.bf16.gmra.mxu0 %v1890
        %v2475 = vpop.f32.mrf.mxu0
        %v2476 = vadd.f32 %v2387, %v2475
        %v2477 = vpop.f32.mrf.mxu0
        %v2478 = vadd.f32 %v2389, %v2477
        %2479 = vmatmul.bf16.gmra.mxu0 %v1902
        %v2480 = vpop.f32.mrf.mxu0
        %v2481 = vadd.f32 %v2392, %v2480
        %v2482 = vpop.f32.mrf.mxu0
        %v2483 = vadd.f32 %v2394, %v2482
        %2484 = vmatmul.bf16.gmra.mxu0 %v1914
        %v2485 = vpop.f32.mrf.mxu0
        %v2486 = vadd.f32 %v2397, %v2485
        %v2487 = vpop.f32.mrf.mxu0
        %v2488 = vadd.f32 %v2399, %v2487
        %2489 = vmatmul.bf16.gmra.mxu0 %v1926
        %v2490 = vpop.f32.mrf.mxu0
        %v2491 = vadd.f32 %v2402, %v2490
        %v2492 = vpop.f32.mrf.mxu0
        %v2493 = vadd.f32 %v2404, %v2492
        %2494 = vmatmul.bf16.gmra.mxu0 %v1938
        %v2495 = vpop.f32.mrf.mxu0
        %v2496 = vadd.f32 %v2407, %v2495
        %v2497 = vpop.f32.mrf.mxu0
        %v2498 = vadd.f32 %v2409, %v2497
        %2499 = vmatmul.bf16.gmra.mxu0 %v1950
        %v2500 = vpop.f32.mrf.mxu0
        %v2501 = vadd.f32 %v2412, %v2500
        %v2502 = vpop.f32.mrf.mxu0
        %v2503 = vadd.f32 %v2414, %v2502
        %2504 = vmatmul.bf16.gmra.mxu0 %v1962
        %v2505 = vpop.f32.mrf.mxu0
        %v2506 = vadd.f32 %v2417, %v2505
        %v2507 = vpop.f32.mrf.mxu0
        %v2508 = vadd.f32 %v2419, %v2507
        %2509 = vmatmul.bf16.gmra.mxu0 %v1974
        %v2510 = vpop.f32.mrf.mxu0
        %v2511 = vadd.f32 %v2422, %v2510
        %v2512 = vpop.f32.mrf.mxu0
        %v2513 = vadd.f32 %v2424, %v2512
        %2514 = vmatmul.bf16.gmra.mxu0 %v1986
        %v2515 = vpop.f32.mrf.mxu0
        %v2516 = vadd.f32 %v2427, %v2515
        %v2517 = vpop.f32.mrf.mxu0
        %v2518 = vadd.f32 %v2429, %v2517
        %2519 = vmatmul.bf16.gmra.mxu0 %v1998
        %v2520 = vpop.f32.mrf.mxu0
        %v2521 = vadd.f32 %v2432, %v2520
        %v2522 = vpop.f32.mrf.mxu0
        %v2523 = vadd.f32 %v2434, %v2522
        %2524 = vmatmul.bf16.gmra.mxu0 %v2010
        %v2525 = vpop.f32.mrf.mxu0
        %v2526 = vadd.f32 %v2437, %v2525
        %v2527 = vpop.f32.mrf.mxu0
        %v2528 = vadd.f32 %v2439, %v2527
        %2529 = vmatmul.bf16.gmra.mxu0 %v2022
        %v2530 = vpop.f32.mrf.mxu0
        %v2531 = vadd.f32 %v2442, %v2530
        %v2532 = vpop.f32.mrf.mxu0
        %v2533 = vadd.f32 %v2444, %v2532
        %2534 = vmatmul.bf16.gmra.mxu0 %v2034
        %v2535 = vpop.f32.mrf.mxu0
        %v2536 = vadd.f32 %v2447, %v2535
        %v2537 = vpop.f32.mrf.mxu0
        %v2538 = vadd.f32 %v2449, %v2537
        %2539 = vmatmul.bf16.gmra.mxu0 %v2046
        %v2540 = vpop.f32.mrf.mxu0
        %v2541 = vadd.f32 %v2452, %v2540
        %v2542 = vpop.f32.mrf.mxu0
        %v2543 = vadd.f32 %v2454, %v2542
        %2544 = vdwg.mxu0
        %2545 = vmatpush.bf16.msra.mxu0 %v2342
        %2546 = vmatpush.bf16.msra.mxu0 %v2341
        %2547 = vmatpush.bf16.msra.mxu0 %v2340
        %2548 = vmatpush.bf16.msra.mxu0 %v2339
        %2549 = vmatpush.bf16.msra.mxu0 %v2338
        %2550 = vmatpush.bf16.msra.mxu0 %v2337
        %2551 = vmatpush.bf16.msra.mxu0 %v2336
        %2552 = vmatpush.bf16.msra.mxu0 %v2335
        %2553 = vmatmul.bf16.gmra.mxu0 %v2113
        %v2554 = vpop.f32.mrf.mxu0
        %v2555 = vadd.f32 %v2466, %v2554
        %v2556 = vpop.f32.mrf.mxu0
        %v2557 = vadd.f32 %v2468, %v2556
        %2558 = vmatmul.bf16.gmra.mxu0 %v2116
        %v2559 = vpop.f32.mrf.mxu0
        %v2560 = vadd.f32 %v2471, %v2559
        %v2561 = vpop.f32.mrf.mxu0
        %v2562 = vadd.f32 %v2473, %v2561
        %2563 = vmatmul.bf16.gmra.mxu0 %v2119
        %v2564 = vpop.f32.mrf.mxu0
        %v2565 = vadd.f32 %v2476, %v2564
        %v2566 = vpop.f32.mrf.mxu0
        %v2567 = vadd.f32 %v2478, %v2566
        %2568 = vmatmul.bf16.gmra.mxu0 %v2122
        %v2569 = vpop.f32.mrf.mxu0
        %v2570 = vadd.f32 %v2481, %v2569
        %v2571 = vpop.f32.mrf.mxu0
        %v2572 = vadd.f32 %v2483, %v2571
        %2573 = vmatmul.bf16.gmra.mxu0 %v2125
        %v2574 = vpop.f32.mrf.mxu0
        %v2575 = vadd.f32 %v2486, %v2574
        %v2576 = vpop.f32.mrf.mxu0
        %v2577 = vadd.f32 %v2488, %v2576
        %2578 = vmatmul.bf16.gmra.mxu0 %v2128
        %v2579 = vpop.f32.mrf.mxu0
        %v2580 = vadd.f32 %v2491, %v2579
        %v2581 = vpop.f32.mrf.mxu0
        %v2582 = vadd.f32 %v2493, %v2581
        %2583 = vmatmul.bf16.gmra.mxu0 %v2131
        %v2584 = vpop.f32.mrf.mxu0
        %v2585 = vadd.f32 %v2496, %v2584
        %v2586 = vpop.f32.mrf.mxu0
        %v2587 = vadd.f32 %v2498, %v2586
        %2588 = vmatmul.bf16.gmra.mxu0 %v2134
        %v2589 = vpop.f32.mrf.mxu0
        %v2590 = vadd.f32 %v2501, %v2589
        %v2591 = vpop.f32.mrf.mxu0
        %v2592 = vadd.f32 %v2503, %v2591
        %2593 = vmatmul.bf16.gmra.mxu0 %v2137
        %v2594 = vpop.f32.mrf.mxu0
        %v2595 = vadd.f32 %v2506, %v2594
        %v2596 = vpop.f32.mrf.mxu0
        %v2597 = vadd.f32 %v2508, %v2596
        %2598 = vmatmul.bf16.gmra.mxu0 %v2140
        %v2599 = vpop.f32.mrf.mxu0
        %v2600 = vadd.f32 %v2511, %v2599
        %v2601 = vpop.f32.mrf.mxu0
        %v2602 = vadd.f32 %v2513, %v2601
        %2603 = vmatmul.bf16.gmra.mxu0 %v2143
        %v2604 = vpop.f32.mrf.mxu0
        %v2605 = vadd.f32 %v2516, %v2604
        %v2606 = vpop.f32.mrf.mxu0
        %v2607 = vadd.f32 %v2518, %v2606
        %2608 = vmatmul.bf16.gmra.mxu0 %v2146
        %v2609 = vpop.f32.mrf.mxu0
        %v2610 = vadd.f32 %v2521, %v2609
        %v2611 = vpop.f32.mrf.mxu0
        %v2612 = vadd.f32 %v2523, %v2611
        %2613 = vmatmul.bf16.gmra.mxu0 %v2149
        %v2614 = vpop.f32.mrf.mxu0
        %v2615 = vadd.f32 %v2526, %v2614
        %v2616 = vpop.f32.mrf.mxu0
        %v2617 = vadd.f32 %v2528, %v2616
        %2618 = vmatmul.bf16.gmra.mxu0 %v2152
        %v2619 = vpop.f32.mrf.mxu0
        %v2620 = vadd.f32 %v2531, %v2619
        %v2621 = vpop.f32.mrf.mxu0
        %v2622 = vadd.f32 %v2533, %v2621
        %2623 = vmatmul.bf16.gmra.mxu0 %v2155
        %v2624 = vpop.f32.mrf.mxu0
        %v2625 = vadd.f32 %v2536, %v2624
        %v2626 = vpop.f32.mrf.mxu0
        %v2627 = vadd.f32 %v2538, %v2626
        %2628 = vmatmul.bf16.gmra.mxu0 %v2158
        %v2629 = vpop.f32.mrf.mxu0
        %v2630 = vadd.f32 %v2541, %v2629
        %v2631 = vpop.f32.mrf.mxu0
        %v2632 = vadd.f32 %v2543, %v2631
        %2633 = vdwg.mxu0
        %v2682 = vunpack.c.l.b16 %v1599
        %v2683 = vunpack.c.l.b16 %v1600
        %v2684 = vunpack.c.l.b16 %v1601
        %v2685 = vunpack.c.l.b16 %v1602
        %v2686 = vunpack.c.l.b16 %v1603
        %v2687 = vunpack.c.l.b16 %v1604
        %v2688 = vunpack.c.l.b16 %v1605
        %v2689 = vunpack.c.l.b16 %v1606
        %v2690 = vunpack.c.l.b16 %v1607
        %v2691 = vunpack.c.l.b16 %v1608
        %v2692 = vunpack.c.l.b16 %v1609
        %v2693 = vunpack.c.l.b16 %v1610
        %v2694 = vunpack.c.l.b16 %v1611
        %v2695 = vunpack.c.l.b16 %v1612
        %v2696 = vunpack.c.l.b16 %v1613
        %v2697 = vunpack.c.l.b16 %v1614
        %v2698 = vunpack.c.l.b16 %v1615
        %v2699 = vunpack.c.l.b16 %v1616
        %v2700 = vunpack.c.l.b16 %v1617
        %v2701 = vunpack.c.l.b16 %v1618
        %v2702 = vunpack.c.l.b16 %v1619
        %v2703 = vunpack.c.l.b16 %v1620
        %v2704 = vunpack.c.l.b16 %v1621
        %v2705 = vunpack.c.l.b16 %v1622
        %v2706 = vunpack.c.l.b16 %v1623
        %v2707 = vunpack.c.l.b16 %v1624
        %v2708 = vunpack.c.l.b16 %v1625
        %v2709 = vunpack.c.l.b16 %v1626
        %v2710 = vunpack.c.l.b16 %v1627
        %v2711 = vunpack.c.l.b16 %v1628
        %v2712 = vunpack.c.l.b16 %v1629
        %v2713 = vunpack.c.l.b16 %v1630
        %v2714 = vunpack.c.l.b16 %v1631
        %v2715 = vunpack.c.l.b16 %v1632
        %v2716 = vunpack.c.l.b16 %v1633
        %v2717 = vunpack.c.l.b16 %v1634
        %v2718 = vunpack.c.l.b16 %v1635
        %v2719 = vunpack.c.l.b16 %v1636
        %v2720 = vunpack.c.l.b16 %v1637
        %v2721 = vunpack.c.l.b16 %v1638
        %v2722 = vunpack.c.l.b16 %v1639
        %v2723 = vunpack.c.l.b16 %v1640
        %v2724 = vunpack.c.l.b16 %v1641
        %v2725 = vunpack.c.l.b16 %v1642
        %v2726 = vunpack.c.l.b16 %v1643
        %v2727 = vunpack.c.l.b16 %v1644
        %v2728 = vunpack.c.l.b16 %v1645
        %v2729 = vunpack.c.l.b16 %v1646
        %v2730 = vpack.c.b16 %v2683, %v2682
        %v2731 = vpack.c.b16 %v2685, %v2684
        %v2732 = vpack.c.b16 %v2687, %v2686
        %v2733 = vpack.c.b16 %v2689, %v2688
        %v2734 = vpack.c.b16 %v2691, %v2690
        %v2735 = vpack.c.b16 %v2693, %v2692
        %v2736 = vpack.c.b16 %v2695, %v2694
        %v2737 = vpack.c.b16 %v2697, %v2696
        %v2738 = vpack.c.b16 %v2699, %v2698
        %v2739 = vpack.c.b16 %v2701, %v2700
        %v2740 = vpack.c.b16 %v2703, %v2702
        %v2741 = vpack.c.b16 %v2705, %v2704
        %v2742 = vpack.c.b16 %v2707, %v2706
        %v2743 = vpack.c.b16 %v2709, %v2708
        %v2744 = vpack.c.b16 %v2711, %v2710
        %v2745 = vpack.c.b16 %v2713, %v2712
        %v2746 = vpack.c.b16 %v2715, %v2714
        %v2747 = vpack.c.b16 %v2717, %v2716
        %v2748 = vpack.c.b16 %v2719, %v2718
        %v2749 = vpack.c.b16 %v2721, %v2720
        %v2750 = vpack.c.b16 %v2723, %v2722
        %v2751 = vpack.c.b16 %v2725, %v2724
        %v2752 = vpack.c.b16 %v2727, %v2726
        %v2753 = vpack.c.b16 %v2729, %v2728
        %2778 = vmatpush.bf16.msra.mxu0 %v2737
        %2779 = vmatpush.bf16.msra.mxu0 %v2736
        %2780 = vmatpush.bf16.msra.mxu0 %v2735
        %2781 = vmatpush.bf16.msra.mxu0 %v2734
        %2782 = vmatpush.bf16.msra.mxu0 %v2733
        %2783 = vmatpush.bf16.msra.mxu0 %v2732
        %2784 = vmatpush.bf16.msra.mxu0 %v2731
        %2785 = vmatpush.bf16.msra.mxu0 %v2730
        %2786 = vmatmul.bf16.gmra.mxu0 %v1197
        %v2787 = vpop.f32.mrf.mxu0
        %v2788 = vadd.f32 %v2555, %v2787
        %v2789 = vpop.f32.mrf.mxu0
        %v2790 = vadd.f32 %v2557, %v2789
        %2791 = vmatmul.bf16.gmra.mxu0 %v1198
        %v2792 = vpop.f32.mrf.mxu0
        %v2793 = vadd.f32 %v2560, %v2792
        %v2794 = vpop.f32.mrf.mxu0
        %v2795 = vadd.f32 %v2562, %v2794
        %2796 = vmatmul.bf16.gmra.mxu0 %v1199
        %v2797 = vpop.f32.mrf.mxu0
        %v2798 = vadd.f32 %v2565, %v2797
        %v2799 = vpop.f32.mrf.mxu0
        %v2800 = vadd.f32 %v2567, %v2799
        %2801 = vmatmul.bf16.gmra.mxu0 %v1200
        %v2802 = vpop.f32.mrf.mxu0
        %v2803 = vadd.f32 %v2570, %v2802
        %v2804 = vpop.f32.mrf.mxu0
        %v2805 = vadd.f32 %v2572, %v2804
        %2806 = vmatmul.bf16.gmra.mxu0 %v1201
        %v2807 = vpop.f32.mrf.mxu0
        %v2808 = vadd.f32 %v2575, %v2807
        %v2809 = vpop.f32.mrf.mxu0
        %v2810 = vadd.f32 %v2577, %v2809
        %2811 = vmatmul.bf16.gmra.mxu0 %v1202
        %v2812 = vpop.f32.mrf.mxu0
        %v2813 = vadd.f32 %v2580, %v2812
        %v2814 = vpop.f32.mrf.mxu0
        %v2815 = vadd.f32 %v2582, %v2814
        %2816 = vmatmul.bf16.gmra.mxu0 %v1203
        %v2817 = vpop.f32.mrf.mxu0
        %v2818 = vadd.f32 %v2585, %v2817
        %v2819 = vpop.f32.mrf.mxu0
        %v2820 = vadd.f32 %v2587, %v2819
        %2821 = vmatmul.bf16.gmra.mxu0 %v1204
        %v2822 = vpop.f32.mrf.mxu0
        %v2823 = vadd.f32 %v2590, %v2822
        %v2824 = vpop.f32.mrf.mxu0
        %v2825 = vadd.f32 %v2592, %v2824
        %2826 = vmatmul.bf16.gmra.mxu0 %v1205
        %v2827 = vpop.f32.mrf.mxu0
        %v2828 = vadd.f32 %v2595, %v2827
        %v2829 = vpop.f32.mrf.mxu0
        %v2830 = vadd.f32 %v2597, %v2829
        %2831 = vmatmul.bf16.gmra.mxu0 %v1206
        %v2832 = vpop.f32.mrf.mxu0
        %v2833 = vadd.f32 %v2600, %v2832
        %v2834 = vpop.f32.mrf.mxu0
        %v2835 = vadd.f32 %v2602, %v2834
        %2836 = vmatmul.bf16.gmra.mxu0 %v1207
        %v2837 = vpop.f32.mrf.mxu0
        %v2838 = vadd.f32 %v2605, %v2837
        %v2839 = vpop.f32.mrf.mxu0
        %v2840 = vadd.f32 %v2607, %v2839
        %2841 = vmatmul.bf16.gmra.mxu0 %v1208
        %v2842 = vpop.f32.mrf.mxu0
        %v2843 = vadd.f32 %v2610, %v2842
        %v2844 = vpop.f32.mrf.mxu0
        %v2845 = vadd.f32 %v2612, %v2844
        %2846 = vmatmul.bf16.gmra.mxu0 %v1209
        %v2847 = vpop.f32.mrf.mxu0
        %v2848 = vadd.f32 %v2615, %v2847
        %v2849 = vpop.f32.mrf.mxu0
        %v2850 = vadd.f32 %v2617, %v2849
        %2851 = vmatmul.bf16.gmra.mxu0 %v1210
        %v2852 = vpop.f32.mrf.mxu0
        %v2853 = vadd.f32 %v2620, %v2852
        %v2854 = vpop.f32.mrf.mxu0
        %v2855 = vadd.f32 %v2622, %v2854
        %2856 = vmatmul.bf16.gmra.mxu0 %v1211
        %v2857 = vpop.f32.mrf.mxu0
        %v2858 = vadd.f32 %v2625, %v2857
        %v2859 = vpop.f32.mrf.mxu0
        %v2860 = vadd.f32 %v2627, %v2859
        %2861 = vmatmul.bf16.gmra.mxu0 %v1212
        %v2862 = vpop.f32.mrf.mxu0
        %v2863 = vadd.f32 %v2630, %v2862
        %v2864 = vpop.f32.mrf.mxu0
        %v2865 = vadd.f32 %v2632, %v2864
        %2866 = vdwg.mxu0
        %2867 = vmatpush.bf16.msra.mxu0 %v2745
        %2868 = vmatpush.bf16.msra.mxu0 %v2744
        %2869 = vmatpush.bf16.msra.mxu0 %v2743
        %2870 = vmatpush.bf16.msra.mxu0 %v2742
        %2871 = vmatpush.bf16.msra.mxu0 %v2741
        %2872 = vmatpush.bf16.msra.mxu0 %v2740
        %2873 = vmatpush.bf16.msra.mxu0 %v2739
        %2874 = vmatpush.bf16.msra.mxu0 %v2738
        %2875 = vmatmul.bf16.gmra.mxu0 %v1289
        %v2876 = vpop.f32.mrf.mxu0
        %v2877 = vadd.f32 %v2788, %v2876
        %v2878 = vpop.f32.mrf.mxu0
        %v2879 = vadd.f32 %v2790, %v2878
        %2880 = vmatmul.bf16.gmra.mxu0 %v1301
        %v2881 = vpop.f32.mrf.mxu0
        %v2882 = vadd.f32 %v2793, %v2881
        %v2883 = vpop.f32.mrf.mxu0
        %v2884 = vadd.f32 %v2795, %v2883
        %2885 = vmatmul.bf16.gmra.mxu0 %v1313
        %v2886 = vpop.f32.mrf.mxu0
        %v2887 = vadd.f32 %v2798, %v2886
        %v2888 = vpop.f32.mrf.mxu0
        %v2889 = vadd.f32 %v2800, %v2888
        %2890 = vmatmul.bf16.gmra.mxu0 %v1325
        %v2891 = vpop.f32.mrf.mxu0
        %v2892 = vadd.f32 %v2803, %v2891
        %v2893 = vpop.f32.mrf.mxu0
        %v2894 = vadd.f32 %v2805, %v2893
        %2895 = vmatmul.bf16.gmra.mxu0 %v1337
        %v2896 = vpop.f32.mrf.mxu0
        %v2897 = vadd.f32 %v2808, %v2896
        %v2898 = vpop.f32.mrf.mxu0
        %v2899 = vadd.f32 %v2810, %v2898
        %2900 = vmatmul.bf16.gmra.mxu0 %v1349
        %v2901 = vpop.f32.mrf.mxu0
        %v2902 = vadd.f32 %v2813, %v2901
        %v2903 = vpop.f32.mrf.mxu0
        %v2904 = vadd.f32 %v2815, %v2903
        %2905 = vmatmul.bf16.gmra.mxu0 %v1361
        %v2906 = vpop.f32.mrf.mxu0
        %v2907 = vadd.f32 %v2818, %v2906
        %v2908 = vpop.f32.mrf.mxu0
        %v2909 = vadd.f32 %v2820, %v2908
        %2910 = vmatmul.bf16.gmra.mxu0 %v1373
        %v2911 = vpop.f32.mrf.mxu0
        %v2912 = vadd.f32 %v2823, %v2911
        %v2913 = vpop.f32.mrf.mxu0
        %v2914 = vadd.f32 %v2825, %v2913
        %2915 = vmatmul.bf16.gmra.mxu0 %v1385
        %v2916 = vpop.f32.mrf.mxu0
        %v2917 = vadd.f32 %v2828, %v2916
        %v2918 = vpop.f32.mrf.mxu0
        %v2919 = vadd.f32 %v2830, %v2918
        %2920 = vmatmul.bf16.gmra.mxu0 %v1397
        %v2921 = vpop.f32.mrf.mxu0
        %v2922 = vadd.f32 %v2833, %v2921
        %v2923 = vpop.f32.mrf.mxu0
        %v2924 = vadd.f32 %v2835, %v2923
        %2925 = vmatmul.bf16.gmra.mxu0 %v1409
        %v2926 = vpop.f32.mrf.mxu0
        %v2927 = vadd.f32 %v2838, %v2926
        %v2928 = vpop.f32.mrf.mxu0
        %v2929 = vadd.f32 %v2840, %v2928
        %2930 = vmatmul.bf16.gmra.mxu0 %v1421
        %v2931 = vpop.f32.mrf.mxu0
        %v2932 = vadd.f32 %v2843, %v2931
        %v2933 = vpop.f32.mrf.mxu0
        %v2934 = vadd.f32 %v2845, %v2933
        %2935 = vmatmul.bf16.gmra.mxu0 %v1433
        %v2936 = vpop.f32.mrf.mxu0
        %v2937 = vadd.f32 %v2848, %v2936
        %v2938 = vpop.f32.mrf.mxu0
        %v2939 = vadd.f32 %v2850, %v2938
        %2940 = vmatmul.bf16.gmra.mxu0 %v1445
        %v2941 = vpop.f32.mrf.mxu0
        %v2942 = vadd.f32 %v2853, %v2941
        %v2943 = vpop.f32.mrf.mxu0
        %v2944 = vadd.f32 %v2855, %v2943
        %2945 = vmatmul.bf16.gmra.mxu0 %v1457
        %v2946 = vpop.f32.mrf.mxu0
        %v2947 = vadd.f32 %v2858, %v2946
        %v2948 = vpop.f32.mrf.mxu0
        %v2949 = vadd.f32 %v2860, %v2948
        %2950 = vmatmul.bf16.gmra.mxu0 %v1469
        %v2951 = vpop.f32.mrf.mxu0
        %v2952 = vadd.f32 %v2863, %v2951
        %v2953 = vpop.f32.mrf.mxu0
        %v2954 = vadd.f32 %v2865, %v2953
        %2955 = vdwg.mxu0
        %2956 = vmatpush.bf16.msra.mxu0 %v2753
        %2957 = vmatpush.bf16.msra.mxu0 %v2752
        %2958 = vmatpush.bf16.msra.mxu0 %v2751
        %2959 = vmatpush.bf16.msra.mxu0 %v2750
        %2960 = vmatpush.bf16.msra.mxu0 %v2749
        %2961 = vmatpush.bf16.msra.mxu0 %v2748
        %2962 = vmatpush.bf16.msra.mxu0 %v2747
        %2963 = vmatpush.bf16.msra.mxu0 %v2746
        %2964 = vmatmul.bf16.gmra.mxu0 %v1537
        %v2965 = vpop.f32.mrf.mxu0
        %v2966 = vadd.f32 %v2877, %v2965
        %v2967 = vpop.f32.mrf.mxu0
        %v2968 = vadd.f32 %v2879, %v2967
        %2969 = vmatmul.bf16.gmra.mxu0 %v1540
        %v2970 = vpop.f32.mrf.mxu0
        %v2971 = vadd.f32 %v2882, %v2970
        %v2972 = vpop.f32.mrf.mxu0
        %v2973 = vadd.f32 %v2884, %v2972
        %2974 = vmatmul.bf16.gmra.mxu0 %v1543
        %v2975 = vpop.f32.mrf.mxu0
        %v2976 = vadd.f32 %v2887, %v2975
        %v2977 = vpop.f32.mrf.mxu0
        %v2978 = vadd.f32 %v2889, %v2977
        %2979 = vmatmul.bf16.gmra.mxu0 %v1546
        %v2980 = vpop.f32.mrf.mxu0
        %v2981 = vadd.f32 %v2892, %v2980
        %v2982 = vpop.f32.mrf.mxu0
        %v2983 = vadd.f32 %v2894, %v2982
        %2984 = vmatmul.bf16.gmra.mxu0 %v1549
        %v2985 = vpop.f32.mrf.mxu0
        %v2986 = vadd.f32 %v2897, %v2985
        %v2987 = vpop.f32.mrf.mxu0
        %v2988 = vadd.f32 %v2899, %v2987
        %2989 = vmatmul.bf16.gmra.mxu0 %v1552
        %v2990 = vpop.f32.mrf.mxu0
        %v2991 = vadd.f32 %v2902, %v2990
        %v2992 = vpop.f32.mrf.mxu0
        %v2993 = vadd.f32 %v2904, %v2992
        %2994 = vmatmul.bf16.gmra.mxu0 %v1555
        %v2995 = vpop.f32.mrf.mxu0
        %v2996 = vadd.f32 %v2907, %v2995
        %v2997 = vpop.f32.mrf.mxu0
        %v2998 = vadd.f32 %v2909, %v2997
        %2999 = vmatmul.bf16.gmra.mxu0 %v1558
        %v3000 = vpop.f32.mrf.mxu0
        %v3001 = vadd.f32 %v2912, %v3000
        %v3002 = vpop.f32.mrf.mxu0
        %v3003 = vadd.f32 %v2914, %v3002
        %3004 = vmatmul.bf16.gmra.mxu0 %v1561
        %v3005 = vpop.f32.mrf.mxu0
        %v3006 = vadd.f32 %v2917, %v3005
        %v3007 = vpop.f32.mrf.mxu0
        %v3008 = vadd.f32 %v2919, %v3007
        %3009 = vmatmul.bf16.gmra.mxu0 %v1564
        %v3010 = vpop.f32.mrf.mxu0
        %v3011 = vadd.f32 %v2922, %v3010
        %v3012 = vpop.f32.mrf.mxu0
        %v3013 = vadd.f32 %v2924, %v3012
        %3014 = vmatmul.bf16.gmra.mxu0 %v1567
        %v3015 = vpop.f32.mrf.mxu0
        %v3016 = vadd.f32 %v2927, %v3015
        %v3017 = vpop.f32.mrf.mxu0
        %v3018 = vadd.f32 %v2929, %v3017
        %3019 = vmatmul.bf16.gmra.mxu0 %v1570
        %v3020 = vpop.f32.mrf.mxu0
        %v3021 = vadd.f32 %v2932, %v3020
        %v3022 = vpop.f32.mrf.mxu0
        %v3023 = vadd.f32 %v2934, %v3022
        %3024 = vmatmul.bf16.gmra.mxu0 %v1573
        %v3025 = vpop.f32.mrf.mxu0
        %v3026 = vadd.f32 %v2937, %v3025
        %v3027 = vpop.f32.mrf.mxu0
        %v3028 = vadd.f32 %v2939, %v3027
        %3029 = vmatmul.bf16.gmra.mxu0 %v1576
        %v3030 = vpop.f32.mrf.mxu0
        %v3031 = vadd.f32 %v2942, %v3030
        %v3032 = vpop.f32.mrf.mxu0
        %v3033 = vadd.f32 %v2944, %v3032
        %3034 = vmatmul.bf16.gmra.mxu0 %v1579
        %v3035 = vpop.f32.mrf.mxu0
        %v3036 = vadd.f32 %v2947, %v3035
        %v3037 = vpop.f32.mrf.mxu0
        %v3038 = vadd.f32 %v2949, %v3037
        %3039 = vmatmul.bf16.gmra.mxu0 %v1582
        %v3040 = vpop.f32.mrf.mxu0
        %v3041 = vadd.f32 %v2952, %v3040
        %v3042 = vpop.f32.mrf.mxu0
        %v3043 = vadd.f32 %v2954, %v3042
        %3044 = vdwg.mxu0
        %s3045 = scalar_lea.vmem [#allocation2], 24
        %v3046 = vld [vmem:[%s3045] sm:$0xf]
        %v3047 = vld [vmem:[%s3045 + $0x4] sm:$0xf]
        %v3048 = vld [vmem:[%s3045 + $0xc] sm:$0xf]
        %v3049 = vld [vmem:[%s3045 + $0x10] sm:$0xf]
        %v3050 = vld [vmem:[%s3045 + $0x18] sm:$0xf]
        %v3051 = vld [vmem:[%s3045 + $0x1c] sm:$0xf]
        %v3052 = vld [vmem:[%s3045 + $0x24] sm:$0xf]
        %v3053 = vld [vmem:[%s3045 + $0x28] sm:$0xf]
        %v3054 = vld [vmem:[%s3045 + $0x30] sm:$0xf]
        %v3055 = vld [vmem:[%s3045 + $0x34] sm:$0xf]
        %v3056 = vld [vmem:[%s3045 + $0x3c] sm:$0xf]
        %v3057 = vld [vmem:[%s3045 + $0x40] sm:$0xf]
        %v3058 = vld [vmem:[%s3045 + $0x48] sm:$0xf]
        %v3059 = vld [vmem:[%s3045 + $0x4c] sm:$0xf]
        %v3060 = vld [vmem:[%s3045 + $0x54] sm:$0xf]
        %v3061 = vld [vmem:[%s3045 + $0x58] sm:$0xf]
        %v3062 = vld [vmem:[%s3045 + $0x60] sm:$0xf]
        %v3063 = vld [vmem:[%s3045 + $0x64] sm:$0xf]
        %v3064 = vld [vmem:[%s3045 + $0x6c] sm:$0xf]
        %v3065 = vld [vmem:[%s3045 + $0x70] sm:$0xf]
        %v3066 = vld [vmem:[%s3045 + $0x78] sm:$0xf]
        %v3067 = vld [vmem:[%s3045 + $0x7c] sm:$0xf]
        %v3068 = vld [vmem:[%s3045 + $0x84] sm:$0xf]
        %v3069 = vld [vmem:[%s3045 + $0x88] sm:$0xf]
        %v3070 = vld [vmem:[%s3045 + $0x90] sm:$0xf]
        %v3071 = vld [vmem:[%s3045 + $0x94] sm:$0xf]
        %v3072 = vld [vmem:[%s3045 + $0x9c] sm:$0xf]
        %v3073 = vld [vmem:[%s3045 + $0xa0] sm:$0xf]
        %v3074 = vld [vmem:[%s3045 + $0xa8] sm:$0xf]
        %v3075 = vld [vmem:[%s3045 + $0xac] sm:$0xf]
        %v3076 = vld [vmem:[%s3045 + $0xb4] sm:$0xf]
        %v3077 = vld [vmem:[%s3045 + $0xb8] sm:$0xf]
        %v3078 = vld [vmem:[%s3045 + $0x8] sm:$0x1]
        %v3079 = vld [vmem:[%s3045 + $0x14] sm:$0x1]
        %v3080 = vld [vmem:[%s3045 + $0x20] sm:$0x1]
        %v3081 = vld [vmem:[%s3045 + $0x2c] sm:$0x1]
        %v3082 = vld [vmem:[%s3045 + $0x38] sm:$0x1]
        %v3083 = vld [vmem:[%s3045 + $0x44] sm:$0x1]
        %v3084 = vld [vmem:[%s3045 + $0x50] sm:$0x1]
        %v3085 = vld [vmem:[%s3045 + $0x5c] sm:$0x1]
        %v3086 = vld [vmem:[%s3045 + $0x68] sm:$0x1]
        %v3087 = vld [vmem:[%s3045 + $0x74] sm:$0x1]
        %v3088 = vld [vmem:[%s3045 + $0x80] sm:$0x1]
        %v3089 = vld [vmem:[%s3045 + $0x8c] sm:$0x1]
        %v3090 = vld [vmem:[%s3045 + $0x98] sm:$0x1]
        %v3091 = vld [vmem:[%s3045 + $0xa4] sm:$0x1]
        %v3092 = vld [vmem:[%s3045 + $0xb0] sm:$0x1]
        %v3093 = vld [vmem:[%s3045 + $0xbc] sm:$0x1]
        %v3094 = vld [vmem:[%s3045] sm:$0xe]
        %v3095 = vld [vmem:[%s3045 + $0xc] sm:$0xe]
        %v3096 = vld [vmem:[%s3045 + $0x18] sm:$0xe]
        %v3097 = vld [vmem:[%s3045 + $0x24] sm:$0xe]
        %v3098 = vld [vmem:[%s3045 + $0x30] sm:$0xe]
        %v3099 = vld [vmem:[%s3045 + $0x3c] sm:$0xe]
        %v3100 = vld [vmem:[%s3045 + $0x48] sm:$0xe]
        %v3101 = vld [vmem:[%s3045 + $0x54] sm:$0xe]
        %v3102 = vld [vmem:[%s3045 + $0x60] sm:$0xe]
        %v3103 = vld [vmem:[%s3045 + $0x6c] sm:$0xe]
        %v3104 = vld [vmem:[%s3045 + $0x78] sm:$0xe]
        %v3105 = vld [vmem:[%s3045 + $0x84] sm:$0xe]
        %v3106 = vld [vmem:[%s3045 + $0x90] sm:$0xe]
        %v3107 = vld [vmem:[%s3045 + $0x9c] sm:$0xe]
        %v3108 = vld [vmem:[%s3045 + $0xa8] sm:$0xe]
        %v3109 = vld [vmem:[%s3045 + $0xb4] sm:$0xe]
        %v3142 = vunpack.c.l.b16 %v3046
        %v3143 = vunpack.c.l.b16 %v3047
        %v3144 = vunpack.c.l.b16 %v3048
        %v3145 = vunpack.c.l.b16 %v3049
        %v3146 = vunpack.c.l.b16 %v3050
        %v3147 = vunpack.c.l.b16 %v3051
        %v3148 = vunpack.c.l.b16 %v3052
        %v3149 = vunpack.c.l.b16 %v3053
        %v3150 = vunpack.c.l.b16 %v3054
        %v3151 = vunpack.c.l.b16 %v3055
        %v3152 = vunpack.c.l.b16 %v3056
        %v3153 = vunpack.c.l.b16 %v3057
        %v3154 = vunpack.c.l.b16 %v3058
        %v3155 = vunpack.c.l.b16 %v3059
        %v3156 = vunpack.c.l.b16 %v3060
        %v3157 = vunpack.c.l.b16 %v3061
        %v3158 = vunpack.c.l.b16 %v3062
        %v3159 = vunpack.c.l.b16 %v3063
        %v3160 = vunpack.c.l.b16 %v3064
        %v3161 = vunpack.c.l.b16 %v3065
        %v3162 = vunpack.c.l.b16 %v3066
        %v3163 = vunpack.c.l.b16 %v3067
        %v3164 = vunpack.c.l.b16 %v3068
        %v3165 = vunpack.c.l.b16 %v3069
        %v3166 = vunpack.c.l.b16 %v3070
        %v3167 = vunpack.c.l.b16 %v3071
        %v3168 = vunpack.c.l.b16 %v3072
        %v3169 = vunpack.c.l.b16 %v3073
        %v3170 = vunpack.c.l.b16 %v3074
        %v3171 = vunpack.c.l.b16 %v3075
        %v3172 = vunpack.c.l.b16 %v3076
        %v3173 = vunpack.c.l.b16 %v3077
        %v3174 = vpack.c.b16 %v3143, %v3142
        %v3175 = vpack.c.b16 %v3145, %v3144
        %v3176 = vpack.c.b16 %v3147, %v3146
        %v3177 = vpack.c.b16 %v3149, %v3148
        %v3178 = vpack.c.b16 %v3151, %v3150
        %v3179 = vpack.c.b16 %v3153, %v3152
        %v3180 = vpack.c.b16 %v3155, %v3154
        %v3181 = vpack.c.b16 %v3157, %v3156
        %v3182 = vpack.c.b16 %v3159, %v3158
        %v3183 = vpack.c.b16 %v3161, %v3160
        %v3184 = vpack.c.b16 %v3163, %v3162
        %v3185 = vpack.c.b16 %v3165, %v3164
        %v3186 = vpack.c.b16 %v3167, %v3166
        %v3187 = vpack.c.b16 %v3169, %v3168
        %v3188 = vpack.c.b16 %v3171, %v3170
        %v3189 = vpack.c.b16 %v3173, %v3172
        %v3222 = vunpack.c.l.b16 %v3078
        %v3223 = vunpack.c.l.b16 %v3079
        %v3224 = vunpack.c.l.b16 %v3080
        %v3225 = vunpack.c.l.b16 %v3081
        %v3226 = vunpack.c.l.b16 %v3082
        %v3227 = vunpack.c.l.b16 %v3083
        %v3228 = vunpack.c.l.b16 %v3084
        %v3229 = vunpack.c.l.b16 %v3085
        %v3230 = vunpack.c.l.b16 %v3086
        %v3231 = vunpack.c.l.b16 %v3087
        %v3232 = vunpack.c.l.b16 %v3088
        %v3233 = vunpack.c.l.b16 %v3089
        %v3234 = vunpack.c.l.b16 %v3090
        %v3235 = vunpack.c.l.b16 %v3091
        %v3236 = vunpack.c.l.b16 %v3092
        %v3237 = vunpack.c.l.b16 %v3093
        %v3238 = vpack.c.b16 %v3222, %v3222
        %v3239 = vpack.c.b16 %v3223, %v3223
        %v3240 = vpack.c.b16 %v3224, %v3224
        %v3241 = vpack.c.b16 %v3225, %v3225
        %v3242 = vpack.c.b16 %v3226, %v3226
        %v3243 = vpack.c.b16 %v3227, %v3227
        %v3244 = vpack.c.b16 %v3228, %v3228
        %v3245 = vpack.c.b16 %v3229, %v3229
        %v3246 = vpack.c.b16 %v3230, %v3230
        %v3247 = vpack.c.b16 %v3231, %v3231
        %v3248 = vpack.c.b16 %v3232, %v3232
        %v3249 = vpack.c.b16 %v3233, %v3233
        %v3250 = vpack.c.b16 %v3234, %v3234
        %v3251 = vpack.c.b16 %v3235, %v3235
        %v3252 = vpack.c.b16 %v3236, %v3236
        %v3253 = vpack.c.b16 %v3237, %v3237
        %v3255 = vshrl.u32 %v3174, 16
        %v3257 = vshll.u32 %v3174, 16
        %v3259 = vrot.slane %v3257, 1
        %v3260 = vor.u32 %v3255, %v3259
        %v3262 = vshll.u32 %v3238, 16
        %v3264 = vrot.slane %v3262, 1
        %v3265 = vsel %vm1277, %v3260, %v3264
        %v3267 = vshrl.u32 %v3175, 16
        %v3269 = vshll.u32 %v3175, 16
        %v3271 = vrot.slane %v3269, 1
        %v3272 = vor.u32 %v3267, %v3271
        %v3274 = vshll.u32 %v3239, 16
        %v3276 = vrot.slane %v3274, 1
        %v3277 = vsel %vm1277, %v3272, %v3276
        %v3279 = vshrl.u32 %v3176, 16
        %v3281 = vshll.u32 %v3176, 16
        %v3283 = vrot.slane %v3281, 1
        %v3284 = vor.u32 %v3279, %v3283
        %v3286 = vshll.u32 %v3240, 16
        %v3288 = vrot.slane %v3286, 1
        %v3289 = vsel %vm1277, %v3284, %v3288
        %v3291 = vshrl.u32 %v3177, 16
        %v3293 = vshll.u32 %v3177, 16
        %v3295 = vrot.slane %v3293, 1
        %v3296 = vor.u32 %v3291, %v3295
        %v3298 = vshll.u32 %v3241, 16
        %v3300 = vrot.slane %v3298, 1
        %v3301 = vsel %vm1277, %v3296, %v3300
        %v3303 = vshrl.u32 %v3178, 16
        %v3305 = vshll.u32 %v3178, 16
        %v3307 = vrot.slane %v3305, 1
        %v3308 = vor.u32 %v3303, %v3307
        %v3310 = vshll.u32 %v3242, 16
        %v3312 = vrot.slane %v3310, 1
        %v3313 = vsel %vm1277, %v3308, %v3312
        %v3315 = vshrl.u32 %v3179, 16
        %v3317 = vshll.u32 %v3179, 16
        %v3319 = vrot.slane %v3317, 1
        %v3320 = vor.u32 %v3315, %v3319
        %v3322 = vshll.u32 %v3243, 16
        %v3324 = vrot.slane %v3322, 1
        %v3325 = vsel %vm1277, %v3320, %v3324
        %v3327 = vshrl.u32 %v3180, 16
        %v3329 = vshll.u32 %v3180, 16
        %v3331 = vrot.slane %v3329, 1
        %v3332 = vor.u32 %v3327, %v3331
        %v3334 = vshll.u32 %v3244, 16
        %v3336 = vrot.slane %v3334, 1
        %v3337 = vsel %vm1277, %v3332, %v3336
        %v3339 = vshrl.u32 %v3181, 16
        %v3341 = vshll.u32 %v3181, 16
        %v3343 = vrot.slane %v3341, 1
        %v3344 = vor.u32 %v3339, %v3343
        %v3346 = vshll.u32 %v3245, 16
        %v3348 = vrot.slane %v3346, 1
        %v3349 = vsel %vm1277, %v3344, %v3348
        %v3351 = vshrl.u32 %v3182, 16
        %v3353 = vshll.u32 %v3182, 16
        %v3355 = vrot.slane %v3353, 1
        %v3356 = vor.u32 %v3351, %v3355
        %v3358 = vshll.u32 %v3246, 16
        %v3360 = vrot.slane %v3358, 1
        %v3361 = vsel %vm1277, %v3356, %v3360
        %v3363 = vshrl.u32 %v3183, 16
        %v3365 = vshll.u32 %v3183, 16
        %v3367 = vrot.slane %v3365, 1
        %v3368 = vor.u32 %v3363, %v3367
        %v3370 = vshll.u32 %v3247, 16
        %v3372 = vrot.slane %v3370, 1
        %v3373 = vsel %vm1277, %v3368, %v3372
        %v3375 = vshrl.u32 %v3184, 16
        %v3377 = vshll.u32 %v3184, 16
        %v3379 = vrot.slane %v3377, 1
        %v3380 = vor.u32 %v3375, %v3379
        %v3382 = vshll.u32 %v3248, 16
        %v3384 = vrot.slane %v3382, 1
        %v3385 = vsel %vm1277, %v3380, %v3384
        %v3387 = vshrl.u32 %v3185, 16
        %v3389 = vshll.u32 %v3185, 16
        %v3391 = vrot.slane %v3389, 1
        %v3392 = vor.u32 %v3387, %v3391
        %v3394 = vshll.u32 %v3249, 16
        %v3396 = vrot.slane %v3394, 1
        %v3397 = vsel %vm1277, %v3392, %v3396
        %v3399 = vshrl.u32 %v3186, 16
        %v3401 = vshll.u32 %v3186, 16
        %v3403 = vrot.slane %v3401, 1
        %v3404 = vor.u32 %v3399, %v3403
        %v3406 = vshll.u32 %v3250, 16
        %v3408 = vrot.slane %v3406, 1
        %v3409 = vsel %vm1277, %v3404, %v3408
        %v3411 = vshrl.u32 %v3187, 16
        %v3413 = vshll.u32 %v3187, 16
        %v3415 = vrot.slane %v3413, 1
        %v3416 = vor.u32 %v3411, %v3415
        %v3418 = vshll.u32 %v3251, 16
        %v3420 = vrot.slane %v3418, 1
        %v3421 = vsel %vm1277, %v3416, %v3420
        %v3423 = vshrl.u32 %v3188, 16
        %v3425 = vshll.u32 %v3188, 16
        %v3427 = vrot.slane %v3425, 1
        %v3428 = vor.u32 %v3423, %v3427
        %v3430 = vshll.u32 %v3252, 16
        %v3432 = vrot.slane %v3430, 1
        %v3433 = vsel %vm1277, %v3428, %v3432
        %v3435 = vshrl.u32 %v3189, 16
        %v3437 = vshll.u32 %v3189, 16
        %v3439 = vrot.slane %v3437, 1
        %v3440 = vor.u32 %v3435, %v3439
        %v3442 = vshll.u32 %v3253, 16
        %v3444 = vrot.slane %v3442, 1
        %v3445 = vsel %vm1277, %v3440, %v3444
        %v3478 = vunpack.c.l.b16 %v3094
        %v3479 = vunpack.c.l.b16 %v3095
        %v3480 = vunpack.c.l.b16 %v3096
        %v3481 = vunpack.c.l.b16 %v3097
        %v3482 = vunpack.c.l.b16 %v3098
        %v3483 = vunpack.c.l.b16 %v3099
        %v3484 = vunpack.c.l.b16 %v3100
        %v3485 = vunpack.c.l.b16 %v3101
        %v3486 = vunpack.c.l.b16 %v3102
        %v3487 = vunpack.c.l.b16 %v3103
        %v3488 = vunpack.c.l.b16 %v3104
        %v3489 = vunpack.c.l.b16 %v3105
        %v3490 = vunpack.c.l.b16 %v3106
        %v3491 = vunpack.c.l.b16 %v3107
        %v3492 = vunpack.c.l.b16 %v3108
        %v3493 = vunpack.c.l.b16 %v3109
        %v3494 = vpack.c.b16 %v3143, %v3478
        %v3495 = vpack.c.b16 %v3145, %v3479
        %v3496 = vpack.c.b16 %v3147, %v3480
        %v3497 = vpack.c.b16 %v3149, %v3481
        %v3498 = vpack.c.b16 %v3151, %v3482
        %v3499 = vpack.c.b16 %v3153, %v3483
        %v3500 = vpack.c.b16 %v3155, %v3484
        %v3501 = vpack.c.b16 %v3157, %v3485
        %v3502 = vpack.c.b16 %v3159, %v3486
        %v3503 = vpack.c.b16 %v3161, %v3487
        %v3504 = vpack.c.b16 %v3163, %v3488
        %v3505 = vpack.c.b16 %v3165, %v3489
        %v3506 = vpack.c.b16 %v3167, %v3490
        %v3507 = vpack.c.b16 %v3169, %v3491
        %v3508 = vpack.c.b16 %v3171, %v3492
        %v3509 = vpack.c.b16 %v3173, %v3493
        %v3510 = vrot.slane %v3494, 1
        %v3511 = vrot.slane %v3238, 1
        %v3512 = vsel %vm1534, %v3510, %v3511
        %v3513 = vrot.slane %v3495, 1
        %v3514 = vrot.slane %v3239, 1
        %v3515 = vsel %vm1534, %v3513, %v3514
        %v3516 = vrot.slane %v3496, 1
        %v3517 = vrot.slane %v3240, 1
        %v3518 = vsel %vm1534, %v3516, %v3517
        %v3519 = vrot.slane %v3497, 1
        %v3520 = vrot.slane %v3241, 1
        %v3521 = vsel %vm1534, %v3519, %v3520
        %v3522 = vrot.slane %v3498, 1
        %v3523 = vrot.slane %v3242, 1
        %v3524 = vsel %vm1534, %v3522, %v3523
        %v3525 = vrot.slane %v3499, 1
        %v3526 = vrot.slane %v3243, 1
        %v3527 = vsel %vm1534, %v3525, %v3526
        %v3528 = vrot.slane %v3500, 1
        %v3529 = vrot.slane %v3244, 1
        %v3530 = vsel %vm1534, %v3528, %v3529
        %v3531 = vrot.slane %v3501, 1
        %v3532 = vrot.slane %v3245, 1
        %v3533 = vsel %vm1534, %v3531, %v3532
        %v3534 = vrot.slane %v3502, 1
        %v3535 = vrot.slane %v3246, 1
        %v3536 = vsel %vm1534, %v3534, %v3535
        %v3537 = vrot.slane %v3503, 1
        %v3538 = vrot.slane %v3247, 1
        %v3539 = vsel %vm1534, %v3537, %v3538
        %v3540 = vrot.slane %v3504, 1
        %v3541 = vrot.slane %v3248, 1
        %v3542 = vsel %vm1534, %v3540, %v3541
        %v3543 = vrot.slane %v3505, 1
        %v3544 = vrot.slane %v3249, 1
        %v3545 = vsel %vm1534, %v3543, %v3544
        %v3546 = vrot.slane %v3506, 1
        %v3547 = vrot.slane %v3250, 1
        %v3548 = vsel %vm1534, %v3546, %v3547
        %v3549 = vrot.slane %v3507, 1
        %v3550 = vrot.slane %v3251, 1
        %v3551 = vsel %vm1534, %v3549, %v3550
        %v3552 = vrot.slane %v3508, 1
        %v3553 = vrot.slane %v3252, 1
        %v3554 = vsel %vm1534, %v3552, %v3553
        %v3555 = vrot.slane %v3509, 1
        %v3556 = vrot.slane %v3253, 1
        %v3557 = vsel %vm1534, %v3555, %v3556
        %v3574 = vld [vmem:[%s1 + $0x180] sm:$0xf]
        %v3575 = vld [vmem:[%s1 + $0x184] sm:$0xf]
        %v3576 = vld [vmem:[%s1 + $0x188] sm:$0xf]
        %v3577 = vld [vmem:[%s1 + $0x18c] sm:$0xf]
        %v3578 = vld [vmem:[%s1 + $0x190] sm:$0xf]
        %v3579 = vld [vmem:[%s1 + $0x194] sm:$0xf]
        %v3580 = vld [vmem:[%s1 + $0x198] sm:$0xf]
        %v3581 = vld [vmem:[%s1 + $0x19c] sm:$0xf]
        %v3582 = vld [vmem:[%s1 + $0x1a0] sm:$0xf]
        %v3583 = vld [vmem:[%s1 + $0x1a4] sm:$0xf]
        %v3584 = vld [vmem:[%s1 + $0x1a8] sm:$0xf]
        %v3585 = vld [vmem:[%s1 + $0x1ac] sm:$0xf]
        %v3586 = vld [vmem:[%s1 + $0x1b0] sm:$0xf]
        %v3587 = vld [vmem:[%s1 + $0x1b4] sm:$0xf]
        %v3588 = vld [vmem:[%s1 + $0x1b8] sm:$0xf]
        %v3589 = vld [vmem:[%s1 + $0x1bc] sm:$0xf]
        %v3590 = vld [vmem:[%s1 + $0x1c0] sm:$0xf]
        %v3591 = vld [vmem:[%s1 + $0x1c4] sm:$0xf]
        %v3592 = vld [vmem:[%s1 + $0x1c8] sm:$0xf]
        %v3593 = vld [vmem:[%s1 + $0x1cc] sm:$0xf]
        %v3594 = vld [vmem:[%s1 + $0x1d0] sm:$0xf]
        %v3595 = vld [vmem:[%s1 + $0x1d4] sm:$0xf]
        %v3596 = vld [vmem:[%s1 + $0x1d8] sm:$0xf]
        %v3597 = vld [vmem:[%s1 + $0x1dc] sm:$0xf]
        %v3598 = vld [vmem:[%s1 + $0x1e0] sm:$0xf]
        %v3599 = vld [vmem:[%s1 + $0x1e4] sm:$0xf]
        %v3600 = vld [vmem:[%s1 + $0x1e8] sm:$0xf]
        %v3601 = vld [vmem:[%s1 + $0x1ec] sm:$0xf]
        %v3602 = vld [vmem:[%s1 + $0x1f0] sm:$0xf]
        %v3603 = vld [vmem:[%s1 + $0x1f4] sm:$0xf]
        %v3604 = vld [vmem:[%s1 + $0x1f8] sm:$0xf]
        %v3605 = vld [vmem:[%s1 + $0x1fc] sm:$0xf]
        %v3606 = vld [vmem:[%s1 + $0x200] sm:$0xf]
        %v3607 = vld [vmem:[%s1 + $0x204] sm:$0xf]
        %v3608 = vld [vmem:[%s1 + $0x208] sm:$0xf]
        %v3609 = vld [vmem:[%s1 + $0x20c] sm:$0xf]
        %v3610 = vld [vmem:[%s1 + $0x210] sm:$0xf]
        %v3611 = vld [vmem:[%s1 + $0x214] sm:$0xf]
        %v3612 = vld [vmem:[%s1 + $0x218] sm:$0xf]
        %v3613 = vld [vmem:[%s1 + $0x21c] sm:$0xf]
        %v3614 = vld [vmem:[%s1 + $0x220] sm:$0xf]
        %v3615 = vld [vmem:[%s1 + $0x224] sm:$0xf]
        %v3616 = vld [vmem:[%s1 + $0x228] sm:$0xf]
        %v3617 = vld [vmem:[%s1 + $0x22c] sm:$0xf]
        %v3618 = vld [vmem:[%s1 + $0x230] sm:$0xf]
        %v3619 = vld [vmem:[%s1 + $0x234] sm:$0xf]
        %v3620 = vld [vmem:[%s1 + $0x238] sm:$0xf]
        %v3621 = vld [vmem:[%s1 + $0x23c] sm:$0xf]
        %v3670 = vunpack.c.l.b16 %v3574
        %v3671 = vunpack.c.l.b16 %v3575
        %v3672 = vunpack.c.l.b16 %v3576
        %v3673 = vunpack.c.l.b16 %v3577
        %v3674 = vunpack.c.l.b16 %v3578
        %v3675 = vunpack.c.l.b16 %v3579
        %v3676 = vunpack.c.l.b16 %v3580
        %v3677 = vunpack.c.l.b16 %v3581
        %v3678 = vunpack.c.l.b16 %v3582
        %v3679 = vunpack.c.l.b16 %v3583
        %v3680 = vunpack.c.l.b16 %v3584
        %v3681 = vunpack.c.l.b16 %v3585
        %v3682 = vunpack.c.l.b16 %v3586
        %v3683 = vunpack.c.l.b16 %v3587
        %v3684 = vunpack.c.l.b16 %v3588
        %v3685 = vunpack.c.l.b16 %v3589
        %v3686 = vunpack.c.l.b16 %v3590
        %v3687 = vunpack.c.l.b16 %v3591
        %v3688 = vunpack.c.l.b16 %v3592
        %v3689 = vunpack.c.l.b16 %v3593
        %v3690 = vunpack.c.l.b16 %v3594
        %v3691 = vunpack.c.l.b16 %v3595
        %v3692 = vunpack.c.l.b16 %v3596
        %v3693 = vunpack.c.l.b16 %v3597
        %v3694 = vunpack.c.l.b16 %v3598
        %v3695 = vunpack.c.l.b16 %v3599
        %v3696 = vunpack.c.l.b16 %v3600
        %v3697 = vunpack.c.l.b16 %v3601
        %v3698 = vunpack.c.l.b16 %v3602
        %v3699 = vunpack.c.l.b16 %v3603
        %v3700 = vunpack.c.l.b16 %v3604
        %v3701 = vunpack.c.l.b16 %v3605
        %v3702 = vunpack.c.l.b16 %v3606
        %v3703 = vunpack.c.l.b16 %v3607
        %v3704 = vunpack.c.l.b16 %v3608
        %v3705 = vunpack.c.l.b16 %v3609
        %v3706 = vunpack.c.l.b16 %v3610
        %v3707 = vunpack.c.l.b16 %v3611
        %v3708 = vunpack.c.l.b16 %v3612
        %v3709 = vunpack.c.l.b16 %v3613
        %v3710 = vunpack.c.l.b16 %v3614
        %v3711 = vunpack.c.l.b16 %v3615
        %v3712 = vunpack.c.l.b16 %v3616
        %v3713 = vunpack.c.l.b16 %v3617
        %v3714 = vunpack.c.l.b16 %v3618
        %v3715 = vunpack.c.l.b16 %v3619
        %v3716 = vunpack.c.l.b16 %v3620
        %v3717 = vunpack.c.l.b16 %v3621
        %v3718 = vpack.c.b16 %v3671, %v3670
        %v3719 = vpack.c.b16 %v3673, %v3672
        %v3720 = vpack.c.b16 %v3675, %v3674
        %v3721 = vpack.c.b16 %v3677, %v3676
        %v3722 = vpack.c.b16 %v3679, %v3678
        %v3723 = vpack.c.b16 %v3681, %v3680
        %v3724 = vpack.c.b16 %v3683, %v3682
        %v3725 = vpack.c.b16 %v3685, %v3684
        %v3726 = vpack.c.b16 %v3687, %v3686
        %v3727 = vpack.c.b16 %v3689, %v3688
        %v3728 = vpack.c.b16 %v3691, %v3690
        %v3729 = vpack.c.b16 %v3693, %v3692
        %v3730 = vpack.c.b16 %v3695, %v3694
        %v3731 = vpack.c.b16 %v3697, %v3696
        %v3732 = vpack.c.b16 %v3699, %v3698
        %v3733 = vpack.c.b16 %v3701, %v3700
        %v3734 = vpack.c.b16 %v3703, %v3702
        %v3735 = vpack.c.b16 %v3705, %v3704
        %v3736 = vpack.c.b16 %v3707, %v3706
        %v3737 = vpack.c.b16 %v3709, %v3708
        %v3738 = vpack.c.b16 %v3711, %v3710
        %v3739 = vpack.c.b16 %v3713, %v3712
        %v3740 = vpack.c.b16 %v3715, %v3714
        %v3741 = vpack.c.b16 %v3717, %v3716
        %3766 = vmatpush.bf16.msra.mxu0 %v3725
        %3767 = vmatpush.bf16.msra.mxu0 %v3724
        %3768 = vmatpush.bf16.msra.mxu0 %v3723
        %3769 = vmatpush.bf16.msra.mxu0 %v3722
        %3770 = vmatpush.bf16.msra.mxu0 %v3721
        %3771 = vmatpush.bf16.msra.mxu0 %v3720
        %3772 = vmatpush.bf16.msra.mxu0 %v3719
        %3773 = vmatpush.bf16.msra.mxu0 %v3718
        %3774 = vmatmul.bf16.gmra.mxu0 %v3174
        %v3775 = vpop.f32.mrf.mxu0
        %v3776 = vadd.f32 0.0, %v3775
        %v3777 = vpop.f32.mrf.mxu0
        %v3778 = vadd.f32 0.0, %v3777
        %3779 = vmatmul.bf16.gmra.mxu0 %v3175
        %v3780 = vpop.f32.mrf.mxu0
        %v3781 = vadd.f32 0.0, %v3780
        %v3782 = vpop.f32.mrf.mxu0
        %v3783 = vadd.f32 0.0, %v3782
        %3784 = vmatmul.bf16.gmra.mxu0 %v3176
        %v3785 = vpop.f32.mrf.mxu0
        %v3786 = vadd.f32 0.0, %v3785
        %v3787 = vpop.f32.mrf.mxu0
        %v3788 = vadd.f32 0.0, %v3787
        %3789 = vmatmul.bf16.gmra.mxu0 %v3177
        %v3790 = vpop.f32.mrf.mxu0
        %v3791 = vadd.f32 0.0, %v3790
        %v3792 = vpop.f32.mrf.mxu0
        %v3793 = vadd.f32 0.0, %v3792
        %3794 = vmatmul.bf16.gmra.mxu0 %v3178
        %v3795 = vpop.f32.mrf.mxu0
        %v3796 = vadd.f32 0.0, %v3795
        %v3797 = vpop.f32.mrf.mxu0
        %v3798 = vadd.f32 0.0, %v3797
        %3799 = vmatmul.bf16.gmra.mxu0 %v3179
        %v3800 = vpop.f32.mrf.mxu0
        %v3801 = vadd.f32 0.0, %v3800
        %v3802 = vpop.f32.mrf.mxu0
        %v3803 = vadd.f32 0.0, %v3802
        %3804 = vmatmul.bf16.gmra.mxu0 %v3180
        %v3805 = vpop.f32.mrf.mxu0
        %v3806 = vadd.f32 0.0, %v3805
        %v3807 = vpop.f32.mrf.mxu0
        %v3808 = vadd.f32 0.0, %v3807
        %3809 = vmatmul.bf16.gmra.mxu0 %v3181
        %v3810 = vpop.f32.mrf.mxu0
        %v3811 = vadd.f32 0.0, %v3810
        %v3812 = vpop.f32.mrf.mxu0
        %v3813 = vadd.f32 0.0, %v3812
        %3814 = vmatmul.bf16.gmra.mxu0 %v3182
        %v3815 = vpop.f32.mrf.mxu0
        %v3816 = vadd.f32 0.0, %v3815
        %v3817 = vpop.f32.mrf.mxu0
        %v3818 = vadd.f32 0.0, %v3817
        %3819 = vmatmul.bf16.gmra.mxu0 %v3183
        %v3820 = vpop.f32.mrf.mxu0
        %v3821 = vadd.f32 0.0, %v3820
        %v3822 = vpop.f32.mrf.mxu0
        %v3823 = vadd.f32 0.0, %v3822
        %3824 = vmatmul.bf16.gmra.mxu0 %v3184
        %v3825 = vpop.f32.mrf.mxu0
        %v3826 = vadd.f32 0.0, %v3825
        %v3827 = vpop.f32.mrf.mxu0
        %v3828 = vadd.f32 0.0, %v3827
        %3829 = vmatmul.bf16.gmra.mxu0 %v3185
        %v3830 = vpop.f32.mrf.mxu0
        %v3831 = vadd.f32 0.0, %v3830
        %v3832 = vpop.f32.mrf.mxu0
        %v3833 = vadd.f32 0.0, %v3832
        %3834 = vmatmul.bf16.gmra.mxu0 %v3186
        %v3835 = vpop.f32.mrf.mxu0
        %v3836 = vadd.f32 0.0, %v3835
        %v3837 = vpop.f32.mrf.mxu0
        %v3838 = vadd.f32 0.0, %v3837
        %3839 = vmatmul.bf16.gmra.mxu0 %v3187
        %v3840 = vpop.f32.mrf.mxu0
        %v3841 = vadd.f32 0.0, %v3840
        %v3842 = vpop.f32.mrf.mxu0
        %v3843 = vadd.f32 0.0, %v3842
        %3844 = vmatmul.bf16.gmra.mxu0 %v3188
        %v3845 = vpop.f32.mrf.mxu0
        %v3846 = vadd.f32 0.0, %v3845
        %v3847 = vpop.f32.mrf.mxu0
        %v3848 = vadd.f32 0.0, %v3847
        %3849 = vmatmul.bf16.gmra.mxu0 %v3189
        %v3850 = vpop.f32.mrf.mxu0
        %v3851 = vadd.f32 0.0, %v3850
        %v3852 = vpop.f32.mrf.mxu0
        %v3853 = vadd.f32 0.0, %v3852
        %3854 = vdwg.mxu0
        %3855 = vmatpush.bf16.msra.mxu0 %v3733
        %3856 = vmatpush.bf16.msra.mxu0 %v3732
        %3857 = vmatpush.bf16.msra.mxu0 %v3731
        %3858 = vmatpush.bf16.msra.mxu0 %v3730
        %3859 = vmatpush.bf16.msra.mxu0 %v3729
        %3860 = vmatpush.bf16.msra.mxu0 %v3728
        %3861 = vmatpush.bf16.msra.mxu0 %v3727
        %3862 = vmatpush.bf16.msra.mxu0 %v3726
        %3863 = vmatmul.bf16.gmra.mxu0 %v3265
        %v3864 = vpop.f32.mrf.mxu0
        %v3865 = vadd.f32 %v3776, %v3864
        %v3866 = vpop.f32.mrf.mxu0
        %v3867 = vadd.f32 %v3778, %v3866
        %3868 = vmatmul.bf16.gmra.mxu0 %v3277
        %v3869 = vpop.f32.mrf.mxu0
        %v3870 = vadd.f32 %v3781, %v3869
        %v3871 = vpop.f32.mrf.mxu0
        %v3872 = vadd.f32 %v3783, %v3871
        %3873 = vmatmul.bf16.gmra.mxu0 %v3289
        %v3874 = vpop.f32.mrf.mxu0
        %v3875 = vadd.f32 %v3786, %v3874
        %v3876 = vpop.f32.mrf.mxu0
        %v3877 = vadd.f32 %v3788, %v3876
        %3878 = vmatmul.bf16.gmra.mxu0 %v3301
        %v3879 = vpop.f32.mrf.mxu0
        %v3880 = vadd.f32 %v3791, %v3879
        %v3881 = vpop.f32.mrf.mxu0
        %v3882 = vadd.f32 %v3793, %v3881
        %3883 = vmatmul.bf16.gmra.mxu0 %v3313
        %v3884 = vpop.f32.mrf.mxu0
        %v3885 = vadd.f32 %v3796, %v3884
        %v3886 = vpop.f32.mrf.mxu0
        %v3887 = vadd.f32 %v3798, %v3886
        %3888 = vmatmul.bf16.gmra.mxu0 %v3325
        %v3889 = vpop.f32.mrf.mxu0
        %v3890 = vadd.f32 %v3801, %v3889
        %v3891 = vpop.f32.mrf.mxu0
        %v3892 = vadd.f32 %v3803, %v3891
        %3893 = vmatmul.bf16.gmra.mxu0 %v3337
        %v3894 = vpop.f32.mrf.mxu0
        %v3895 = vadd.f32 %v3806, %v3894
        %v3896 = vpop.f32.mrf.mxu0
        %v3897 = vadd.f32 %v3808, %v3896
        %3898 = vmatmul.bf16.gmra.mxu0 %v3349
        %v3899 = vpop.f32.mrf.mxu0
        %v3900 = vadd.f32 %v3811, %v3899
        %v3901 = vpop.f32.mrf.mxu0
        %v3902 = vadd.f32 %v3813, %v3901
        %3903 = vmatmul.bf16.gmra.mxu0 %v3361
        %v3904 = vpop.f32.mrf.mxu0
        %v3905 = vadd.f32 %v3816, %v3904
        %v3906 = vpop.f32.mrf.mxu0
        %v3907 = vadd.f32 %v3818, %v3906
        %3908 = vmatmul.bf16.gmra.mxu0 %v3373
        %v3909 = vpop.f32.mrf.mxu0
        %v3910 = vadd.f32 %v3821, %v3909
        %v3911 = vpop.f32.mrf.mxu0
        %v3912 = vadd.f32 %v3823, %v3911
        %3913 = vmatmul.bf16.gmra.mxu0 %v3385
        %v3914 = vpop.f32.mrf.mxu0
        %v3915 = vadd.f32 %v3826, %v3914
        %v3916 = vpop.f32.mrf.mxu0
        %v3917 = vadd.f32 %v3828, %v3916
        %3918 = vmatmul.bf16.gmra.mxu0 %v3397
        %v3919 = vpop.f32.mrf.mxu0
        %v3920 = vadd.f32 %v3831, %v3919
        %v3921 = vpop.f32.mrf.mxu0
        %v3922 = vadd.f32 %v3833, %v3921
        %3923 = vmatmul.bf16.gmra.mxu0 %v3409
        %v3924 = vpop.f32.mrf.mxu0
        %v3925 = vadd.f32 %v3836, %v3924
        %v3926 = vpop.f32.mrf.mxu0
        %v3927 = vadd.f32 %v3838, %v3926
        %3928 = vmatmul.bf16.gmra.mxu0 %v3421
        %v3929 = vpop.f32.mrf.mxu0
        %v3930 = vadd.f32 %v3841, %v3929
        %v3931 = vpop.f32.mrf.mxu0
        %v3932 = vadd.f32 %v3843, %v3931
        %3933 = vmatmul.bf16.gmra.mxu0 %v3433
        %v3934 = vpop.f32.mrf.mxu0
        %v3935 = vadd.f32 %v3846, %v3934
        %v3936 = vpop.f32.mrf.mxu0
        %v3937 = vadd.f32 %v3848, %v3936
        %3938 = vmatmul.bf16.gmra.mxu0 %v3445
        %v3939 = vpop.f32.mrf.mxu0
        %v3940 = vadd.f32 %v3851, %v3939
        %v3941 = vpop.f32.mrf.mxu0
        %v3942 = vadd.f32 %v3853, %v3941
        %3943 = vdwg.mxu0
        %3944 = vmatpush.bf16.msra.mxu0 %v3741
        %3945 = vmatpush.bf16.msra.mxu0 %v3740
        %3946 = vmatpush.bf16.msra.mxu0 %v3739
        %3947 = vmatpush.bf16.msra.mxu0 %v3738
        %3948 = vmatpush.bf16.msra.mxu0 %v3737
        %3949 = vmatpush.bf16.msra.mxu0 %v3736
        %3950 = vmatpush.bf16.msra.mxu0 %v3735
        %3951 = vmatpush.bf16.msra.mxu0 %v3734
        %3952 = vmatmul.bf16.gmra.mxu0 %v3512
        %v3953 = vpop.f32.mrf.mxu0
        %v3954 = vadd.f32 %v3865, %v3953
        %v3955 = vpop.f32.mrf.mxu0
        %v3956 = vadd.f32 %v3867, %v3955
        %3957 = vmatmul.bf16.gmra.mxu0 %v3515
        %v3958 = vpop.f32.mrf.mxu0
        %v3959 = vadd.f32 %v3870, %v3958
        %v3960 = vpop.f32.mrf.mxu0
        %v3961 = vadd.f32 %v3872, %v3960
        %3962 = vmatmul.bf16.gmra.mxu0 %v3518
        %v3963 = vpop.f32.mrf.mxu0
        %v3964 = vadd.f32 %v3875, %v3963
        %v3965 = vpop.f32.mrf.mxu0
        %v3966 = vadd.f32 %v3877, %v3965
        %3967 = vmatmul.bf16.gmra.mxu0 %v3521
        %v3968 = vpop.f32.mrf.mxu0
        %v3969 = vadd.f32 %v3880, %v3968
        %v3970 = vpop.f32.mrf.mxu0
        %v3971 = vadd.f32 %v3882, %v3970
        %3972 = vmatmul.bf16.gmra.mxu0 %v3524
        %v3973 = vpop.f32.mrf.mxu0
        %v3974 = vadd.f32 %v3885, %v3973
        %v3975 = vpop.f32.mrf.mxu0
        %v3976 = vadd.f32 %v3887, %v3975
        %3977 = vmatmul.bf16.gmra.mxu0 %v3527
        %v3978 = vpop.f32.mrf.mxu0
        %v3979 = vadd.f32 %v3890, %v3978
        %v3980 = vpop.f32.mrf.mxu0
        %v3981 = vadd.f32 %v3892, %v3980
        %3982 = vmatmul.bf16.gmra.mxu0 %v3530
        %v3983 = vpop.f32.mrf.mxu0
        %v3984 = vadd.f32 %v3895, %v3983
        %v3985 = vpop.f32.mrf.mxu0
        %v3986 = vadd.f32 %v3897, %v3985
        %3987 = vmatmul.bf16.gmra.mxu0 %v3533
        %v3988 = vpop.f32.mrf.mxu0
        %v3989 = vadd.f32 %v3900, %v3988
        %v3990 = vpop.f32.mrf.mxu0
        %v3991 = vadd.f32 %v3902, %v3990
        %3992 = vmatmul.bf16.gmra.mxu0 %v3536
        %v3993 = vpop.f32.mrf.mxu0
        %v3994 = vadd.f32 %v3905, %v3993
        %v3995 = vpop.f32.mrf.mxu0
        %v3996 = vadd.f32 %v3907, %v3995
        %3997 = vmatmul.bf16.gmra.mxu0 %v3539
        %v3998 = vpop.f32.mrf.mxu0
        %v3999 = vadd.f32 %v3910, %v3998
        %v4000 = vpop.f32.mrf.mxu0
        %v4001 = vadd.f32 %v3912, %v4000
        %4002 = vmatmul.bf16.gmra.mxu0 %v3542
        %v4003 = vpop.f32.mrf.mxu0
        %v4004 = vadd.f32 %v3915, %v4003
        %v4005 = vpop.f32.mrf.mxu0
        %v4006 = vadd.f32 %v3917, %v4005
        %4007 = vmatmul.bf16.gmra.mxu0 %v3545
        %v4008 = vpop.f32.mrf.mxu0
        %v4009 = vadd.f32 %v3920, %v4008
        %v4010 = vpop.f32.mrf.mxu0
        %v4011 = vadd.f32 %v3922, %v4010
        %4012 = vmatmul.bf16.gmra.mxu0 %v3548
        %v4013 = vpop.f32.mrf.mxu0
        %v4014 = vadd.f32 %v3925, %v4013
        %v4015 = vpop.f32.mrf.mxu0
        %v4016 = vadd.f32 %v3927, %v4015
        %4017 = vmatmul.bf16.gmra.mxu0 %v3551
        %v4018 = vpop.f32.mrf.mxu0
        %v4019 = vadd.f32 %v3930, %v4018
        %v4020 = vpop.f32.mrf.mxu0
        %v4021 = vadd.f32 %v3932, %v4020
        %4022 = vmatmul.bf16.gmra.mxu0 %v3554
        %v4023 = vpop.f32.mrf.mxu0
        %v4024 = vadd.f32 %v3935, %v4023
        %v4025 = vpop.f32.mrf.mxu0
        %v4026 = vadd.f32 %v3937, %v4025
        %4027 = vmatmul.bf16.gmra.mxu0 %v3557
        %v4028 = vpop.f32.mrf.mxu0
        %v4029 = vadd.f32 %v3940, %v4028
        %v4030 = vpop.f32.mrf.mxu0
        %v4031 = vadd.f32 %v3942, %v4030
        %4032 = vdwg.mxu0
        %v4033 = vadd.f32 %v2966, %v3954
        %v4034 = vadd.f32 %v2968, %v3956
        %v4035 = vadd.f32 %v2971, %v3959
        %v4036 = vadd.f32 %v2973, %v3961
        %v4037 = vadd.f32 %v2976, %v3964
        %v4038 = vadd.f32 %v2978, %v3966
        %v4039 = vadd.f32 %v2981, %v3969
        %v4040 = vadd.f32 %v2983, %v3971
        %v4041 = vadd.f32 %v2986, %v3974
        %v4042 = vadd.f32 %v2988, %v3976
        %v4043 = vadd.f32 %v2991, %v3979
        %v4044 = vadd.f32 %v2993, %v3981
        %v4045 = vadd.f32 %v2996, %v3984
        %v4046 = vadd.f32 %v2998, %v3986
        %v4047 = vadd.f32 %v3001, %v3989
        %v4048 = vadd.f32 %v3003, %v3991
        %v4049 = vadd.f32 %v3006, %v3994
        %v4050 = vadd.f32 %v3008, %v3996
        %v4051 = vadd.f32 %v3011, %v3999
        %v4052 = vadd.f32 %v3013, %v4001
        %v4053 = vadd.f32 %v3016, %v4004
        %v4054 = vadd.f32 %v3018, %v4006
        %v4055 = vadd.f32 %v3021, %v4009
        %v4056 = vadd.f32 %v3023, %v4011
        %v4057 = vadd.f32 %v3026, %v4014
        %v4058 = vadd.f32 %v3028, %v4016
        %v4059 = vadd.f32 %v3031, %v4019
        %v4060 = vadd.f32 %v3033, %v4021
        %v4061 = vadd.f32 %v3036, %v4024
        %v4062 = vadd.f32 %v3038, %v4026
        %v4063 = vadd.f32 %v3041, %v4029
        %v4064 = vadd.f32 %v3043, %v4031
        %v4065 = vld [vmem:[%s2] sm:$0x1]
        %v4067 = vperm.slane %v4065, 0
        %v4069 = vmul.f32 %v4033, %v4067
        %v4070 = vmul.f32 %v4034, %v4067
        %v4071 = vmul.f32 %v4035, %v4067
        %v4072 = vmul.f32 %v4036, %v4067
        %v4073 = vmul.f32 %v4037, %v4067
        %v4074 = vmul.f32 %v4038, %v4067
        %v4075 = vmul.f32 %v4039, %v4067
        %v4076 = vmul.f32 %v4040, %v4067
        %v4077 = vmul.f32 %v4041, %v4067
        %v4078 = vmul.f32 %v4042, %v4067
        %v4079 = vmul.f32 %v4043, %v4067
        %v4080 = vmul.f32 %v4044, %v4067
        %v4081 = vmul.f32 %v4045, %v4067
        %v4082 = vmul.f32 %v4046, %v4067
        %v4083 = vmul.f32 %v4047, %v4067
        %v4084 = vmul.f32 %v4048, %v4067
        %v4085 = vmul.f32 %v4049, %v4067
        %v4086 = vmul.f32 %v4050, %v4067
        %v4087 = vmul.f32 %v4051, %v4067
        %v4088 = vmul.f32 %v4052, %v4067
        %v4089 = vmul.f32 %v4053, %v4067
        %v4090 = vmul.f32 %v4054, %v4067
        %v4091 = vmul.f32 %v4055, %v4067
        %v4092 = vmul.f32 %v4056, %v4067
        %v4093 = vmul.f32 %v4057, %v4067
        %v4094 = vmul.f32 %v4058, %v4067
        %v4095 = vmul.f32 %v4059, %v4067
        %v4096 = vmul.f32 %v4060, %v4067
        %v4097 = vmul.f32 %v4061, %v4067
        %v4098 = vmul.f32 %v4062, %v4067
        %v4099 = vmul.f32 %v4063, %v4067
        %v4100 = vmul.f32 %v4064, %v4067
        %v4101 = vld [vmem:[%s3] sm:$0x1]
        %v4103 = vperm.slane %v4101, 0
        %v4105 = vadd.f32 %v4069, %v4103
        %v4106 = vadd.f32 %v4070, %v4103
        %v4107 = vadd.f32 %v4071, %v4103
        %v4108 = vadd.f32 %v4072, %v4103
        %v4109 = vadd.f32 %v4073, %v4103
        %v4110 = vadd.f32 %v4074, %v4103
        %v4111 = vadd.f32 %v4075, %v4103
        %v4112 = vadd.f32 %v4076, %v4103
        %v4113 = vadd.f32 %v4077, %v4103
        %v4114 = vadd.f32 %v4078, %v4103
        %v4115 = vadd.f32 %v4079, %v4103
        %v4116 = vadd.f32 %v4080, %v4103
        %v4117 = vadd.f32 %v4081, %v4103
        %v4118 = vadd.f32 %v4082, %v4103
        %v4119 = vadd.f32 %v4083, %v4103
        %v4120 = vadd.f32 %v4084, %v4103
        %v4121 = vadd.f32 %v4085, %v4103
        %v4122 = vadd.f32 %v4086, %v4103
        %v4123 = vadd.f32 %v4087, %v4103
        %v4124 = vadd.f32 %v4088, %v4103
        %v4125 = vadd.f32 %v4089, %v4103
        %v4126 = vadd.f32 %v4090, %v4103
        %v4127 = vadd.f32 %v4091, %v4103
        %v4128 = vadd.f32 %v4092, %v4103
        %v4129 = vadd.f32 %v4093, %v4103
        %v4130 = vadd.f32 %v4094, %v4103
        %v4131 = vadd.f32 %v4095, %v4103
        %v4132 = vadd.f32 %v4096, %v4103
        %v4133 = vadd.f32 %v4097, %v4103
        %v4134 = vadd.f32 %v4098, %v4103
        %v4135 = vadd.f32 %v4099, %v4103
        %v4136 = vadd.f32 %v4100, %v4103
        %v4137 = vmax.f32 %v4105, 0.0
        %v4138 = vmax.f32 %v4106, 0.0
        %v4139 = vmax.f32 %v4107, 0.0
        %v4140 = vmax.f32 %v4108, 0.0
        %v4141 = vmax.f32 %v4109, 0.0
        %v4142 = vmax.f32 %v4110, 0.0
        %v4143 = vmax.f32 %v4111, 0.0
        %v4144 = vmax.f32 %v4112, 0.0
        %v4145 = vmax.f32 %v4113, 0.0
        %v4146 = vmax.f32 %v4114, 0.0
        %v4147 = vmax.f32 %v4115, 0.0
        %v4148 = vmax.f32 %v4116, 0.0
        %v4149 = vmax.f32 %v4117, 0.0
        %v4150 = vmax.f32 %v4118, 0.0
        %v4151 = vmax.f32 %v4119, 0.0
        %v4152 = vmax.f32 %v4120, 0.0
        %v4153 = vmax.f32 %v4121, 0.0
        %v4154 = vmax.f32 %v4122, 0.0
        %v4155 = vmax.f32 %v4123, 0.0
        %v4156 = vmax.f32 %v4124, 0.0
        %v4157 = vmax.f32 %v4125, 0.0
        %v4158 = vmax.f32 %v4126, 0.0
        %v4159 = vmax.f32 %v4127, 0.0
        %v4160 = vmax.f32 %v4128, 0.0
        %v4161 = vmax.f32 %v4129, 0.0
        %v4162 = vmax.f32 %v4130, 0.0
        %v4163 = vmax.f32 %v4131, 0.0
        %v4164 = vmax.f32 %v4132, 0.0
        %v4165 = vmax.f32 %v4133, 0.0
        %v4166 = vmax.f32 %v4134, 0.0
        %v4167 = vmax.f32 %v4135, 0.0
        %v4168 = vmax.f32 %v4136, 0.0
        %v4169 = vpack.c.bf16 %v4137, %v4137
        %v4170 = vpack.c.bf16 %v4138, %v4138
        %v4171 = vpack.c.bf16 %v4139, %v4139
        %v4172 = vpack.c.bf16 %v4140, %v4140
        %v4173 = vpack.c.bf16 %v4141, %v4141
        %v4174 = vpack.c.bf16 %v4142, %v4142
        %v4175 = vpack.c.bf16 %v4143, %v4143
        %v4176 = vpack.c.bf16 %v4144, %v4144
        %v4177 = vpack.c.bf16 %v4145, %v4145
        %v4178 = vpack.c.bf16 %v4146, %v4146
        %v4179 = vpack.c.bf16 %v4147, %v4147
        %v4180 = vpack.c.bf16 %v4148, %v4148
        %v4181 = vpack.c.bf16 %v4149, %v4149
        %v4182 = vpack.c.bf16 %v4150, %v4150
        %v4183 = vpack.c.bf16 %v4151, %v4151
        %v4184 = vpack.c.bf16 %v4152, %v4152
        %v4185 = vpack.c.bf16 %v4153, %v4153
        %v4186 = vpack.c.bf16 %v4154, %v4154
        %v4187 = vpack.c.bf16 %v4155, %v4155
        %v4188 = vpack.c.bf16 %v4156, %v4156
        %v4189 = vpack.c.bf16 %v4157, %v4157
        %v4190 = vpack.c.bf16 %v4158, %v4158
        %v4191 = vpack.c.bf16 %v4159, %v4159
        %v4192 = vpack.c.bf16 %v4160, %v4160
        %v4193 = vpack.c.bf16 %v4161, %v4161
        %v4194 = vpack.c.bf16 %v4162, %v4162
        %v4195 = vpack.c.bf16 %v4163, %v4163
        %v4196 = vpack.c.bf16 %v4164, %v4164
        %v4197 = vpack.c.bf16 %v4165, %v4165
        %v4198 = vpack.c.bf16 %v4166, %v4166
        %v4199 = vpack.c.bf16 %v4167, %v4167
        %v4200 = vpack.c.bf16 %v4168, %v4168
        %v4202 = vshrl.u32 %v4169, 16
        %v4204 = vrot.slane %v4202, 7
        %v4205 = vshll.u32 %v4169, 16
        %v4207 = vor.u32 %v4204, %v4205
        %v4208 = vrot.slane %v4204, 4
        %v4210 = vshrl.u32 %v4170, 16
        %v4212 = vrot.slane %v4210, 7
        %v4213 = vshll.u32 %v4170, 16
        %v4215 = vor.u32 %v4212, %v4213
        %v4216 = vsel %vm530, %v4208, %v4215
        %v4217 = vrot.slane %v4212, 4
        %v4219 = vshrl.u32 %v4171, 16
        %v4221 = vrot.slane %v4219, 7
        %v4222 = vshll.u32 %v4171, 16
        %v4224 = vor.u32 %v4221, %v4222
        %v4225 = vrot.slane %v4221, 4
        %v4227 = vshrl.u32 %v4172, 16
        %v4229 = vrot.slane %v4227, 7
        %v4230 = vshll.u32 %v4172, 16
        %v4232 = vor.u32 %v4229, %v4230
        %v4233 = vsel %vm530, %v4225, %v4232
        %v4234 = vrot.slane %v4229, 4
        %v4236 = vshrl.u32 %v4173, 16
        %v4238 = vrot.slane %v4236, 7
        %v4239 = vshll.u32 %v4173, 16
        %v4241 = vor.u32 %v4238, %v4239
        %v4242 = vrot.slane %v4238, 4
        %v4244 = vshrl.u32 %v4174, 16
        %v4246 = vrot.slane %v4244, 7
        %v4247 = vshll.u32 %v4174, 16
        %v4249 = vor.u32 %v4246, %v4247
        %v4250 = vsel %vm530, %v4242, %v4249
        %v4251 = vrot.slane %v4246, 4
        %v4253 = vshrl.u32 %v4175, 16
        %v4255 = vrot.slane %v4253, 7
        %v4256 = vshll.u32 %v4175, 16
        %v4258 = vor.u32 %v4255, %v4256
        %v4259 = vrot.slane %v4255, 4
        %v4261 = vshrl.u32 %v4176, 16
        %v4263 = vrot.slane %v4261, 7
        %v4264 = vshll.u32 %v4176, 16
        %v4266 = vor.u32 %v4263, %v4264
        %v4267 = vsel %vm530, %v4259, %v4266
        %v4268 = vrot.slane %v4263, 4
        %v4270 = vshrl.u32 %v4177, 16
        %v4272 = vrot.slane %v4270, 7
        %v4273 = vshll.u32 %v4177, 16
        %v4275 = vor.u32 %v4272, %v4273
        %v4276 = vrot.slane %v4272, 4
        %v4278 = vshrl.u32 %v4178, 16
        %v4280 = vrot.slane %v4278, 7
        %v4281 = vshll.u32 %v4178, 16
        %v4283 = vor.u32 %v4280, %v4281
        %v4284 = vsel %vm530, %v4276, %v4283
        %v4285 = vrot.slane %v4280, 4
        %v4287 = vshrl.u32 %v4179, 16
        %v4289 = vrot.slane %v4287, 7
        %v4290 = vshll.u32 %v4179, 16
        %v4292 = vor.u32 %v4289, %v4290
        %v4293 = vrot.slane %v4289, 4
        %v4295 = vshrl.u32 %v4180, 16
        %v4297 = vrot.slane %v4295, 7
        %v4298 = vshll.u32 %v4180, 16
        %v4300 = vor.u32 %v4297, %v4298
        %v4301 = vsel %vm530, %v4293, %v4300
        %v4302 = vrot.slane %v4297, 4
        %v4304 = vshrl.u32 %v4181, 16
        %v4306 = vrot.slane %v4304, 7
        %v4307 = vshll.u32 %v4181, 16
        %v4309 = vor.u32 %v4306, %v4307
        %v4310 = vrot.slane %v4306, 4
        %v4312 = vshrl.u32 %v4182, 16
        %v4314 = vrot.slane %v4312, 7
        %v4315 = vshll.u32 %v4182, 16
        %v4317 = vor.u32 %v4314, %v4315
        %v4318 = vsel %vm530, %v4310, %v4317
        %v4319 = vrot.slane %v4314, 4
        %v4321 = vshrl.u32 %v4183, 16
        %v4323 = vrot.slane %v4321, 7
        %v4324 = vshll.u32 %v4183, 16
        %v4326 = vor.u32 %v4323, %v4324
        %v4327 = vrot.slane %v4323, 4
        %v4329 = vshrl.u32 %v4184, 16
        %v4331 = vrot.slane %v4329, 7
        %v4332 = vshll.u32 %v4184, 16
        %v4334 = vor.u32 %v4331, %v4332
        %v4335 = vsel %vm530, %v4327, %v4334
        %v4336 = vrot.slane %v4331, 4
        %v4338 = vshrl.u32 %v4185, 16
        %v4340 = vrot.slane %v4338, 7
        %v4341 = vshll.u32 %v4185, 16
        %v4343 = vor.u32 %v4340, %v4341
        %v4344 = vrot.slane %v4340, 4
        %v4346 = vshrl.u32 %v4186, 16
        %v4348 = vrot.slane %v4346, 7
        %v4349 = vshll.u32 %v4186, 16
        %v4351 = vor.u32 %v4348, %v4349
        %v4352 = vsel %vm530, %v4344, %v4351
        %v4353 = vrot.slane %v4348, 4
        %v4355 = vshrl.u32 %v4187, 16
        %v4357 = vrot.slane %v4355, 7
        %v4358 = vshll.u32 %v4187, 16
        %v4360 = vor.u32 %v4357, %v4358
        %v4361 = vrot.slane %v4357, 4
        %v4363 = vshrl.u32 %v4188, 16
        %v4365 = vrot.slane %v4363, 7
        %v4366 = vshll.u32 %v4188, 16
        %v4368 = vor.u32 %v4365, %v4366
        %v4369 = vsel %vm530, %v4361, %v4368
        %v4370 = vrot.slane %v4365, 4
        %v4372 = vshrl.u32 %v4189, 16
        %v4374 = vrot.slane %v4372, 7
        %v4375 = vshll.u32 %v4189, 16
        %v4377 = vor.u32 %v4374, %v4375
        %v4378 = vrot.slane %v4374, 4
        %v4380 = vshrl.u32 %v4190, 16
        %v4382 = vrot.slane %v4380, 7
        %v4383 = vshll.u32 %v4190, 16
        %v4385 = vor.u32 %v4382, %v4383
        %v4386 = vsel %vm530, %v4378, %v4385
        %v4387 = vrot.slane %v4382, 4
        %v4389 = vshrl.u32 %v4191, 16
        %v4391 = vrot.slane %v4389, 7
        %v4392 = vshll.u32 %v4191, 16
        %v4394 = vor.u32 %v4391, %v4392
        %v4395 = vrot.slane %v4391, 4
        %v4397 = vshrl.u32 %v4192, 16
        %v4399 = vrot.slane %v4397, 7
        %v4400 = vshll.u32 %v4192, 16
        %v4402 = vor.u32 %v4399, %v4400
        %v4403 = vsel %vm530, %v4395, %v4402
        %v4404 = vrot.slane %v4399, 4
        %v4406 = vshrl.u32 %v4193, 16
        %v4408 = vrot.slane %v4406, 7
        %v4409 = vshll.u32 %v4193, 16
        %v4411 = vor.u32 %v4408, %v4409
        %v4412 = vrot.slane %v4408, 4
        %v4414 = vshrl.u32 %v4194, 16
        %v4416 = vrot.slane %v4414, 7
        %v4417 = vshll.u32 %v4194, 16
        %v4419 = vor.u32 %v4416, %v4417
        %v4420 = vsel %vm530, %v4412, %v4419
        %v4421 = vrot.slane %v4416, 4
        %v4423 = vshrl.u32 %v4195, 16
        %v4425 = vrot.slane %v4423, 7
        %v4426 = vshll.u32 %v4195, 16
        %v4428 = vor.u32 %v4425, %v4426
        %v4429 = vrot.slane %v4425, 4
        %v4431 = vshrl.u32 %v4196, 16
        %v4433 = vrot.slane %v4431, 7
        %v4434 = vshll.u32 %v4196, 16
        %v4436 = vor.u32 %v4433, %v4434
        %v4437 = vsel %vm530, %v4429, %v4436
        %v4438 = vrot.slane %v4433, 4
        %v4440 = vshrl.u32 %v4197, 16
        %v4442 = vrot.slane %v4440, 7
        %v4443 = vshll.u32 %v4197, 16
        %v4445 = vor.u32 %v4442, %v4443
        %v4446 = vrot.slane %v4442, 4
        %v4448 = vshrl.u32 %v4198, 16
        %v4450 = vrot.slane %v4448, 7
        %v4451 = vshll.u32 %v4198, 16
        %v4453 = vor.u32 %v4450, %v4451
        %v4454 = vsel %vm530, %v4446, %v4453
        %v4455 = vrot.slane %v4450, 4
        %v4457 = vshrl.u32 %v4199, 16
        %v4459 = vrot.slane %v4457, 7
        %v4460 = vshll.u32 %v4199, 16
        %v4462 = vor.u32 %v4459, %v4460
        %v4463 = vrot.slane %v4459, 4
        %v4465 = vshrl.u32 %v4200, 16
        %v4467 = vrot.slane %v4465, 7
        %v4468 = vshll.u32 %v4200, 16
        %v4470 = vor.u32 %v4467, %v4468
        %v4471 = vsel %vm530, %v4463, %v4470
        %v4472 = vrot.slane %v4467, 4
        %v4521 = vld [vmem:[%s972] sm:$0xf]
        %v4522 = vsel %vm852, %v4207, %v4521
        %4523 = vst [vmem:[%s972] sm:$0xf] %v4522
        %4524 = vst [vmem:[%s972 + $0x4] sm:$0xf] %v4216
        %v4525 = vld [vmem:[%s972 + $0x8] sm:$0x1]
        %v4526 = vsel %vm398, %v4217, %v4525
        %4527 = vst [vmem:[%s972 + $0x8] sm:$0x1] %v4526
        %v4528 = vld [vmem:[%s972 + $0xc] sm:$0xf]
        %v4529 = vsel %vm852, %v4224, %v4528
        %4530 = vst [vmem:[%s972 + $0xc] sm:$0xf] %v4529
        %4531 = vst [vmem:[%s972 + $0x10] sm:$0xf] %v4233
        %v4532 = vld [vmem:[%s972 + $0x14] sm:$0x1]
        %v4533 = vsel %vm398, %v4234, %v4532
        %4534 = vst [vmem:[%s972 + $0x14] sm:$0x1] %v4533
        %v4535 = vld [vmem:[%s972 + $0x18] sm:$0xf]
        %v4536 = vsel %vm852, %v4241, %v4535
        %4537 = vst [vmem:[%s972 + $0x18] sm:$0xf] %v4536
        %4538 = vst [vmem:[%s972 + $0x1c] sm:$0xf] %v4250
        %v4539 = vld [vmem:[%s972 + $0x20] sm:$0x1]
        %v4540 = vsel %vm398, %v4251, %v4539
        %4541 = vst [vmem:[%s972 + $0x20] sm:$0x1] %v4540
        %v4542 = vld [vmem:[%s972 + $0x24] sm:$0xf]
        %v4543 = vsel %vm852, %v4258, %v4542
        %4544 = vst [vmem:[%s972 + $0x24] sm:$0xf] %v4543
        %4545 = vst [vmem:[%s972 + $0x28] sm:$0xf] %v4267
        %v4546 = vld [vmem:[%s972 + $0x2c] sm:$0x1]
        %v4547 = vsel %vm398, %v4268, %v4546
        %4548 = vst [vmem:[%s972 + $0x2c] sm:$0x1] %v4547
        %v4549 = vld [vmem:[%s972 + $0x30] sm:$0xf]
        %v4550 = vsel %vm852, %v4275, %v4549
        %4551 = vst [vmem:[%s972 + $0x30] sm:$0xf] %v4550
        %4552 = vst [vmem:[%s972 + $0x34] sm:$0xf] %v4284
        %v4553 = vld [vmem:[%s972 + $0x38] sm:$0x1]
        %v4554 = vsel %vm398, %v4285, %v4553
        %4555 = vst [vmem:[%s972 + $0x38] sm:$0x1] %v4554
        %v4556 = vld [vmem:[%s972 + $0x3c] sm:$0xf]
        %v4557 = vsel %vm852, %v4292, %v4556
        %4558 = vst [vmem:[%s972 + $0x3c] sm:$0xf] %v4557
        %4559 = vst [vmem:[%s972 + $0x40] sm:$0xf] %v4301
        %v4560 = vld [vmem:[%s972 + $0x44] sm:$0x1]
        %v4561 = vsel %vm398, %v4302, %v4560
        %4562 = vst [vmem:[%s972 + $0x44] sm:$0x1] %v4561
        %v4563 = vld [vmem:[%s972 + $0x48] sm:$0xf]
        %v4564 = vsel %vm852, %v4309, %v4563
        %4565 = vst [vmem:[%s972 + $0x48] sm:$0xf] %v4564
        %4566 = vst [vmem:[%s972 + $0x4c] sm:$0xf] %v4318
        %v4567 = vld [vmem:[%s972 + $0x50] sm:$0x1]
        %v4568 = vsel %vm398, %v4319, %v4567
        %4569 = vst [vmem:[%s972 + $0x50] sm:$0x1] %v4568
        %v4570 = vld [vmem:[%s972 + $0x54] sm:$0xf]
        %v4571 = vsel %vm852, %v4326, %v4570
        %4572 = vst [vmem:[%s972 + $0x54] sm:$0xf] %v4571
        %4573 = vst [vmem:[%s972 + $0x58] sm:$0xf] %v4335
        %v4574 = vld [vmem:[%s972 + $0x5c] sm:$0x1]
        %v4575 = vsel %vm398, %v4336, %v4574
        %4576 = vst [vmem:[%s972 + $0x5c] sm:$0x1] %v4575
        %v4577 = vld [vmem:[%s972 + $0x60] sm:$0xf]
        %v4578 = vsel %vm852, %v4343, %v4577
        %4579 = vst [vmem:[%s972 + $0x60] sm:$0xf] %v4578
        %4580 = vst [vmem:[%s972 + $0x64] sm:$0xf] %v4352
        %v4581 = vld [vmem:[%s972 + $0x68] sm:$0x1]
        %v4582 = vsel %vm398, %v4353, %v4581
        %4583 = vst [vmem:[%s972 + $0x68] sm:$0x1] %v4582
        %v4584 = vld [vmem:[%s972 + $0x6c] sm:$0xf]
        %v4585 = vsel %vm852, %v4360, %v4584
        %4586 = vst [vmem:[%s972 + $0x6c] sm:$0xf] %v4585
        %4587 = vst [vmem:[%s972 + $0x70] sm:$0xf] %v4369
        %v4588 = vld [vmem:[%s972 + $0x74] sm:$0x1]
        %v4589 = vsel %vm398, %v4370, %v4588
        %4590 = vst [vmem:[%s972 + $0x74] sm:$0x1] %v4589
        %v4591 = vld [vmem:[%s972 + $0x78] sm:$0xf]
        %v4592 = vsel %vm852, %v4377, %v4591
        %4593 = vst [vmem:[%s972 + $0x78] sm:$0xf] %v4592
        %4594 = vst [vmem:[%s972 + $0x7c] sm:$0xf] %v4386
        %v4595 = vld [vmem:[%s972 + $0x80] sm:$0x1]
        %v4596 = vsel %vm398, %v4387, %v4595
        %4597 = vst [vmem:[%s972 + $0x80] sm:$0x1] %v4596
        %v4598 = vld [vmem:[%s972 + $0x84] sm:$0xf]
        %v4599 = vsel %vm852, %v4394, %v4598
        %4600 = vst [vmem:[%s972 + $0x84] sm:$0xf] %v4599
        %4601 = vst [vmem:[%s972 + $0x88] sm:$0xf] %v4403
        %v4602 = vld [vmem:[%s972 + $0x8c] sm:$0x1]
        %v4603 = vsel %vm398, %v4404, %v4602
        %4604 = vst [vmem:[%s972 + $0x8c] sm:$0x1] %v4603
        %v4605 = vld [vmem:[%s972 + $0x90] sm:$0xf]
        %v4606 = vsel %vm852, %v4411, %v4605
        %4607 = vst [vmem:[%s972 + $0x90] sm:$0xf] %v4606
        %4608 = vst [vmem:[%s972 + $0x94] sm:$0xf] %v4420
        %v4609 = vld [vmem:[%s972 + $0x98] sm:$0x1]
        %v4610 = vsel %vm398, %v4421, %v4609
        %4611 = vst [vmem:[%s972 + $0x98] sm:$0x1] %v4610
        %v4612 = vld [vmem:[%s972 + $0x9c] sm:$0xf]
        %v4613 = vsel %vm852, %v4428, %v4612
        %4614 = vst [vmem:[%s972 + $0x9c] sm:$0xf] %v4613
        %4615 = vst [vmem:[%s972 + $0xa0] sm:$0xf] %v4437
        %v4616 = vld [vmem:[%s972 + $0xa4] sm:$0x1]
        %v4617 = vsel %vm398, %v4438, %v4616
        %4618 = vst [vmem:[%s972 + $0xa4] sm:$0x1] %v4617
        %v4619 = vld [vmem:[%s972 + $0xa8] sm:$0xf]
        %v4620 = vsel %vm852, %v4445, %v4619
        %4621 = vst [vmem:[%s972 + $0xa8] sm:$0xf] %v4620
        %4622 = vst [vmem:[%s972 + $0xac] sm:$0xf] %v4454
        %v4623 = vld [vmem:[%s972 + $0xb0] sm:$0x1]
        %v4624 = vsel %vm398, %v4455, %v4623
        %4625 = vst [vmem:[%s972 + $0xb0] sm:$0x1] %v4624
        %v4626 = vld [vmem:[%s972 + $0xb4] sm:$0xf]
        %v4627 = vsel %vm852, %v4462, %v4626
        %4628 = vst [vmem:[%s972 + $0xb4] sm:$0xf] %v4627
        %4629 = vst [vmem:[%s972 + $0xb8] sm:$0xf] %v4471
        %v4630 = vld [vmem:[%s972 + $0xbc] sm:$0x1]
        %v4631 = vsel %vm398, %v4472, %v4630
        %4632 = vst [vmem:[%s972 + $0xbc] sm:$0x1] %v4631
      $region64: #{double_conv_forward.1} parent=59 // pred_fallthru
        _
      %s4633 = smul.u32 %s26, 16
      %s4634 = smul.u32 %s4633, 3
      %s4635 = smul.addr %s4634, 4
      %s4636 = scalar_lea.vmem [#allocation3], %s4635
      %v4637 = vld [vmem:[%s4636] sm:$0xf]
      %v4638 = vld [vmem:[%s4636 + $0x4] sm:$0xf]
      %v4639 = vld [vmem:[%s4636 + $0xc] sm:$0xf]
      %v4640 = vld [vmem:[%s4636 + $0x10] sm:$0xf]
      %v4641 = vld [vmem:[%s4636 + $0x18] sm:$0xf]
      %v4642 = vld [vmem:[%s4636 + $0x1c] sm:$0xf]
      %v4643 = vld [vmem:[%s4636 + $0x24] sm:$0xf]
      %v4644 = vld [vmem:[%s4636 + $0x28] sm:$0xf]
      %v4645 = vld [vmem:[%s4636 + $0x30] sm:$0xf]
      %v4646 = vld [vmem:[%s4636 + $0x34] sm:$0xf]
      %v4647 = vld [vmem:[%s4636 + $0x3c] sm:$0xf]
      %v4648 = vld [vmem:[%s4636 + $0x40] sm:$0xf]
      %v4649 = vld [vmem:[%s4636 + $0x48] sm:$0xf]
      %v4650 = vld [vmem:[%s4636 + $0x4c] sm:$0xf]
      %v4651 = vld [vmem:[%s4636 + $0x54] sm:$0xf]
      %v4652 = vld [vmem:[%s4636 + $0x58] sm:$0xf]
      %v4653 = vld [vmem:[%s4636 + $0x60] sm:$0xf]
      %v4654 = vld [vmem:[%s4636 + $0x64] sm:$0xf]
      %v4655 = vld [vmem:[%s4636 + $0x6c] sm:$0xf]
      %v4656 = vld [vmem:[%s4636 + $0x70] sm:$0xf]
      %v4657 = vld [vmem:[%s4636 + $0x78] sm:$0xf]
      %v4658 = vld [vmem:[%s4636 + $0x7c] sm:$0xf]
      %v4659 = vld [vmem:[%s4636 + $0x84] sm:$0xf]
      %v4660 = vld [vmem:[%s4636 + $0x88] sm:$0xf]
      %v4661 = vld [vmem:[%s4636 + $0x90] sm:$0xf]
      %v4662 = vld [vmem:[%s4636 + $0x94] sm:$0xf]
      %v4663 = vld [vmem:[%s4636 + $0x9c] sm:$0xf]
      %v4664 = vld [vmem:[%s4636 + $0xa0] sm:$0xf]
      %v4665 = vld [vmem:[%s4636 + $0xa8] sm:$0xf]
      %v4666 = vld [vmem:[%s4636 + $0xac] sm:$0xf]
      %v4667 = vld [vmem:[%s4636 + $0xb4] sm:$0xf]
      %v4668 = vld [vmem:[%s4636 + $0xb8] sm:$0xf]
      %v4669 = vld [vmem:[%s4636 + $0x8] sm:$0x1]
      %v4670 = vld [vmem:[%s4636 + $0x14] sm:$0x1]
      %v4671 = vld [vmem:[%s4636 + $0x20] sm:$0x1]
      %v4672 = vld [vmem:[%s4636 + $0x2c] sm:$0x1]
      %v4673 = vld [vmem:[%s4636 + $0x38] sm:$0x1]
      %v4674 = vld [vmem:[%s4636 + $0x44] sm:$0x1]
      %v4675 = vld [vmem:[%s4636 + $0x50] sm:$0x1]
      %v4676 = vld [vmem:[%s4636 + $0x5c] sm:$0x1]
      %v4677 = vld [vmem:[%s4636 + $0x68] sm:$0x1]
      %v4678 = vld [vmem:[%s4636 + $0x74] sm:$0x1]
      %v4679 = vld [vmem:[%s4636 + $0x80] sm:$0x1]
      %v4680 = vld [vmem:[%s4636 + $0x8c] sm:$0x1]
      %v4681 = vld [vmem:[%s4636 + $0x98] sm:$0x1]
      %v4682 = vld [vmem:[%s4636 + $0xa4] sm:$0x1]
      %v4683 = vld [vmem:[%s4636 + $0xb0] sm:$0x1]
      %v4684 = vld [vmem:[%s4636 + $0xbc] sm:$0x1]
      %v4685 = vld [vmem:[%s4636] sm:$0xe]
      %v4686 = vld [vmem:[%s4636 + $0xc] sm:$0xe]
      %v4687 = vld [vmem:[%s4636 + $0x18] sm:$0xe]
      %v4688 = vld [vmem:[%s4636 + $0x24] sm:$0xe]
      %v4689 = vld [vmem:[%s4636 + $0x30] sm:$0xe]
      %v4690 = vld [vmem:[%s4636 + $0x3c] sm:$0xe]
      %v4691 = vld [vmem:[%s4636 + $0x48] sm:$0xe]
      %v4692 = vld [vmem:[%s4636 + $0x54] sm:$0xe]
      %v4693 = vld [vmem:[%s4636 + $0x60] sm:$0xe]
      %v4694 = vld [vmem:[%s4636 + $0x6c] sm:$0xe]
      %v4695 = vld [vmem:[%s4636 + $0x78] sm:$0xe]
      %v4696 = vld [vmem:[%s4636 + $0x84] sm:$0xe]
      %v4697 = vld [vmem:[%s4636 + $0x90] sm:$0xe]
      %v4698 = vld [vmem:[%s4636 + $0x9c] sm:$0xe]
      %v4699 = vld [vmem:[%s4636 + $0xa8] sm:$0xe]
      %v4700 = vld [vmem:[%s4636 + $0xb4] sm:$0xe]
      %v4733 = vunpack.c.l.b16 %v4637
      %v4734 = vunpack.c.l.b16 %v4638
      %v4735 = vunpack.c.l.b16 %v4639
      %v4736 = vunpack.c.l.b16 %v4640
      %v4737 = vunpack.c.l.b16 %v4641
      %v4738 = vunpack.c.l.b16 %v4642
      %v4739 = vunpack.c.l.b16 %v4643
      %v4740 = vunpack.c.l.b16 %v4644
      %v4741 = vunpack.c.l.b16 %v4645
      %v4742 = vunpack.c.l.b16 %v4646
      %v4743 = vunpack.c.l.b16 %v4647
      %v4744 = vunpack.c.l.b16 %v4648
      %v4745 = vunpack.c.l.b16 %v4649
      %v4746 = vunpack.c.l.b16 %v4650
      %v4747 = vunpack.c.l.b16 %v4651
      %v4748 = vunpack.c.l.b16 %v4652
      %v4749 = vunpack.c.l.b16 %v4653
      %v4750 = vunpack.c.l.b16 %v4654
      %v4751 = vunpack.c.l.b16 %v4655
      %v4752 = vunpack.c.l.b16 %v4656
      %v4753 = vunpack.c.l.b16 %v4657
      %v4754 = vunpack.c.l.b16 %v4658
      %v4755 = vunpack.c.l.b16 %v4659
      %v4756 = vunpack.c.l.b16 %v4660
      %v4757 = vunpack.c.l.b16 %v4661
      %v4758 = vunpack.c.l.b16 %v4662
      %v4759 = vunpack.c.l.b16 %v4663
      %v4760 = vunpack.c.l.b16 %v4664
      %v4761 = vunpack.c.l.b16 %v4665
      %v4762 = vunpack.c.l.b16 %v4666
      %v4763 = vunpack.c.l.b16 %v4667
      %v4764 = vunpack.c.l.b16 %v4668
      %v4765 = vpack.c.b16 %v4734, %v4733
      %v4766 = vpack.c.b16 %v4736, %v4735
      %v4767 = vpack.c.b16 %v4738, %v4737
      %v4768 = vpack.c.b16 %v4740, %v4739
      %v4769 = vpack.c.b16 %v4742, %v4741
      %v4770 = vpack.c.b16 %v4744, %v4743
      %v4771 = vpack.c.b16 %v4746, %v4745
      %v4772 = vpack.c.b16 %v4748, %v4747
      %v4773 = vpack.c.b16 %v4750, %v4749
      %v4774 = vpack.c.b16 %v4752, %v4751
      %v4775 = vpack.c.b16 %v4754, %v4753
      %v4776 = vpack.c.b16 %v4756, %v4755
      %v4777 = vpack.c.b16 %v4758, %v4757
      %v4778 = vpack.c.b16 %v4760, %v4759
      %v4779 = vpack.c.b16 %v4762, %v4761
      %v4780 = vpack.c.b16 %v4764, %v4763
      %v4813 = vunpack.c.l.b16 %v4669
      %v4814 = vunpack.c.l.b16 %v4670
      %v4815 = vunpack.c.l.b16 %v4671
      %v4816 = vunpack.c.l.b16 %v4672
      %v4817 = vunpack.c.l.b16 %v4673
      %v4818 = vunpack.c.l.b16 %v4674
      %v4819 = vunpack.c.l.b16 %v4675
      %v4820 = vunpack.c.l.b16 %v4676
      %v4821 = vunpack.c.l.b16 %v4677
      %v4822 = vunpack.c.l.b16 %v4678
      %v4823 = vunpack.c.l.b16 %v4679
      %v4824 = vunpack.c.l.b16 %v4680
      %v4825 = vunpack.c.l.b16 %v4681
      %v4826 = vunpack.c.l.b16 %v4682
      %v4827 = vunpack.c.l.b16 %v4683
      %v4828 = vunpack.c.l.b16 %v4684
      %v4829 = vpack.c.b16 %v4813, %v4813
      %v4830 = vpack.c.b16 %v4814, %v4814
      %v4831 = vpack.c.b16 %v4815, %v4815
      %v4832 = vpack.c.b16 %v4816, %v4816
      %v4833 = vpack.c.b16 %v4817, %v4817
      %v4834 = vpack.c.b16 %v4818, %v4818
      %v4835 = vpack.c.b16 %v4819, %v4819
      %v4836 = vpack.c.b16 %v4820, %v4820
      %v4837 = vpack.c.b16 %v4821, %v4821
      %v4838 = vpack.c.b16 %v4822, %v4822
      %v4839 = vpack.c.b16 %v4823, %v4823
      %v4840 = vpack.c.b16 %v4824, %v4824
      %v4841 = vpack.c.b16 %v4825, %v4825
      %v4842 = vpack.c.b16 %v4826, %v4826
      %v4843 = vpack.c.b16 %v4827, %v4827
      %v4844 = vpack.c.b16 %v4828, %v4828
      %vm4845 = vsmask.f32 7424
      %v4847 = vshrl.u32 %v4765, 16
      %v4849 = vshll.u32 %v4765, 16
      %v4851 = vrot.slane %v4849, 1
      %v4852 = vor.u32 %v4847, %v4851
      %v4854 = vshll.u32 %v4829, 16
      %v4856 = vrot.slane %v4854, 1
      %v4857 = vsel %vm4845, %v4852, %v4856
      %v4859 = vshrl.u32 %v4766, 16
      %v4861 = vshll.u32 %v4766, 16
      %v4863 = vrot.slane %v4861, 1
      %v4864 = vor.u32 %v4859, %v4863
      %v4866 = vshll.u32 %v4830, 16
      %v4868 = vrot.slane %v4866, 1
      %v4869 = vsel %vm4845, %v4864, %v4868
      %v4871 = vshrl.u32 %v4767, 16
      %v4873 = vshll.u32 %v4767, 16
      %v4875 = vrot.slane %v4873, 1
      %v4876 = vor.u32 %v4871, %v4875
      %v4878 = vshll.u32 %v4831, 16
      %v4880 = vrot.slane %v4878, 1
      %v4881 = vsel %vm4845, %v4876, %v4880
      %v4883 = vshrl.u32 %v4768, 16
      %v4885 = vshll.u32 %v4768, 16
      %v4887 = vrot.slane %v4885, 1
      %v4888 = vor.u32 %v4883, %v4887
      %v4890 = vshll.u32 %v4832, 16
      %v4892 = vrot.slane %v4890, 1
      %v4893 = vsel %vm4845, %v4888, %v4892
      %v4895 = vshrl.u32 %v4769, 16
      %v4897 = vshll.u32 %v4769, 16
      %v4899 = vrot.slane %v4897, 1
      %v4900 = vor.u32 %v4895, %v4899
      %v4902 = vshll.u32 %v4833, 16
      %v4904 = vrot.slane %v4902, 1
      %v4905 = vsel %vm4845, %v4900, %v4904
      %v4907 = vshrl.u32 %v4770, 16
      %v4909 = vshll.u32 %v4770, 16
      %v4911 = vrot.slane %v4909, 1
      %v4912 = vor.u32 %v4907, %v4911
      %v4914 = vshll.u32 %v4834, 16
      %v4916 = vrot.slane %v4914, 1
      %v4917 = vsel %vm4845, %v4912, %v4916
      %v4919 = vshrl.u32 %v4771, 16
      %v4921 = vshll.u32 %v4771, 16
      %v4923 = vrot.slane %v4921, 1
      %v4924 = vor.u32 %v4919, %v4923
      %v4926 = vshll.u32 %v4835, 16
      %v4928 = vrot.slane %v4926, 1
      %v4929 = vsel %vm4845, %v4924, %v4928
      %v4931 = vshrl.u32 %v4772, 16
      %v4933 = vshll.u32 %v4772, 16
      %v4935 = vrot.slane %v4933, 1
      %v4936 = vor.u32 %v4931, %v4935
      %v4938 = vshll.u32 %v4836, 16
      %v4940 = vrot.slane %v4938, 1
      %v4941 = vsel %vm4845, %v4936, %v4940
      %v4943 = vshrl.u32 %v4773, 16
      %v4945 = vshll.u32 %v4773, 16
      %v4947 = vrot.slane %v4945, 1
      %v4948 = vor.u32 %v4943, %v4947
      %v4950 = vshll.u32 %v4837, 16
      %v4952 = vrot.slane %v4950, 1
      %v4953 = vsel %vm4845, %v4948, %v4952
      %v4955 = vshrl.u32 %v4774, 16
      %v4957 = vshll.u32 %v4774, 16
      %v4959 = vrot.slane %v4957, 1
      %v4960 = vor.u32 %v4955, %v4959
      %v4962 = vshll.u32 %v4838, 16
      %v4964 = vrot.slane %v4962, 1
      %v4965 = vsel %vm4845, %v4960, %v4964
      %v4967 = vshrl.u32 %v4775, 16
      %v4969 = vshll.u32 %v4775, 16
      %v4971 = vrot.slane %v4969, 1
      %v4972 = vor.u32 %v4967, %v4971
      %v4974 = vshll.u32 %v4839, 16
      %v4976 = vrot.slane %v4974, 1
      %v4977 = vsel %vm4845, %v4972, %v4976
      %v4979 = vshrl.u32 %v4776, 16
      %v4981 = vshll.u32 %v4776, 16
      %v4983 = vrot.slane %v4981, 1
      %v4984 = vor.u32 %v4979, %v4983
      %v4986 = vshll.u32 %v4840, 16
      %v4988 = vrot.slane %v4986, 1
      %v4989 = vsel %vm4845, %v4984, %v4988
      %v4991 = vshrl.u32 %v4777, 16
      %v4993 = vshll.u32 %v4777, 16
      %v4995 = vrot.slane %v4993, 1
      %v4996 = vor.u32 %v4991, %v4995
      %v4998 = vshll.u32 %v4841, 16
      %v5000 = vrot.slane %v4998, 1
      %v5001 = vsel %vm4845, %v4996, %v5000
      %v5003 = vshrl.u32 %v4778, 16
      %v5005 = vshll.u32 %v4778, 16
      %v5007 = vrot.slane %v5005, 1
      %v5008 = vor.u32 %v5003, %v5007
      %v5010 = vshll.u32 %v4842, 16
      %v5012 = vrot.slane %v5010, 1
      %v5013 = vsel %vm4845, %v5008, %v5012
      %v5015 = vshrl.u32 %v4779, 16
      %v5017 = vshll.u32 %v4779, 16
      %v5019 = vrot.slane %v5017, 1
      %v5020 = vor.u32 %v5015, %v5019
      %v5022 = vshll.u32 %v4843, 16
      %v5024 = vrot.slane %v5022, 1
      %v5025 = vsel %vm4845, %v5020, %v5024
      %v5027 = vshrl.u32 %v4780, 16
      %v5029 = vshll.u32 %v4780, 16
      %v5031 = vrot.slane %v5029, 1
      %v5032 = vor.u32 %v5027, %v5031
      %v5034 = vshll.u32 %v4844, 16
      %v5036 = vrot.slane %v5034, 1
      %v5037 = vsel %vm4845, %v5032, %v5036
      %v5070 = vunpack.c.l.b16 %v4685
      %v5071 = vunpack.c.l.b16 %v4686
      %v5072 = vunpack.c.l.b16 %v4687
      %v5073 = vunpack.c.l.b16 %v4688
      %v5074 = vunpack.c.l.b16 %v4689
      %v5075 = vunpack.c.l.b16 %v4690
      %v5076 = vunpack.c.l.b16 %v4691
      %v5077 = vunpack.c.l.b16 %v4692
      %v5078 = vunpack.c.l.b16 %v4693
      %v5079 = vunpack.c.l.b16 %v4694
      %v5080 = vunpack.c.l.b16 %v4695
      %v5081 = vunpack.c.l.b16 %v4696
      %v5082 = vunpack.c.l.b16 %v4697
      %v5083 = vunpack.c.l.b16 %v4698
      %v5084 = vunpack.c.l.b16 %v4699
      %v5085 = vunpack.c.l.b16 %v4700
      %v5086 = vpack.c.b16 %v4734, %v5070
      %v5087 = vpack.c.b16 %v4736, %v5071
      %v5088 = vpack.c.b16 %v4738, %v5072
      %v5089 = vpack.c.b16 %v4740, %v5073
      %v5090 = vpack.c.b16 %v4742, %v5074
      %v5091 = vpack.c.b16 %v4744, %v5075
      %v5092 = vpack.c.b16 %v4746, %v5076
      %v5093 = vpack.c.b16 %v4748, %v5077
      %v5094 = vpack.c.b16 %v4750, %v5078
      %v5095 = vpack.c.b16 %v4752, %v5079
      %v5096 = vpack.c.b16 %v4754, %v5080
      %v5097 = vpack.c.b16 %v4756, %v5081
      %v5098 = vpack.c.b16 %v4758, %v5082
      %v5099 = vpack.c.b16 %v4760, %v5083
      %v5100 = vpack.c.b16 %v4762, %v5084
      %v5101 = vpack.c.b16 %v4764, %v5085
      %vm5102 = vcmask 1046528
      %v5103 = vrot.slane %v5086, 1
      %v5104 = vrot.slane %v4829, 1
      %v5105 = vsel %vm5102, %v5103, %v5104
      %v5106 = vrot.slane %v5087, 1
      %v5107 = vrot.slane %v4830, 1
      %v5108 = vsel %vm5102, %v5106, %v5107
      %v5109 = vrot.slane %v5088, 1
      %v5110 = vrot.slane %v4831, 1
      %v5111 = vsel %vm5102, %v5109, %v5110
      %v5112 = vrot.slane %v5089, 1
      %v5113 = vrot.slane %v4832, 1
      %v5114 = vsel %vm5102, %v5112, %v5113
      %v5115 = vrot.slane %v5090, 1
      %v5116 = vrot.slane %v4833, 1
      %v5117 = vsel %vm5102, %v5115, %v5116
      %v5118 = vrot.slane %v5091, 1
      %v5119 = vrot.slane %v4834, 1
      %v5120 = vsel %vm5102, %v5118, %v5119
      %v5121 = vrot.slane %v5092, 1
      %v5122 = vrot.slane %v4835, 1
      %v5123 = vsel %vm5102, %v5121, %v5122
      %v5124 = vrot.slane %v5093, 1
      %v5125 = vrot.slane %v4836, 1
      %v5126 = vsel %vm5102, %v5124, %v5125
      %v5127 = vrot.slane %v5094, 1
      %v5128 = vrot.slane %v4837, 1
      %v5129 = vsel %vm5102, %v5127, %v5128
      %v5130 = vrot.slane %v5095, 1
      %v5131 = vrot.slane %v4838, 1
      %v5132 = vsel %vm5102, %v5130, %v5131
      %v5133 = vrot.slane %v5096, 1
      %v5134 = vrot.slane %v4839, 1
      %v5135 = vsel %vm5102, %v5133, %v5134
      %v5136 = vrot.slane %v5097, 1
      %v5137 = vrot.slane %v4840, 1
      %v5138 = vsel %vm5102, %v5136, %v5137
      %v5139 = vrot.slane %v5098, 1
      %v5140 = vrot.slane %v4841, 1
      %v5141 = vsel %vm5102, %v5139, %v5140
      %v5142 = vrot.slane %v5099, 1
      %v5143 = vrot.slane %v4842, 1
      %v5144 = vsel %vm5102, %v5142, %v5143
      %v5145 = vrot.slane %v5100, 1
      %v5146 = vrot.slane %v4843, 1
      %v5147 = vsel %vm5102, %v5145, %v5146
      %v5148 = vrot.slane %v5101, 1
      %v5149 = vrot.slane %v4844, 1
      %v5150 = vsel %vm5102, %v5148, %v5149
      %v5167 = vld [vmem:[%s4] sm:$0xf]
      %v5168 = vld [vmem:[%s4 + $0x4] sm:$0xf]
      %v5169 = vld [vmem:[%s4 + $0x8] sm:$0xf]
      %v5170 = vld [vmem:[%s4 + $0xc] sm:$0xf]
      %v5171 = vld [vmem:[%s4 + $0x10] sm:$0xf]
      %v5172 = vld [vmem:[%s4 + $0x14] sm:$0xf]
      %v5173 = vld [vmem:[%s4 + $0x18] sm:$0xf]
      %v5174 = vld [vmem:[%s4 + $0x1c] sm:$0xf]
      %v5175 = vld [vmem:[%s4 + $0x20] sm:$0xf]
      %v5176 = vld [vmem:[%s4 + $0x24] sm:$0xf]
      %v5177 = vld [vmem:[%s4 + $0x28] sm:$0xf]
      %v5178 = vld [vmem:[%s4 + $0x2c] sm:$0xf]
      %v5179 = vld [vmem:[%s4 + $0x30] sm:$0xf]
      %v5180 = vld [vmem:[%s4 + $0x34] sm:$0xf]
      %v5181 = vld [vmem:[%s4 + $0x38] sm:$0xf]
      %v5182 = vld [vmem:[%s4 + $0x3c] sm:$0xf]
      %v5183 = vld [vmem:[%s4 + $0x40] sm:$0xf]
      %v5184 = vld [vmem:[%s4 + $0x44] sm:$0xf]
      %v5185 = vld [vmem:[%s4 + $0x48] sm:$0xf]
      %v5186 = vld [vmem:[%s4 + $0x4c] sm:$0xf]
      %v5187 = vld [vmem:[%s4 + $0x50] sm:$0xf]
      %v5188 = vld [vmem:[%s4 + $0x54] sm:$0xf]
      %v5189 = vld [vmem:[%s4 + $0x58] sm:$0xf]
      %v5190 = vld [vmem:[%s4 + $0x5c] sm:$0xf]
      %v5191 = vld [vmem:[%s4 + $0x60] sm:$0xf]
      %v5192 = vld [vmem:[%s4 + $0x64] sm:$0xf]
      %v5193 = vld [vmem:[%s4 + $0x68] sm:$0xf]
      %v5194 = vld [vmem:[%s4 + $0x6c] sm:$0xf]
      %v5195 = vld [vmem:[%s4 + $0x70] sm:$0xf]
      %v5196 = vld [vmem:[%s4 + $0x74] sm:$0xf]
      %v5197 = vld [vmem:[%s4 + $0x78] sm:$0xf]
      %v5198 = vld [vmem:[%s4 + $0x7c] sm:$0xf]
      %v5199 = vld [vmem:[%s4 + $0x80] sm:$0xf]
      %v5200 = vld [vmem:[%s4 + $0x84] sm:$0xf]
      %v5201 = vld [vmem:[%s4 + $0x88] sm:$0xf]
      %v5202 = vld [vmem:[%s4 + $0x8c] sm:$0xf]
      %v5203 = vld [vmem:[%s4 + $0x90] sm:$0xf]
      %v5204 = vld [vmem:[%s4 + $0x94] sm:$0xf]
      %v5205 = vld [vmem:[%s4 + $0x98] sm:$0xf]
      %v5206 = vld [vmem:[%s4 + $0x9c] sm:$0xf]
      %v5207 = vld [vmem:[%s4 + $0xa0] sm:$0xf]
      %v5208 = vld [vmem:[%s4 + $0xa4] sm:$0xf]
      %v5209 = vld [vmem:[%s4 + $0xa8] sm:$0xf]
      %v5210 = vld [vmem:[%s4 + $0xac] sm:$0xf]
      %v5211 = vld [vmem:[%s4 + $0xb0] sm:$0xf]
      %v5212 = vld [vmem:[%s4 + $0xb4] sm:$0xf]
      %v5213 = vld [vmem:[%s4 + $0xb8] sm:$0xf]
      %v5214 = vld [vmem:[%s4 + $0xbc] sm:$0xf]
      %s5215 = sadd.s32 %s4633, 1
      %s5216 = smul.u32 %s5215, 3
      %s5217 = smul.addr %s5216, 4
      %s5218 = scalar_lea.vmem [#allocation3], %s5217
      %v5219 = vld [vmem:[%s5218] sm:$0xf]
      %v5220 = vld [vmem:[%s5218 + $0x4] sm:$0xf]
      %v5221 = vld [vmem:[%s5218 + $0xc] sm:$0xf]
      %v5222 = vld [vmem:[%s5218 + $0x10] sm:$0xf]
      %v5223 = vld [vmem:[%s5218 + $0x18] sm:$0xf]
      %v5224 = vld [vmem:[%s5218 + $0x1c] sm:$0xf]
      %v5225 = vld [vmem:[%s5218 + $0x24] sm:$0xf]
      %v5226 = vld [vmem:[%s5218 + $0x28] sm:$0xf]
      %v5227 = vld [vmem:[%s5218 + $0x30] sm:$0xf]
      %v5228 = vld [vmem:[%s5218 + $0x34] sm:$0xf]
      %v5229 = vld [vmem:[%s5218 + $0x3c] sm:$0xf]
      %v5230 = vld [vmem:[%s5218 + $0x40] sm:$0xf]
      %v5231 = vld [vmem:[%s5218 + $0x48] sm:$0xf]
      %v5232 = vld [vmem:[%s5218 + $0x4c] sm:$0xf]
      %v5233 = vld [vmem:[%s5218 + $0x54] sm:$0xf]
      %v5234 = vld [vmem:[%s5218 + $0x58] sm:$0xf]
      %v5235 = vld [vmem:[%s5218 + $0x60] sm:$0xf]
      %v5236 = vld [vmem:[%s5218 + $0x64] sm:$0xf]
      %v5237 = vld [vmem:[%s5218 + $0x6c] sm:$0xf]
      %v5238 = vld [vmem:[%s5218 + $0x70] sm:$0xf]
      %v5239 = vld [vmem:[%s5218 + $0x78] sm:$0xf]
      %v5240 = vld [vmem:[%s5218 + $0x7c] sm:$0xf]
      %v5241 = vld [vmem:[%s5218 + $0x84] sm:$0xf]
      %v5242 = vld [vmem:[%s5218 + $0x88] sm:$0xf]
      %v5243 = vld [vmem:[%s5218 + $0x90] sm:$0xf]
      %v5244 = vld [vmem:[%s5218 + $0x94] sm:$0xf]
      %v5245 = vld [vmem:[%s5218 + $0x9c] sm:$0xf]
      %v5246 = vld [vmem:[%s5218 + $0xa0] sm:$0xf]
      %v5247 = vld [vmem:[%s5218 + $0xa8] sm:$0xf]
      %v5248 = vld [vmem:[%s5218 + $0xac] sm:$0xf]
      %v5249 = vld [vmem:[%s5218 + $0xb4] sm:$0xf]
      %v5250 = vld [vmem:[%s5218 + $0xb8] sm:$0xf]
      %v5251 = vld [vmem:[%s5218 + $0x8] sm:$0x1]
      %v5252 = vld [vmem:[%s5218 + $0x14] sm:$0x1]
      %v5253 = vld [vmem:[%s5218 + $0x20] sm:$0x1]
      %v5254 = vld [vmem:[%s5218 + $0x2c] sm:$0x1]
      %v5255 = vld [vmem:[%s5218 + $0x38] sm:$0x1]
      %v5256 = vld [vmem:[%s5218 + $0x44] sm:$0x1]
      %v5257 = vld [vmem:[%s5218 + $0x50] sm:$0x1]
      %v5258 = vld [vmem:[%s5218 + $0x5c] sm:$0x1]
      %v5259 = vld [vmem:[%s5218 + $0x68] sm:$0x1]
      %v5260 = vld [vmem:[%s5218 + $0x74] sm:$0x1]
      %v5261 = vld [vmem:[%s5218 + $0x80] sm:$0x1]
      %v5262 = vld [vmem:[%s5218 + $0x8c] sm:$0x1]
      %v5263 = vld [vmem:[%s5218 + $0x98] sm:$0x1]
      %v5264 = vld [vmem:[%s5218 + $0xa4] sm:$0x1]
      %v5265 = vld [vmem:[%s5218 + $0xb0] sm:$0x1]
      %v5266 = vld [vmem:[%s5218 + $0xbc] sm:$0x1]
      %v5267 = vld [vmem:[%s5218] sm:$0xe]
      %v5268 = vld [vmem:[%s5218 + $0xc] sm:$0xe]
      %v5269 = vld [vmem:[%s5218 + $0x18] sm:$0xe]
      %v5270 = vld [vmem:[%s5218 + $0x24] sm:$0xe]
      %v5271 = vld [vmem:[%s5218 + $0x30] sm:$0xe]
      %v5272 = vld [vmem:[%s5218 + $0x3c] sm:$0xe]
      %v5273 = vld [vmem:[%s5218 + $0x48] sm:$0xe]
      %v5274 = vld [vmem:[%s5218 + $0x54] sm:$0xe]
      %v5275 = vld [vmem:[%s5218 + $0x60] sm:$0xe]
      %v5276 = vld [vmem:[%s5218 + $0x6c] sm:$0xe]
      %v5277 = vld [vmem:[%s5218 + $0x78] sm:$0xe]
      %v5278 = vld [vmem:[%s5218 + $0x84] sm:$0xe]
      %v5279 = vld [vmem:[%s5218 + $0x90] sm:$0xe]
      %v5280 = vld [vmem:[%s5218 + $0x9c] sm:$0xe]
      %v5281 = vld [vmem:[%s5218 + $0xa8] sm:$0xe]
      %v5282 = vld [vmem:[%s5218 + $0xb4] sm:$0xe]
      %v5315 = vunpack.c.l.b16 %v5219
      %v5316 = vunpack.c.l.b16 %v5220
      %v5317 = vunpack.c.l.b16 %v5221
      %v5318 = vunpack.c.l.b16 %v5222
      %v5319 = vunpack.c.l.b16 %v5223
      %v5320 = vunpack.c.l.b16 %v5224
      %v5321 = vunpack.c.l.b16 %v5225
      %v5322 = vunpack.c.l.b16 %v5226
      %v5323 = vunpack.c.l.b16 %v5227
      %v5324 = vunpack.c.l.b16 %v5228
      %v5325 = vunpack.c.l.b16 %v5229
      %v5326 = vunpack.c.l.b16 %v5230
      %v5327 = vunpack.c.l.b16 %v5231
      %v5328 = vunpack.c.l.b16 %v5232
      %v5329 = vunpack.c.l.b16 %v5233
      %v5330 = vunpack.c.l.b16 %v5234
      %v5331 = vunpack.c.l.b16 %v5235
      %v5332 = vunpack.c.l.b16 %v5236
      %v5333 = vunpack.c.l.b16 %v5237
      %v5334 = vunpack.c.l.b16 %v5238
      %v5335 = vunpack.c.l.b16 %v5239
      %v5336 = vunpack.c.l.b16 %v5240
      %v5337 = vunpack.c.l.b16 %v5241
      %v5338 = vunpack.c.l.b16 %v5242
      %v5339 = vunpack.c.l.b16 %v5243
      %v5340 = vunpack.c.l.b16 %v5244
      %v5341 = vunpack.c.l.b16 %v5245
      %v5342 = vunpack.c.l.b16 %v5246
      %v5343 = vunpack.c.l.b16 %v5247
      %v5344 = vunpack.c.l.b16 %v5248
      %v5345 = vunpack.c.l.b16 %v5249
      %v5346 = vunpack.c.l.b16 %v5250
      %v5347 = vpack.c.b16 %v5316, %v5315
      %v5348 = vpack.c.b16 %v5318, %v5317
      %v5349 = vpack.c.b16 %v5320, %v5319
      %v5350 = vpack.c.b16 %v5322, %v5321
      %v5351 = vpack.c.b16 %v5324, %v5323
      %v5352 = vpack.c.b16 %v5326, %v5325
      %v5353 = vpack.c.b16 %v5328, %v5327
      %v5354 = vpack.c.b16 %v5330, %v5329
      %v5355 = vpack.c.b16 %v5332, %v5331
      %v5356 = vpack.c.b16 %v5334, %v5333
      %v5357 = vpack.c.b16 %v5336, %v5335
      %v5358 = vpack.c.b16 %v5338, %v5337
      %v5359 = vpack.c.b16 %v5340, %v5339
      %v5360 = vpack.c.b16 %v5342, %v5341
      %v5361 = vpack.c.b16 %v5344, %v5343
      %v5362 = vpack.c.b16 %v5346, %v5345
      %v5395 = vunpack.c.l.b16 %v5251
      %v5396 = vunpack.c.l.b16 %v5252
      %v5397 = vunpack.c.l.b16 %v5253
      %v5398 = vunpack.c.l.b16 %v5254
      %v5399 = vunpack.c.l.b16 %v5255
      %v5400 = vunpack.c.l.b16 %v5256
      %v5401 = vunpack.c.l.b16 %v5257
      %v5402 = vunpack.c.l.b16 %v5258
      %v5403 = vunpack.c.l.b16 %v5259
      %v5404 = vunpack.c.l.b16 %v5260
      %v5405 = vunpack.c.l.b16 %v5261
      %v5406 = vunpack.c.l.b16 %v5262
      %v5407 = vunpack.c.l.b16 %v5263
      %v5408 = vunpack.c.l.b16 %v5264
      %v5409 = vunpack.c.l.b16 %v5265
      %v5410 = vunpack.c.l.b16 %v5266
      %v5411 = vpack.c.b16 %v5395, %v5395
      %v5412 = vpack.c.b16 %v5396, %v5396
      %v5413 = vpack.c.b16 %v5397, %v5397
      %v5414 = vpack.c.b16 %v5398, %v5398
      %v5415 = vpack.c.b16 %v5399, %v5399
      %v5416 = vpack.c.b16 %v5400, %v5400
      %v5417 = vpack.c.b16 %v5401, %v5401
      %v5418 = vpack.c.b16 %v5402, %v5402
      %v5419 = vpack.c.b16 %v5403, %v5403
      %v5420 = vpack.c.b16 %v5404, %v5404
      %v5421 = vpack.c.b16 %v5405, %v5405
      %v5422 = vpack.c.b16 %v5406, %v5406
      %v5423 = vpack.c.b16 %v5407, %v5407
      %v5424 = vpack.c.b16 %v5408, %v5408
      %v5425 = vpack.c.b16 %v5409, %v5409
      %v5426 = vpack.c.b16 %v5410, %v5410
      %v5428 = vshrl.u32 %v5347, 16
      %v5430 = vshll.u32 %v5347, 16
      %v5432 = vrot.slane %v5430, 1
      %v5433 = vor.u32 %v5428, %v5432
      %v5435 = vshll.u32 %v5411, 16
      %v5437 = vrot.slane %v5435, 1
      %v5438 = vsel %vm4845, %v5433, %v5437
      %v5440 = vshrl.u32 %v5348, 16
      %v5442 = vshll.u32 %v5348, 16
      %v5444 = vrot.slane %v5442, 1
      %v5445 = vor.u32 %v5440, %v5444
      %v5447 = vshll.u32 %v5412, 16
      %v5449 = vrot.slane %v5447, 1
      %v5450 = vsel %vm4845, %v5445, %v5449
      %v5452 = vshrl.u32 %v5349, 16
      %v5454 = vshll.u32 %v5349, 16
      %v5456 = vrot.slane %v5454, 1
      %v5457 = vor.u32 %v5452, %v5456
      %v5459 = vshll.u32 %v5413, 16
      %v5461 = vrot.slane %v5459, 1
      %v5462 = vsel %vm4845, %v5457, %v5461
      %v5464 = vshrl.u32 %v5350, 16
      %v5466 = vshll.u32 %v5350, 16
      %v5468 = vrot.slane %v5466, 1
      %v5469 = vor.u32 %v5464, %v5468
      %v5471 = vshll.u32 %v5414, 16
      %v5473 = vrot.slane %v5471, 1
      %v5474 = vsel %vm4845, %v5469, %v5473
      %v5476 = vshrl.u32 %v5351, 16
      %v5478 = vshll.u32 %v5351, 16
      %v5480 = vrot.slane %v5478, 1
      %v5481 = vor.u32 %v5476, %v5480
      %v5483 = vshll.u32 %v5415, 16
      %v5485 = vrot.slane %v5483, 1
      %v5486 = vsel %vm4845, %v5481, %v5485
      %v5488 = vshrl.u32 %v5352, 16
      %v5490 = vshll.u32 %v5352, 16
      %v5492 = vrot.slane %v5490, 1
      %v5493 = vor.u32 %v5488, %v5492
      %v5495 = vshll.u32 %v5416, 16
      %v5497 = vrot.slane %v5495, 1
      %v5498 = vsel %vm4845, %v5493, %v5497
      %v5500 = vshrl.u32 %v5353, 16
      %v5502 = vshll.u32 %v5353, 16
      %v5504 = vrot.slane %v5502, 1
      %v5505 = vor.u32 %v5500, %v5504
      %v5507 = vshll.u32 %v5417, 16
      %v5509 = vrot.slane %v5507, 1
      %v5510 = vsel %vm4845, %v5505, %v5509
      %v5512 = vshrl.u32 %v5354, 16
      %v5514 = vshll.u32 %v5354, 16
      %v5516 = vrot.slane %v5514, 1
      %v5517 = vor.u32 %v5512, %v5516
      %v5519 = vshll.u32 %v5418, 16
      %v5521 = vrot.slane %v5519, 1
      %v5522 = vsel %vm4845, %v5517, %v5521
      %v5524 = vshrl.u32 %v5355, 16
      %v5526 = vshll.u32 %v5355, 16
      %v5528 = vrot.slane %v5526, 1
      %v5529 = vor.u32 %v5524, %v5528
      %v5531 = vshll.u32 %v5419, 16
      %v5533 = vrot.slane %v5531, 1
      %v5534 = vsel %vm4845, %v5529, %v5533
      %v5536 = vshrl.u32 %v5356, 16
      %v5538 = vshll.u32 %v5356, 16
      %v5540 = vrot.slane %v5538, 1
      %v5541 = vor.u32 %v5536, %v5540
      %v5543 = vshll.u32 %v5420, 16
      %v5545 = vrot.slane %v5543, 1
      %v5546 = vsel %vm4845, %v5541, %v5545
      %v5548 = vshrl.u32 %v5357, 16
      %v5550 = vshll.u32 %v5357, 16
      %v5552 = vrot.slane %v5550, 1
      %v5553 = vor.u32 %v5548, %v5552
      %v5555 = vshll.u32 %v5421, 16
      %v5557 = vrot.slane %v5555, 1
      %v5558 = vsel %vm4845, %v5553, %v5557
      %v5560 = vshrl.u32 %v5358, 16
      %v5562 = vshll.u32 %v5358, 16
      %v5564 = vrot.slane %v5562, 1
      %v5565 = vor.u32 %v5560, %v5564
      %v5567 = vshll.u32 %v5422, 16
      %v5569 = vrot.slane %v5567, 1
      %v5570 = vsel %vm4845, %v5565, %v5569
      %v5572 = vshrl.u32 %v5359, 16
      %v5574 = vshll.u32 %v5359, 16
      %v5576 = vrot.slane %v5574, 1
      %v5577 = vor.u32 %v5572, %v5576
      %v5579 = vshll.u32 %v5423, 16
      %v5581 = vrot.slane %v5579, 1
      %v5582 = vsel %vm4845, %v5577, %v5581
      %v5584 = vshrl.u32 %v5360, 16
      %v5586 = vshll.u32 %v5360, 16
      %v5588 = vrot.slane %v5586, 1
      %v5589 = vor.u32 %v5584, %v5588
      %v5591 = vshll.u32 %v5424, 16
      %v5593 = vrot.slane %v5591, 1
      %v5594 = vsel %vm4845, %v5589, %v5593
      %v5596 = vshrl.u32 %v5361, 16
      %v5598 = vshll.u32 %v5361, 16
      %v5600 = vrot.slane %v5598, 1
      %v5601 = vor.u32 %v5596, %v5600
      %v5603 = vshll.u32 %v5425, 16
      %v5605 = vrot.slane %v5603, 1
      %v5606 = vsel %vm4845, %v5601, %v5605
      %v5608 = vshrl.u32 %v5362, 16
      %v5610 = vshll.u32 %v5362, 16
      %v5612 = vrot.slane %v5610, 1
      %v5613 = vor.u32 %v5608, %v5612
      %v5615 = vshll.u32 %v5426, 16
      %v5617 = vrot.slane %v5615, 1
      %v5618 = vsel %vm4845, %v5613, %v5617
      %v5651 = vunpack.c.l.b16 %v5267
      %v5652 = vunpack.c.l.b16 %v5268
      %v5653 = vunpack.c.l.b16 %v5269
      %v5654 = vunpack.c.l.b16 %v5270
      %v5655 = vunpack.c.l.b16 %v5271
      %v5656 = vunpack.c.l.b16 %v5272
      %v5657 = vunpack.c.l.b16 %v5273
      %v5658 = vunpack.c.l.b16 %v5274
      %v5659 = vunpack.c.l.b16 %v5275
      %v5660 = vunpack.c.l.b16 %v5276
      %v5661 = vunpack.c.l.b16 %v5277
      %v5662 = vunpack.c.l.b16 %v5278
      %v5663 = vunpack.c.l.b16 %v5279
      %v5664 = vunpack.c.l.b16 %v5280
      %v5665 = vunpack.c.l.b16 %v5281
      %v5666 = vunpack.c.l.b16 %v5282
      %v5667 = vpack.c.b16 %v5316, %v5651
      %v5668 = vpack.c.b16 %v5318, %v5652
      %v5669 = vpack.c.b16 %v5320, %v5653
      %v5670 = vpack.c.b16 %v5322, %v5654
      %v5671 = vpack.c.b16 %v5324, %v5655
      %v5672 = vpack.c.b16 %v5326, %v5656
      %v5673 = vpack.c.b16 %v5328, %v5657
      %v5674 = vpack.c.b16 %v5330, %v5658
      %v5675 = vpack.c.b16 %v5332, %v5659
      %v5676 = vpack.c.b16 %v5334, %v5660
      %v5677 = vpack.c.b16 %v5336, %v5661
      %v5678 = vpack.c.b16 %v5338, %v5662
      %v5679 = vpack.c.b16 %v5340, %v5663
      %v5680 = vpack.c.b16 %v5342, %v5664
      %v5681 = vpack.c.b16 %v5344, %v5665
      %v5682 = vpack.c.b16 %v5346, %v5666
      %v5683 = vrot.slane %v5667, 1
      %v5684 = vrot.slane %v5411, 1
      %v5685 = vsel %vm5102, %v5683, %v5684
      %v5686 = vrot.slane %v5668, 1
      %v5687 = vrot.slane %v5412, 1
      %v5688 = vsel %vm5102, %v5686, %v5687
      %v5689 = vrot.slane %v5669, 1
      %v5690 = vrot.slane %v5413, 1
      %v5691 = vsel %vm5102, %v5689, %v5690
      %v5692 = vrot.slane %v5670, 1
      %v5693 = vrot.slane %v5414, 1
      %v5694 = vsel %vm5102, %v5692, %v5693
      %v5695 = vrot.slane %v5671, 1
      %v5696 = vrot.slane %v5415, 1
      %v5697 = vsel %vm5102, %v5695, %v5696
      %v5698 = vrot.slane %v5672, 1
      %v5699 = vrot.slane %v5416, 1
      %v5700 = vsel %vm5102, %v5698, %v5699
      %v5701 = vrot.slane %v5673, 1
      %v5702 = vrot.slane %v5417, 1
      %v5703 = vsel %vm5102, %v5701, %v5702
      %v5704 = vrot.slane %v5674, 1
      %v5705 = vrot.slane %v5418, 1
      %v5706 = vsel %vm5102, %v5704, %v5705
      %v5707 = vrot.slane %v5675, 1
      %v5708 = vrot.slane %v5419, 1
      %v5709 = vsel %vm5102, %v5707, %v5708
      %v5710 = vrot.slane %v5676, 1
      %v5711 = vrot.slane %v5420, 1
      %v5712 = vsel %vm5102, %v5710, %v5711
      %v5713 = vrot.slane %v5677, 1
      %v5714 = vrot.slane %v5421, 1
      %v5715 = vsel %vm5102, %v5713, %v5714
      %v5716 = vrot.slane %v5678, 1
      %v5717 = vrot.slane %v5422, 1
      %v5718 = vsel %vm5102, %v5716, %v5717
      %v5719 = vrot.slane %v5679, 1
      %v5720 = vrot.slane %v5423, 1
      %v5721 = vsel %vm5102, %v5719, %v5720
      %v5722 = vrot.slane %v5680, 1
      %v5723 = vrot.slane %v5424, 1
      %v5724 = vsel %vm5102, %v5722, %v5723
      %v5725 = vrot.slane %v5681, 1
      %v5726 = vrot.slane %v5425, 1
      %v5727 = vsel %vm5102, %v5725, %v5726
      %v5728 = vrot.slane %v5682, 1
      %v5729 = vrot.slane %v5426, 1
      %v5730 = vsel %vm5102, %v5728, %v5729
      %v5747 = vld [vmem:[%s4 + $0xc0] sm:$0xf]
      %v5748 = vld [vmem:[%s4 + $0xc4] sm:$0xf]
      %v5749 = vld [vmem:[%s4 + $0xc8] sm:$0xf]
      %v5750 = vld [vmem:[%s4 + $0xcc] sm:$0xf]
      %v5751 = vld [vmem:[%s4 + $0xd0] sm:$0xf]
      %v5752 = vld [vmem:[%s4 + $0xd4] sm:$0xf]
      %v5753 = vld [vmem:[%s4 + $0xd8] sm:$0xf]
      %v5754 = vld [vmem:[%s4 + $0xdc] sm:$0xf]
      %v5755 = vld [vmem:[%s4 + $0xe0] sm:$0xf]
      %v5756 = vld [vmem:[%s4 + $0xe4] sm:$0xf]
      %v5757 = vld [vmem:[%s4 + $0xe8] sm:$0xf]
      %v5758 = vld [vmem:[%s4 + $0xec] sm:$0xf]
      %v5759 = vld [vmem:[%s4 + $0xf0] sm:$0xf]
      %v5760 = vld [vmem:[%s4 + $0xf4] sm:$0xf]
      %v5761 = vld [vmem:[%s4 + $0xf8] sm:$0xf]
      %v5762 = vld [vmem:[%s4 + $0xfc] sm:$0xf]
      %v5763 = vld [vmem:[%s4 + $0x100] sm:$0xf]
      %v5764 = vld [vmem:[%s4 + $0x104] sm:$0xf]
      %v5765 = vld [vmem:[%s4 + $0x108] sm:$0xf]
      %v5766 = vld [vmem:[%s4 + $0x10c] sm:$0xf]
      %v5767 = vld [vmem:[%s4 + $0x110] sm:$0xf]
      %v5768 = vld [vmem:[%s4 + $0x114] sm:$0xf]
      %v5769 = vld [vmem:[%s4 + $0x118] sm:$0xf]
      %v5770 = vld [vmem:[%s4 + $0x11c] sm:$0xf]
      %v5771 = vld [vmem:[%s4 + $0x120] sm:$0xf]
      %v5772 = vld [vmem:[%s4 + $0x124] sm:$0xf]
      %v5773 = vld [vmem:[%s4 + $0x128] sm:$0xf]
      %v5774 = vld [vmem:[%s4 + $0x12c] sm:$0xf]
      %v5775 = vld [vmem:[%s4 + $0x130] sm:$0xf]
      %v5776 = vld [vmem:[%s4 + $0x134] sm:$0xf]
      %v5777 = vld [vmem:[%s4 + $0x138] sm:$0xf]
      %v5778 = vld [vmem:[%s4 + $0x13c] sm:$0xf]
      %v5779 = vld [vmem:[%s4 + $0x140] sm:$0xf]
      %v5780 = vld [vmem:[%s4 + $0x144] sm:$0xf]
      %v5781 = vld [vmem:[%s4 + $0x148] sm:$0xf]
      %v5782 = vld [vmem:[%s4 + $0x14c] sm:$0xf]
      %v5783 = vld [vmem:[%s4 + $0x150] sm:$0xf]
      %v5784 = vld [vmem:[%s4 + $0x154] sm:$0xf]
      %v5785 = vld [vmem:[%s4 + $0x158] sm:$0xf]
      %v5786 = vld [vmem:[%s4 + $0x15c] sm:$0xf]
      %v5787 = vld [vmem:[%s4 + $0x160] sm:$0xf]
      %v5788 = vld [vmem:[%s4 + $0x164] sm:$0xf]
      %v5789 = vld [vmem:[%s4 + $0x168] sm:$0xf]
      %v5790 = vld [vmem:[%s4 + $0x16c] sm:$0xf]
      %v5791 = vld [vmem:[%s4 + $0x170] sm:$0xf]
      %v5792 = vld [vmem:[%s4 + $0x174] sm:$0xf]
      %v5793 = vld [vmem:[%s4 + $0x178] sm:$0xf]
      %v5794 = vld [vmem:[%s4 + $0x17c] sm:$0xf]
      %v5843 = vunpack.c.l.b16 %v5747
      %v5844 = vunpack.c.l.b16 %v5748
      %v5845 = vunpack.c.l.b16 %v5749
      %v5846 = vunpack.c.l.b16 %v5750
      %v5847 = vunpack.c.l.b16 %v5751
      %v5848 = vunpack.c.l.b16 %v5752
      %v5849 = vunpack.c.l.b16 %v5753
      %v5850 = vunpack.c.l.b16 %v5754
      %v5851 = vunpack.c.l.b16 %v5755
      %v5852 = vunpack.c.l.b16 %v5756
      %v5853 = vunpack.c.l.b16 %v5757
      %v5854 = vunpack.c.l.b16 %v5758
      %v5855 = vunpack.c.l.b16 %v5759
      %v5856 = vunpack.c.l.b16 %v5760
      %v5857 = vunpack.c.l.b16 %v5761
      %v5858 = vunpack.c.l.b16 %v5762
      %v5859 = vunpack.c.l.b16 %v5763
      %v5860 = vunpack.c.l.b16 %v5764
      %v5861 = vunpack.c.l.b16 %v5765
      %v5862 = vunpack.c.l.b16 %v5766
      %v5863 = vunpack.c.l.b16 %v5767
      %v5864 = vunpack.c.l.b16 %v5768
      %v5865 = vunpack.c.l.b16 %v5769
      %v5866 = vunpack.c.l.b16 %v5770
      %v5867 = vunpack.c.l.b16 %v5771
      %v5868 = vunpack.c.l.b16 %v5772
      %v5869 = vunpack.c.l.b16 %v5773
      %v5870 = vunpack.c.l.b16 %v5774
      %v5871 = vunpack.c.l.b16 %v5775
      %v5872 = vunpack.c.l.b16 %v5776
      %v5873 = vunpack.c.l.b16 %v5777
      %v5874 = vunpack.c.l.b16 %v5778
      %v5875 = vunpack.c.l.b16 %v5779
      %v5876 = vunpack.c.l.b16 %v5780
      %v5877 = vunpack.c.l.b16 %v5781
      %v5878 = vunpack.c.l.b16 %v5782
      %v5879 = vunpack.c.l.b16 %v5783
      %v5880 = vunpack.c.l.b16 %v5784
      %v5881 = vunpack.c.l.b16 %v5785
      %v5882 = vunpack.c.l.b16 %v5786
      %v5883 = vunpack.c.l.b16 %v5787
      %v5884 = vunpack.c.l.b16 %v5788
      %v5885 = vunpack.c.l.b16 %v5789
      %v5886 = vunpack.c.l.b16 %v5790
      %v5887 = vunpack.c.l.b16 %v5791
      %v5888 = vunpack.c.l.b16 %v5792
      %v5889 = vunpack.c.l.b16 %v5793
      %v5890 = vunpack.c.l.b16 %v5794
      %v5891 = vpack.c.b16 %v5844, %v5843
      %v5892 = vpack.c.b16 %v5846, %v5845
      %v5893 = vpack.c.b16 %v5848, %v5847
      %v5894 = vpack.c.b16 %v5850, %v5849
      %v5895 = vpack.c.b16 %v5852, %v5851
      %v5896 = vpack.c.b16 %v5854, %v5853
      %v5897 = vpack.c.b16 %v5856, %v5855
      %v5898 = vpack.c.b16 %v5858, %v5857
      %v5899 = vpack.c.b16 %v5860, %v5859
      %v5900 = vpack.c.b16 %v5862, %v5861
      %v5901 = vpack.c.b16 %v5864, %v5863
      %v5902 = vpack.c.b16 %v5866, %v5865
      %v5903 = vpack.c.b16 %v5868, %v5867
      %v5904 = vpack.c.b16 %v5870, %v5869
      %v5905 = vpack.c.b16 %v5872, %v5871
      %v5906 = vpack.c.b16 %v5874, %v5873
      %v5907 = vpack.c.b16 %v5876, %v5875
      %v5908 = vpack.c.b16 %v5878, %v5877
      %v5909 = vpack.c.b16 %v5880, %v5879
      %v5910 = vpack.c.b16 %v5882, %v5881
      %v5911 = vpack.c.b16 %v5884, %v5883
      %v5912 = vpack.c.b16 %v5886, %v5885
      %v5913 = vpack.c.b16 %v5888, %v5887
      %v5914 = vpack.c.b16 %v5890, %v5889
      %5939 = vmatpush.bf16.msra.mxu0 %v5898
      %5940 = vmatpush.bf16.msra.mxu0 %v5897
      %5941 = vmatpush.bf16.msra.mxu0 %v5896
      %5942 = vmatpush.bf16.msra.mxu0 %v5895
      %5943 = vmatpush.bf16.msra.mxu0 %v5894
      %5944 = vmatpush.bf16.msra.mxu0 %v5893
      %5945 = vmatpush.bf16.msra.mxu0 %v5892
      %5946 = vmatpush.bf16.msra.mxu0 %v5891
      %5947 = vmatmul.bf16.gmra.mxu0 %v5347
      %v5948 = vpop.f32.mrf.mxu0
      %v5949 = vadd.f32 0.0, %v5948
      %v5950 = vpop.f32.mrf.mxu0
      %v5951 = vadd.f32 0.0, %v5950
      %5952 = vmatmul.bf16.gmra.mxu0 %v5348
      %v5953 = vpop.f32.mrf.mxu0
      %v5954 = vadd.f32 0.0, %v5953
      %v5955 = vpop.f32.mrf.mxu0
      %v5956 = vadd.f32 0.0, %v5955
      %5957 = vmatmul.bf16.gmra.mxu0 %v5349
      %v5958 = vpop.f32.mrf.mxu0
      %v5959 = vadd.f32 0.0, %v5958
      %v5960 = vpop.f32.mrf.mxu0
      %v5961 = vadd.f32 0.0, %v5960
      %5962 = vmatmul.bf16.gmra.mxu0 %v5350
      %v5963 = vpop.f32.mrf.mxu0
      %v5964 = vadd.f32 0.0, %v5963
      %v5965 = vpop.f32.mrf.mxu0
      %v5966 = vadd.f32 0.0, %v5965
      %5967 = vmatmul.bf16.gmra.mxu0 %v5351
      %v5968 = vpop.f32.mrf.mxu0
      %v5969 = vadd.f32 0.0, %v5968
      %v5970 = vpop.f32.mrf.mxu0
      %v5971 = vadd.f32 0.0, %v5970
      %5972 = vmatmul.bf16.gmra.mxu0 %v5352
      %v5973 = vpop.f32.mrf.mxu0
      %v5974 = vadd.f32 0.0, %v5973
      %v5975 = vpop.f32.mrf.mxu0
      %v5976 = vadd.f32 0.0, %v5975
      %5977 = vmatmul.bf16.gmra.mxu0 %v5353
      %v5978 = vpop.f32.mrf.mxu0
      %v5979 = vadd.f32 0.0, %v5978
      %v5980 = vpop.f32.mrf.mxu0
      %v5981 = vadd.f32 0.0, %v5980
      %5982 = vmatmul.bf16.gmra.mxu0 %v5354
      %v5983 = vpop.f32.mrf.mxu0
      %v5984 = vadd.f32 0.0, %v5983
      %v5985 = vpop.f32.mrf.mxu0
      %v5986 = vadd.f32 0.0, %v5985
      %5987 = vmatmul.bf16.gmra.mxu0 %v5355
      %v5988 = vpop.f32.mrf.mxu0
      %v5989 = vadd.f32 0.0, %v5988
      %v5990 = vpop.f32.mrf.mxu0
      %v5991 = vadd.f32 0.0, %v5990
      %5992 = vmatmul.bf16.gmra.mxu0 %v5356
      %v5993 = vpop.f32.mrf.mxu0
      %v5994 = vadd.f32 0.0, %v5993
      %v5995 = vpop.f32.mrf.mxu0
      %v5996 = vadd.f32 0.0, %v5995
      %5997 = vmatmul.bf16.gmra.mxu0 %v5357
      %v5998 = vpop.f32.mrf.mxu0
      %v5999 = vadd.f32 0.0, %v5998
      %v6000 = vpop.f32.mrf.mxu0
      %v6001 = vadd.f32 0.0, %v6000
      %6002 = vmatmul.bf16.gmra.mxu0 %v5358
      %v6003 = vpop.f32.mrf.mxu0
      %v6004 = vadd.f32 0.0, %v6003
      %v6005 = vpop.f32.mrf.mxu0
      %v6006 = vadd.f32 0.0, %v6005
      %6007 = vmatmul.bf16.gmra.mxu0 %v5359
      %v6008 = vpop.f32.mrf.mxu0
      %v6009 = vadd.f32 0.0, %v6008
      %v6010 = vpop.f32.mrf.mxu0
      %v6011 = vadd.f32 0.0, %v6010
      %6012 = vmatmul.bf16.gmra.mxu0 %v5360
      %v6013 = vpop.f32.mrf.mxu0
      %v6014 = vadd.f32 0.0, %v6013
      %v6015 = vpop.f32.mrf.mxu0
      %v6016 = vadd.f32 0.0, %v6015
      %6017 = vmatmul.bf16.gmra.mxu0 %v5361
      %v6018 = vpop.f32.mrf.mxu0
      %v6019 = vadd.f32 0.0, %v6018
      %v6020 = vpop.f32.mrf.mxu0
      %v6021 = vadd.f32 0.0, %v6020
      %6022 = vmatmul.bf16.gmra.mxu0 %v5362
      %v6023 = vpop.f32.mrf.mxu0
      %v6024 = vadd.f32 0.0, %v6023
      %v6025 = vpop.f32.mrf.mxu0
      %v6026 = vadd.f32 0.0, %v6025
      %6027 = vdwg.mxu0
      %6028 = vmatpush.bf16.msra.mxu0 %v5906
      %6029 = vmatpush.bf16.msra.mxu0 %v5905
      %6030 = vmatpush.bf16.msra.mxu0 %v5904
      %6031 = vmatpush.bf16.msra.mxu0 %v5903
      %6032 = vmatpush.bf16.msra.mxu0 %v5902
      %6033 = vmatpush.bf16.msra.mxu0 %v5901
      %6034 = vmatpush.bf16.msra.mxu0 %v5900
      %6035 = vmatpush.bf16.msra.mxu0 %v5899
      %6036 = vmatmul.bf16.gmra.mxu0 %v5438
      %v6037 = vpop.f32.mrf.mxu0
      %v6038 = vadd.f32 %v5949, %v6037
      %v6039 = vpop.f32.mrf.mxu0
      %v6040 = vadd.f32 %v5951, %v6039
      %6041 = vmatmul.bf16.gmra.mxu0 %v5450
      %v6042 = vpop.f32.mrf.mxu0
      %v6043 = vadd.f32 %v5954, %v6042
      %v6044 = vpop.f32.mrf.mxu0
      %v6045 = vadd.f32 %v5956, %v6044
      %6046 = vmatmul.bf16.gmra.mxu0 %v5462
      %v6047 = vpop.f32.mrf.mxu0
      %v6048 = vadd.f32 %v5959, %v6047
      %v6049 = vpop.f32.mrf.mxu0
      %v6050 = vadd.f32 %v5961, %v6049
      %6051 = vmatmul.bf16.gmra.mxu0 %v5474
      %v6052 = vpop.f32.mrf.mxu0
      %v6053 = vadd.f32 %v5964, %v6052
      %v6054 = vpop.f32.mrf.mxu0
      %v6055 = vadd.f32 %v5966, %v6054
      %6056 = vmatmul.bf16.gmra.mxu0 %v5486
      %v6057 = vpop.f32.mrf.mxu0
      %v6058 = vadd.f32 %v5969, %v6057
      %v6059 = vpop.f32.mrf.mxu0
      %v6060 = vadd.f32 %v5971, %v6059
      %6061 = vmatmul.bf16.gmra.mxu0 %v5498
      %v6062 = vpop.f32.mrf.mxu0
      %v6063 = vadd.f32 %v5974, %v6062
      %v6064 = vpop.f32.mrf.mxu0
      %v6065 = vadd.f32 %v5976, %v6064
      %6066 = vmatmul.bf16.gmra.mxu0 %v5510
      %v6067 = vpop.f32.mrf.mxu0
      %v6068 = vadd.f32 %v5979, %v6067
      %v6069 = vpop.f32.mrf.mxu0
      %v6070 = vadd.f32 %v5981, %v6069
      %6071 = vmatmul.bf16.gmra.mxu0 %v5522
      %v6072 = vpop.f32.mrf.mxu0
      %v6073 = vadd.f32 %v5984, %v6072
      %v6074 = vpop.f32.mrf.mxu0
      %v6075 = vadd.f32 %v5986, %v6074
      %6076 = vmatmul.bf16.gmra.mxu0 %v5534
      %v6077 = vpop.f32.mrf.mxu0
      %v6078 = vadd.f32 %v5989, %v6077
      %v6079 = vpop.f32.mrf.mxu0
      %v6080 = vadd.f32 %v5991, %v6079
      %6081 = vmatmul.bf16.gmra.mxu0 %v5546
      %v6082 = vpop.f32.mrf.mxu0
      %v6083 = vadd.f32 %v5994, %v6082
      %v6084 = vpop.f32.mrf.mxu0
      %v6085 = vadd.f32 %v5996, %v6084
      %6086 = vmatmul.bf16.gmra.mxu0 %v5558
      %v6087 = vpop.f32.mrf.mxu0
      %v6088 = vadd.f32 %v5999, %v6087
      %v6089 = vpop.f32.mrf.mxu0
      %v6090 = vadd.f32 %v6001, %v6089
      %6091 = vmatmul.bf16.gmra.mxu0 %v5570
      %v6092 = vpop.f32.mrf.mxu0
      %v6093 = vadd.f32 %v6004, %v6092
      %v6094 = vpop.f32.mrf.mxu0
      %v6095 = vadd.f32 %v6006, %v6094
      %6096 = vmatmul.bf16.gmra.mxu0 %v5582
      %v6097 = vpop.f32.mrf.mxu0
      %v6098 = vadd.f32 %v6009, %v6097
      %v6099 = vpop.f32.mrf.mxu0
      %v6100 = vadd.f32 %v6011, %v6099
      %6101 = vmatmul.bf16.gmra.mxu0 %v5594
      %v6102 = vpop.f32.mrf.mxu0
      %v6103 = vadd.f32 %v6014, %v6102
      %v6104 = vpop.f32.mrf.mxu0
      %v6105 = vadd.f32 %v6016, %v6104
      %6106 = vmatmul.bf16.gmra.mxu0 %v5606
      %v6107 = vpop.f32.mrf.mxu0
      %v6108 = vadd.f32 %v6019, %v6107
      %v6109 = vpop.f32.mrf.mxu0
      %v6110 = vadd.f32 %v6021, %v6109
      %6111 = vmatmul.bf16.gmra.mxu0 %v5618
      %v6112 = vpop.f32.mrf.mxu0
      %v6113 = vadd.f32 %v6024, %v6112
      %v6114 = vpop.f32.mrf.mxu0
      %v6115 = vadd.f32 %v6026, %v6114
      %6116 = vdwg.mxu0
      %6117 = vmatpush.bf16.msra.mxu0 %v5914
      %6118 = vmatpush.bf16.msra.mxu0 %v5913
      %6119 = vmatpush.bf16.msra.mxu0 %v5912
      %6120 = vmatpush.bf16.msra.mxu0 %v5911
      %6121 = vmatpush.bf16.msra.mxu0 %v5910
      %6122 = vmatpush.bf16.msra.mxu0 %v5909
      %6123 = vmatpush.bf16.msra.mxu0 %v5908
      %6124 = vmatpush.bf16.msra.mxu0 %v5907
      %6125 = vmatmul.bf16.gmra.mxu0 %v5685
      %v6126 = vpop.f32.mrf.mxu0
      %v6127 = vadd.f32 %v6038, %v6126
      %v6128 = vpop.f32.mrf.mxu0
      %v6129 = vadd.f32 %v6040, %v6128
      %6130 = vmatmul.bf16.gmra.mxu0 %v5688
      %v6131 = vpop.f32.mrf.mxu0
      %v6132 = vadd.f32 %v6043, %v6131
      %v6133 = vpop.f32.mrf.mxu0
      %v6134 = vadd.f32 %v6045, %v6133
      %6135 = vmatmul.bf16.gmra.mxu0 %v5691
      %v6136 = vpop.f32.mrf.mxu0
      %v6137 = vadd.f32 %v6048, %v6136
      %v6138 = vpop.f32.mrf.mxu0
      %v6139 = vadd.f32 %v6050, %v6138
      %6140 = vmatmul.bf16.gmra.mxu0 %v5694
      %v6141 = vpop.f32.mrf.mxu0
      %v6142 = vadd.f32 %v6053, %v6141
      %v6143 = vpop.f32.mrf.mxu0
      %v6144 = vadd.f32 %v6055, %v6143
      %6145 = vmatmul.bf16.gmra.mxu0 %v5697
      %v6146 = vpop.f32.mrf.mxu0
      %v6147 = vadd.f32 %v6058, %v6146
      %v6148 = vpop.f32.mrf.mxu0
      %v6149 = vadd.f32 %v6060, %v6148
      %6150 = vmatmul.bf16.gmra.mxu0 %v5700
      %v6151 = vpop.f32.mrf.mxu0
      %v6152 = vadd.f32 %v6063, %v6151
      %v6153 = vpop.f32.mrf.mxu0
      %v6154 = vadd.f32 %v6065, %v6153
      %6155 = vmatmul.bf16.gmra.mxu0 %v5703
      %v6156 = vpop.f32.mrf.mxu0
      %v6157 = vadd.f32 %v6068, %v6156
      %v6158 = vpop.f32.mrf.mxu0
      %v6159 = vadd.f32 %v6070, %v6158
      %6160 = vmatmul.bf16.gmra.mxu0 %v5706
      %v6161 = vpop.f32.mrf.mxu0
      %v6162 = vadd.f32 %v6073, %v6161
      %v6163 = vpop.f32.mrf.mxu0
      %v6164 = vadd.f32 %v6075, %v6163
      %6165 = vmatmul.bf16.gmra.mxu0 %v5709
      %v6166 = vpop.f32.mrf.mxu0
      %v6167 = vadd.f32 %v6078, %v6166
      %v6168 = vpop.f32.mrf.mxu0
      %v6169 = vadd.f32 %v6080, %v6168
      %6170 = vmatmul.bf16.gmra.mxu0 %v5712
      %v6171 = vpop.f32.mrf.mxu0
      %v6172 = vadd.f32 %v6083, %v6171
      %v6173 = vpop.f32.mrf.mxu0
      %v6174 = vadd.f32 %v6085, %v6173
      %6175 = vmatmul.bf16.gmra.mxu0 %v5715
      %v6176 = vpop.f32.mrf.mxu0
      %v6177 = vadd.f32 %v6088, %v6176
      %v6178 = vpop.f32.mrf.mxu0
      %v6179 = vadd.f32 %v6090, %v6178
      %6180 = vmatmul.bf16.gmra.mxu0 %v5718
      %v6181 = vpop.f32.mrf.mxu0
      %v6182 = vadd.f32 %v6093, %v6181
      %v6183 = vpop.f32.mrf.mxu0
      %v6184 = vadd.f32 %v6095, %v6183
      %6185 = vmatmul.bf16.gmra.mxu0 %v5721
      %v6186 = vpop.f32.mrf.mxu0
      %v6187 = vadd.f32 %v6098, %v6186
      %v6188 = vpop.f32.mrf.mxu0
      %v6189 = vadd.f32 %v6100, %v6188
      %6190 = vmatmul.bf16.gmra.mxu0 %v5724
      %v6191 = vpop.f32.mrf.mxu0
      %v6192 = vadd.f32 %v6103, %v6191
      %v6193 = vpop.f32.mrf.mxu0
      %v6194 = vadd.f32 %v6105, %v6193
      %6195 = vmatmul.bf16.gmra.mxu0 %v5727
      %v6196 = vpop.f32.mrf.mxu0
      %v6197 = vadd.f32 %v6108, %v6196
      %v6198 = vpop.f32.mrf.mxu0
      %v6199 = vadd.f32 %v6110, %v6198
      %6200 = vmatmul.bf16.gmra.mxu0 %v5730
      %v6201 = vpop.f32.mrf.mxu0
      %v6202 = vadd.f32 %v6113, %v6201
      %v6203 = vpop.f32.mrf.mxu0
      %v6204 = vadd.f32 %v6115, %v6203
      %6205 = vdwg.mxu0
      %v6254 = vunpack.c.l.b16 %v5167
      %v6255 = vunpack.c.l.b16 %v5168
      %v6256 = vunpack.c.l.b16 %v5169
      %v6257 = vunpack.c.l.b16 %v5170
      %v6258 = vunpack.c.l.b16 %v5171
      %v6259 = vunpack.c.l.b16 %v5172
      %v6260 = vunpack.c.l.b16 %v5173
      %v6261 = vunpack.c.l.b16 %v5174
      %v6262 = vunpack.c.l.b16 %v5175
      %v6263 = vunpack.c.l.b16 %v5176
      %v6264 = vunpack.c.l.b16 %v5177
      %v6265 = vunpack.c.l.b16 %v5178
      %v6266 = vunpack.c.l.b16 %v5179
      %v6267 = vunpack.c.l.b16 %v5180
      %v6268 = vunpack.c.l.b16 %v5181
      %v6269 = vunpack.c.l.b16 %v5182
      %v6270 = vunpack.c.l.b16 %v5183
      %v6271 = vunpack.c.l.b16 %v5184
      %v6272 = vunpack.c.l.b16 %v5185
      %v6273 = vunpack.c.l.b16 %v5186
      %v6274 = vunpack.c.l.b16 %v5187
      %v6275 = vunpack.c.l.b16 %v5188
      %v6276 = vunpack.c.l.b16 %v5189
      %v6277 = vunpack.c.l.b16 %v5190
      %v6278 = vunpack.c.l.b16 %v5191
      %v6279 = vunpack.c.l.b16 %v5192
      %v6280 = vunpack.c.l.b16 %v5193
      %v6281 = vunpack.c.l.b16 %v5194
      %v6282 = vunpack.c.l.b16 %v5195
      %v6283 = vunpack.c.l.b16 %v5196
      %v6284 = vunpack.c.l.b16 %v5197
      %v6285 = vunpack.c.l.b16 %v5198
      %v6286 = vunpack.c.l.b16 %v5199
      %v6287 = vunpack.c.l.b16 %v5200
      %v6288 = vunpack.c.l.b16 %v5201
      %v6289 = vunpack.c.l.b16 %v5202
      %v6290 = vunpack.c.l.b16 %v5203
      %v6291 = vunpack.c.l.b16 %v5204
      %v6292 = vunpack.c.l.b16 %v5205
      %v6293 = vunpack.c.l.b16 %v5206
      %v6294 = vunpack.c.l.b16 %v5207
      %v6295 = vunpack.c.l.b16 %v5208
      %v6296 = vunpack.c.l.b16 %v5209
      %v6297 = vunpack.c.l.b16 %v5210
      %v6298 = vunpack.c.l.b16 %v5211
      %v6299 = vunpack.c.l.b16 %v5212
      %v6300 = vunpack.c.l.b16 %v5213
      %v6301 = vunpack.c.l.b16 %v5214
      %v6302 = vpack.c.b16 %v6255, %v6254
      %v6303 = vpack.c.b16 %v6257, %v6256
      %v6304 = vpack.c.b16 %v6259, %v6258
      %v6305 = vpack.c.b16 %v6261, %v6260
      %v6306 = vpack.c.b16 %v6263, %v6262
      %v6307 = vpack.c.b16 %v6265, %v6264
      %v6308 = vpack.c.b16 %v6267, %v6266
      %v6309 = vpack.c.b16 %v6269, %v6268
      %v6310 = vpack.c.b16 %v6271, %v6270
      %v6311 = vpack.c.b16 %v6273, %v6272
      %v6312 = vpack.c.b16 %v6275, %v6274
      %v6313 = vpack.c.b16 %v6277, %v6276
      %v6314 = vpack.c.b16 %v6279, %v6278
      %v6315 = vpack.c.b16 %v6281, %v6280
      %v6316 = vpack.c.b16 %v6283, %v6282
      %v6317 = vpack.c.b16 %v6285, %v6284
      %v6318 = vpack.c.b16 %v6287, %v6286
      %v6319 = vpack.c.b16 %v6289, %v6288
      %v6320 = vpack.c.b16 %v6291, %v6290
      %v6321 = vpack.c.b16 %v6293, %v6292
      %v6322 = vpack.c.b16 %v6295, %v6294
      %v6323 = vpack.c.b16 %v6297, %v6296
      %v6324 = vpack.c.b16 %v6299, %v6298
      %v6325 = vpack.c.b16 %v6301, %v6300
      %6350 = vmatpush.bf16.msra.mxu0 %v6309
      %6351 = vmatpush.bf16.msra.mxu0 %v6308
      %6352 = vmatpush.bf16.msra.mxu0 %v6307
      %6353 = vmatpush.bf16.msra.mxu0 %v6306
      %6354 = vmatpush.bf16.msra.mxu0 %v6305
      %6355 = vmatpush.bf16.msra.mxu0 %v6304
      %6356 = vmatpush.bf16.msra.mxu0 %v6303
      %6357 = vmatpush.bf16.msra.mxu0 %v6302
      %6358 = vmatmul.bf16.gmra.mxu0 %v4765
      %v6359 = vpop.f32.mrf.mxu0
      %v6360 = vadd.f32 %v6127, %v6359
      %v6361 = vpop.f32.mrf.mxu0
      %v6362 = vadd.f32 %v6129, %v6361
      %6363 = vmatmul.bf16.gmra.mxu0 %v4766
      %v6364 = vpop.f32.mrf.mxu0
      %v6365 = vadd.f32 %v6132, %v6364
      %v6366 = vpop.f32.mrf.mxu0
      %v6367 = vadd.f32 %v6134, %v6366
      %6368 = vmatmul.bf16.gmra.mxu0 %v4767
      %v6369 = vpop.f32.mrf.mxu0
      %v6370 = vadd.f32 %v6137, %v6369
      %v6371 = vpop.f32.mrf.mxu0
      %v6372 = vadd.f32 %v6139, %v6371
      %6373 = vmatmul.bf16.gmra.mxu0 %v4768
      %v6374 = vpop.f32.mrf.mxu0
      %v6375 = vadd.f32 %v6142, %v6374
      %v6376 = vpop.f32.mrf.mxu0
      %v6377 = vadd.f32 %v6144, %v6376
      %6378 = vmatmul.bf16.gmra.mxu0 %v4769
      %v6379 = vpop.f32.mrf.mxu0
      %v6380 = vadd.f32 %v6147, %v6379
      %v6381 = vpop.f32.mrf.mxu0
      %v6382 = vadd.f32 %v6149, %v6381
      %6383 = vmatmul.bf16.gmra.mxu0 %v4770
      %v6384 = vpop.f32.mrf.mxu0
      %v6385 = vadd.f32 %v6152, %v6384
      %v6386 = vpop.f32.mrf.mxu0
      %v6387 = vadd.f32 %v6154, %v6386
      %6388 = vmatmul.bf16.gmra.mxu0 %v4771
      %v6389 = vpop.f32.mrf.mxu0
      %v6390 = vadd.f32 %v6157, %v6389
      %v6391 = vpop.f32.mrf.mxu0
      %v6392 = vadd.f32 %v6159, %v6391
      %6393 = vmatmul.bf16.gmra.mxu0 %v4772
      %v6394 = vpop.f32.mrf.mxu0
      %v6395 = vadd.f32 %v6162, %v6394
      %v6396 = vpop.f32.mrf.mxu0
      %v6397 = vadd.f32 %v6164, %v6396
      %6398 = vmatmul.bf16.gmra.mxu0 %v4773
      %v6399 = vpop.f32.mrf.mxu0
      %v6400 = vadd.f32 %v6167, %v6399
      %v6401 = vpop.f32.mrf.mxu0
      %v6402 = vadd.f32 %v6169, %v6401
      %6403 = vmatmul.bf16.gmra.mxu0 %v4774
      %v6404 = vpop.f32.mrf.mxu0
      %v6405 = vadd.f32 %v6172, %v6404
      %v6406 = vpop.f32.mrf.mxu0
      %v6407 = vadd.f32 %v6174, %v6406
      %6408 = vmatmul.bf16.gmra.mxu0 %v4775
      %v6409 = vpop.f32.mrf.mxu0
      %v6410 = vadd.f32 %v6177, %v6409
      %v6411 = vpop.f32.mrf.mxu0
      %v6412 = vadd.f32 %v6179, %v6411
      %6413 = vmatmul.bf16.gmra.mxu0 %v4776
      %v6414 = vpop.f32.mrf.mxu0
      %v6415 = vadd.f32 %v6182, %v6414
      %v6416 = vpop.f32.mrf.mxu0
      %v6417 = vadd.f32 %v6184, %v6416
      %6418 = vmatmul.bf16.gmra.mxu0 %v4777
      %v6419 = vpop.f32.mrf.mxu0
      %v6420 = vadd.f32 %v6187, %v6419
      %v6421 = vpop.f32.mrf.mxu0
      %v6422 = vadd.f32 %v6189, %v6421
      %6423 = vmatmul.bf16.gmra.mxu0 %v4778
      %v6424 = vpop.f32.mrf.mxu0
      %v6425 = vadd.f32 %v6192, %v6424
      %v6426 = vpop.f32.mrf.mxu0
      %v6427 = vadd.f32 %v6194, %v6426
      %6428 = vmatmul.bf16.gmra.mxu0 %v4779
      %v6429 = vpop.f32.mrf.mxu0
      %v6430 = vadd.f32 %v6197, %v6429
      %v6431 = vpop.f32.mrf.mxu0
      %v6432 = vadd.f32 %v6199, %v6431
      %6433 = vmatmul.bf16.gmra.mxu0 %v4780
      %v6434 = vpop.f32.mrf.mxu0
      %v6435 = vadd.f32 %v6202, %v6434
      %v6436 = vpop.f32.mrf.mxu0
      %v6437 = vadd.f32 %v6204, %v6436
      %6438 = vdwg.mxu0
      %6439 = vmatpush.bf16.msra.mxu0 %v6317
      %6440 = vmatpush.bf16.msra.mxu0 %v6316
      %6441 = vmatpush.bf16.msra.mxu0 %v6315
      %6442 = vmatpush.bf16.msra.mxu0 %v6314
      %6443 = vmatpush.bf16.msra.mxu0 %v6313
      %6444 = vmatpush.bf16.msra.mxu0 %v6312
      %6445 = vmatpush.bf16.msra.mxu0 %v6311
      %6446 = vmatpush.bf16.msra.mxu0 %v6310
      %6447 = vmatmul.bf16.gmra.mxu0 %v4857
      %v6448 = vpop.f32.mrf.mxu0
      %v6449 = vadd.f32 %v6360, %v6448
      %v6450 = vpop.f32.mrf.mxu0
      %v6451 = vadd.f32 %v6362, %v6450
      %6452 = vmatmul.bf16.gmra.mxu0 %v4869
      %v6453 = vpop.f32.mrf.mxu0
      %v6454 = vadd.f32 %v6365, %v6453
      %v6455 = vpop.f32.mrf.mxu0
      %v6456 = vadd.f32 %v6367, %v6455
      %6457 = vmatmul.bf16.gmra.mxu0 %v4881
      %v6458 = vpop.f32.mrf.mxu0
      %v6459 = vadd.f32 %v6370, %v6458
      %v6460 = vpop.f32.mrf.mxu0
      %v6461 = vadd.f32 %v6372, %v6460
      %6462 = vmatmul.bf16.gmra.mxu0 %v4893
      %v6463 = vpop.f32.mrf.mxu0
      %v6464 = vadd.f32 %v6375, %v6463
      %v6465 = vpop.f32.mrf.mxu0
      %v6466 = vadd.f32 %v6377, %v6465
      %6467 = vmatmul.bf16.gmra.mxu0 %v4905
      %v6468 = vpop.f32.mrf.mxu0
      %v6469 = vadd.f32 %v6380, %v6468
      %v6470 = vpop.f32.mrf.mxu0
      %v6471 = vadd.f32 %v6382, %v6470
      %6472 = vmatmul.bf16.gmra.mxu0 %v4917
      %v6473 = vpop.f32.mrf.mxu0
      %v6474 = vadd.f32 %v6385, %v6473
      %v6475 = vpop.f32.mrf.mxu0
      %v6476 = vadd.f32 %v6387, %v6475
      %6477 = vmatmul.bf16.gmra.mxu0 %v4929
      %v6478 = vpop.f32.mrf.mxu0
      %v6479 = vadd.f32 %v6390, %v6478
      %v6480 = vpop.f32.mrf.mxu0
      %v6481 = vadd.f32 %v6392, %v6480
      %6482 = vmatmul.bf16.gmra.mxu0 %v4941
      %v6483 = vpop.f32.mrf.mxu0
      %v6484 = vadd.f32 %v6395, %v6483
      %v6485 = vpop.f32.mrf.mxu0
      %v6486 = vadd.f32 %v6397, %v6485
      %6487 = vmatmul.bf16.gmra.mxu0 %v4953
      %v6488 = vpop.f32.mrf.mxu0
      %v6489 = vadd.f32 %v6400, %v6488
      %v6490 = vpop.f32.mrf.mxu0
      %v6491 = vadd.f32 %v6402, %v6490
      %6492 = vmatmul.bf16.gmra.mxu0 %v4965
      %v6493 = vpop.f32.mrf.mxu0
      %v6494 = vadd.f32 %v6405, %v6493
      %v6495 = vpop.f32.mrf.mxu0
      %v6496 = vadd.f32 %v6407, %v6495
      %6497 = vmatmul.bf16.gmra.mxu0 %v4977
      %v6498 = vpop.f32.mrf.mxu0
      %v6499 = vadd.f32 %v6410, %v6498
      %v6500 = vpop.f32.mrf.mxu0
      %v6501 = vadd.f32 %v6412, %v6500
      %6502 = vmatmul.bf16.gmra.mxu0 %v4989
      %v6503 = vpop.f32.mrf.mxu0
      %v6504 = vadd.f32 %v6415, %v6503
      %v6505 = vpop.f32.mrf.mxu0
      %v6506 = vadd.f32 %v6417, %v6505
      %6507 = vmatmul.bf16.gmra.mxu0 %v5001
      %v6508 = vpop.f32.mrf.mxu0
      %v6509 = vadd.f32 %v6420, %v6508
      %v6510 = vpop.f32.mrf.mxu0
      %v6511 = vadd.f32 %v6422, %v6510
      %6512 = vmatmul.bf16.gmra.mxu0 %v5013
      %v6513 = vpop.f32.mrf.mxu0
      %v6514 = vadd.f32 %v6425, %v6513
      %v6515 = vpop.f32.mrf.mxu0
      %v6516 = vadd.f32 %v6427, %v6515
      %6517 = vmatmul.bf16.gmra.mxu0 %v5025
      %v6518 = vpop.f32.mrf.mxu0
      %v6519 = vadd.f32 %v6430, %v6518
      %v6520 = vpop.f32.mrf.mxu0
      %v6521 = vadd.f32 %v6432, %v6520
      %6522 = vmatmul.bf16.gmra.mxu0 %v5037
      %v6523 = vpop.f32.mrf.mxu0
      %v6524 = vadd.f32 %v6435, %v6523
      %v6525 = vpop.f32.mrf.mxu0
      %v6526 = vadd.f32 %v6437, %v6525
      %6527 = vdwg.mxu0
      %6528 = vmatpush.bf16.msra.mxu0 %v6325
      %6529 = vmatpush.bf16.msra.mxu0 %v6324
      %6530 = vmatpush.bf16.msra.mxu0 %v6323
      %6531 = vmatpush.bf16.msra.mxu0 %v6322
      %6532 = vmatpush.bf16.msra.mxu0 %v6321
      %6533 = vmatpush.bf16.msra.mxu0 %v6320
      %6534 = vmatpush.bf16.msra.mxu0 %v6319
      %6535 = vmatpush.bf16.msra.mxu0 %v6318
      %6536 = vmatmul.bf16.gmra.mxu0 %v5105
      %v6537 = vpop.f32.mrf.mxu0
      %v6538 = vadd.f32 %v6449, %v6537
      %v6539 = vpop.f32.mrf.mxu0
      %v6540 = vadd.f32 %v6451, %v6539
      %6541 = vmatmul.bf16.gmra.mxu0 %v5108
      %v6542 = vpop.f32.mrf.mxu0
      %v6543 = vadd.f32 %v6454, %v6542
      %v6544 = vpop.f32.mrf.mxu0
      %v6545 = vadd.f32 %v6456, %v6544
      %6546 = vmatmul.bf16.gmra.mxu0 %v5111
      %v6547 = vpop.f32.mrf.mxu0
      %v6548 = vadd.f32 %v6459, %v6547
      %v6549 = vpop.f32.mrf.mxu0
      %v6550 = vadd.f32 %v6461, %v6549
      %6551 = vmatmul.bf16.gmra.mxu0 %v5114
      %v6552 = vpop.f32.mrf.mxu0
      %v6553 = vadd.f32 %v6464, %v6552
      %v6554 = vpop.f32.mrf.mxu0
      %v6555 = vadd.f32 %v6466, %v6554
      %6556 = vmatmul.bf16.gmra.mxu0 %v5117
      %v6557 = vpop.f32.mrf.mxu0
      %v6558 = vadd.f32 %v6469, %v6557
      %v6559 = vpop.f32.mrf.mxu0
      %v6560 = vadd.f32 %v6471, %v6559
      %6561 = vmatmul.bf16.gmra.mxu0 %v5120
      %v6562 = vpop.f32.mrf.mxu0
      %v6563 = vadd.f32 %v6474, %v6562
      %v6564 = vpop.f32.mrf.mxu0
      %v6565 = vadd.f32 %v6476, %v6564
      %6566 = vmatmul.bf16.gmra.mxu0 %v5123
      %v6567 = vpop.f32.mrf.mxu0
      %v6568 = vadd.f32 %v6479, %v6567
      %v6569 = vpop.f32.mrf.mxu0
      %v6570 = vadd.f32 %v6481, %v6569
      %6571 = vmatmul.bf16.gmra.mxu0 %v5126
      %v6572 = vpop.f32.mrf.mxu0
      %v6573 = vadd.f32 %v6484, %v6572
      %v6574 = vpop.f32.mrf.mxu0
      %v6575 = vadd.f32 %v6486, %v6574
      %6576 = vmatmul.bf16.gmra.mxu0 %v5129
      %v6577 = vpop.f32.mrf.mxu0
      %v6578 = vadd.f32 %v6489, %v6577
      %v6579 = vpop.f32.mrf.mxu0
      %v6580 = vadd.f32 %v6491, %v6579
      %6581 = vmatmul.bf16.gmra.mxu0 %v5132
      %v6582 = vpop.f32.mrf.mxu0
      %v6583 = vadd.f32 %v6494, %v6582
      %v6584 = vpop.f32.mrf.mxu0
      %v6585 = vadd.f32 %v6496, %v6584
      %6586 = vmatmul.bf16.gmra.mxu0 %v5135
      %v6587 = vpop.f32.mrf.mxu0
      %v6588 = vadd.f32 %v6499, %v6587
      %v6589 = vpop.f32.mrf.mxu0
      %v6590 = vadd.f32 %v6501, %v6589
      %6591 = vmatmul.bf16.gmra.mxu0 %v5138
      %v6592 = vpop.f32.mrf.mxu0
      %v6593 = vadd.f32 %v6504, %v6592
      %v6594 = vpop.f32.mrf.mxu0
      %v6595 = vadd.f32 %v6506, %v6594
      %6596 = vmatmul.bf16.gmra.mxu0 %v5141
      %v6597 = vpop.f32.mrf.mxu0
      %v6598 = vadd.f32 %v6509, %v6597
      %v6599 = vpop.f32.mrf.mxu0
      %v6600 = vadd.f32 %v6511, %v6599
      %6601 = vmatmul.bf16.gmra.mxu0 %v5144
      %v6602 = vpop.f32.mrf.mxu0
      %v6603 = vadd.f32 %v6514, %v6602
      %v6604 = vpop.f32.mrf.mxu0
      %v6605 = vadd.f32 %v6516, %v6604
      %6606 = vmatmul.bf16.gmra.mxu0 %v5147
      %v6607 = vpop.f32.mrf.mxu0
      %v6608 = vadd.f32 %v6519, %v6607
      %v6609 = vpop.f32.mrf.mxu0
      %v6610 = vadd.f32 %v6521, %v6609
      %6611 = vmatmul.bf16.gmra.mxu0 %v5150
      %v6612 = vpop.f32.mrf.mxu0
      %v6613 = vadd.f32 %v6524, %v6612
      %v6614 = vpop.f32.mrf.mxu0
      %v6615 = vadd.f32 %v6526, %v6614
      %6616 = vdwg.mxu0
      %s6617 = sadd.s32 %s4633, 2
      %s6618 = smul.u32 %s6617, 3
      %s6619 = smul.addr %s6618, 4
      %s6620 = scalar_lea.vmem [#allocation3], %s6619
      %v6621 = vld [vmem:[%s6620] sm:$0xf]
      %v6622 = vld [vmem:[%s6620 + $0x4] sm:$0xf]
      %v6623 = vld [vmem:[%s6620 + $0xc] sm:$0xf]
      %v6624 = vld [vmem:[%s6620 + $0x10] sm:$0xf]
      %v6625 = vld [vmem:[%s6620 + $0x18] sm:$0xf]
      %v6626 = vld [vmem:[%s6620 + $0x1c] sm:$0xf]
      %v6627 = vld [vmem:[%s6620 + $0x24] sm:$0xf]
      %v6628 = vld [vmem:[%s6620 + $0x28] sm:$0xf]
      %v6629 = vld [vmem:[%s6620 + $0x30] sm:$0xf]
      %v6630 = vld [vmem:[%s6620 + $0x34] sm:$0xf]
      %v6631 = vld [vmem:[%s6620 + $0x3c] sm:$0xf]
      %v6632 = vld [vmem:[%s6620 + $0x40] sm:$0xf]
      %v6633 = vld [vmem:[%s6620 + $0x48] sm:$0xf]
      %v6634 = vld [vmem:[%s6620 + $0x4c] sm:$0xf]
      %v6635 = vld [vmem:[%s6620 + $0x54] sm:$0xf]
      %v6636 = vld [vmem:[%s6620 + $0x58] sm:$0xf]
      %v6637 = vld [vmem:[%s6620 + $0x60] sm:$0xf]
      %v6638 = vld [vmem:[%s6620 + $0x64] sm:$0xf]
      %v6639 = vld [vmem:[%s6620 + $0x6c] sm:$0xf]
      %v6640 = vld [vmem:[%s6620 + $0x70] sm:$0xf]
      %v6641 = vld [vmem:[%s6620 + $0x78] sm:$0xf]
      %v6642 = vld [vmem:[%s6620 + $0x7c] sm:$0xf]
      %v6643 = vld [vmem:[%s6620 + $0x84] sm:$0xf]
      %v6644 = vld [vmem:[%s6620 + $0x88] sm:$0xf]
      %v6645 = vld [vmem:[%s6620 + $0x90] sm:$0xf]
      %v6646 = vld [vmem:[%s6620 + $0x94] sm:$0xf]
      %v6647 = vld [vmem:[%s6620 + $0x9c] sm:$0xf]
      %v6648 = vld [vmem:[%s6620 + $0xa0] sm:$0xf]
      %v6649 = vld [vmem:[%s6620 + $0xa8] sm:$0xf]
      %v6650 = vld [vmem:[%s6620 + $0xac] sm:$0xf]
      %v6651 = vld [vmem:[%s6620 + $0xb4] sm:$0xf]
      %v6652 = vld [vmem:[%s6620 + $0xb8] sm:$0xf]
      %v6653 = vld [vmem:[%s6620 + $0x8] sm:$0x1]
      %v6654 = vld [vmem:[%s6620 + $0x14] sm:$0x1]
      %v6655 = vld [vmem:[%s6620 + $0x20] sm:$0x1]
      %v6656 = vld [vmem:[%s6620 + $0x2c] sm:$0x1]
      %v6657 = vld [vmem:[%s6620 + $0x38] sm:$0x1]
      %v6658 = vld [vmem:[%s6620 + $0x44] sm:$0x1]
      %v6659 = vld [vmem:[%s6620 + $0x50] sm:$0x1]
      %v6660 = vld [vmem:[%s6620 + $0x5c] sm:$0x1]
      %v6661 = vld [vmem:[%s6620 + $0x68] sm:$0x1]
      %v6662 = vld [vmem:[%s6620 + $0x74] sm:$0x1]
      %v6663 = vld [vmem:[%s6620 + $0x80] sm:$0x1]
      %v6664 = vld [vmem:[%s6620 + $0x8c] sm:$0x1]
      %v6665 = vld [vmem:[%s6620 + $0x98] sm:$0x1]
      %v6666 = vld [vmem:[%s6620 + $0xa4] sm:$0x1]
      %v6667 = vld [vmem:[%s6620 + $0xb0] sm:$0x1]
      %v6668 = vld [vmem:[%s6620 + $0xbc] sm:$0x1]
      %v6669 = vld [vmem:[%s6620] sm:$0xe]
      %v6670 = vld [vmem:[%s6620 + $0xc] sm:$0xe]
      %v6671 = vld [vmem:[%s6620 + $0x18] sm:$0xe]
      %v6672 = vld [vmem:[%s6620 + $0x24] sm:$0xe]
      %v6673 = vld [vmem:[%s6620 + $0x30] sm:$0xe]
      %v6674 = vld [vmem:[%s6620 + $0x3c] sm:$0xe]
      %v6675 = vld [vmem:[%s6620 + $0x48] sm:$0xe]
      %v6676 = vld [vmem:[%s6620 + $0x54] sm:$0xe]
      %v6677 = vld [vmem:[%s6620 + $0x60] sm:$0xe]
      %v6678 = vld [vmem:[%s6620 + $0x6c] sm:$0xe]
      %v6679 = vld [vmem:[%s6620 + $0x78] sm:$0xe]
      %v6680 = vld [vmem:[%s6620 + $0x84] sm:$0xe]
      %v6681 = vld [vmem:[%s6620 + $0x90] sm:$0xe]
      %v6682 = vld [vmem:[%s6620 + $0x9c] sm:$0xe]
      %v6683 = vld [vmem:[%s6620 + $0xa8] sm:$0xe]
      %v6684 = vld [vmem:[%s6620 + $0xb4] sm:$0xe]
      %v6717 = vunpack.c.l.b16 %v6621
      %v6718 = vunpack.c.l.b16 %v6622
      %v6719 = vunpack.c.l.b16 %v6623
      %v6720 = vunpack.c.l.b16 %v6624
      %v6721 = vunpack.c.l.b16 %v6625
      %v6722 = vunpack.c.l.b16 %v6626
      %v6723 = vunpack.c.l.b16 %v6627
      %v6724 = vunpack.c.l.b16 %v6628
      %v6725 = vunpack.c.l.b16 %v6629
      %v6726 = vunpack.c.l.b16 %v6630
      %v6727 = vunpack.c.l.b16 %v6631
      %v6728 = vunpack.c.l.b16 %v6632
      %v6729 = vunpack.c.l.b16 %v6633
      %v6730 = vunpack.c.l.b16 %v6634
      %v6731 = vunpack.c.l.b16 %v6635
      %v6732 = vunpack.c.l.b16 %v6636
      %v6733 = vunpack.c.l.b16 %v6637
      %v6734 = vunpack.c.l.b16 %v6638
      %v6735 = vunpack.c.l.b16 %v6639
      %v6736 = vunpack.c.l.b16 %v6640
      %v6737 = vunpack.c.l.b16 %v6641
      %v6738 = vunpack.c.l.b16 %v6642
      %v6739 = vunpack.c.l.b16 %v6643
      %v6740 = vunpack.c.l.b16 %v6644
      %v6741 = vunpack.c.l.b16 %v6645
      %v6742 = vunpack.c.l.b16 %v6646
      %v6743 = vunpack.c.l.b16 %v6647
      %v6744 = vunpack.c.l.b16 %v6648
      %v6745 = vunpack.c.l.b16 %v6649
      %v6746 = vunpack.c.l.b16 %v6650
      %v6747 = vunpack.c.l.b16 %v6651
      %v6748 = vunpack.c.l.b16 %v6652
      %v6749 = vpack.c.b16 %v6718, %v6717
      %v6750 = vpack.c.b16 %v6720, %v6719
      %v6751 = vpack.c.b16 %v6722, %v6721
      %v6752 = vpack.c.b16 %v6724, %v6723
      %v6753 = vpack.c.b16 %v6726, %v6725
      %v6754 = vpack.c.b16 %v6728, %v6727
      %v6755 = vpack.c.b16 %v6730, %v6729
      %v6756 = vpack.c.b16 %v6732, %v6731
      %v6757 = vpack.c.b16 %v6734, %v6733
      %v6758 = vpack.c.b16 %v6736, %v6735
      %v6759 = vpack.c.b16 %v6738, %v6737
      %v6760 = vpack.c.b16 %v6740, %v6739
      %v6761 = vpack.c.b16 %v6742, %v6741
      %v6762 = vpack.c.b16 %v6744, %v6743
      %v6763 = vpack.c.b16 %v6746, %v6745
      %v6764 = vpack.c.b16 %v6748, %v6747
      %v6797 = vunpack.c.l.b16 %v6653
      %v6798 = vunpack.c.l.b16 %v6654
      %v6799 = vunpack.c.l.b16 %v6655
      %v6800 = vunpack.c.l.b16 %v6656
      %v6801 = vunpack.c.l.b16 %v6657
      %v6802 = vunpack.c.l.b16 %v6658
      %v6803 = vunpack.c.l.b16 %v6659
      %v6804 = vunpack.c.l.b16 %v6660
      %v6805 = vunpack.c.l.b16 %v6661
      %v6806 = vunpack.c.l.b16 %v6662
      %v6807 = vunpack.c.l.b16 %v6663
      %v6808 = vunpack.c.l.b16 %v6664
      %v6809 = vunpack.c.l.b16 %v6665
      %v6810 = vunpack.c.l.b16 %v6666
      %v6811 = vunpack.c.l.b16 %v6667
      %v6812 = vunpack.c.l.b16 %v6668
      %v6813 = vpack.c.b16 %v6797, %v6797
      %v6814 = vpack.c.b16 %v6798, %v6798
      %v6815 = vpack.c.b16 %v6799, %v6799
      %v6816 = vpack.c.b16 %v6800, %v6800
      %v6817 = vpack.c.b16 %v6801, %v6801
      %v6818 = vpack.c.b16 %v6802, %v6802
      %v6819 = vpack.c.b16 %v6803, %v6803
      %v6820 = vpack.c.b16 %v6804, %v6804
      %v6821 = vpack.c.b16 %v6805, %v6805
      %v6822 = vpack.c.b16 %v6806, %v6806
      %v6823 = vpack.c.b16 %v6807, %v6807
      %v6824 = vpack.c.b16 %v6808, %v6808
      %v6825 = vpack.c.b16 %v6809, %v6809
      %v6826 = vpack.c.b16 %v6810, %v6810
      %v6827 = vpack.c.b16 %v6811, %v6811
      %v6828 = vpack.c.b16 %v6812, %v6812
      %v6830 = vshrl.u32 %v6749, 16
      %v6832 = vshll.u32 %v6749, 16
      %v6834 = vrot.slane %v6832, 1
      %v6835 = vor.u32 %v6830, %v6834
      %v6837 = vshll.u32 %v6813, 16
      %v6839 = vrot.slane %v6837, 1
      %v6840 = vsel %vm4845, %v6835, %v6839
      %v6842 = vshrl.u32 %v6750, 16
      %v6844 = vshll.u32 %v6750, 16
      %v6846 = vrot.slane %v6844, 1
      %v6847 = vor.u32 %v6842, %v6846
      %v6849 = vshll.u32 %v6814, 16
      %v6851 = vrot.slane %v6849, 1
      %v6852 = vsel %vm4845, %v6847, %v6851
      %v6854 = vshrl.u32 %v6751, 16
      %v6856 = vshll.u32 %v6751, 16
      %v6858 = vrot.slane %v6856, 1
      %v6859 = vor.u32 %v6854, %v6858
      %v6861 = vshll.u32 %v6815, 16
      %v6863 = vrot.slane %v6861, 1
      %v6864 = vsel %vm4845, %v6859, %v6863
      %v6866 = vshrl.u32 %v6752, 16
      %v6868 = vshll.u32 %v6752, 16
      %v6870 = vrot.slane %v6868, 1
      %v6871 = vor.u32 %v6866, %v6870
      %v6873 = vshll.u32 %v6816, 16
      %v6875 = vrot.slane %v6873, 1
      %v6876 = vsel %vm4845, %v6871, %v6875
      %v6878 = vshrl.u32 %v6753, 16
      %v6880 = vshll.u32 %v6753, 16
      %v6882 = vrot.slane %v6880, 1
      %v6883 = vor.u32 %v6878, %v6882
      %v6885 = vshll.u32 %v6817, 16
      %v6887 = vrot.slane %v6885, 1
      %v6888 = vsel %vm4845, %v6883, %v6887
      %v6890 = vshrl.u32 %v6754, 16
      %v6892 = vshll.u32 %v6754, 16
      %v6894 = vrot.slane %v6892, 1
      %v6895 = vor.u32 %v6890, %v6894
      %v6897 = vshll.u32 %v6818, 16
      %v6899 = vrot.slane %v6897, 1
      %v6900 = vsel %vm4845, %v6895, %v6899
      %v6902 = vshrl.u32 %v6755, 16
      %v6904 = vshll.u32 %v6755, 16
      %v6906 = vrot.slane %v6904, 1
      %v6907 = vor.u32 %v6902, %v6906
      %v6909 = vshll.u32 %v6819, 16
      %v6911 = vrot.slane %v6909, 1
      %v6912 = vsel %vm4845, %v6907, %v6911
      %v6914 = vshrl.u32 %v6756, 16
      %v6916 = vshll.u32 %v6756, 16
      %v6918 = vrot.slane %v6916, 1
      %v6919 = vor.u32 %v6914, %v6918
      %v6921 = vshll.u32 %v6820, 16
      %v6923 = vrot.slane %v6921, 1
      %v6924 = vsel %vm4845, %v6919, %v6923
      %v6926 = vshrl.u32 %v6757, 16
      %v6928 = vshll.u32 %v6757, 16
      %v6930 = vrot.slane %v6928, 1
      %v6931 = vor.u32 %v6926, %v6930
      %v6933 = vshll.u32 %v6821, 16
      %v6935 = vrot.slane %v6933, 1
      %v6936 = vsel %vm4845, %v6931, %v6935
      %v6938 = vshrl.u32 %v6758, 16
      %v6940 = vshll.u32 %v6758, 16
      %v6942 = vrot.slane %v6940, 1
      %v6943 = vor.u32 %v6938, %v6942
      %v6945 = vshll.u32 %v6822, 16
      %v6947 = vrot.slane %v6945, 1
      %v6948 = vsel %vm4845, %v6943, %v6947
      %v6950 = vshrl.u32 %v6759, 16
      %v6952 = vshll.u32 %v6759, 16
      %v6954 = vrot.slane %v6952, 1
      %v6955 = vor.u32 %v6950, %v6954
      %v6957 = vshll.u32 %v6823, 16
      %v6959 = vrot.slane %v6957, 1
      %v6960 = vsel %vm4845, %v6955, %v6959
      %v6962 = vshrl.u32 %v6760, 16
      %v6964 = vshll.u32 %v6760, 16
      %v6966 = vrot.slane %v6964, 1
      %v6967 = vor.u32 %v6962, %v6966
      %v6969 = vshll.u32 %v6824, 16
      %v6971 = vrot.slane %v6969, 1
      %v6972 = vsel %vm4845, %v6967, %v6971
      %v6974 = vshrl.u32 %v6761, 16
      %v6976 = vshll.u32 %v6761, 16
      %v6978 = vrot.slane %v6976, 1
      %v6979 = vor.u32 %v6974, %v6978
      %v6981 = vshll.u32 %v6825, 16
      %v6983 = vrot.slane %v6981, 1
      %v6984 = vsel %vm4845, %v6979, %v6983
      %v6986 = vshrl.u32 %v6762, 16
      %v6988 = vshll.u32 %v6762, 16
      %v6990 = vrot.slane %v6988, 1
      %v6991 = vor.u32 %v6986, %v6990
      %v6993 = vshll.u32 %v6826, 16
      %v6995 = vrot.slane %v6993, 1
      %v6996 = vsel %vm4845, %v6991, %v6995
      %v6998 = vshrl.u32 %v6763, 16
      %v7000 = vshll.u32 %v6763, 16
      %v7002 = vrot.slane %v7000, 1
      %v7003 = vor.u32 %v6998, %v7002
      %v7005 = vshll.u32 %v6827, 16
      %v7007 = vrot.slane %v7005, 1
      %v7008 = vsel %vm4845, %v7003, %v7007
      %v7010 = vshrl.u32 %v6764, 16
      %v7012 = vshll.u32 %v6764, 16
      %v7014 = vrot.slane %v7012, 1
      %v7015 = vor.u32 %v7010, %v7014
      %v7017 = vshll.u32 %v6828, 16
      %v7019 = vrot.slane %v7017, 1
      %v7020 = vsel %vm4845, %v7015, %v7019
      %v7053 = vunpack.c.l.b16 %v6669
      %v7054 = vunpack.c.l.b16 %v6670
      %v7055 = vunpack.c.l.b16 %v6671
      %v7056 = vunpack.c.l.b16 %v6672
      %v7057 = vunpack.c.l.b16 %v6673
      %v7058 = vunpack.c.l.b16 %v6674
      %v7059 = vunpack.c.l.b16 %v6675
      %v7060 = vunpack.c.l.b16 %v6676
      %v7061 = vunpack.c.l.b16 %v6677
      %v7062 = vunpack.c.l.b16 %v6678
      %v7063 = vunpack.c.l.b16 %v6679
      %v7064 = vunpack.c.l.b16 %v6680
      %v7065 = vunpack.c.l.b16 %v6681
      %v7066 = vunpack.c.l.b16 %v6682
      %v7067 = vunpack.c.l.b16 %v6683
      %v7068 = vunpack.c.l.b16 %v6684
      %v7069 = vpack.c.b16 %v6718, %v7053
      %v7070 = vpack.c.b16 %v6720, %v7054
      %v7071 = vpack.c.b16 %v6722, %v7055
      %v7072 = vpack.c.b16 %v6724, %v7056
      %v7073 = vpack.c.b16 %v6726, %v7057
      %v7074 = vpack.c.b16 %v6728, %v7058
      %v7075 = vpack.c.b16 %v6730, %v7059
      %v7076 = vpack.c.b16 %v6732, %v7060
      %v7077 = vpack.c.b16 %v6734, %v7061
      %v7078 = vpack.c.b16 %v6736, %v7062
      %v7079 = vpack.c.b16 %v6738, %v7063
      %v7080 = vpack.c.b16 %v6740, %v7064
      %v7081 = vpack.c.b16 %v6742, %v7065
      %v7082 = vpack.c.b16 %v6744, %v7066
      %v7083 = vpack.c.b16 %v6746, %v7067
      %v7084 = vpack.c.b16 %v6748, %v7068
      %v7085 = vrot.slane %v7069, 1
      %v7086 = vrot.slane %v6813, 1
      %v7087 = vsel %vm5102, %v7085, %v7086
      %v7088 = vrot.slane %v7070, 1
      %v7089 = vrot.slane %v6814, 1
      %v7090 = vsel %vm5102, %v7088, %v7089
      %v7091 = vrot.slane %v7071, 1
      %v7092 = vrot.slane %v6815, 1
      %v7093 = vsel %vm5102, %v7091, %v7092
      %v7094 = vrot.slane %v7072, 1
      %v7095 = vrot.slane %v6816, 1
      %v7096 = vsel %vm5102, %v7094, %v7095
      %v7097 = vrot.slane %v7073, 1
      %v7098 = vrot.slane %v6817, 1
      %v7099 = vsel %vm5102, %v7097, %v7098
      %v7100 = vrot.slane %v7074, 1
      %v7101 = vrot.slane %v6818, 1
      %v7102 = vsel %vm5102, %v7100, %v7101
      %v7103 = vrot.slane %v7075, 1
      %v7104 = vrot.slane %v6819, 1
      %v7105 = vsel %vm5102, %v7103, %v7104
      %v7106 = vrot.slane %v7076, 1
      %v7107 = vrot.slane %v6820, 1
      %v7108 = vsel %vm5102, %v7106, %v7107
      %v7109 = vrot.slane %v7077, 1
      %v7110 = vrot.slane %v6821, 1
      %v7111 = vsel %vm5102, %v7109, %v7110
      %v7112 = vrot.slane %v7078, 1
      %v7113 = vrot.slane %v6822, 1
      %v7114 = vsel %vm5102, %v7112, %v7113
      %v7115 = vrot.slane %v7079, 1
      %v7116 = vrot.slane %v6823, 1
      %v7117 = vsel %vm5102, %v7115, %v7116
      %v7118 = vrot.slane %v7080, 1
      %v7119 = vrot.slane %v6824, 1
      %v7120 = vsel %vm5102, %v7118, %v7119
      %v7121 = vrot.slane %v7081, 1
      %v7122 = vrot.slane %v6825, 1
      %v7123 = vsel %vm5102, %v7121, %v7122
      %v7124 = vrot.slane %v7082, 1
      %v7125 = vrot.slane %v6826, 1
      %v7126 = vsel %vm5102, %v7124, %v7125
      %v7127 = vrot.slane %v7083, 1
      %v7128 = vrot.slane %v6827, 1
      %v7129 = vsel %vm5102, %v7127, %v7128
      %v7130 = vrot.slane %v7084, 1
      %v7131 = vrot.slane %v6828, 1
      %v7132 = vsel %vm5102, %v7130, %v7131
      %v7149 = vld [vmem:[%s4 + $0x180] sm:$0xf]
      %v7150 = vld [vmem:[%s4 + $0x184] sm:$0xf]
      %v7151 = vld [vmem:[%s4 + $0x188] sm:$0xf]
      %v7152 = vld [vmem:[%s4 + $0x18c] sm:$0xf]
      %v7153 = vld [vmem:[%s4 + $0x190] sm:$0xf]
      %v7154 = vld [vmem:[%s4 + $0x194] sm:$0xf]
      %v7155 = vld [vmem:[%s4 + $0x198] sm:$0xf]
      %v7156 = vld [vmem:[%s4 + $0x19c] sm:$0xf]
      %v7157 = vld [vmem:[%s4 + $0x1a0] sm:$0xf]
      %v7158 = vld [vmem:[%s4 + $0x1a4] sm:$0xf]
      %v7159 = vld [vmem:[%s4 + $0x1a8] sm:$0xf]
      %v7160 = vld [vmem:[%s4 + $0x1ac] sm:$0xf]
      %v7161 = vld [vmem:[%s4 + $0x1b0] sm:$0xf]
      %v7162 = vld [vmem:[%s4 + $0x1b4] sm:$0xf]
      %v7163 = vld [vmem:[%s4 + $0x1b8] sm:$0xf]
      %v7164 = vld [vmem:[%s4 + $0x1bc] sm:$0xf]
      %v7165 = vld [vmem:[%s4 + $0x1c0] sm:$0xf]
      %v7166 = vld [vmem:[%s4 + $0x1c4] sm:$0xf]
      %v7167 = vld [vmem:[%s4 + $0x1c8] sm:$0xf]
      %v7168 = vld [vmem:[%s4 + $0x1cc] sm:$0xf]
      %v7169 = vld [vmem:[%s4 + $0x1d0] sm:$0xf]
      %v7170 = vld [vmem:[%s4 + $0x1d4] sm:$0xf]
      %v7171 = vld [vmem:[%s4 + $0x1d8] sm:$0xf]
      %v7172 = vld [vmem:[%s4 + $0x1dc] sm:$0xf]
      %v7173 = vld [vmem:[%s4 + $0x1e0] sm:$0xf]
      %v7174 = vld [vmem:[%s4 + $0x1e4] sm:$0xf]
      %v7175 = vld [vmem:[%s4 + $0x1e8] sm:$0xf]
      %v7176 = vld [vmem:[%s4 + $0x1ec] sm:$0xf]
      %v7177 = vld [vmem:[%s4 + $0x1f0] sm:$0xf]
      %v7178 = vld [vmem:[%s4 + $0x1f4] sm:$0xf]
      %v7179 = vld [vmem:[%s4 + $0x1f8] sm:$0xf]
      %v7180 = vld [vmem:[%s4 + $0x1fc] sm:$0xf]
      %v7181 = vld [vmem:[%s4 + $0x200] sm:$0xf]
      %v7182 = vld [vmem:[%s4 + $0x204] sm:$0xf]
      %v7183 = vld [vmem:[%s4 + $0x208] sm:$0xf]
      %v7184 = vld [vmem:[%s4 + $0x20c] sm:$0xf]
      %v7185 = vld [vmem:[%s4 + $0x210] sm:$0xf]
      %v7186 = vld [vmem:[%s4 + $0x214] sm:$0xf]
      %v7187 = vld [vmem:[%s4 + $0x218] sm:$0xf]
      %v7188 = vld [vmem:[%s4 + $0x21c] sm:$0xf]
      %v7189 = vld [vmem:[%s4 + $0x220] sm:$0xf]
      %v7190 = vld [vmem:[%s4 + $0x224] sm:$0xf]
      %v7191 = vld [vmem:[%s4 + $0x228] sm:$0xf]
      %v7192 = vld [vmem:[%s4 + $0x22c] sm:$0xf]
      %v7193 = vld [vmem:[%s4 + $0x230] sm:$0xf]
      %v7194 = vld [vmem:[%s4 + $0x234] sm:$0xf]
      %v7195 = vld [vmem:[%s4 + $0x238] sm:$0xf]
      %v7196 = vld [vmem:[%s4 + $0x23c] sm:$0xf]
      %v7245 = vunpack.c.l.b16 %v7149
      %v7246 = vunpack.c.l.b16 %v7150
      %v7247 = vunpack.c.l.b16 %v7151
      %v7248 = vunpack.c.l.b16 %v7152
      %v7249 = vunpack.c.l.b16 %v7153
      %v7250 = vunpack.c.l.b16 %v7154
      %v7251 = vunpack.c.l.b16 %v7155
      %v7252 = vunpack.c.l.b16 %v7156
      %v7253 = vunpack.c.l.b16 %v7157
      %v7254 = vunpack.c.l.b16 %v7158
      %v7255 = vunpack.c.l.b16 %v7159
      %v7256 = vunpack.c.l.b16 %v7160
      %v7257 = vunpack.c.l.b16 %v7161
      %v7258 = vunpack.c.l.b16 %v7162
      %v7259 = vunpack.c.l.b16 %v7163
      %v7260 = vunpack.c.l.b16 %v7164
      %v7261 = vunpack.c.l.b16 %v7165
      %v7262 = vunpack.c.l.b16 %v7166
      %v7263 = vunpack.c.l.b16 %v7167
      %v7264 = vunpack.c.l.b16 %v7168
      %v7265 = vunpack.c.l.b16 %v7169
      %v7266 = vunpack.c.l.b16 %v7170
      %v7267 = vunpack.c.l.b16 %v7171
      %v7268 = vunpack.c.l.b16 %v7172
      %v7269 = vunpack.c.l.b16 %v7173
      %v7270 = vunpack.c.l.b16 %v7174
      %v7271 = vunpack.c.l.b16 %v7175
      %v7272 = vunpack.c.l.b16 %v7176
      %v7273 = vunpack.c.l.b16 %v7177
      %v7274 = vunpack.c.l.b16 %v7178
      %v7275 = vunpack.c.l.b16 %v7179
      %v7276 = vunpack.c.l.b16 %v7180
      %v7277 = vunpack.c.l.b16 %v7181
      %v7278 = vunpack.c.l.b16 %v7182
      %v7279 = vunpack.c.l.b16 %v7183
      %v7280 = vunpack.c.l.b16 %v7184
      %v7281 = vunpack.c.l.b16 %v7185
      %v7282 = vunpack.c.l.b16 %v7186
      %v7283 = vunpack.c.l.b16 %v7187
      %v7284 = vunpack.c.l.b16 %v7188
      %v7285 = vunpack.c.l.b16 %v7189
      %v7286 = vunpack.c.l.b16 %v7190
      %v7287 = vunpack.c.l.b16 %v7191
      %v7288 = vunpack.c.l.b16 %v7192
      %v7289 = vunpack.c.l.b16 %v7193
      %v7290 = vunpack.c.l.b16 %v7194
      %v7291 = vunpack.c.l.b16 %v7195
      %v7292 = vunpack.c.l.b16 %v7196
      %v7293 = vpack.c.b16 %v7246, %v7245
      %v7294 = vpack.c.b16 %v7248, %v7247
      %v7295 = vpack.c.b16 %v7250, %v7249
      %v7296 = vpack.c.b16 %v7252, %v7251
      %v7297 = vpack.c.b16 %v7254, %v7253
      %v7298 = vpack.c.b16 %v7256, %v7255
      %v7299 = vpack.c.b16 %v7258, %v7257
      %v7300 = vpack.c.b16 %v7260, %v7259
      %v7301 = vpack.c.b16 %v7262, %v7261
      %v7302 = vpack.c.b16 %v7264, %v7263
      %v7303 = vpack.c.b16 %v7266, %v7265
      %v7304 = vpack.c.b16 %v7268, %v7267
      %v7305 = vpack.c.b16 %v7270, %v7269
      %v7306 = vpack.c.b16 %v7272, %v7271
      %v7307 = vpack.c.b16 %v7274, %v7273
      %v7308 = vpack.c.b16 %v7276, %v7275
      %v7309 = vpack.c.b16 %v7278, %v7277
      %v7310 = vpack.c.b16 %v7280, %v7279
      %v7311 = vpack.c.b16 %v7282, %v7281
      %v7312 = vpack.c.b16 %v7284, %v7283
      %v7313 = vpack.c.b16 %v7286, %v7285
      %v7314 = vpack.c.b16 %v7288, %v7287
      %v7315 = vpack.c.b16 %v7290, %v7289
      %v7316 = vpack.c.b16 %v7292, %v7291
      %7341 = vmatpush.bf16.msra.mxu0 %v7300
      %7342 = vmatpush.bf16.msra.mxu0 %v7299
      %7343 = vmatpush.bf16.msra.mxu0 %v7298
      %7344 = vmatpush.bf16.msra.mxu0 %v7297
      %7345 = vmatpush.bf16.msra.mxu0 %v7296
      %7346 = vmatpush.bf16.msra.mxu0 %v7295
      %7347 = vmatpush.bf16.msra.mxu0 %v7294
      %7348 = vmatpush.bf16.msra.mxu0 %v7293
      %7349 = vmatmul.bf16.gmra.mxu0 %v6749
      %v7350 = vpop.f32.mrf.mxu0
      %v7351 = vadd.f32 0.0, %v7350
      %v7352 = vpop.f32.mrf.mxu0
      %v7353 = vadd.f32 0.0, %v7352
      %7354 = vmatmul.bf16.gmra.mxu0 %v6750
      %v7355 = vpop.f32.mrf.mxu0
      %v7356 = vadd.f32 0.0, %v7355
      %v7357 = vpop.f32.mrf.mxu0
      %v7358 = vadd.f32 0.0, %v7357
      %7359 = vmatmul.bf16.gmra.mxu0 %v6751
      %v7360 = vpop.f32.mrf.mxu0
      %v7361 = vadd.f32 0.0, %v7360
      %v7362 = vpop.f32.mrf.mxu0
      %v7363 = vadd.f32 0.0, %v7362
      %7364 = vmatmul.bf16.gmra.mxu0 %v6752
      %v7365 = vpop.f32.mrf.mxu0
      %v7366 = vadd.f32 0.0, %v7365
      %v7367 = vpop.f32.mrf.mxu0
      %v7368 = vadd.f32 0.0, %v7367
      %7369 = vmatmul.bf16.gmra.mxu0 %v6753
      %v7370 = vpop.f32.mrf.mxu0
      %v7371 = vadd.f32 0.0, %v7370
      %v7372 = vpop.f32.mrf.mxu0
      %v7373 = vadd.f32 0.0, %v7372
      %7374 = vmatmul.bf16.gmra.mxu0 %v6754
      %v7375 = vpop.f32.mrf.mxu0
      %v7376 = vadd.f32 0.0, %v7375
      %v7377 = vpop.f32.mrf.mxu0
      %v7378 = vadd.f32 0.0, %v7377
      %7379 = vmatmul.bf16.gmra.mxu0 %v6755
      %v7380 = vpop.f32.mrf.mxu0
      %v7381 = vadd.f32 0.0, %v7380
      %v7382 = vpop.f32.mrf.mxu0
      %v7383 = vadd.f32 0.0, %v7382
      %7384 = vmatmul.bf16.gmra.mxu0 %v6756
      %v7385 = vpop.f32.mrf.mxu0
      %v7386 = vadd.f32 0.0, %v7385
      %v7387 = vpop.f32.mrf.mxu0
      %v7388 = vadd.f32 0.0, %v7387
      %7389 = vmatmul.bf16.gmra.mxu0 %v6757
      %v7390 = vpop.f32.mrf.mxu0
      %v7391 = vadd.f32 0.0, %v7390
      %v7392 = vpop.f32.mrf.mxu0
      %v7393 = vadd.f32 0.0, %v7392
      %7394 = vmatmul.bf16.gmra.mxu0 %v6758
      %v7395 = vpop.f32.mrf.mxu0
      %v7396 = vadd.f32 0.0, %v7395
      %v7397 = vpop.f32.mrf.mxu0
      %v7398 = vadd.f32 0.0, %v7397
      %7399 = vmatmul.bf16.gmra.mxu0 %v6759
      %v7400 = vpop.f32.mrf.mxu0
      %v7401 = vadd.f32 0.0, %v7400
      %v7402 = vpop.f32.mrf.mxu0
      %v7403 = vadd.f32 0.0, %v7402
      %7404 = vmatmul.bf16.gmra.mxu0 %v6760
      %v7405 = vpop.f32.mrf.mxu0
      %v7406 = vadd.f32 0.0, %v7405
      %v7407 = vpop.f32.mrf.mxu0
      %v7408 = vadd.f32 0.0, %v7407
      %7409 = vmatmul.bf16.gmra.mxu0 %v6761
      %v7410 = vpop.f32.mrf.mxu0
      %v7411 = vadd.f32 0.0, %v7410
      %v7412 = vpop.f32.mrf.mxu0
      %v7413 = vadd.f32 0.0, %v7412
      %7414 = vmatmul.bf16.gmra.mxu0 %v6762
      %v7415 = vpop.f32.mrf.mxu0
      %v7416 = vadd.f32 0.0, %v7415
      %v7417 = vpop.f32.mrf.mxu0
      %v7418 = vadd.f32 0.0, %v7417
      %7419 = vmatmul.bf16.gmra.mxu0 %v6763
      %v7420 = vpop.f32.mrf.mxu0
      %v7421 = vadd.f32 0.0, %v7420
      %v7422 = vpop.f32.mrf.mxu0
      %v7423 = vadd.f32 0.0, %v7422
      %7424 = vmatmul.bf16.gmra.mxu0 %v6764
      %v7425 = vpop.f32.mrf.mxu0
      %v7426 = vadd.f32 0.0, %v7425
      %v7427 = vpop.f32.mrf.mxu0
      %v7428 = vadd.f32 0.0, %v7427
      %7429 = vdwg.mxu0
      %7430 = vmatpush.bf16.msra.mxu0 %v7308
      %7431 = vmatpush.bf16.msra.mxu0 %v7307
      %7432 = vmatpush.bf16.msra.mxu0 %v7306
      %7433 = vmatpush.bf16.msra.mxu0 %v7305
      %7434 = vmatpush.bf16.msra.mxu0 %v7304
      %7435 = vmatpush.bf16.msra.mxu0 %v7303
      %7436 = vmatpush.bf16.msra.mxu0 %v7302
      %7437 = vmatpush.bf16.msra.mxu0 %v7301
      %7438 = vmatmul.bf16.gmra.mxu0 %v6840
      %v7439 = vpop.f32.mrf.mxu0
      %v7440 = vadd.f32 %v7351, %v7439
      %v7441 = vpop.f32.mrf.mxu0
      %v7442 = vadd.f32 %v7353, %v7441
      %7443 = vmatmul.bf16.gmra.mxu0 %v6852
      %v7444 = vpop.f32.mrf.mxu0
      %v7445 = vadd.f32 %v7356, %v7444
      %v7446 = vpop.f32.mrf.mxu0
      %v7447 = vadd.f32 %v7358, %v7446
      %7448 = vmatmul.bf16.gmra.mxu0 %v6864
      %v7449 = vpop.f32.mrf.mxu0
      %v7450 = vadd.f32 %v7361, %v7449
      %v7451 = vpop.f32.mrf.mxu0
      %v7452 = vadd.f32 %v7363, %v7451
      %7453 = vmatmul.bf16.gmra.mxu0 %v6876
      %v7454 = vpop.f32.mrf.mxu0
      %v7455 = vadd.f32 %v7366, %v7454
      %v7456 = vpop.f32.mrf.mxu0
      %v7457 = vadd.f32 %v7368, %v7456
      %7458 = vmatmul.bf16.gmra.mxu0 %v6888
      %v7459 = vpop.f32.mrf.mxu0
      %v7460 = vadd.f32 %v7371, %v7459
      %v7461 = vpop.f32.mrf.mxu0
      %v7462 = vadd.f32 %v7373, %v7461
      %7463 = vmatmul.bf16.gmra.mxu0 %v6900
      %v7464 = vpop.f32.mrf.mxu0
      %v7465 = vadd.f32 %v7376, %v7464
      %v7466 = vpop.f32.mrf.mxu0
      %v7467 = vadd.f32 %v7378, %v7466
      %7468 = vmatmul.bf16.gmra.mxu0 %v6912
      %v7469 = vpop.f32.mrf.mxu0
      %v7470 = vadd.f32 %v7381, %v7469
      %v7471 = vpop.f32.mrf.mxu0
      %v7472 = vadd.f32 %v7383, %v7471
      %7473 = vmatmul.bf16.gmra.mxu0 %v6924
      %v7474 = vpop.f32.mrf.mxu0
      %v7475 = vadd.f32 %v7386, %v7474
      %v7476 = vpop.f32.mrf.mxu0
      %v7477 = vadd.f32 %v7388, %v7476
      %7478 = vmatmul.bf16.gmra.mxu0 %v6936
      %v7479 = vpop.f32.mrf.mxu0
      %v7480 = vadd.f32 %v7391, %v7479
      %v7481 = vpop.f32.mrf.mxu0
      %v7482 = vadd.f32 %v7393, %v7481
      %7483 = vmatmul.bf16.gmra.mxu0 %v6948
      %v7484 = vpop.f32.mrf.mxu0
      %v7485 = vadd.f32 %v7396, %v7484
      %v7486 = vpop.f32.mrf.mxu0
      %v7487 = vadd.f32 %v7398, %v7486
      %7488 = vmatmul.bf16.gmra.mxu0 %v6960
      %v7489 = vpop.f32.mrf.mxu0
      %v7490 = vadd.f32 %v7401, %v7489
      %v7491 = vpop.f32.mrf.mxu0
      %v7492 = vadd.f32 %v7403, %v7491
      %7493 = vmatmul.bf16.gmra.mxu0 %v6972
      %v7494 = vpop.f32.mrf.mxu0
      %v7495 = vadd.f32 %v7406, %v7494
      %v7496 = vpop.f32.mrf.mxu0
      %v7497 = vadd.f32 %v7408, %v7496
      %7498 = vmatmul.bf16.gmra.mxu0 %v6984
      %v7499 = vpop.f32.mrf.mxu0
      %v7500 = vadd.f32 %v7411, %v7499
      %v7501 = vpop.f32.mrf.mxu0
      %v7502 = vadd.f32 %v7413, %v7501
      %7503 = vmatmul.bf16.gmra.mxu0 %v6996
      %v7504 = vpop.f32.mrf.mxu0
      %v7505 = vadd.f32 %v7416, %v7504
      %v7506 = vpop.f32.mrf.mxu0
      %v7507 = vadd.f32 %v7418, %v7506
      %7508 = vmatmul.bf16.gmra.mxu0 %v7008
      %v7509 = vpop.f32.mrf.mxu0
      %v7510 = vadd.f32 %v7421, %v7509
      %v7511 = vpop.f32.mrf.mxu0
      %v7512 = vadd.f32 %v7423, %v7511
      %7513 = vmatmul.bf16.gmra.mxu0 %v7020
      %v7514 = vpop.f32.mrf.mxu0
      %v7515 = vadd.f32 %v7426, %v7514
      %v7516 = vpop.f32.mrf.mxu0
      %v7517 = vadd.f32 %v7428, %v7516
      %7518 = vdwg.mxu0
      %7519 = vmatpush.bf16.msra.mxu0 %v7316
      %7520 = vmatpush.bf16.msra.mxu0 %v7315
      %7521 = vmatpush.bf16.msra.mxu0 %v7314
      %7522 = vmatpush.bf16.msra.mxu0 %v7313
      %7523 = vmatpush.bf16.msra.mxu0 %v7312
      %7524 = vmatpush.bf16.msra.mxu0 %v7311
      %7525 = vmatpush.bf16.msra.mxu0 %v7310
      %7526 = vmatpush.bf16.msra.mxu0 %v7309
      %7527 = vmatmul.bf16.gmra.mxu0 %v7087
      %v7528 = vpop.f32.mrf.mxu0
      %v7529 = vadd.f32 %v7440, %v7528
      %v7530 = vpop.f32.mrf.mxu0
      %v7531 = vadd.f32 %v7442, %v7530
      %7532 = vmatmul.bf16.gmra.mxu0 %v7090
      %v7533 = vpop.f32.mrf.mxu0
      %v7534 = vadd.f32 %v7445, %v7533
      %v7535 = vpop.f32.mrf.mxu0
      %v7536 = vadd.f32 %v7447, %v7535
      %7537 = vmatmul.bf16.gmra.mxu0 %v7093
      %v7538 = vpop.f32.mrf.mxu0
      %v7539 = vadd.f32 %v7450, %v7538
      %v7540 = vpop.f32.mrf.mxu0
      %v7541 = vadd.f32 %v7452, %v7540
      %7542 = vmatmul.bf16.gmra.mxu0 %v7096
      %v7543 = vpop.f32.mrf.mxu0
      %v7544 = vadd.f32 %v7455, %v7543
      %v7545 = vpop.f32.mrf.mxu0
      %v7546 = vadd.f32 %v7457, %v7545
      %7547 = vmatmul.bf16.gmra.mxu0 %v7099
      %v7548 = vpop.f32.mrf.mxu0
      %v7549 = vadd.f32 %v7460, %v7548
      %v7550 = vpop.f32.mrf.mxu0
      %v7551 = vadd.f32 %v7462, %v7550
      %7552 = vmatmul.bf16.gmra.mxu0 %v7102
      %v7553 = vpop.f32.mrf.mxu0
      %v7554 = vadd.f32 %v7465, %v7553
      %v7555 = vpop.f32.mrf.mxu0
      %v7556 = vadd.f32 %v7467, %v7555
      %7557 = vmatmul.bf16.gmra.mxu0 %v7105
      %v7558 = vpop.f32.mrf.mxu0
      %v7559 = vadd.f32 %v7470, %v7558
      %v7560 = vpop.f32.mrf.mxu0
      %v7561 = vadd.f32 %v7472, %v7560
      %7562 = vmatmul.bf16.gmra.mxu0 %v7108
      %v7563 = vpop.f32.mrf.mxu0
      %v7564 = vadd.f32 %v7475, %v7563
      %v7565 = vpop.f32.mrf.mxu0
      %v7566 = vadd.f32 %v7477, %v7565
      %7567 = vmatmul.bf16.gmra.mxu0 %v7111
      %v7568 = vpop.f32.mrf.mxu0
      %v7569 = vadd.f32 %v7480, %v7568
      %v7570 = vpop.f32.mrf.mxu0
      %v7571 = vadd.f32 %v7482, %v7570
      %7572 = vmatmul.bf16.gmra.mxu0 %v7114
      %v7573 = vpop.f32.mrf.mxu0
      %v7574 = vadd.f32 %v7485, %v7573
      %v7575 = vpop.f32.mrf.mxu0
      %v7576 = vadd.f32 %v7487, %v7575
      %7577 = vmatmul.bf16.gmra.mxu0 %v7117
      %v7578 = vpop.f32.mrf.mxu0
      %v7579 = vadd.f32 %v7490, %v7578
      %v7580 = vpop.f32.mrf.mxu0
      %v7581 = vadd.f32 %v7492, %v7580
      %7582 = vmatmul.bf16.gmra.mxu0 %v7120
      %v7583 = vpop.f32.mrf.mxu0
      %v7584 = vadd.f32 %v7495, %v7583
      %v7585 = vpop.f32.mrf.mxu0
      %v7586 = vadd.f32 %v7497, %v7585
      %7587 = vmatmul.bf16.gmra.mxu0 %v7123
      %v7588 = vpop.f32.mrf.mxu0
      %v7589 = vadd.f32 %v7500, %v7588
      %v7590 = vpop.f32.mrf.mxu0
      %v7591 = vadd.f32 %v7502, %v7590
      %7592 = vmatmul.bf16.gmra.mxu0 %v7126
      %v7593 = vpop.f32.mrf.mxu0
      %v7594 = vadd.f32 %v7505, %v7593
      %v7595 = vpop.f32.mrf.mxu0
      %v7596 = vadd.f32 %v7507, %v7595
      %7597 = vmatmul.bf16.gmra.mxu0 %v7129
      %v7598 = vpop.f32.mrf.mxu0
      %v7599 = vadd.f32 %v7510, %v7598
      %v7600 = vpop.f32.mrf.mxu0
      %v7601 = vadd.f32 %v7512, %v7600
      %7602 = vmatmul.bf16.gmra.mxu0 %v7132
      %v7603 = vpop.f32.mrf.mxu0
      %v7604 = vadd.f32 %v7515, %v7603
      %v7605 = vpop.f32.mrf.mxu0
      %v7606 = vadd.f32 %v7517, %v7605
      %7607 = vdwg.mxu0
      %v7608 = vadd.f32 %v6538, %v7529
      %v7609 = vadd.f32 %v6540, %v7531
      %v7610 = vadd.f32 %v6543, %v7534
      %v7611 = vadd.f32 %v6545, %v7536
      %v7612 = vadd.f32 %v6548, %v7539
      %v7613 = vadd.f32 %v6550, %v7541
      %v7614 = vadd.f32 %v6553, %v7544
      %v7615 = vadd.f32 %v6555, %v7546
      %v7616 = vadd.f32 %v6558, %v7549
      %v7617 = vadd.f32 %v6560, %v7551
      %v7618 = vadd.f32 %v6563, %v7554
      %v7619 = vadd.f32 %v6565, %v7556
      %v7620 = vadd.f32 %v6568, %v7559
      %v7621 = vadd.f32 %v6570, %v7561
      %v7622 = vadd.f32 %v6573, %v7564
      %v7623 = vadd.f32 %v6575, %v7566
      %v7624 = vadd.f32 %v6578, %v7569
      %v7625 = vadd.f32 %v6580, %v7571
      %v7626 = vadd.f32 %v6583, %v7574
      %v7627 = vadd.f32 %v6585, %v7576
      %v7628 = vadd.f32 %v6588, %v7579
      %v7629 = vadd.f32 %v6590, %v7581
      %v7630 = vadd.f32 %v6593, %v7584
      %v7631 = vadd.f32 %v6595, %v7586
      %v7632 = vadd.f32 %v6598, %v7589
      %v7633 = vadd.f32 %v6600, %v7591
      %v7634 = vadd.f32 %v6603, %v7594
      %v7635 = vadd.f32 %v6605, %v7596
      %v7636 = vadd.f32 %v6608, %v7599
      %v7637 = vadd.f32 %v6610, %v7601
      %v7638 = vadd.f32 %v6613, %v7604
      %v7639 = vadd.f32 %v6615, %v7606
      %v7640 = vld [vmem:[%s5] sm:$0x1]
      %v7642 = vperm.slane %v7640, 0
      %v7644 = vmul.f32 %v7608, %v7642
      %v7645 = vmul.f32 %v7609, %v7642
      %v7646 = vmul.f32 %v7610, %v7642
      %v7647 = vmul.f32 %v7611, %v7642
      %v7648 = vmul.f32 %v7612, %v7642
      %v7649 = vmul.f32 %v7613, %v7642
      %v7650 = vmul.f32 %v7614, %v7642
      %v7651 = vmul.f32 %v7615, %v7642
      %v7652 = vmul.f32 %v7616, %v7642
      %v7653 = vmul.f32 %v7617, %v7642
      %v7654 = vmul.f32 %v7618, %v7642
      %v7655 = vmul.f32 %v7619, %v7642
      %v7656 = vmul.f32 %v7620, %v7642
      %v7657 = vmul.f32 %v7621, %v7642
      %v7658 = vmul.f32 %v7622, %v7642
      %v7659 = vmul.f32 %v7623, %v7642
      %v7660 = vmul.f32 %v7624, %v7642
      %v7661 = vmul.f32 %v7625, %v7642
      %v7662 = vmul.f32 %v7626, %v7642
      %v7663 = vmul.f32 %v7627, %v7642
      %v7664 = vmul.f32 %v7628, %v7642
      %v7665 = vmul.f32 %v7629, %v7642
      %v7666 = vmul.f32 %v7630, %v7642
      %v7667 = vmul.f32 %v7631, %v7642
      %v7668 = vmul.f32 %v7632, %v7642
      %v7669 = vmul.f32 %v7633, %v7642
      %v7670 = vmul.f32 %v7634, %v7642
      %v7671 = vmul.f32 %v7635, %v7642
      %v7672 = vmul.f32 %v7636, %v7642
      %v7673 = vmul.f32 %v7637, %v7642
      %v7674 = vmul.f32 %v7638, %v7642
      %v7675 = vmul.f32 %v7639, %v7642
      %v7676 = vld [vmem:[%s6] sm:$0x1]
      %v7678 = vperm.slane %v7676, 0
      %v7680 = vadd.f32 %v7644, %v7678
      %v7681 = vadd.f32 %v7645, %v7678
      %v7682 = vadd.f32 %v7646, %v7678
      %v7683 = vadd.f32 %v7647, %v7678
      %v7684 = vadd.f32 %v7648, %v7678
      %v7685 = vadd.f32 %v7649, %v7678
      %v7686 = vadd.f32 %v7650, %v7678
      %v7687 = vadd.f32 %v7651, %v7678
      %v7688 = vadd.f32 %v7652, %v7678
      %v7689 = vadd.f32 %v7653, %v7678
      %v7690 = vadd.f32 %v7654, %v7678
      %v7691 = vadd.f32 %v7655, %v7678
      %v7692 = vadd.f32 %v7656, %v7678
      %v7693 = vadd.f32 %v7657, %v7678
      %v7694 = vadd.f32 %v7658, %v7678
      %v7695 = vadd.f32 %v7659, %v7678
      %v7696 = vadd.f32 %v7660, %v7678
      %v7697 = vadd.f32 %v7661, %v7678
      %v7698 = vadd.f32 %v7662, %v7678
      %v7699 = vadd.f32 %v7663, %v7678
      %v7700 = vadd.f32 %v7664, %v7678
      %v7701 = vadd.f32 %v7665, %v7678
      %v7702 = vadd.f32 %v7666, %v7678
      %v7703 = vadd.f32 %v7667, %v7678
      %v7704 = vadd.f32 %v7668, %v7678
      %v7705 = vadd.f32 %v7669, %v7678
      %v7706 = vadd.f32 %v7670, %v7678
      %v7707 = vadd.f32 %v7671, %v7678
      %v7708 = vadd.f32 %v7672, %v7678
      %v7709 = vadd.f32 %v7673, %v7678
      %v7710 = vadd.f32 %v7674, %v7678
      %v7711 = vadd.f32 %v7675, %v7678
      %v7712 = vmax.f32 %v7680, 0.0
      %v7713 = vmax.f32 %v7681, 0.0
      %v7714 = vmax.f32 %v7682, 0.0
      %v7715 = vmax.f32 %v7683, 0.0
      %v7716 = vmax.f32 %v7684, 0.0
      %v7717 = vmax.f32 %v7685, 0.0
      %v7718 = vmax.f32 %v7686, 0.0
      %v7719 = vmax.f32 %v7687, 0.0
      %v7720 = vmax.f32 %v7688, 0.0
      %v7721 = vmax.f32 %v7689, 0.0
      %v7722 = vmax.f32 %v7690, 0.0
      %v7723 = vmax.f32 %v7691, 0.0
      %v7724 = vmax.f32 %v7692, 0.0
      %v7725 = vmax.f32 %v7693, 0.0
      %v7726 = vmax.f32 %v7694, 0.0
      %v7727 = vmax.f32 %v7695, 0.0
      %v7728 = vmax.f32 %v7696, 0.0
      %v7729 = vmax.f32 %v7697, 0.0
      %v7730 = vmax.f32 %v7698, 0.0
      %v7731 = vmax.f32 %v7699, 0.0
      %v7732 = vmax.f32 %v7700, 0.0
      %v7733 = vmax.f32 %v7701, 0.0
      %v7734 = vmax.f32 %v7702, 0.0
      %v7735 = vmax.f32 %v7703, 0.0
      %v7736 = vmax.f32 %v7704, 0.0
      %v7737 = vmax.f32 %v7705, 0.0
      %v7738 = vmax.f32 %v7706, 0.0
      %v7739 = vmax.f32 %v7707, 0.0
      %v7740 = vmax.f32 %v7708, 0.0
      %v7741 = vmax.f32 %v7709, 0.0
      %v7742 = vmax.f32 %v7710, 0.0
      %v7743 = vmax.f32 %v7711, 0.0
      %s7744 = smul.addr %s5216, 4
      %s7745 = scalar_lea.vmem [#allocation2], %s7744
      %v7746 = vld [vmem:[%s7745] sm:$0xf]
      %v7747 = vld [vmem:[%s7745 + $0x4] sm:$0xf]
      %v7748 = vld [vmem:[%s7745 + $0x8] sm:$0x1]
      %v7749 = vld [vmem:[%s7745 + $0xc] sm:$0xf]
      %v7750 = vld [vmem:[%s7745 + $0x10] sm:$0xf]
      %v7751 = vld [vmem:[%s7745 + $0x14] sm:$0x1]
      %v7752 = vld [vmem:[%s7745 + $0x18] sm:$0xf]
      %v7753 = vld [vmem:[%s7745 + $0x1c] sm:$0xf]
      %v7754 = vld [vmem:[%s7745 + $0x20] sm:$0x1]
      %v7755 = vld [vmem:[%s7745 + $0x24] sm:$0xf]
      %v7756 = vld [vmem:[%s7745 + $0x28] sm:$0xf]
      %v7757 = vld [vmem:[%s7745 + $0x2c] sm:$0x1]
      %v7758 = vld [vmem:[%s7745 + $0x30] sm:$0xf]
      %v7759 = vld [vmem:[%s7745 + $0x34] sm:$0xf]
      %v7760 = vld [vmem:[%s7745 + $0x38] sm:$0x1]
      %v7761 = vld [vmem:[%s7745 + $0x3c] sm:$0xf]
      %v7762 = vld [vmem:[%s7745 + $0x40] sm:$0xf]
      %v7763 = vld [vmem:[%s7745 + $0x44] sm:$0x1]
      %v7764 = vld [vmem:[%s7745 + $0x48] sm:$0xf]
      %v7765 = vld [vmem:[%s7745 + $0x4c] sm:$0xf]
      %v7766 = vld [vmem:[%s7745 + $0x50] sm:$0x1]
      %v7767 = vld [vmem:[%s7745 + $0x54] sm:$0xf]
      %v7768 = vld [vmem:[%s7745 + $0x58] sm:$0xf]
      %v7769 = vld [vmem:[%s7745 + $0x5c] sm:$0x1]
      %v7770 = vld [vmem:[%s7745 + $0x60] sm:$0xf]
      %v7771 = vld [vmem:[%s7745 + $0x64] sm:$0xf]
      %v7772 = vld [vmem:[%s7745 + $0x68] sm:$0x1]
      %v7773 = vld [vmem:[%s7745 + $0x6c] sm:$0xf]
      %v7774 = vld [vmem:[%s7745 + $0x70] sm:$0xf]
      %v7775 = vld [vmem:[%s7745 + $0x74] sm:$0x1]
      %v7776 = vld [vmem:[%s7745 + $0x78] sm:$0xf]
      %v7777 = vld [vmem:[%s7745 + $0x7c] sm:$0xf]
      %v7778 = vld [vmem:[%s7745 + $0x80] sm:$0x1]
      %v7779 = vld [vmem:[%s7745 + $0x84] sm:$0xf]
      %v7780 = vld [vmem:[%s7745 + $0x88] sm:$0xf]
      %v7781 = vld [vmem:[%s7745 + $0x8c] sm:$0x1]
      %v7782 = vld [vmem:[%s7745 + $0x90] sm:$0xf]
      %v7783 = vld [vmem:[%s7745 + $0x94] sm:$0xf]
      %v7784 = vld [vmem:[%s7745 + $0x98] sm:$0x1]
      %v7785 = vld [vmem:[%s7745 + $0x9c] sm:$0xf]
      %v7786 = vld [vmem:[%s7745 + $0xa0] sm:$0xf]
      %v7787 = vld [vmem:[%s7745 + $0xa4] sm:$0x1]
      %v7788 = vld [vmem:[%s7745 + $0xa8] sm:$0xf]
      %v7789 = vld [vmem:[%s7745 + $0xac] sm:$0xf]
      %v7790 = vld [vmem:[%s7745 + $0xb0] sm:$0x1]
      %v7791 = vld [vmem:[%s7745 + $0xb4] sm:$0xf]
      %v7792 = vld [vmem:[%s7745 + $0xb8] sm:$0xf]
      %v7793 = vld [vmem:[%s7745 + $0xbc] sm:$0x1]
      %vm7794 = vsmask.f32 3328
      %vm7795 = vsmask.f32 7440
      %vm7796 = vmor %vm7794, %vm7795
      %v7798 = vshrl.u32 %v7746, 16
      %v7800 = vrot.slane %v7798, 4
      %v7801 = vshll.u32 %v7746, 16
      %v7803 = vrot.slane %v7801, 5
      %v7804 = vor.u32 %v7800, %v7803
      %v7805 = vrot.slane %v7804, 4
      %v7807 = vshll.u32 %v7747, 16
      %v7809 = vrot.slane %v7807, 5
      %v7810 = vsel %vm7796, %v7805, %v7809
      %v7811 = vshrl.u32 %v7747, 16
      %v7813 = vrot.slane %v7811, 4
      %v7814 = vor.u32 %v7813, %v7809
      %v7815 = vrot.slane %v7814, 4
      %v7817 = vshll.u32 %v7748, 16
      %v7819 = vrot.slane %v7817, 5
      %v7820 = vsel %vm7796, %v7815, %v7819
      %v7822 = vshrl.u32 %v7749, 16
      %v7824 = vrot.slane %v7822, 4
      %v7825 = vshll.u32 %v7749, 16
      %v7827 = vrot.slane %v7825, 5
      %v7828 = vor.u32 %v7824, %v7827
      %v7829 = vrot.slane %v7828, 4
      %v7831 = vshll.u32 %v7750, 16
      %v7833 = vrot.slane %v7831, 5
      %v7834 = vsel %vm7796, %v7829, %v7833
      %v7835 = vshrl.u32 %v7750, 16
      %v7837 = vrot.slane %v7835, 4
      %v7838 = vor.u32 %v7837, %v7833
      %v7839 = vrot.slane %v7838, 4
      %v7841 = vshll.u32 %v7751, 16
      %v7843 = vrot.slane %v7841, 5
      %v7844 = vsel %vm7796, %v7839, %v7843
      %v7846 = vshrl.u32 %v7752, 16
      %v7848 = vrot.slane %v7846, 4
      %v7849 = vshll.u32 %v7752, 16
      %v7851 = vrot.slane %v7849, 5
      %v7852 = vor.u32 %v7848, %v7851
      %v7853 = vrot.slane %v7852, 4
      %v7855 = vshll.u32 %v7753, 16
      %v7857 = vrot.slane %v7855, 5
      %v7858 = vsel %vm7796, %v7853, %v7857
      %v7859 = vshrl.u32 %v7753, 16
      %v7861 = vrot.slane %v7859, 4
      %v7862 = vor.u32 %v7861, %v7857
      %v7863 = vrot.slane %v7862, 4
      %v7865 = vshll.u32 %v7754, 16
      %v7867 = vrot.slane %v7865, 5
      %v7868 = vsel %vm7796, %v7863, %v7867
      %v7870 = vshrl.u32 %v7755, 16
      %v7872 = vrot.slane %v7870, 4
      %v7873 = vshll.u32 %v7755, 16
      %v7875 = vrot.slane %v7873, 5
      %v7876 = vor.u32 %v7872, %v7875
      %v7877 = vrot.slane %v7876, 4
      %v7879 = vshll.u32 %v7756, 16
      %v7881 = vrot.slane %v7879, 5
      %v7882 = vsel %vm7796, %v7877, %v7881
      %v7883 = vshrl.u32 %v7756, 16
      %v7885 = vrot.slane %v7883, 4
      %v7886 = vor.u32 %v7885, %v7881
      %v7887 = vrot.slane %v7886, 4
      %v7889 = vshll.u32 %v7757, 16
      %v7891 = vrot.slane %v7889, 5
      %v7892 = vsel %vm7796, %v7887, %v7891
      %v7894 = vshrl.u32 %v7758, 16
      %v7896 = vrot.slane %v7894, 4
      %v7897 = vshll.u32 %v7758, 16
      %v7899 = vrot.slane %v7897, 5
      %v7900 = vor.u32 %v7896, %v7899
      %v7901 = vrot.slane %v7900, 4
      %v7903 = vshll.u32 %v7759, 16
      %v7905 = vrot.slane %v7903, 5
      %v7906 = vsel %vm7796, %v7901, %v7905
      %v7907 = vshrl.u32 %v7759, 16
      %v7909 = vrot.slane %v7907, 4
      %v7910 = vor.u32 %v7909, %v7905
      %v7911 = vrot.slane %v7910, 4
      %v7913 = vshll.u32 %v7760, 16
      %v7915 = vrot.slane %v7913, 5
      %v7916 = vsel %vm7796, %v7911, %v7915
      %v7918 = vshrl.u32 %v7761, 16
      %v7920 = vrot.slane %v7918, 4
      %v7921 = vshll.u32 %v7761, 16
      %v7923 = vrot.slane %v7921, 5
      %v7924 = vor.u32 %v7920, %v7923
      %v7925 = vrot.slane %v7924, 4
      %v7927 = vshll.u32 %v7762, 16
      %v7929 = vrot.slane %v7927, 5
      %v7930 = vsel %vm7796, %v7925, %v7929
      %v7931 = vshrl.u32 %v7762, 16
      %v7933 = vrot.slane %v7931, 4
      %v7934 = vor.u32 %v7933, %v7929
      %v7935 = vrot.slane %v7934, 4
      %v7937 = vshll.u32 %v7763, 16
      %v7939 = vrot.slane %v7937, 5
      %v7940 = vsel %vm7796, %v7935, %v7939
      %v7942 = vshrl.u32 %v7764, 16
      %v7944 = vrot.slane %v7942, 4
      %v7945 = vshll.u32 %v7764, 16
      %v7947 = vrot.slane %v7945, 5
      %v7948 = vor.u32 %v7944, %v7947
      %v7949 = vrot.slane %v7948, 4
      %v7951 = vshll.u32 %v7765, 16
      %v7953 = vrot.slane %v7951, 5
      %v7954 = vsel %vm7796, %v7949, %v7953
      %v7955 = vshrl.u32 %v7765, 16
      %v7957 = vrot.slane %v7955, 4
      %v7958 = vor.u32 %v7957, %v7953
      %v7959 = vrot.slane %v7958, 4
      %v7961 = vshll.u32 %v7766, 16
      %v7963 = vrot.slane %v7961, 5
      %v7964 = vsel %vm7796, %v7959, %v7963
      %v7966 = vshrl.u32 %v7767, 16
      %v7968 = vrot.slane %v7966, 4
      %v7969 = vshll.u32 %v7767, 16
      %v7971 = vrot.slane %v7969, 5
      %v7972 = vor.u32 %v7968, %v7971
      %v7973 = vrot.slane %v7972, 4
      %v7975 = vshll.u32 %v7768, 16
      %v7977 = vrot.slane %v7975, 5
      %v7978 = vsel %vm7796, %v7973, %v7977
      %v7979 = vshrl.u32 %v7768, 16
      %v7981 = vrot.slane %v7979, 4
      %v7982 = vor.u32 %v7981, %v7977
      %v7983 = vrot.slane %v7982, 4
      %v7985 = vshll.u32 %v7769, 16
      %v7987 = vrot.slane %v7985, 5
      %v7988 = vsel %vm7796, %v7983, %v7987
      %v7990 = vshrl.u32 %v7770, 16
      %v7992 = vrot.slane %v7990, 4
      %v7993 = vshll.u32 %v7770, 16
      %v7995 = vrot.slane %v7993, 5
      %v7996 = vor.u32 %v7992, %v7995
      %v7997 = vrot.slane %v7996, 4
      %v7999 = vshll.u32 %v7771, 16
      %v8001 = vrot.slane %v7999, 5
      %v8002 = vsel %vm7796, %v7997, %v8001
      %v8003 = vshrl.u32 %v7771, 16
      %v8005 = vrot.slane %v8003, 4
      %v8006 = vor.u32 %v8005, %v8001
      %v8007 = vrot.slane %v8006, 4
      %v8009 = vshll.u32 %v7772, 16
      %v8011 = vrot.slane %v8009, 5
      %v8012 = vsel %vm7796, %v8007, %v8011
      %v8014 = vshrl.u32 %v7773, 16
      %v8016 = vrot.slane %v8014, 4
      %v8017 = vshll.u32 %v7773, 16
      %v8019 = vrot.slane %v8017, 5
      %v8020 = vor.u32 %v8016, %v8019
      %v8021 = vrot.slane %v8020, 4
      %v8023 = vshll.u32 %v7774, 16
      %v8025 = vrot.slane %v8023, 5
      %v8026 = vsel %vm7796, %v8021, %v8025
      %v8027 = vshrl.u32 %v7774, 16
      %v8029 = vrot.slane %v8027, 4
      %v8030 = vor.u32 %v8029, %v8025
      %v8031 = vrot.slane %v8030, 4
      %v8033 = vshll.u32 %v7775, 16
      %v8035 = vrot.slane %v8033, 5
      %v8036 = vsel %vm7796, %v8031, %v8035
      %v8038 = vshrl.u32 %v7776, 16
      %v8040 = vrot.slane %v8038, 4
      %v8041 = vshll.u32 %v7776, 16
      %v8043 = vrot.slane %v8041, 5
      %v8044 = vor.u32 %v8040, %v8043
      %v8045 = vrot.slane %v8044, 4
      %v8047 = vshll.u32 %v7777, 16
      %v8049 = vrot.slane %v8047, 5
      %v8050 = vsel %vm7796, %v8045, %v8049
      %v8051 = vshrl.u32 %v7777, 16
      %v8053 = vrot.slane %v8051, 4
      %v8054 = vor.u32 %v8053, %v8049
      %v8055 = vrot.slane %v8054, 4
      %v8057 = vshll.u32 %v7778, 16
      %v8059 = vrot.slane %v8057, 5
      %v8060 = vsel %vm7796, %v8055, %v8059
      %v8062 = vshrl.u32 %v7779, 16
      %v8064 = vrot.slane %v8062, 4
      %v8065 = vshll.u32 %v7779, 16
      %v8067 = vrot.slane %v8065, 5
      %v8068 = vor.u32 %v8064, %v8067
      %v8069 = vrot.slane %v8068, 4
      %v8071 = vshll.u32 %v7780, 16
      %v8073 = vrot.slane %v8071, 5
      %v8074 = vsel %vm7796, %v8069, %v8073
      %v8075 = vshrl.u32 %v7780, 16
      %v8077 = vrot.slane %v8075, 4
      %v8078 = vor.u32 %v8077, %v8073
      %v8079 = vrot.slane %v8078, 4
      %v8081 = vshll.u32 %v7781, 16
      %v8083 = vrot.slane %v8081, 5
      %v8084 = vsel %vm7796, %v8079, %v8083
      %v8086 = vshrl.u32 %v7782, 16
      %v8088 = vrot.slane %v8086, 4
      %v8089 = vshll.u32 %v7782, 16
      %v8091 = vrot.slane %v8089, 5
      %v8092 = vor.u32 %v8088, %v8091
      %v8093 = vrot.slane %v8092, 4
      %v8095 = vshll.u32 %v7783, 16
      %v8097 = vrot.slane %v8095, 5
      %v8098 = vsel %vm7796, %v8093, %v8097
      %v8099 = vshrl.u32 %v7783, 16
      %v8101 = vrot.slane %v8099, 4
      %v8102 = vor.u32 %v8101, %v8097
      %v8103 = vrot.slane %v8102, 4
      %v8105 = vshll.u32 %v7784, 16
      %v8107 = vrot.slane %v8105, 5
      %v8108 = vsel %vm7796, %v8103, %v8107
      %v8110 = vshrl.u32 %v7785, 16
      %v8112 = vrot.slane %v8110, 4
      %v8113 = vshll.u32 %v7785, 16
      %v8115 = vrot.slane %v8113, 5
      %v8116 = vor.u32 %v8112, %v8115
      %v8117 = vrot.slane %v8116, 4
      %v8119 = vshll.u32 %v7786, 16
      %v8121 = vrot.slane %v8119, 5
      %v8122 = vsel %vm7796, %v8117, %v8121
      %v8123 = vshrl.u32 %v7786, 16
      %v8125 = vrot.slane %v8123, 4
      %v8126 = vor.u32 %v8125, %v8121
      %v8127 = vrot.slane %v8126, 4
      %v8129 = vshll.u32 %v7787, 16
      %v8131 = vrot.slane %v8129, 5
      %v8132 = vsel %vm7796, %v8127, %v8131
      %v8134 = vshrl.u32 %v7788, 16
      %v8136 = vrot.slane %v8134, 4
      %v8137 = vshll.u32 %v7788, 16
      %v8139 = vrot.slane %v8137, 5
      %v8140 = vor.u32 %v8136, %v8139
      %v8141 = vrot.slane %v8140, 4
      %v8143 = vshll.u32 %v7789, 16
      %v8145 = vrot.slane %v8143, 5
      %v8146 = vsel %vm7796, %v8141, %v8145
      %v8147 = vshrl.u32 %v7789, 16
      %v8149 = vrot.slane %v8147, 4
      %v8150 = vor.u32 %v8149, %v8145
      %v8151 = vrot.slane %v8150, 4
      %v8153 = vshll.u32 %v7790, 16
      %v8155 = vrot.slane %v8153, 5
      %v8156 = vsel %vm7796, %v8151, %v8155
      %v8158 = vshrl.u32 %v7791, 16
      %v8160 = vrot.slane %v8158, 4
      %v8161 = vshll.u32 %v7791, 16
      %v8163 = vrot.slane %v8161, 5
      %v8164 = vor.u32 %v8160, %v8163
      %v8165 = vrot.slane %v8164, 4
      %v8167 = vshll.u32 %v7792, 16
      %v8169 = vrot.slane %v8167, 5
      %v8170 = vsel %vm7796, %v8165, %v8169
      %v8171 = vshrl.u32 %v7792, 16
      %v8173 = vrot.slane %v8171, 4
      %v8174 = vor.u32 %v8173, %v8169
      %v8175 = vrot.slane %v8174, 4
      %v8177 = vshll.u32 %v7793, 16
      %v8179 = vrot.slane %v8177, 5
      %v8180 = vsel %vm7796, %v8175, %v8179
      %v8181 = vld [vmem:[%s7] sm:$0xf]
      %v8182 = vld [vmem:[%s7 + $0x4] sm:$0xf]
      %v8183 = vld [vmem:[%s7 + $0x8] sm:$0xf]
      %v8184 = vld [vmem:[%s7 + $0xc] sm:$0xf]
      %v8185 = vld [vmem:[%s7 + $0x10] sm:$0xf]
      %v8186 = vld [vmem:[%s7 + $0x14] sm:$0xf]
      %v8187 = vld [vmem:[%s7 + $0x18] sm:$0xf]
      %v8188 = vld [vmem:[%s7 + $0x1c] sm:$0xf]
      %v8189 = vld [vmem:[%s7 + $0x20] sm:$0xf]
      %v8190 = vld [vmem:[%s7 + $0x24] sm:$0xf]
      %v8191 = vld [vmem:[%s7 + $0x28] sm:$0xf]
      %v8192 = vld [vmem:[%s7 + $0x2c] sm:$0xf]
      %v8193 = vld [vmem:[%s7 + $0x30] sm:$0xf]
      %v8194 = vld [vmem:[%s7 + $0x34] sm:$0xf]
      %v8195 = vld [vmem:[%s7 + $0x38] sm:$0xf]
      %v8196 = vld [vmem:[%s7 + $0x3c] sm:$0xf]
      %v8197 = vunpack.c.l.b16 %v7810
      %v8198 = vunpack.c.l.b16 %v7820
      %v8199 = vunpack.c.l.b16 %v7834
      %v8200 = vunpack.c.l.b16 %v7844
      %v8201 = vunpack.c.l.b16 %v7858
      %v8202 = vunpack.c.l.b16 %v7868
      %v8203 = vunpack.c.l.b16 %v7882
      %v8204 = vunpack.c.l.b16 %v7892
      %v8205 = vunpack.c.l.b16 %v7906
      %v8206 = vunpack.c.l.b16 %v7916
      %v8207 = vunpack.c.l.b16 %v7930
      %v8208 = vunpack.c.l.b16 %v7940
      %v8209 = vunpack.c.l.b16 %v7954
      %v8210 = vunpack.c.l.b16 %v7964
      %v8211 = vunpack.c.l.b16 %v7978
      %v8212 = vunpack.c.l.b16 %v7988
      %v8213 = vunpack.c.l.b16 %v8002
      %v8214 = vunpack.c.l.b16 %v8012
      %v8215 = vunpack.c.l.b16 %v8026
      %v8216 = vunpack.c.l.b16 %v8036
      %v8217 = vunpack.c.l.b16 %v8050
      %v8218 = vunpack.c.l.b16 %v8060
      %v8219 = vunpack.c.l.b16 %v8074
      %v8220 = vunpack.c.l.b16 %v8084
      %v8221 = vunpack.c.l.b16 %v8098
      %v8222 = vunpack.c.l.b16 %v8108
      %v8223 = vunpack.c.l.b16 %v8122
      %v8224 = vunpack.c.l.b16 %v8132
      %v8225 = vunpack.c.l.b16 %v8146
      %v8226 = vunpack.c.l.b16 %v8156
      %v8227 = vunpack.c.l.b16 %v8170
      %v8228 = vunpack.c.l.b16 %v8180
      %v8229 = vpack.c.b16 %v8198, %v8197
      %v8230 = vpack.c.b16 %v8200, %v8199
      %v8231 = vpack.c.b16 %v8202, %v8201
      %v8232 = vpack.c.b16 %v8204, %v8203
      %v8233 = vpack.c.b16 %v8206, %v8205
      %v8234 = vpack.c.b16 %v8208, %v8207
      %v8235 = vpack.c.b16 %v8210, %v8209
      %v8236 = vpack.c.b16 %v8212, %v8211
      %v8237 = vpack.c.b16 %v8214, %v8213
      %v8238 = vpack.c.b16 %v8216, %v8215
      %v8239 = vpack.c.b16 %v8218, %v8217
      %v8240 = vpack.c.b16 %v8220, %v8219
      %v8241 = vpack.c.b16 %v8222, %v8221
      %v8242 = vpack.c.b16 %v8224, %v8223
      %v8243 = vpack.c.b16 %v8226, %v8225
      %v8244 = vpack.c.b16 %v8228, %v8227
      %v8277 = vunpack.c.l.b16 %v8181
      %v8278 = vunpack.c.l.b16 %v8182
      %v8279 = vunpack.c.l.b16 %v8183
      %v8280 = vunpack.c.l.b16 %v8184
      %v8281 = vunpack.c.l.b16 %v8185
      %v8282 = vunpack.c.l.b16 %v8186
      %v8283 = vunpack.c.l.b16 %v8187
      %v8284 = vunpack.c.l.b16 %v8188
      %v8285 = vunpack.c.l.b16 %v8189
      %v8286 = vunpack.c.l.b16 %v8190
      %v8287 = vunpack.c.l.b16 %v8191
      %v8288 = vunpack.c.l.b16 %v8192
      %v8289 = vunpack.c.l.b16 %v8193
      %v8290 = vunpack.c.l.b16 %v8194
      %v8291 = vunpack.c.l.b16 %v8195
      %v8292 = vunpack.c.l.b16 %v8196
      %v8293 = vpack.c.b16 %v8278, %v8277
      %v8294 = vpack.c.b16 %v8280, %v8279
      %v8295 = vpack.c.b16 %v8282, %v8281
      %v8296 = vpack.c.b16 %v8284, %v8283
      %v8297 = vpack.c.b16 %v8286, %v8285
      %v8298 = vpack.c.b16 %v8288, %v8287
      %v8299 = vpack.c.b16 %v8290, %v8289
      %v8300 = vpack.c.b16 %v8292, %v8291
      %8309 = vmatpush.bf16.msra.mxu0 %v8300
      %8310 = vmatpush.bf16.msra.mxu0 %v8299
      %8311 = vmatpush.bf16.msra.mxu0 %v8298
      %8312 = vmatpush.bf16.msra.mxu0 %v8297
      %8313 = vmatpush.bf16.msra.mxu0 %v8296
      %8314 = vmatpush.bf16.msra.mxu0 %v8295
      %8315 = vmatpush.bf16.msra.mxu0 %v8294
      %8316 = vmatpush.bf16.msra.mxu0 %v8293
      %8317 = vmatmul.bf16.gmra.mxu0 %v8229
      %v8318 = vpop.f32.mrf.mxu0
      %v8319 = vadd.f32 0.0, %v8318
      %v8320 = vpop.f32.mrf.mxu0
      %v8321 = vadd.f32 0.0, %v8320
      %8322 = vmatmul.bf16.gmra.mxu0 %v8230
      %v8323 = vpop.f32.mrf.mxu0
      %v8324 = vadd.f32 0.0, %v8323
      %v8325 = vpop.f32.mrf.mxu0
      %v8326 = vadd.f32 0.0, %v8325
      %8327 = vmatmul.bf16.gmra.mxu0 %v8231
      %v8328 = vpop.f32.mrf.mxu0
      %v8329 = vadd.f32 0.0, %v8328
      %v8330 = vpop.f32.mrf.mxu0
      %v8331 = vadd.f32 0.0, %v8330
      %8332 = vmatmul.bf16.gmra.mxu0 %v8232
      %v8333 = vpop.f32.mrf.mxu0
      %v8334 = vadd.f32 0.0, %v8333
      %v8335 = vpop.f32.mrf.mxu0
      %v8336 = vadd.f32 0.0, %v8335
      %8337 = vmatmul.bf16.gmra.mxu0 %v8233
      %v8338 = vpop.f32.mrf.mxu0
      %v8339 = vadd.f32 0.0, %v8338
      %v8340 = vpop.f32.mrf.mxu0
      %v8341 = vadd.f32 0.0, %v8340
      %8342 = vmatmul.bf16.gmra.mxu0 %v8234
      %v8343 = vpop.f32.mrf.mxu0
      %v8344 = vadd.f32 0.0, %v8343
      %v8345 = vpop.f32.mrf.mxu0
      %v8346 = vadd.f32 0.0, %v8345
      %8347 = vmatmul.bf16.gmra.mxu0 %v8235
      %v8348 = vpop.f32.mrf.mxu0
      %v8349 = vadd.f32 0.0, %v8348
      %v8350 = vpop.f32.mrf.mxu0
      %v8351 = vadd.f32 0.0, %v8350
      %8352 = vmatmul.bf16.gmra.mxu0 %v8236
      %v8353 = vpop.f32.mrf.mxu0
      %v8354 = vadd.f32 0.0, %v8353
      %v8355 = vpop.f32.mrf.mxu0
      %v8356 = vadd.f32 0.0, %v8355
      %8357 = vmatmul.bf16.gmra.mxu0 %v8237
      %v8358 = vpop.f32.mrf.mxu0
      %v8359 = vadd.f32 0.0, %v8358
      %v8360 = vpop.f32.mrf.mxu0
      %v8361 = vadd.f32 0.0, %v8360
      %8362 = vmatmul.bf16.gmra.mxu0 %v8238
      %v8363 = vpop.f32.mrf.mxu0
      %v8364 = vadd.f32 0.0, %v8363
      %v8365 = vpop.f32.mrf.mxu0
      %v8366 = vadd.f32 0.0, %v8365
      %8367 = vmatmul.bf16.gmra.mxu0 %v8239
      %v8368 = vpop.f32.mrf.mxu0
      %v8369 = vadd.f32 0.0, %v8368
      %v8370 = vpop.f32.mrf.mxu0
      %v8371 = vadd.f32 0.0, %v8370
      %8372 = vmatmul.bf16.gmra.mxu0 %v8240
      %v8373 = vpop.f32.mrf.mxu0
      %v8374 = vadd.f32 0.0, %v8373
      %v8375 = vpop.f32.mrf.mxu0
      %v8376 = vadd.f32 0.0, %v8375
      %8377 = vmatmul.bf16.gmra.mxu0 %v8241
      %v8378 = vpop.f32.mrf.mxu0
      %v8379 = vadd.f32 0.0, %v8378
      %v8380 = vpop.f32.mrf.mxu0
      %v8381 = vadd.f32 0.0, %v8380
      %8382 = vmatmul.bf16.gmra.mxu0 %v8242
      %v8383 = vpop.f32.mrf.mxu0
      %v8384 = vadd.f32 0.0, %v8383
      %v8385 = vpop.f32.mrf.mxu0
      %v8386 = vadd.f32 0.0, %v8385
      %8387 = vmatmul.bf16.gmra.mxu0 %v8243
      %v8388 = vpop.f32.mrf.mxu0
      %v8389 = vadd.f32 0.0, %v8388
      %v8390 = vpop.f32.mrf.mxu0
      %v8391 = vadd.f32 0.0, %v8390
      %8392 = vmatmul.bf16.gmra.mxu0 %v8244
      %v8393 = vpop.f32.mrf.mxu0
      %v8394 = vadd.f32 0.0, %v8393
      %v8395 = vpop.f32.mrf.mxu0
      %v8396 = vadd.f32 0.0, %v8395
      %8397 = vdwg.mxu0
      %v8398 = vld [vmem:[%s8] sm:$0x1]
      %v8400 = vperm.slane %v8398, 0
      %v8402 = vmul.f32 %v8319, %v8400
      %v8403 = vmul.f32 %v8321, %v8400
      %v8404 = vmul.f32 %v8324, %v8400
      %v8405 = vmul.f32 %v8326, %v8400
      %v8406 = vmul.f32 %v8329, %v8400
      %v8407 = vmul.f32 %v8331, %v8400
      %v8408 = vmul.f32 %v8334, %v8400
      %v8409 = vmul.f32 %v8336, %v8400
      %v8410 = vmul.f32 %v8339, %v8400
      %v8411 = vmul.f32 %v8341, %v8400
      %v8412 = vmul.f32 %v8344, %v8400
      %v8413 = vmul.f32 %v8346, %v8400
      %v8414 = vmul.f32 %v8349, %v8400
      %v8415 = vmul.f32 %v8351, %v8400
      %v8416 = vmul.f32 %v8354, %v8400
      %v8417 = vmul.f32 %v8356, %v8400
      %v8418 = vmul.f32 %v8359, %v8400
      %v8419 = vmul.f32 %v8361, %v8400
      %v8420 = vmul.f32 %v8364, %v8400
      %v8421 = vmul.f32 %v8366, %v8400
      %v8422 = vmul.f32 %v8369, %v8400
      %v8423 = vmul.f32 %v8371, %v8400
      %v8424 = vmul.f32 %v8374, %v8400
      %v8425 = vmul.f32 %v8376, %v8400
      %v8426 = vmul.f32 %v8379, %v8400
      %v8427 = vmul.f32 %v8381, %v8400
      %v8428 = vmul.f32 %v8384, %v8400
      %v8429 = vmul.f32 %v8386, %v8400
      %v8430 = vmul.f32 %v8389, %v8400
      %v8431 = vmul.f32 %v8391, %v8400
      %v8432 = vmul.f32 %v8394, %v8400
      %v8433 = vmul.f32 %v8396, %v8400
      %v8434 = vld [vmem:[%s9] sm:$0x1]
      %v8436 = vperm.slane %v8434, 0
      %v8438 = vadd.f32 %v8402, %v8436
      %v8439 = vadd.f32 %v8403, %v8436
      %v8440 = vadd.f32 %v8404, %v8436
      %v8441 = vadd.f32 %v8405, %v8436
      %v8442 = vadd.f32 %v8406, %v8436
      %v8443 = vadd.f32 %v8407, %v8436
      %v8444 = vadd.f32 %v8408, %v8436
      %v8445 = vadd.f32 %v8409, %v8436
      %v8446 = vadd.f32 %v8410, %v8436
      %v8447 = vadd.f32 %v8411, %v8436
      %v8448 = vadd.f32 %v8412, %v8436
      %v8449 = vadd.f32 %v8413, %v8436
      %v8450 = vadd.f32 %v8414, %v8436
      %v8451 = vadd.f32 %v8415, %v8436
      %v8452 = vadd.f32 %v8416, %v8436
      %v8453 = vadd.f32 %v8417, %v8436
      %v8454 = vadd.f32 %v8418, %v8436
      %v8455 = vadd.f32 %v8419, %v8436
      %v8456 = vadd.f32 %v8420, %v8436
      %v8457 = vadd.f32 %v8421, %v8436
      %v8458 = vadd.f32 %v8422, %v8436
      %v8459 = vadd.f32 %v8423, %v8436
      %v8460 = vadd.f32 %v8424, %v8436
      %v8461 = vadd.f32 %v8425, %v8436
      %v8462 = vadd.f32 %v8426, %v8436
      %v8463 = vadd.f32 %v8427, %v8436
      %v8464 = vadd.f32 %v8428, %v8436
      %v8465 = vadd.f32 %v8429, %v8436
      %v8466 = vadd.f32 %v8430, %v8436
      %v8467 = vadd.f32 %v8431, %v8436
      %v8468 = vadd.f32 %v8432, %v8436
      %v8469 = vadd.f32 %v8433, %v8436
      %v8470 = vadd.f32 %v7712, %v8438
      %v8471 = vadd.f32 %v7713, %v8439
      %v8472 = vadd.f32 %v7714, %v8440
      %v8473 = vadd.f32 %v7715, %v8441
      %v8474 = vadd.f32 %v7716, %v8442
      %v8475 = vadd.f32 %v7717, %v8443
      %v8476 = vadd.f32 %v7718, %v8444
      %v8477 = vadd.f32 %v7719, %v8445
      %v8478 = vadd.f32 %v7720, %v8446
      %v8479 = vadd.f32 %v7721, %v8447
      %v8480 = vadd.f32 %v7722, %v8448
      %v8481 = vadd.f32 %v7723, %v8449
      %v8482 = vadd.f32 %v7724, %v8450
      %v8483 = vadd.f32 %v7725, %v8451
      %v8484 = vadd.f32 %v7726, %v8452
      %v8485 = vadd.f32 %v7727, %v8453
      %v8486 = vadd.f32 %v7728, %v8454
      %v8487 = vadd.f32 %v7729, %v8455
      %v8488 = vadd.f32 %v7730, %v8456
      %v8489 = vadd.f32 %v7731, %v8457
      %v8490 = vadd.f32 %v7732, %v8458
      %v8491 = vadd.f32 %v7733, %v8459
      %v8492 = vadd.f32 %v7734, %v8460
      %v8493 = vadd.f32 %v7735, %v8461
      %v8494 = vadd.f32 %v7736, %v8462
      %v8495 = vadd.f32 %v7737, %v8463
      %v8496 = vadd.f32 %v7738, %v8464
      %v8497 = vadd.f32 %v7739, %v8465
      %v8498 = vadd.f32 %v7740, %v8466
      %v8499 = vadd.f32 %v7741, %v8467
      %v8500 = vadd.f32 %v7742, %v8468
      %v8501 = vadd.f32 %v7743, %v8469
      %v8502 = vpack.c.bf16 %v8470, %v8470
      %v8503 = vpack.c.bf16 %v8471, %v8471
      %v8504 = vpack.c.bf16 %v8472, %v8472
      %v8505 = vpack.c.bf16 %v8473, %v8473
      %v8506 = vpack.c.bf16 %v8474, %v8474
      %v8507 = vpack.c.bf16 %v8475, %v8475
      %v8508 = vpack.c.bf16 %v8476, %v8476
      %v8509 = vpack.c.bf16 %v8477, %v8477
      %v8510 = vpack.c.bf16 %v8478, %v8478
      %v8511 = vpack.c.bf16 %v8479, %v8479
      %v8512 = vpack.c.bf16 %v8480, %v8480
      %v8513 = vpack.c.bf16 %v8481, %v8481
      %v8514 = vpack.c.bf16 %v8482, %v8482
      %v8515 = vpack.c.bf16 %v8483, %v8483
      %v8516 = vpack.c.bf16 %v8484, %v8484
      %v8517 = vpack.c.bf16 %v8485, %v8485
      %v8518 = vpack.c.bf16 %v8486, %v8486
      %v8519 = vpack.c.bf16 %v8487, %v8487
      %v8520 = vpack.c.bf16 %v8488, %v8488
      %v8521 = vpack.c.bf16 %v8489, %v8489
      %v8522 = vpack.c.bf16 %v8490, %v8490
      %v8523 = vpack.c.bf16 %v8491, %v8491
      %v8524 = vpack.c.bf16 %v8492, %v8492
      %v8525 = vpack.c.bf16 %v8493, %v8493
      %v8526 = vpack.c.bf16 %v8494, %v8494
      %v8527 = vpack.c.bf16 %v8495, %v8495
      %v8528 = vpack.c.bf16 %v8496, %v8496
      %v8529 = vpack.c.bf16 %v8497, %v8497
      %v8530 = vpack.c.bf16 %v8498, %v8498
      %v8531 = vpack.c.bf16 %v8499, %v8499
      %v8532 = vpack.c.bf16 %v8500, %v8500
      %v8533 = vpack.c.bf16 %v8501, %v8501
      %8534 = vst [vmem:[%s381] sm:$0xf] %v8502
      %8535 = vst [vmem:[%s381 + $0x4] sm:$0xf] %v8503
      %8536 = vst [vmem:[%s381 + $0x8] sm:$0xf] %v8504
      %8537 = vst [vmem:[%s381 + $0xc] sm:$0xf] %v8505
      %8538 = vst [vmem:[%s381 + $0x10] sm:$0xf] %v8506
      %8539 = vst [vmem:[%s381 + $0x14] sm:$0xf] %v8507
      %8540 = vst [vmem:[%s381 + $0x18] sm:$0xf] %v8508
      %8541 = vst [vmem:[%s381 + $0x1c] sm:$0xf] %v8509
      %8542 = vst [vmem:[%s381 + $0x20] sm:$0xf] %v8510
      %8543 = vst [vmem:[%s381 + $0x24] sm:$0xf] %v8511
      %8544 = vst [vmem:[%s381 + $0x28] sm:$0xf] %v8512
      %8545 = vst [vmem:[%s381 + $0x2c] sm:$0xf] %v8513
      %8546 = vst [vmem:[%s381 + $0x30] sm:$0xf] %v8514
      %8547 = vst [vmem:[%s381 + $0x34] sm:$0xf] %v8515
      %8548 = vst [vmem:[%s381 + $0x38] sm:$0xf] %v8516
      %8549 = vst [vmem:[%s381 + $0x3c] sm:$0xf] %v8517
      %8550 = vst [vmem:[%s381 + $0x40] sm:$0xf] %v8518
      %8551 = vst [vmem:[%s381 + $0x44] sm:$0xf] %v8519
      %8552 = vst [vmem:[%s381 + $0x48] sm:$0xf] %v8520
      %8553 = vst [vmem:[%s381 + $0x4c] sm:$0xf] %v8521
      %8554 = vst [vmem:[%s381 + $0x50] sm:$0xf] %v8522
      %8555 = vst [vmem:[%s381 + $0x54] sm:$0xf] %v8523
      %8556 = vst [vmem:[%s381 + $0x58] sm:$0xf] %v8524
      %8557 = vst [vmem:[%s381 + $0x5c] sm:$0xf] %v8525
      %8558 = vst [vmem:[%s381 + $0x60] sm:$0xf] %v8526
      %8559 = vst [vmem:[%s381 + $0x64] sm:$0xf] %v8527
      %8560 = vst [vmem:[%s381 + $0x68] sm:$0xf] %v8528
      %8561 = vst [vmem:[%s381 + $0x6c] sm:$0xf] %v8529
      %8562 = vst [vmem:[%s381 + $0x70] sm:$0xf] %v8530
      %8563 = vst [vmem:[%s381 + $0x74] sm:$0xf] %v8531
      %8564 = vst [vmem:[%s381 + $0x78] sm:$0xf] %v8532
      %8565 = vst [vmem:[%s381 + $0x7c] sm:$0xf] %v8533
      %s8566 = smul.u32 32, %s26
      %p8567 = scmp.lt.s32.totalorder %s25, 1
      %s8568 = scalar_select %p8567, %s25, 1
      %p8569 = scmp.lt.s32.totalorder %s8566, 31
      %s8570 = scalar_select %p8569, %s8566, 31
      %s8571 = smul.addr %s8568, 32
      %s8572 = sadd.s32 %s8570, %s8571
      %s8573 = smul.addr %s8572, 4
      %s8574 = scalar_lea.vmem %s10, %s8573
      // Predicated region
      $region65: #{double_conv_forward.1} parent=59 // pred_check
        %p8575 = pneg %p268
      $region66: #{double_conv_forward.1} parent=59 // pred_check_branch
        %8577 = sbr.rel (%p8575) target = $region68
      $region67: #{double_conv_forward.1} parent=59 // pred_region
        %s8578 = smul.u32 32, %s26
      $region68: #{double_conv_forward.1} parent=59 // pred_fallthru
        _
    $region60: #{double_conv_forward.1} parent=5 // pred_fallthru
      _
    %p8579 = scmp.le.s32.totalorder 2, %s16
    // Predicated region
    $region69: #{double_conv_forward.1} parent=5 // pred_check
      %p8580 = pneg %p8579
    $region70: #{double_conv_forward.1} parent=5 // pred_check_branch
      %8582 = sbr.rel (%p8580) target = $region72
    $region71: #{double_conv_forward.1} parent=5 // pred_region
      %s8583 = ssub.s32 %s16, 2
      // Predicated region
      $region73: #{double_conv_forward.1} parent=71 // pred_check
        %p8584 = pneg %p274
      $region74: #{double_conv_forward.1} parent=71 // pred_check_branch
        %8586 = sbr.rel (%p8584) target = $region76
      $region75: #{double_conv_forward.1} parent=71 // pred_region
        %s8587 = smul.u32 32, %s28
        %p8588 = scmp.lt.s32.totalorder %s27, 1
        %s8589 = scalar_select %p8588, %s27, 1
        %p8590 = scmp.lt.s32.totalorder %s8587, 31
        %s8591 = scalar_select %p8590, %s8587, 31
        %s8592 = smul.addr %s8589, 32
        %s8593 = sadd.s32 %s8591, %s8592
        %s8594 = smul.addr %s8593, 4
        %s8595 = scalar_lea.vmem %s10, %s8594
      $region76: #{double_conv_forward.1} parent=71 // pred_fallthru
        _
    $region72: #{double_conv_forward.1} parent=5 // pred_fallthru
      _
  $region6: #{double_conv_forward.1} parent=0 // loop_footer
    %s20 = sadd.s32 1, %s16
  $region7: #{double_conv_forward.1} parent=0 // loop_footer_branch
    %15 = sbr.rel target = $region3
  $region8: #{double_conv_forward.1} parent=0 // loop_exit
    _

</llo_original>
